<compile_context>
chip_gen: v7x
topology: tpu7x:2x2x1
jax: 0.10.0
libtpu: 0.0.40
codegen_flags: <defaults>
</compile_context>

<pallas_src>
import functools

import jax
import jax.numpy as jnp
from jax import lax
from jax.experimental import pallas as pl


# ---------------------------------------------------------------------------
# Pallas kernels (single full-array block, everything in VMEM)
# ---------------------------------------------------------------------------

def _matmul_bias_act_kernel(x_ref, w_ref, b_ref, o_ref, *, relu):
    """o = act(x @ w + b); x:(M,K), w:(K,N), b:(1,N), o:(M,N)."""
    acc = jnp.dot(x_ref[...], w_ref[...], preferred_element_type=jnp.float32)
    acc = acc + b_ref[...]
    if relu:
        acc = jnp.maximum(acc, 0.0)
    o_ref[...] = acc.astype(o_ref.dtype)


def _relu_linear_kernel(x_ref, w_ref, b_ref, o_ref):
    """Head: Linear(Dropout(ReLU(x))); Dropout is identity in eval mode."""
    x = jnp.maximum(x_ref[...], 0.0)
    acc = jnp.dot(x, w_ref[...], preferred_element_type=jnp.float32) + b_ref[...]
    o_ref[...] = acc.astype(o_ref.dtype)


def _pallas_matmul(kernel, x, w, b2, *, extra_flops=0):
    m, k = x.shape
    _, n = w.shape
    return pl.pallas_call(
        kernel,
        out_shape=jax.ShapeDtypeStruct((m, n), x.dtype),
        cost_estimate=pl.CostEstimate(
            flops=2 * m * k * n + m * n + extra_flops,
            transcendentals=0,
            bytes_accessed=4 * (m * k + k * n + n + m * n),
        ),
    )(x, w, b2)


# ---------------------------------------------------------------------------
# Wrappers (use_pallas=False gives a pure-XLA reference path for verification)
# ---------------------------------------------------------------------------

def matmul_bias_act(x, w, b, *, relu, use_pallas):
    b2 = b.reshape(1, -1).astype(x.dtype)
    if use_pallas:
        return _pallas_matmul(
            functools.partial(_matmul_bias_act_kernel, relu=relu), x, w, b2)
    y = jnp.dot(x, w, preferred_element_type=jnp.float32) + b2
    return jnp.maximum(y, 0.0) if relu else y


def head_relu_linear(feats, w, b, *, use_pallas):
    b2 = b.reshape(1, -1).astype(feats.dtype)
    if use_pallas:
        return _pallas_matmul(_relu_linear_kernel, feats, w, b2,
                              extra_flops=feats.size)
    return jnp.dot(jnp.maximum(feats, 0.0), w,
                   preferred_element_type=jnp.float32) + b2


def conv2d(x, w_mat, b, *, k, stride, pad, relu, use_pallas):
    """NHWC conv as im2col + Pallas matmul.

    w_mat: (k*k*Cin, Cout), flattened in (kh, kw, Cin) order matching the patch
    extraction below (weights are randomly initialized, so the ordering simply
    defines the conv filters).
    """
    n, h, wdim, c = x.shape
    if pad:
        x = jnp.pad(x, ((0, 0), (pad, pad), (pad, pad), (0, 0)))
        h += 2 * pad
        wdim += 2 * pad
    ho = (h - k) // stride + 1
    wo = (wdim - k) // stride + 1
    if k == 1 and stride == 1:
        cols = x.reshape(n * ho * wo, c)
    else:
        patches = [
            x[:, di:di + stride * ho:stride, dj:dj + stride * wo:stride, :]
            for di in range(k) for dj in range(k)
        ]
        cols = jnp.concatenate(patches, axis=-1).reshape(n * ho * wo, k * k * c)
    y = matmul_bias_act(cols, w_mat, b, relu=relu, use_pallas=use_pallas)
    return y.reshape(n, ho, wo, w_mat.shape[1])


def maxpool2d_ceil(x, k=3, s=2):
    """MaxPool2d(kernel_size=3, stride=2, ceil_mode=True), PyTorch semantics."""
    n, h, w, c = x.shape
    ho = -(-(h - k) // s) + 1
    wo = -(-(w - k) // s) + 1
    if (ho - 1) * s >= h:
        ho -= 1
    if (wo - 1) * s >= w:
        wo -= 1
    pad_h = max(0, (ho - 1) * s + k - h)
    pad_w = max(0, (wo - 1) * s + k - w)
    return lax.reduce_window(
        x, -jnp.inf, lax.max,
        window_dimensions=(1, k, k, 1),
        window_strides=(1, s, s, 1),
        padding=((0, 0), (0, pad_h), (0, pad_w), (0, 0)),
    )


def fire(x, p, *, use_pallas):
    s = conv2d(x, p["sq_w"], p["sq_b"], k=1, stride=1, pad=0, relu=True,
               use_pallas=use_pallas)
    e1 = conv2d(s, p["e1_w"], p["e1_b"], k=1, stride=1, pad=0, relu=True,
                use_pallas=use_pallas)
    e3 = conv2d(s, p["e3_w"], p["e3_b"], k=3, stride=1, pad=1, relu=True,
                use_pallas=use_pallas)
    return jnp.concatenate([e1, e3], axis=-1)


# ---------------------------------------------------------------------------
# Parameters (squeezenet1_1 architecture, random init — see TODO above)
# ---------------------------------------------------------------------------

_FIRE_CFG = [
    (64, 16, 64, 64), (128, 16, 64, 64),
    (128, 32, 128, 128), (256, 32, 128, 128),
    (256, 48, 192, 192), (384, 48, 192, 192),
    (384, 64, 256, 256), (512, 64, 256, 256),
]


def init_params(key):
    keys = iter(jax.random.split(key, 64))

    def conv_p(cin, cout, k):
        fan_in = k * k * cin
        kw, kb = jax.random.split(next(keys))
        w = jax.random.normal(kw, (fan_in, cout), jnp.float32) * (2.0 / fan_in) ** 0.5
        bound = 1.0 / (fan_in ** 0.5)
        b = jax.random.uniform(kb, (cout,), jnp.float32, -bound, bound)
        return w, b

    params = {"conv1": conv_p(3, 64, 3)}
    fires = []
    for cin, sq, e1, e3 in _FIRE_CFG:
        sq_w, sq_b = conv_p(cin, sq, 1)
        e1_w, e1_b = conv_p(sq, e1, 1)
        e3_w, e3_b = conv_p(sq, e3, 3)
        fires.append(dict(sq_w=sq_w, sq_b=sq_b, e1_w=e1_w, e1_b=e1_b,
                          e3_w=e3_w, e3_b=e3_b))
    params["fires"] = fires
    params["cls"] = conv_p(512, 1000, 1)
    kw, kb = jax.random.split(next(keys))
    bound = 1.0 / (1000 ** 0.5)
    params["head"] = (jax.random.uniform(kw, (1000, 1), jnp.float32, -bound, bound),
                      jax.random.uniform(kb, (1,), jnp.float32, -bound, bound))
    return params


# ---------------------------------------------------------------------------
# Full forward: model(images.squeeze()).squeeze()
# ---------------------------------------------------------------------------

@functools.partial(jax.jit, static_argnames=("use_pallas",))
def squeezenet2d_forward(images, params, use_pallas=True):
    x = jnp.squeeze(images)                        # images.squeeze()
    x = jnp.transpose(x, (0, 2, 3, 1))             # NCHW -> NHWC (lane-dense channels)

    # --- squeezenet1_1.features ---
    w, b = params["conv1"]
    x = conv2d(x, w, b, k=3, stride=2, pad=0, relu=True, use_pallas=use_pallas)
    x = maxpool2d_ceil(x)
    x = fire(x, params["fires"][0], use_pallas=use_pallas)
    x = fire(x, params["fires"][1], use_pallas=use_pallas)
    x = maxpool2d_ceil(x)
    x = fire(x, params["fires"][2], use_pallas=use_pallas)
    x = fire(x, params["fires"][3], use_pallas=use_pallas)
    x = maxpool2d_ceil(x)
    for i in range(4, 8):
        x = fire(x, params["fires"][i], use_pallas=use_pallas)

    # --- squeezenet1_1.classifier: Dropout(eval) -> Conv1x1(512,1000) -> ReLU -> AvgPool(1) ---
    w, b = params["cls"]
    x = conv2d(x, w, b, k=1, stride=1, pad=0, relu=True, use_pallas=use_pallas)
    feats = jnp.mean(x, axis=(1, 2))               # (N, 1000)

    # --- SqueezeNet2d head: ReLU -> Dropout(eval) -> Linear(1000, 1) ---
    hw, hb = params["head"]
    out = head_relu_linear(feats, hw, hb, use_pallas=use_pallas)  # (N, 1)
    return jnp.squeeze(out)                        # final .squeeze()


if __name__ == "__main__":
    key = jax.random.PRNGKey(0)
    pkey, xkey = jax.random.split(key)
    params = init_params(pkey)

    # batch=2, channels=3 (required by squeezenet1_1 conv1), spatial 64x64 — the
    # smallest convenient size that survives the network's four stride-2 stages.
    images = jax.random.normal(xkey, (2, 3, 64, 64), dtype=jnp.float32)

    out = jax.block_until_ready(squeezenet2d_forward(images, params, use_pallas=True))
    ref = jax.block_until_ready(squeezenet2d_forward(images, params, use_pallas=False))

    assert out.shape == (2,) and out.dtype == jnp.float32
    err = float(jnp.max(jnp.abs(out - ref)))
    scale = float(jnp.max(jnp.abs(ref))) + 1e-6
    assert err <= 0.2 * scale + 1e-3, f"Pallas/XLA mismatch: err={err}, scale={scale}"
    print("KERNEL_OK")
</pallas_src>

<mosaic_0001>
module attributes {stable_mosaic.version = 11 : i64} {
  func.func @_matmul_bias_act_kernel(%arg0: memref<1922x27xf32, #tpu.memory_space<vmem>>, %arg1: memref<27x64xf32, #tpu.memory_space<vmem>>, %arg2: memref<1x64xf32, #tpu.memory_space<vmem>>, %arg3: memref<1922x64xf32, #tpu.memory_space<vmem>>) attributes {dimension_semantics = [], scalar_prefetch = 0 : i64, scratch_operands = 0 : i64, tpu.core_type = #tpu.core_type<tc>} {
    %c0 = arith.constant 0 : index
    %c0_0 = arith.constant 0 : index
    %0 = vector.load %arg0[%c0, %c0_0] : memref<1922x27xf32, #tpu.memory_space<vmem>>, vector<1922x27xf32>
    %c0_1 = arith.constant 0 : index
    %c0_2 = arith.constant 0 : index
    %1 = vector.load %arg1[%c0_1, %c0_2] : memref<27x64xf32, #tpu.memory_space<vmem>>, vector<27x64xf32>
    %cst = arith.constant dense<0.000000e+00> : vector<1922x64xf32>
    %2 = tpu.matmul %0, %1, %cst {dimension_numbers = #tpu.dot_dimension_numbers<[1], [0], [0], [1], [0, 0, 1, 1], [], []>} : vector<1922x27xf32>, vector<27x64xf32>, vector<1922x64xf32> -> vector<1922x64xf32>
    %c0_3 = arith.constant 0 : index
    %c0_4 = arith.constant 0 : index
    %3 = vector.load %arg2[%c0_3, %c0_4] : memref<1x64xf32, #tpu.memory_space<vmem>>, vector<1x64xf32>
    %4 = vector.broadcast %3 : vector<1x64xf32> to vector<1922x64xf32>
    %5 = arith.addf %2, %4 : vector<1922x64xf32>
    %cst_5 = arith.constant 0.000000e+00 : f32
    %6 = vector.broadcast %cst_5 : f32 to vector<1922x64xf32>
    %7 = arith.maximumf %5, %6 : vector<1922x64xf32>
    %c0_6 = arith.constant 0 : index
    %c0_7 = arith.constant 0 : index
    %8 = vector.load %arg3[%c0_6, %c0_7] : memref<1922x64xf32, #tpu.memory_space<vmem>>, vector<1922x64xf32>
    tpu.vector_store %arg3[%c0_6, %c0_7], %7 {strides = array<i32>} : memref<1922x64xf32, #tpu.memory_space<vmem>>, vector<1922x64xf32>,
    return
  }
}

module attributes {stable_mosaic.version = 11 : i64} {
  func.func @_matmul_bias_act_kernel(%arg0: memref<450x64xf32, #tpu.memory_space<vmem>>, %arg1: memref<64x16xf32, #tpu.memory_space<vmem>>, %arg2: memref<1x16xf32, #tpu.memory_space<vmem>>, %arg3: memref<450x16xf32, #tpu.memory_space<vmem>>) attributes {dimension_semantics = [], scalar_prefetch = 0 : i64, scratch_operands = 0 : i64, tpu.core_type = #tpu.core_type<tc>} {
    %c0 = arith.constant 0 : index
    %c0_0 = arith.constant 0 : index
    %0 = vector.load %arg0[%c0, %c0_0] : memref<450x64xf32, #tpu.memory_space<vmem>>, vector<450x64xf32>
    %c0_1 = arith.constant 0 : index
    %c0_2 = arith.constant 0 : index
    %1 = vector.load %arg1[%c0_1, %c0_2] : memref<64x16xf32, #tpu.memory_space<vmem>>, vector<64x16xf32>
    %cst = arith.constant dense<0.000000e+00> : vector<450x16xf32>
    %2 = tpu.matmul %0, %1, %cst {dimension_numbers = #tpu.dot_dimension_numbers<[1], [0], [0], [1], [0, 0, 1, 1], [], []>} : vector<450x64xf32>, vector<64x16xf32>, vector<450x16xf32> -> vector<450x16xf32>
    %c0_3 = arith.constant 0 : index
    %c0_4 = arith.constant 0 : index
    %3 = vector.load %arg2[%c0_3, %c0_4] : memref<1x16xf32, #tpu.memory_space<vmem>>, vector<1x16xf32>
    %4 = vector.broadcast %3 : vector<1x16xf32> to vector<450x16xf32>
    %5 = arith.addf %2, %4 : vector<450x16xf32>
    %cst_5 = arith.constant 0.000000e+00 : f32
    %6 = vector.broadcast %cst_5 : f32 to vector<450x16xf32>
    %7 = arith.maximumf %5, %6 : vector<450x16xf32>
    %c0_6 = arith.constant 0 : index
    %c0_7 = arith.constant 0 : index
    %8 = vector.load %arg3[%c0_6, %c0_7] : memref<450x16xf32, #tpu.memory_space<vmem>>, vector<450x16xf32>
    tpu.vector_store %arg3[%c0_6, %c0_7], %7 {strides = array<i32>} : memref<450x16xf32, #tpu.memory_space<vmem>>, vector<450x16xf32>,
    return
  }
}

module attributes {stable_mosaic.version = 11 : i64} {
  func.func @_matmul_bias_act_kernel(%arg0: memref<450x144xf32, #tpu.memory_space<vmem>>, %arg1: memref<144x64xf32, #tpu.memory_space<vmem>>, %arg2: memref<1x64xf32, #tpu.memory_space<vmem>>, %arg3: memref<450x64xf32, #tpu.memory_space<vmem>>) attributes {dimension_semantics = [], scalar_prefetch = 0 : i64, scratch_operands = 0 : i64, tpu.core_type = #tpu.core_type<tc>} {
    %c0 = arith.constant 0 : index
    %c0_0 = arith.constant 0 : index
    %0 = vector.load %arg0[%c0, %c0_0] : memref<450x144xf32, #tpu.memory_space<vmem>>, vector<450x144xf32>
    %c0_1 = arith.constant 0 : index
    %c0_2 = arith.constant 0 : index
    %1 = vector.load %arg1[%c0_1, %c0_2] : memref<144x64xf32, #tpu.memory_space<vmem>>, vector<144x64xf32>
    %cst = arith.constant dense<0.000000e+00> : vector<450x64xf32>
    %2 = tpu.matmul %0, %1, %cst {dimension_numbers = #tpu.dot_dimension_numbers<[1], [0], [0], [1], [0, 0, 1, 1], [], []>} : vector<450x144xf32>, vector<144x64xf32>, vector<450x64xf32> -> vector<450x64xf32>
    %c0_3 = arith.constant 0 : index
    %c0_4 = arith.constant 0 : index
    %3 = vector.load %arg2[%c0_3, %c0_4] : memref<1x64xf32, #tpu.memory_space<vmem>>, vector<1x64xf32>
    %4 = vector.broadcast %3 : vector<1x64xf32> to vector<450x64xf32>
    %5 = arith.addf %2, %4 : vector<450x64xf32>
    %cst_5 = arith.constant 0.000000e+00 : f32
    %6 = vector.broadcast %cst_5 : f32 to vector<450x64xf32>
    %7 = arith.maximumf %5, %6 : vector<450x64xf32>
    %c0_6 = arith.constant 0 : index
    %c0_7 = arith.constant 0 : index
    %8 = vector.load %arg3[%c0_6, %c0_7] : memref<450x64xf32, #tpu.memory_space<vmem>>, vector<450x64xf32>
    tpu.vector_store %arg3[%c0_6, %c0_7], %7 {strides = array<i32>} : memref<450x64xf32, #tpu.memory_space<vmem>>, vector<450x64xf32>,
    return
  }
}

module attributes {stable_mosaic.version = 11 : i64} {
  func.func @_matmul_bias_act_kernel(%arg0: memref<450x16xf32, #tpu.memory_space<vmem>>, %arg1: memref<16x64xf32, #tpu.memory_space<vmem>>, %arg2: memref<1x64xf32, #tpu.memory_space<vmem>>, %arg3: memref<450x64xf32, #tpu.memory_space<vmem>>) attributes {dimension_semantics = [], scalar_prefetch = 0 : i64, scratch_operands = 0 : i64, tpu.core_type = #tpu.core_type<tc>} {
    %c0 = arith.constant 0 : index
    %c0_0 = arith.constant 0 : index
    %0 = vector.load %arg0[%c0, %c0_0] : memref<450x16xf32, #tpu.memory_space<vmem>>, vector<450x16xf32>
    %c0_1 = arith.constant 0 : index
    %c0_2 = arith.constant 0 : index
    %1 = vector.load %arg1[%c0_1, %c0_2] : memref<16x64xf32, #tpu.memory_space<vmem>>, vector<16x64xf32>
    %cst = arith.constant dense<0.000000e+00> : vector<450x64xf32>
    %2 = tpu.matmul %0, %1, %cst {dimension_numbers = #tpu.dot_dimension_numbers<[1], [0], [0], [1], [0, 0, 1, 1], [], []>} : vector<450x16xf32>, vector<16x64xf32>, vector<450x64xf32> -> vector<450x64xf32>
    %c0_3 = arith.constant 0 : index
    %c0_4 = arith.constant 0 : index
    %3 = vector.load %arg2[%c0_3, %c0_4] : memref<1x64xf32, #tpu.memory_space<vmem>>, vector<1x64xf32>
    %4 = vector.broadcast %3 : vector<1x64xf32> to vector<450x64xf32>
    %5 = arith.addf %2, %4 : vector<450x64xf32>
    %cst_5 = arith.constant 0.000000e+00 : f32
    %6 = vector.broadcast %cst_5 : f32 to vector<450x64xf32>
    %7 = arith.maximumf %5, %6 : vector<450x64xf32>
    %c0_6 = arith.constant 0 : index
    %c0_7 = arith.constant 0 : index
    %8 = vector.load %arg3[%c0_6, %c0_7] : memref<450x64xf32, #tpu.memory_space<vmem>>, vector<450x64xf32>
    tpu.vector_store %arg3[%c0_6, %c0_7], %7 {strides = array<i32>} : memref<450x64xf32, #tpu.memory_space<vmem>>, vector<450x64xf32>,
    return
  }
}

module attributes {stable_mosaic.version = 11 : i64} {
  func.func @_matmul_bias_act_kernel(%arg0: memref<450x128xf32, #tpu.memory_space<vmem>>, %arg1: memref<128x16xf32, #tpu.memory_space<vmem>>, %arg2: memref<1x16xf32, #tpu.memory_space<vmem>>, %arg3: memref<450x16xf32, #tpu.memory_space<vmem>>) attributes {dimension_semantics = [], scalar_prefetch = 0 : i64, scratch_operands = 0 : i64, tpu.core_type = #tpu.core_type<tc>} {
    %c0 = arith.constant 0 : index
    %c0_0 = arith.constant 0 : index
    %0 = vector.load %arg0[%c0, %c0_0] : memref<450x128xf32, #tpu.memory_space<vmem>>, vector<450x128xf32>
    %c0_1 = arith.constant 0 : index
    %c0_2 = arith.constant 0 : index
    %1 = vector.load %arg1[%c0_1, %c0_2] : memref<128x16xf32, #tpu.memory_space<vmem>>, vector<128x16xf32>
    %cst = arith.constant dense<0.000000e+00> : vector<450x16xf32>
    %2 = tpu.matmul %0, %1, %cst {dimension_numbers = #tpu.dot_dimension_numbers<[1], [0], [0], [1], [0, 0, 1, 1], [], []>} : vector<450x128xf32>, vector<128x16xf32>, vector<450x16xf32> -> vector<450x16xf32>
    %c0_3 = arith.constant 0 : index
    %c0_4 = arith.constant 0 : index
    %3 = vector.load %arg2[%c0_3, %c0_4] : memref<1x16xf32, #tpu.memory_space<vmem>>, vector<1x16xf32>
    %4 = vector.broadcast %3 : vector<1x16xf32> to vector<450x16xf32>
    %5 = arith.addf %2, %4 : vector<450x16xf32>
    %cst_5 = arith.constant 0.000000e+00 : f32
    %6 = vector.broadcast %cst_5 : f32 to vector<450x16xf32>
    %7 = arith.maximumf %5, %6 : vector<450x16xf32>
    %c0_6 = arith.constant 0 : index
    %c0_7 = arith.constant 0 : index
    %8 = vector.load %arg3[%c0_6, %c0_7] : memref<450x16xf32, #tpu.memory_space<vmem>>, vector<450x16xf32>
    tpu.vector_store %arg3[%c0_6, %c0_7], %7 {strides = array<i32>} : memref<450x16xf32, #tpu.memory_space<vmem>>, vector<450x16xf32>,
    return
  }
}

module attributes {stable_mosaic.version = 11 : i64} {
  func.func @_matmul_bias_act_kernel(%arg0: memref<98x128xf32, #tpu.memory_space<vmem>>, %arg1: memref<128x32xf32, #tpu.memory_space<vmem>>, %arg2: memref<1x32xf32, #tpu.memory_space<vmem>>, %arg3: memref<98x32xf32, #tpu.memory_space<vmem>>) attributes {dimension_semantics = [], scalar_prefetch = 0 : i64, scratch_operands = 0 : i64, tpu.core_type = #tpu.core_type<tc>} {
    %c0 = arith.constant 0 : index
    %c0_0 = arith.constant 0 : index
    %0 = vector.load %arg0[%c0, %c0_0] : memref<98x128xf32, #tpu.memory_space<vmem>>, vector<98x128xf32>
    %c0_1 = arith.constant 0 : index
    %c0_2 = arith.constant 0 : index
    %1 = vector.load %arg1[%c0_1, %c0_2] : memref<128x32xf32, #tpu.memory_space<vmem>>, vector<128x32xf32>
    %cst = arith.constant dense<0.000000e+00> : vector<98x32xf32>
    %2 = tpu.matmul %0, %1, %cst {dimension_numbers = #tpu.dot_dimension_numbers<[1], [0], [0], [1], [0, 0, 1, 1], [], []>} : vector<98x128xf32>, vector<128x32xf32>, vector<98x32xf32> -> vector<98x32xf32>
    %c0_3 = arith.constant 0 : index
    %c0_4 = arith.constant 0 : index
    %3 = vector.load %arg2[%c0_3, %c0_4] : memref<1x32xf32, #tpu.memory_space<vmem>>, vector<1x32xf32>
    %4 = vector.broadcast %3 : vector<1x32xf32> to vector<98x32xf32>
    %5 = arith.addf %2, %4 : vector<98x32xf32>
    %cst_5 = arith.constant 0.000000e+00 : f32
    %6 = vector.broadcast %cst_5 : f32 to vector<98x32xf32>
    %7 = arith.maximumf %5, %6 : vector<98x32xf32>
    %c0_6 = arith.constant 0 : index
    %c0_7 = arith.constant 0 : index
    %8 = vector.load %arg3[%c0_6, %c0_7] : memref<98x32xf32, #tpu.memory_space<vmem>>, vector<98x32xf32>
    tpu.vector_store %arg3[%c0_6, %c0_7], %7 {strides = array<i32>} : memref<98x32xf32, #tpu.memory_space<vmem>>, vector<98x32xf32>,
    return
  }
}

module attributes {stable_mosaic.version = 11 : i64} {
  func.func @_matmul_bias_act_kernel(%arg0: memref<98x288xf32, #tpu.memory_space<vmem>>, %arg1: memref<288x128xf32, #tpu.memory_space<vmem>>, %arg2: memref<1x128xf32, #tpu.memory_space<vmem>>, %arg3: memref<98x128xf32, #tpu.memory_space<vmem>>) attributes {dimension_semantics = [], scalar_prefetch = 0 : i64, scratch_operands = 0 : i64, tpu.core_type = #tpu.core_type<tc>} {
    %c0 = arith.constant 0 : index
    %c0_0 = arith.constant 0 : index
    %0 = vector.load %arg0[%c0, %c0_0] : memref<98x288xf32, #tpu.memory_space<vmem>>, vector<98x288xf32>
    %c0_1 = arith.constant 0 : index
    %c0_2 = arith.constant 0 : index
    %1 = vector.load %arg1[%c0_1, %c0_2] : memref<288x128xf32, #tpu.memory_space<vmem>>, vector<288x128xf32>
    %cst = arith.constant dense<0.000000e+00> : vector<98x128xf32>
    %2 = tpu.matmul %0, %1, %cst {dimension_numbers = #tpu.dot_dimension_numbers<[1], [0], [0], [1], [0, 0, 1, 1], [], []>} : vector<98x288xf32>, vector<288x128xf32>, vector<98x128xf32> -> vector<98x128xf32>
    %c0_3 = arith.constant 0 : index
    %c0_4 = arith.constant 0 : index
    %3 = vector.load %arg2[%c0_3, %c0_4] : memref<1x128xf32, #tpu.memory_space<vmem>>, vector<1x128xf32>
    %4 = vector.broadcast %3 : vector<1x128xf32> to vector<98x128xf32>
    %5 = arith.addf %2, %4 : vector<98x128xf32>
    %cst_5 = arith.constant 0.000000e+00 : f32
    %6 = vector.broadcast %cst_5 : f32 to vector<98x128xf32>
    %7 = arith.maximumf %5, %6 : vector<98x128xf32>
    %c0_6 = arith.constant 0 : index
    %c0_7 = arith.constant 0 : index
    %8 = vector.load %arg3[%c0_6, %c0_7] : memref<98x128xf32, #tpu.memory_space<vmem>>, vector<98x128xf32>
    tpu.vector_store %arg3[%c0_6, %c0_7], %7 {strides = array<i32>} : memref<98x128xf32, #tpu.memory_space<vmem>>, vector<98x128xf32>,
    return
  }
}

module attributes {stable_mosaic.version = 11 : i64} {
  func.func @_matmul_bias_act_kernel(%arg0: memref<98x256xf32, #tpu.memory_space<vmem>>, %arg1: memref<256x32xf32, #tpu.memory_space<vmem>>, %arg2: memref<1x32xf32, #tpu.memory_space<vmem>>, %arg3: memref<98x32xf32, #tpu.memory_space<vmem>>) attributes {dimension_semantics = [], scalar_prefetch = 0 : i64, scratch_operands = 0 : i64, tpu.core_type = #tpu.core_type<tc>} {
    %c0 = arith.constant 0 : index
    %c0_0 = arith.constant 0 : index
    %0 = vector.load %arg0[%c0, %c0_0] : memref<98x256xf32, #tpu.memory_space<vmem>>, vector<98x256xf32>
    %c0_1 = arith.constant 0 : index
    %c0_2 = arith.constant 0 : index
    %1 = vector.load %arg1[%c0_1, %c0_2] : memref<256x32xf32, #tpu.memory_space<vmem>>, vector<256x32xf32>
    %cst = arith.constant dense<0.000000e+00> : vector<98x32xf32>
    %2 = tpu.matmul %0, %1, %cst {dimension_numbers = #tpu.dot_dimension_numbers<[1], [0], [0], [1], [0, 0, 1, 1], [], []>} : vector<98x256xf32>, vector<256x32xf32>, vector<98x32xf32> -> vector<98x32xf32>
    %c0_3 = arith.constant 0 : index
    %c0_4 = arith.constant 0 : index
    %3 = vector.load %arg2[%c0_3, %c0_4] : memref<1x32xf32, #tpu.memory_space<vmem>>, vector<1x32xf32>
    %4 = vector.broadcast %3 : vector<1x32xf32> to vector<98x32xf32>
    %5 = arith.addf %2, %4 : vector<98x32xf32>
    %cst_5 = arith.constant 0.000000e+00 : f32
    %6 = vector.broadcast %cst_5 : f32 to vector<98x32xf32>
    %7 = arith.maximumf %5, %6 : vector<98x32xf32>
    %c0_6 = arith.constant 0 : index
    %c0_7 = arith.constant 0 : index
    %8 = vector.load %arg3[%c0_6, %c0_7] : memref<98x32xf32, #tpu.memory_space<vmem>>, vector<98x32xf32>
    tpu.vector_store %arg3[%c0_6, %c0_7], %7 {strides = array<i32>} : memref<98x32xf32, #tpu.memory_space<vmem>>, vector<98x32xf32>,
    return
  }
}

module attributes {stable_mosaic.version = 11 : i64} {
  func.func @_matmul_bias_act_kernel(%arg0: memref<98x32xf32, #tpu.memory_space<vmem>>, %arg1: memref<32x128xf32, #tpu.memory_space<vmem>>, %arg2: memref<1x128xf32, #tpu.memory_space<vmem>>, %arg3: memref<98x128xf32, #tpu.memory_space<vmem>>) attributes {dimension_semantics = [], scalar_prefetch = 0 : i64, scratch_operands = 0 : i64, tpu.core_type = #tpu.core_type<tc>} {
    %c0 = arith.constant 0 : index
    %c0_0 = arith.constant 0 : index
    %0 = vector.load %arg0[%c0, %c0_0] : memref<98x32xf32, #tpu.memory_space<vmem>>, vector<98x32xf32>
    %c0_1 = arith.constant 0 : index
    %c0_2 = arith.constant 0 : index
    %1 = vector.load %arg1[%c0_1, %c0_2] : memref<32x128xf32, #tpu.memory_space<vmem>>, vector<32x128xf32>
    %cst = arith.constant dense<0.000000e+00> : vector<98x128xf32>
    %2 = tpu.matmul %0, %1, %cst {dimension_numbers = #tpu.dot_dimension_numbers<[1], [0], [0], [1], [0, 0, 1, 1], [], []>} : vector<98x32xf32>, vector<32x128xf32>, vector<98x128xf32> -> vector<98x128xf32>
    %c0_3 = arith.constant 0 : index
    %c0_4 = arith.constant 0 : index
    %3 = vector.load %arg2[%c0_3, %c0_4] : memref<1x128xf32, #tpu.memory_space<vmem>>, vector<1x128xf32>
    %4 = vector.broadcast %3 : vector<1x128xf32> to vector<98x128xf32>
    %5 = arith.addf %2, %4 : vector<98x128xf32>
    %cst_5 = arith.constant 0.000000e+00 : f32
    %6 = vector.broadcast %cst_5 : f32 to vector<98x128xf32>
    %7 = arith.maximumf %5, %6 : vector<98x128xf32>
    %c0_6 = arith.constant 0 : index
    %c0_7 = arith.constant 0 : index
    %8 = vector.load %arg3[%c0_6, %c0_7] : memref<98x128xf32, #tpu.memory_space<vmem>>, vector<98x128xf32>
    tpu.vector_store %arg3[%c0_6, %c0_7], %7 {strides = array<i32>} : memref<98x128xf32, #tpu.memory_space<vmem>>, vector<98x128xf32>,
    return
  }
}

module attributes {stable_mosaic.version = 11 : i64} {
  func.func @_matmul_bias_act_kernel(%arg0: memref<18x256xf32, #tpu.memory_space<vmem>>, %arg1: memref<256x48xf32, #tpu.memory_space<vmem>>, %arg2: memref<1x48xf32, #tpu.memory_space<vmem>>, %arg3: memref<18x48xf32, #tpu.memory_space<vmem>>) attributes {dimension_semantics = [], scalar_prefetch = 0 : i64, scratch_operands = 0 : i64, tpu.core_type = #tpu.core_type<tc>} {
    %c0 = arith.constant 0 : index
    %c0_0 = arith.constant 0 : index
    %0 = vector.load %arg0[%c0, %c0_0] : memref<18x256xf32, #tpu.memory_space<vmem>>, vector<18x256xf32>
    %c0_1 = arith.constant 0 : index
    %c0_2 = arith.constant 0 : index
    %1 = vector.load %arg1[%c0_1, %c0_2] : memref<256x48xf32, #tpu.memory_space<vmem>>, vector<256x48xf32>
    %cst = arith.constant dense<0.000000e+00> : vector<18x48xf32>
    %2 = tpu.matmul %0, %1, %cst {dimension_numbers = #tpu.dot_dimension_numbers<[1], [0], [0], [1], [0, 0, 1, 1], [], []>} : vector<18x256xf32>, vector<256x48xf32>, vector<18x48xf32> -> vector<18x48xf32>
    %c0_3 = arith.constant 0 : index
    %c0_4 = arith.constant 0 : index
    %3 = vector.load %arg2[%c0_3, %c0_4] : memref<1x48xf32, #tpu.memory_space<vmem>>, vector<1x48xf32>
    %4 = vector.broadcast %3 : vector<1x48xf32> to vector<18x48xf32>
    %5 = arith.addf %2, %4 : vector<18x48xf32>
    %cst_5 = arith.constant 0.000000e+00 : f32
    %6 = vector.broadcast %cst_5 : f32 to vector<18x48xf32>
    %7 = arith.maximumf %5, %6 : vector<18x48xf32>
    %c0_6 = arith.constant 0 : index
    %c0_7 = arith.constant 0 : index
    %8 = vector.load %arg3[%c0_6, %c0_7] : memref<18x48xf32, #tpu.memory_space<vmem>>, vector<18x48xf32>
    tpu.vector_store %arg3[%c0_6, %c0_7], %7 {strides = array<i32>} : memref<18x48xf32, #tpu.memory_space<vmem>>, vector<18x48xf32>,
    return
  }
}

module attributes {stable_mosaic.version = 11 : i64} {
  func.func @_matmul_bias_act_kernel(%arg0: memref<18x432xf32, #tpu.memory_space<vmem>>, %arg1: memref<432x192xf32, #tpu.memory_space<vmem>>, %arg2: memref<1x192xf32, #tpu.memory_space<vmem>>, %arg3: memref<18x192xf32, #tpu.memory_space<vmem>>) attributes {dimension_semantics = [], scalar_prefetch = 0 : i64, scratch_operands = 0 : i64, tpu.core_type = #tpu.core_type<tc>} {
    %c0 = arith.constant 0 : index
    %c0_0 = arith.constant 0 : index
    %0 = vector.load %arg0[%c0, %c0_0] : memref<18x432xf32, #tpu.memory_space<vmem>>, vector<18x432xf32>
    %c0_1 = arith.constant 0 : index
    %c0_2 = arith.constant 0 : index
    %1 = vector.load %arg1[%c0_1, %c0_2] : memref<432x192xf32, #tpu.memory_space<vmem>>, vector<432x192xf32>
    %cst = arith.constant dense<0.000000e+00> : vector<18x192xf32>
    %2 = tpu.matmul %0, %1, %cst {dimension_numbers = #tpu.dot_dimension_numbers<[1], [0], [0], [1], [0, 0, 1, 1], [], []>} : vector<18x432xf32>, vector<432x192xf32>, vector<18x192xf32> -> vector<18x192xf32>
    %c0_3 = arith.constant 0 : index
    %c0_4 = arith.constant 0 : index
    %3 = vector.load %arg2[%c0_3, %c0_4] : memref<1x192xf32, #tpu.memory_space<vmem>>, vector<1x192xf32>
    %4 = vector.broadcast %3 : vector<1x192xf32> to vector<18x192xf32>
    %5 = arith.addf %2, %4 : vector<18x192xf32>
    %cst_5 = arith.constant 0.000000e+00 : f32
    %6 = vector.broadcast %cst_5 : f32 to vector<18x192xf32>
    %7 = arith.maximumf %5, %6 : vector<18x192xf32>
    %c0_6 = arith.constant 0 : index
    %c0_7 = arith.constant 0 : index
    %8 = vector.load %arg3[%c0_6, %c0_7] : memref<18x192xf32, #tpu.memory_space<vmem>>, vector<18x192xf32>
    tpu.vector_store %arg3[%c0_6, %c0_7], %7 {strides = array<i32>} : memref<18x192xf32, #tpu.memory_space<vmem>>, vector<18x192xf32>,
    return
  }
}

module attributes {stable_mosaic.version = 11 : i64} {
  func.func @_matmul_bias_act_kernel(%arg0: memref<18x48xf32, #tpu.memory_space<vmem>>, %arg1: memref<48x192xf32, #tpu.memory_space<vmem>>, %arg2: memref<1x192xf32, #tpu.memory_space<vmem>>, %arg3: memref<18x192xf32, #tpu.memory_space<vmem>>) attributes {dimension_semantics = [], scalar_prefetch = 0 : i64, scratch_operands = 0 : i64, tpu.core_type = #tpu.core_type<tc>} {
    %c0 = arith.constant 0 : index
    %c0_0 = arith.constant 0 : index
    %0 = vector.load %arg0[%c0, %c0_0] : memref<18x48xf32, #tpu.memory_space<vmem>>, vector<18x48xf32>
    %c0_1 = arith.constant 0 : index
    %c0_2 = arith.constant 0 : index
    %1 = vector.load %arg1[%c0_1, %c0_2] : memref<48x192xf32, #tpu.memory_space<vmem>>, vector<48x192xf32>
    %cst = arith.constant dense<0.000000e+00> : vector<18x192xf32>
    %2 = tpu.matmul %0, %1, %cst {dimension_numbers = #tpu.dot_dimension_numbers<[1], [0], [0], [1], [0, 0, 1, 1], [], []>} : vector<18x48xf32>, vector<48x192xf32>, vector<18x192xf32> -> vector<18x192xf32>
    %c0_3 = arith.constant 0 : index
    %c0_4 = arith.constant 0 : index
    %3 = vector.load %arg2[%c0_3, %c0_4] : memref<1x192xf32, #tpu.memory_space<vmem>>, vector<1x192xf32>
    %4 = vector.broadcast %3 : vector<1x192xf32> to vector<18x192xf32>
    %5 = arith.addf %2, %4 : vector<18x192xf32>
    %cst_5 = arith.constant 0.000000e+00 : f32
    %6 = vector.broadcast %cst_5 : f32 to vector<18x192xf32>
    %7 = arith.maximumf %5, %6 : vector<18x192xf32>
    %c0_6 = arith.constant 0 : index
    %c0_7 = arith.constant 0 : index
    %8 = vector.load %arg3[%c0_6, %c0_7] : memref<18x192xf32, #tpu.memory_space<vmem>>, vector<18x192xf32>
    tpu.vector_store %arg3[%c0_6, %c0_7], %7 {strides = array<i32>} : memref<18x192xf32, #tpu.memory_space<vmem>>, vector<18x192xf32>,
    return
  }
}

module attributes {stable_mosaic.version = 11 : i64} {
  func.func @_matmul_bias_act_kernel(%arg0: memref<18x384xf32, #tpu.memory_space<vmem>>, %arg1: memref<384x48xf32, #tpu.memory_space<vmem>>, %arg2: memref<1x48xf32, #tpu.memory_space<vmem>>, %arg3: memref<18x48xf32, #tpu.memory_space<vmem>>) attributes {dimension_semantics = [], scalar_prefetch = 0 : i64, scratch_operands = 0 : i64, tpu.core_type = #tpu.core_type<tc>} {
    %c0 = arith.constant 0 : index
    %c0_0 = arith.constant 0 : index
    %0 = vector.load %arg0[%c0, %c0_0] : memref<18x384xf32, #tpu.memory_space<vmem>>, vector<18x384xf32>
    %c0_1 = arith.constant 0 : index
    %c0_2 = arith.constant 0 : index
    %1 = vector.load %arg1[%c0_1, %c0_2] : memref<384x48xf32, #tpu.memory_space<vmem>>, vector<384x48xf32>
    %cst = arith.constant dense<0.000000e+00> : vector<18x48xf32>
    %2 = tpu.matmul %0, %1, %cst {dimension_numbers = #tpu.dot_dimension_numbers<[1], [0], [0], [1], [0, 0, 1, 1], [], []>} : vector<18x384xf32>, vector<384x48xf32>, vector<18x48xf32> -> vector<18x48xf32>
    %c0_3 = arith.constant 0 : index
    %c0_4 = arith.constant 0 : index
    %3 = vector.load %arg2[%c0_3, %c0_4] : memref<1x48xf32, #tpu.memory_space<vmem>>, vector<1x48xf32>
    %4 = vector.broadcast %3 : vector<1x48xf32> to vector<18x48xf32>
    %5 = arith.addf %2, %4 : vector<18x48xf32>
    %cst_5 = arith.constant 0.000000e+00 : f32
    %6 = vector.broadcast %cst_5 : f32 to vector<18x48xf32>
    %7 = arith.maximumf %5, %6 : vector<18x48xf32>
    %c0_6 = arith.constant 0 : index
    %c0_7 = arith.constant 0 : index
    %8 = vector.load %arg3[%c0_6, %c0_7] : memref<18x48xf32, #tpu.memory_space<vmem>>, vector<18x48xf32>
    tpu.vector_store %arg3[%c0_6, %c0_7], %7 {strides = array<i32>} : memref<18x48xf32, #tpu.memory_space<vmem>>, vector<18x48xf32>,
    return
  }
}

module attributes {stable_mosaic.version = 11 : i64} {
  func.func @_matmul_bias_act_kernel(%arg0: memref<18x384xf32, #tpu.memory_space<vmem>>, %arg1: memref<384x64xf32, #tpu.memory_space<vmem>>, %arg2: memref<1x64xf32, #tpu.memory_space<vmem>>, %arg3: memref<18x64xf32, #tpu.memory_space<vmem>>) attributes {dimension_semantics = [], scalar_prefetch = 0 : i64, scratch_operands = 0 : i64, tpu.core_type = #tpu.core_type<tc>} {
    %c0 = arith.constant 0 : index
    %c0_0 = arith.constant 0 : index
    %0 = vector.load %arg0[%c0, %c0_0] : memref<18x384xf32, #tpu.memory_space<vmem>>, vector<18x384xf32>
    %c0_1 = arith.constant 0 : index
    %c0_2 = arith.constant 0 : index
    %1 = vector.load %arg1[%c0_1, %c0_2] : memref<384x64xf32, #tpu.memory_space<vmem>>, vector<384x64xf32>
    %cst = arith.constant dense<0.000000e+00> : vector<18x64xf32>
    %2 = tpu.matmul %0, %1, %cst {dimension_numbers = #tpu.dot_dimension_numbers<[1], [0], [0], [1], [0, 0, 1, 1], [], []>} : vector<18x384xf32>, vector<384x64xf32>, vector<18x64xf32> -> vector<18x64xf32>
    %c0_3 = arith.constant 0 : index
    %c0_4 = arith.constant 0 : index
    %3 = vector.load %arg2[%c0_3, %c0_4] : memref<1x64xf32, #tpu.memory_space<vmem>>, vector<1x64xf32>
    %4 = vector.broadcast %3 : vector<1x64xf32> to vector<18x64xf32>
    %5 = arith.addf %2, %4 : vector<18x64xf32>
    %cst_5 = arith.constant 0.000000e+00 : f32
    %6 = vector.broadcast %cst_5 : f32 to vector<18x64xf32>
    %7 = arith.maximumf %5, %6 : vector<18x64xf32>
    %c0_6 = arith.constant 0 : index
    %c0_7 = arith.constant 0 : index
    %8 = vector.load %arg3[%c0_6, %c0_7] : memref<18x64xf32, #tpu.memory_space<vmem>>, vector<18x64xf32>
    tpu.vector_store %arg3[%c0_6, %c0_7], %7 {strides = array<i32>} : memref<18x64xf32, #tpu.memory_space<vmem>>, vector<18x64xf32>,
    return
  }
}

module attributes {stable_mosaic.version = 11 : i64} {
  func.func @_matmul_bias_act_kernel(%arg0: memref<18x576xf32, #tpu.memory_space<vmem>>, %arg1: memref<576x256xf32, #tpu.memory_space<vmem>>, %arg2: memref<1x256xf32, #tpu.memory_space<vmem>>, %arg3: memref<18x256xf32, #tpu.memory_space<vmem>>) attributes {dimension_semantics = [], scalar_prefetch = 0 : i64, scratch_operands = 0 : i64, tpu.core_type = #tpu.core_type<tc>} {
    %c0 = arith.constant 0 : index
    %c0_0 = arith.constant 0 : index
    %0 = vector.load %arg0[%c0, %c0_0] : memref<18x576xf32, #tpu.memory_space<vmem>>, vector<18x576xf32>
    %c0_1 = arith.constant 0 : index
    %c0_2 = arith.constant 0 : index
    %1 = vector.load %arg1[%c0_1, %c0_2] : memref<576x256xf32, #tpu.memory_space<vmem>>, vector<576x256xf32>
    %cst = arith.constant dense<0.000000e+00> : vector<18x256xf32>
    %2 = tpu.matmul %0, %1, %cst {dimension_numbers = #tpu.dot_dimension_numbers<[1], [0], [0], [1], [0, 0, 1, 1], [], []>} : vector<18x576xf32>, vector<576x256xf32>, vector<18x256xf32> -> vector<18x256xf32>
    %c0_3 = arith.constant 0 : index
    %c0_4 = arith.constant 0 : index
    %3 = vector.load %arg2[%c0_3, %c0_4] : memref<1x256xf32, #tpu.memory_space<vmem>>, vector<1x256xf32>
    %4 = vector.broadcast %3 : vector<1x256xf32> to vector<18x256xf32>
    %5 = arith.addf %2, %4 : vector<18x256xf32>
    %cst_5 = arith.constant 0.000000e+00 : f32
    %6 = vector.broadcast %cst_5 : f32 to vector<18x256xf32>
    %7 = arith.maximumf %5, %6 : vector<18x256xf32>
    %c0_6 = arith.constant 0 : index
    %c0_7 = arith.constant 0 : index
    %8 = vector.load %arg3[%c0_6, %c0_7] : memref<18x256xf32, #tpu.memory_space<vmem>>, vector<18x256xf32>
    tpu.vector_store %arg3[%c0_6, %c0_7], %7 {strides = array<i32>} : memref<18x256xf32, #tpu.memory_space<vmem>>, vector<18x256xf32>,
    return
  }
}

module attributes {stable_mosaic.version = 11 : i64} {
  func.func @_matmul_bias_act_kernel(%arg0: memref<18x64xf32, #tpu.memory_space<vmem>>, %arg1: memref<64x256xf32, #tpu.memory_space<vmem>>, %arg2: memref<1x256xf32, #tpu.memory_space<vmem>>, %arg3: memref<18x256xf32, #tpu.memory_space<vmem>>) attributes {dimension_semantics = [], scalar_prefetch = 0 : i64, scratch_operands = 0 : i64, tpu.core_type = #tpu.core_type<tc>} {
    %c0 = arith.constant 0 : index
    %c0_0 = arith.constant 0 : index
    %0 = vector.load %arg0[%c0, %c0_0] : memref<18x64xf32, #tpu.memory_space<vmem>>, vector<18x64xf32>
    %c0_1 = arith.constant 0 : index
    %c0_2 = arith.constant 0 : index
    %1 = vector.load %arg1[%c0_1, %c0_2] : memref<64x256xf32, #tpu.memory_space<vmem>>, vector<64x256xf32>
    %cst = arith.constant dense<0.000000e+00> : vector<18x256xf32>
    %2 = tpu.matmul %0, %1, %cst {dimension_numbers = #tpu.dot_dimension_numbers<[1], [0], [0], [1], [0, 0, 1, 1], [], []>} : vector<18x64xf32>, vector<64x256xf32>, vector<18x256xf32> -> vector<18x256xf32>
    %c0_3 = arith.constant 0 : index
    %c0_4 = arith.constant 0 : index
    %3 = vector.load %arg2[%c0_3, %c0_4] : memref<1x256xf32, #tpu.memory_space<vmem>>, vector<1x256xf32>
    %4 = vector.broadcast %3 : vector<1x256xf32> to vector<18x256xf32>
    %5 = arith.addf %2, %4 : vector<18x256xf32>
    %cst_5 = arith.constant 0.000000e+00 : f32
    %6 = vector.broadcast %cst_5 : f32 to vector<18x256xf32>
    %7 = arith.maximumf %5, %6 : vector<18x256xf32>
    %c0_6 = arith.constant 0 : index
    %c0_7 = arith.constant 0 : index
    %8 = vector.load %arg3[%c0_6, %c0_7] : memref<18x256xf32, #tpu.memory_space<vmem>>, vector<18x256xf32>
    tpu.vector_store %arg3[%c0_6, %c0_7], %7 {strides = array<i32>} : memref<18x256xf32, #tpu.memory_space<vmem>>, vector<18x256xf32>,
    return
  }
}

module attributes {stable_mosaic.version = 11 : i64} {
  func.func @_matmul_bias_act_kernel(%arg0: memref<18x512xf32, #tpu.memory_space<vmem>>, %arg1: memref<512x64xf32, #tpu.memory_space<vmem>>, %arg2: memref<1x64xf32, #tpu.memory_space<vmem>>, %arg3: memref<18x64xf32, #tpu.memory_space<vmem>>) attributes {dimension_semantics = [], scalar_prefetch = 0 : i64, scratch_operands = 0 : i64, tpu.core_type = #tpu.core_type<tc>} {
    %c0 = arith.constant 0 : index
    %c0_0 = arith.constant 0 : index
    %0 = vector.load %arg0[%c0, %c0_0] : memref<18x512xf32, #tpu.memory_space<vmem>>, vector<18x512xf32>
    %c0_1 = arith.constant 0 : index
    %c0_2 = arith.constant 0 : index
    %1 = vector.load %arg1[%c0_1, %c0_2] : memref<512x64xf32, #tpu.memory_space<vmem>>, vector<512x64xf32>
    %cst = arith.constant dense<0.000000e+00> : vector<18x64xf32>
    %2 = tpu.matmul %0, %1, %cst {dimension_numbers = #tpu.dot_dimension_numbers<[1], [0], [0], [1], [0, 0, 1, 1], [], []>} : vector<18x512xf32>, vector<512x64xf32>, vector<18x64xf32> -> vector<18x64xf32>
    %c0_3 = arith.constant 0 : index
    %c0_4 = arith.constant 0 : index
    %3 = vector.load %arg2[%c0_3, %c0_4] : memref<1x64xf32, #tpu.memory_space<vmem>>, vector<1x64xf32>
    %4 = vector.broadcast %3 : vector<1x64xf32> to vector<18x64xf32>
    %5 = arith.addf %2, %4 : vector<18x64xf32>
    %cst_5 = arith.constant 0.000000e+00 : f32
    %6 = vector.broadcast %cst_5 : f32 to vector<18x64xf32>
    %7 = arith.maximumf %5, %6 : vector<18x64xf32>
    %c0_6 = arith.constant 0 : index
    %c0_7 = arith.constant 0 : index
    %8 = vector.load %arg3[%c0_6, %c0_7] : memref<18x64xf32, #tpu.memory_space<vmem>>, vector<18x64xf32>
    tpu.vector_store %arg3[%c0_6, %c0_7], %7 {strides = array<i32>} : memref<18x64xf32, #tpu.memory_space<vmem>>, vector<18x64xf32>,
    return
  }
}

module attributes {stable_mosaic.version = 11 : i64} {
  func.func @_matmul_bias_act_kernel(%arg0: memref<18x512xf32, #tpu.memory_space<vmem>>, %arg1: memref<512x1000xf32, #tpu.memory_space<vmem>>, %arg2: memref<1x1000xf32, #tpu.memory_space<vmem>>, %arg3: memref<18x1000xf32, #tpu.memory_space<vmem>>) attributes {dimension_semantics = [], scalar_prefetch = 0 : i64, scratch_operands = 0 : i64, tpu.core_type = #tpu.core_type<tc>} {
    %c0 = arith.constant 0 : index
    %c0_0 = arith.constant 0 : index
    %0 = vector.load %arg0[%c0, %c0_0] : memref<18x512xf32, #tpu.memory_space<vmem>>, vector<18x512xf32>
    %c0_1 = arith.constant 0 : index
    %c0_2 = arith.constant 0 : index
    %1 = vector.load %arg1[%c0_1, %c0_2] : memref<512x1000xf32, #tpu.memory_space<vmem>>, vector<512x1000xf32>
    %cst = arith.constant dense<0.000000e+00> : vector<18x1000xf32>
    %2 = tpu.matmul %0, %1, %cst {dimension_numbers = #tpu.dot_dimension_numbers<[1], [0], [0], [1], [0, 0, 1, 1], [], []>} : vector<18x512xf32>, vector<512x1000xf32>, vector<18x1000xf32> -> vector<18x1000xf32>
    %c0_3 = arith.constant 0 : index
    %c0_4 = arith.constant 0 : index
    %3 = vector.load %arg2[%c0_3, %c0_4] : memref<1x1000xf32, #tpu.memory_space<vmem>>, vector<1x1000xf32>
    %4 = vector.broadcast %3 : vector<1x1000xf32> to vector<18x1000xf32>
    %5 = arith.addf %2, %4 : vector<18x1000xf32>
    %cst_5 = arith.constant 0.000000e+00 : f32
    %6 = vector.broadcast %cst_5 : f32 to vector<18x1000xf32>
    %7 = arith.maximumf %5, %6 : vector<18x1000xf32>
    %c0_6 = arith.constant 0 : index
    %c0_7 = arith.constant 0 : index
    %8 = vector.load %arg3[%c0_6, %c0_7] : memref<18x1000xf32, #tpu.memory_space<vmem>>, vector<18x1000xf32>
    tpu.vector_store %arg3[%c0_6, %c0_7], %7 {strides = array<i32>} : memref<18x1000xf32, #tpu.memory_space<vmem>>, vector<18x1000xf32>,
    return
  }
}

module attributes {stable_mosaic.version = 11 : i64} {
  func.func @_relu_linear_kernel(%arg0: memref<2x1000xf32, #tpu.memory_space<vmem>>, %arg1: memref<1000x1xf32, #tpu.memory_space<vmem>>, %arg2: memref<1x1xf32, #tpu.memory_space<vmem>>, %arg3: memref<2x1xf32, #tpu.memory_space<vmem>>) attributes {dimension_semantics = [], scalar_prefetch = 0 : i64, scratch_operands = 0 : i64, tpu.core_type = #tpu.core_type<tc>} {
    %c0 = arith.constant 0 : index
    %c0_0 = arith.constant 0 : index
    %0 = vector.load %arg0[%c0, %c0_0] : memref<2x1000xf32, #tpu.memory_space<vmem>>, vector<2x1000xf32>
    %cst = arith.constant 0.000000e+00 : f32
    %1 = vector.broadcast %cst : f32 to vector<2x1000xf32>
    %2 = arith.maximumf %0, %1 : vector<2x1000xf32>
    %c0_1 = arith.constant 0 : index
    %c0_2 = arith.constant 0 : index
    %3 = vector.load %arg1[%c0_1, %c0_2] : memref<1000x1xf32, #tpu.memory_space<vmem>>, vector<1000x1xf32>
    %cst_3 = arith.constant dense<0.000000e+00> : vector<2x1xf32>
    %4 = tpu.matmul %2, %3, %cst_3 {dimension_numbers = #tpu.dot_dimension_numbers<[1], [0], [0], [1], [0, 0, 1, 1], [], []>} : vector<2x1000xf32>, vector<1000x1xf32>, vector<2x1xf32> -> vector<2x1xf32>
    %c0_4 = arith.constant 0 : index
    %c0_5 = arith.constant 0 : index
    %5 = vector.load %arg2[%c0_4, %c0_5] : memref<1x1xf32, #tpu.memory_space<vmem>>, vector<1x1xf32>
    %6 = vector.broadcast %5 : vector<1x1xf32> to vector<2x1xf32>
    %7 = arith.addf %4, %6 : vector<2x1xf32>
    %c0_6 = arith.constant 0 : index
    %c0_7 = arith.constant 0 : index
    %8 = vector.load %arg3[%c0_6, %c0_7] : memref<2x1xf32, #tpu.memory_space<vmem>>, vector<2x1xf32>
    tpu.vector_store %arg3[%c0_6, %c0_7], %7 {strides = array<i32>} : memref<2x1xf32, #tpu.memory_space<vmem>>, vector<2x1xf32>,
    return
  }
}

</mosaic_0001>

<llo_original>
// kernel: squeezenet2d_forward.27
$region0: #{squeezenet2d_forward.27}
  #allocation0 [shape = 'u32[]', space=smem, size = 0x4, offset = 0x4, fixed_abs, tag = 'smem constant byte address 0x4 - core index']
  #allocation1 [shape = 'u32[144,128]{1,0:T(1,128)}', space=vmem, size = 0x12000, scoped, tag = 'internal scratch']
  %s0 = inlined_call_operand.vmem [shape: f32[1922,27], index: 0, kind: input, shape index: {}]
  %s1 = inlined_call_operand.vmem [shape: f32[27,64], index: 1, kind: input, shape index: {}]
  %s2 = inlined_call_operand.vmem [shape: f32[1,64], index: 2, kind: input, shape index: {}]
  %s3 = inlined_call_operand.vmem [shape: f32[1922,64], index: 3, kind: output, shape index: {}]
  %s4 = sld [smem:[#allocation0]]
  $region22: #{squeezenet2d_forward.27} parent=0
    _
  %s6 = ssub.s32 1, %s4
  %s7 = scalar_select 0, %s6, %s4
  // Predicated region
  $region2: #{squeezenet2d_forward.27} parent=0 // pred_check
    _
  $region3: #{squeezenet2d_forward.27} parent=0 // pred_check_branch
    %9 = sbr.rel (0) target = $region5
  $region4: #{squeezenet2d_forward.27} parent=0 // pred_region
    _
  $region5: #{squeezenet2d_forward.27} parent=0 // pred_fallthru
    _
  // Predicated region
  $region6: #{squeezenet2d_forward.27} parent=0 // pred_check
    _
  $region7: #{squeezenet2d_forward.27} parent=0 // pred_check_branch
    %11 = sbr.rel (0) target = $region9
  $region8: #{squeezenet2d_forward.27} parent=0 // pred_region
    _
  $region9: #{squeezenet2d_forward.27} parent=0 // pred_fallthru
    _
  // Predicated region
  $region10: #{squeezenet2d_forward.27} parent=0 // pred_check
    _
  $region11: #{squeezenet2d_forward.27} parent=0 // pred_check_branch
    %13 = sbr.rel (0) target = $region13
  $region12: #{squeezenet2d_forward.27} parent=0 // pred_region
    _
  $region13: #{squeezenet2d_forward.27} parent=0 // pred_fallthru
    _
  %v14 = vld [vmem:[%s0] sm:$0xff]
  %v15 = vld [vmem:[%s0 + $0x8] sm:$0xff]
  %v16 = vld [vmem:[%s0 + $0x10] sm:$0xff]
  %v17 = vld [vmem:[%s0 + $0x18] sm:$0xff]
  %v18 = vld [vmem:[%s0 + $0x20] sm:$0xff]
  %v19 = vld [vmem:[%s0 + $0x28] sm:$0xff]
  %v20 = vld [vmem:[%s0 + $0x30] sm:$0xff]
  %v21 = vld [vmem:[%s0 + $0x38] sm:$0xff]
  %v22 = vld [vmem:[%s0 + $0x40] sm:$0xff]
  %v23 = vld [vmem:[%s0 + $0x48] sm:$0xff]
  %v24 = vld [vmem:[%s0 + $0x50] sm:$0xff]
  %v25 = vld [vmem:[%s0 + $0x58] sm:$0xff]
  %v26 = vld [vmem:[%s0 + $0x60] sm:$0xff]
  %v27 = vld [vmem:[%s0 + $0x68] sm:$0xff]
  %v28 = vld [vmem:[%s0 + $0x70] sm:$0xff]
  %v29 = vld [vmem:[%s0 + $0x78] sm:$0xff]
  %v30 = vld [vmem:[%s0 + $0x80] sm:$0xff]
  %v31 = vld [vmem:[%s0 + $0x88] sm:$0xff]
  %v32 = vld [vmem:[%s0 + $0x90] sm:$0xff]
  %v33 = vld [vmem:[%s0 + $0x98] sm:$0xff]
  %v34 = vld [vmem:[%s0 + $0xa0] sm:$0xff]
  %v35 = vld [vmem:[%s0 + $0xa8] sm:$0xff]
  %v36 = vld [vmem:[%s0 + $0xb0] sm:$0xff]
  %v37 = vld [vmem:[%s0 + $0xb8] sm:$0xff]
  %v38 = vld [vmem:[%s0 + $0xc0] sm:$0xff]
  %v39 = vld [vmem:[%s0 + $0xc8] sm:$0xff]
  %v40 = vld [vmem:[%s0 + $0xd0] sm:$0xff]
  %v41 = vld [vmem:[%s0 + $0xd8] sm:$0xff]
  %v42 = vld [vmem:[%s0 + $0xe0] sm:$0xff]
  %v43 = vld [vmem:[%s0 + $0xe8] sm:$0xff]
  %v44 = vld [vmem:[%s0 + $0xf0] sm:$0xff]
  %v45 = vld [vmem:[%s0 + $0xf8] sm:$0xff]
  %v46 = vld [vmem:[%s0 + $0x100] sm:$0xff]
  %v47 = vld [vmem:[%s0 + $0x108] sm:$0xff]
  %v48 = vld [vmem:[%s0 + $0x110] sm:$0xff]
  %v49 = vld [vmem:[%s0 + $0x118] sm:$0xff]
  %v50 = vld [vmem:[%s0 + $0x120] sm:$0xff]
  %v51 = vld [vmem:[%s0 + $0x128] sm:$0xff]
  %v52 = vld [vmem:[%s0 + $0x130] sm:$0xff]
  %v53 = vld [vmem:[%s0 + $0x138] sm:$0xff]
  %v54 = vld [vmem:[%s0 + $0x140] sm:$0xff]
  %v55 = vld [vmem:[%s0 + $0x148] sm:$0xff]
  %v56 = vld [vmem:[%s0 + $0x150] sm:$0xff]
  %v57 = vld [vmem:[%s0 + $0x158] sm:$0xff]
  %v58 = vld [vmem:[%s0 + $0x160] sm:$0xff]
  %v59 = vld [vmem:[%s0 + $0x168] sm:$0xff]
  %v60 = vld [vmem:[%s0 + $0x170] sm:$0xff]
  %v61 = vld [vmem:[%s0 + $0x178] sm:$0xff]
  %v62 = vld [vmem:[%s0 + $0x180] sm:$0xff]
  %v63 = vld [vmem:[%s0 + $0x188] sm:$0xff]
  %v64 = vld [vmem:[%s0 + $0x190] sm:$0xff]
  %v65 = vld [vmem:[%s0 + $0x198] sm:$0xff]
  %v66 = vld [vmem:[%s0 + $0x1a0] sm:$0xff]
  %v67 = vld [vmem:[%s0 + $0x1a8] sm:$0xff]
  %v68 = vld [vmem:[%s0 + $0x1b0] sm:$0xff]
  %v69 = vld [vmem:[%s0 + $0x1b8] sm:$0xff]
  %v70 = vld [vmem:[%s0 + $0x1c0] sm:$0xff]
  %v71 = vld [vmem:[%s0 + $0x1c8] sm:$0xff]
  %v72 = vld [vmem:[%s0 + $0x1d0] sm:$0xff]
  %v73 = vld [vmem:[%s0 + $0x1d8] sm:$0xff]
  %v74 = vld [vmem:[%s0 + $0x1e0] sm:$0xff]
  %v75 = vld [vmem:[%s0 + $0x1e8] sm:$0xff]
  %v76 = vld [vmem:[%s0 + $0x1f0] sm:$0xff]
  %v77 = vld [vmem:[%s0 + $0x1f8] sm:$0xff]
  %v78 = vld [vmem:[%s0 + $0x200] sm:$0xff]
  %v79 = vld [vmem:[%s0 + $0x208] sm:$0xff]
  %v80 = vld [vmem:[%s0 + $0x210] sm:$0xff]
  %v81 = vld [vmem:[%s0 + $0x218] sm:$0xff]
  %v82 = vld [vmem:[%s0 + $0x220] sm:$0xff]
  %v83 = vld [vmem:[%s0 + $0x228] sm:$0xff]
  %v84 = vld [vmem:[%s0 + $0x230] sm:$0xff]
  %v85 = vld [vmem:[%s0 + $0x238] sm:$0xff]
  %v86 = vld [vmem:[%s0 + $0x240] sm:$0xff]
  %v87 = vld [vmem:[%s0 + $0x248] sm:$0xff]
  %v88 = vld [vmem:[%s0 + $0x250] sm:$0xff]
  %v89 = vld [vmem:[%s0 + $0x258] sm:$0xff]
  %v90 = vld [vmem:[%s0 + $0x260] sm:$0xff]
  %v91 = vld [vmem:[%s0 + $0x268] sm:$0xff]
  %v92 = vld [vmem:[%s0 + $0x270] sm:$0xff]
  %v93 = vld [vmem:[%s0 + $0x278] sm:$0xff]
  %v94 = vld [vmem:[%s0 + $0x280] sm:$0xff]
  %v95 = vld [vmem:[%s0 + $0x288] sm:$0xff]
  %v96 = vld [vmem:[%s0 + $0x290] sm:$0xff]
  %v97 = vld [vmem:[%s0 + $0x298] sm:$0xff]
  %v98 = vld [vmem:[%s0 + $0x2a0] sm:$0xff]
  %v99 = vld [vmem:[%s0 + $0x2a8] sm:$0xff]
  %v100 = vld [vmem:[%s0 + $0x2b0] sm:$0xff]
  %v101 = vld [vmem:[%s0 + $0x2b8] sm:$0xff]
  %v102 = vld [vmem:[%s0 + $0x2c0] sm:$0xff]
  %v103 = vld [vmem:[%s0 + $0x2c8] sm:$0xff]
  %v104 = vld [vmem:[%s0 + $0x2d0] sm:$0xff]
  %v105 = vld [vmem:[%s0 + $0x2d8] sm:$0xff]
  %v106 = vld [vmem:[%s0 + $0x2e0] sm:$0xff]
  %v107 = vld [vmem:[%s0 + $0x2e8] sm:$0xff]
  %v108 = vld [vmem:[%s0 + $0x2f0] sm:$0xff]
  %v109 = vld [vmem:[%s0 + $0x2f8] sm:$0xff]
  %v110 = vld [vmem:[%s0 + $0x300] sm:$0xff]
  %v111 = vld [vmem:[%s0 + $0x308] sm:$0xff]
  %v112 = vld [vmem:[%s0 + $0x310] sm:$0xff]
  %v113 = vld [vmem:[%s0 + $0x318] sm:$0xff]
  %v114 = vld [vmem:[%s0 + $0x320] sm:$0xff]
  %v115 = vld [vmem:[%s0 + $0x328] sm:$0xff]
  %v116 = vld [vmem:[%s0 + $0x330] sm:$0xff]
  %v117 = vld [vmem:[%s0 + $0x338] sm:$0xff]
  %v118 = vld [vmem:[%s0 + $0x340] sm:$0xff]
  %v119 = vld [vmem:[%s0 + $0x348] sm:$0xff]
  %v120 = vld [vmem:[%s0 + $0x350] sm:$0xff]
  %v121 = vld [vmem:[%s0 + $0x358] sm:$0xff]
  %v122 = vld [vmem:[%s0 + $0x360] sm:$0xff]
  %v123 = vld [vmem:[%s0 + $0x368] sm:$0xff]
  %v124 = vld [vmem:[%s0 + $0x370] sm:$0xff]
  %v125 = vld [vmem:[%s0 + $0x378] sm:$0xff]
  %v126 = vld [vmem:[%s0 + $0x380] sm:$0xff]
  %v127 = vld [vmem:[%s0 + $0x388] sm:$0xff]
  %v128 = vld [vmem:[%s0 + $0x390] sm:$0xff]
  %v129 = vld [vmem:[%s0 + $0x398] sm:$0xff]
  %v130 = vld [vmem:[%s0 + $0x3a0] sm:$0xff]
  %v131 = vld [vmem:[%s0 + $0x3a8] sm:$0xff]
  %v132 = vld [vmem:[%s0 + $0x3b0] sm:$0xff]
  %v133 = vld [vmem:[%s0 + $0x3b8] sm:$0xff]
  %v134 = vld [vmem:[%s0 + $0x3c0] sm:$0xff]
  %v135 = vld [vmem:[%s0 + $0x3c8] sm:$0xff]
  %v136 = vld [vmem:[%s0 + $0x3d0] sm:$0xff]
  %v137 = vld [vmem:[%s0 + $0x3d8] sm:$0xff]
  %v138 = vld [vmem:[%s0 + $0x3e0] sm:$0xff]
  %v139 = vld [vmem:[%s0 + $0x3e8] sm:$0xff]
  %v140 = vld [vmem:[%s0 + $0x3f0] sm:$0xff]
  %v141 = vld [vmem:[%s0 + $0x3f8] sm:$0xff]
  %v142 = vld [vmem:[%s0 + $0x400] sm:$0xff]
  %v143 = vld [vmem:[%s0 + $0x408] sm:$0xff]
  %v144 = vld [vmem:[%s0 + $0x410] sm:$0xff]
  %v145 = vld [vmem:[%s0 + $0x418] sm:$0xff]
  %v146 = vld [vmem:[%s0 + $0x420] sm:$0xff]
  %v147 = vld [vmem:[%s0 + $0x428] sm:$0xff]
  %v148 = vld [vmem:[%s0 + $0x430] sm:$0xff]
  %v149 = vld [vmem:[%s0 + $0x438] sm:$0xff]
  %v150 = vld [vmem:[%s0 + $0x440] sm:$0xff]
  %v151 = vld [vmem:[%s0 + $0x448] sm:$0xff]
  %v152 = vld [vmem:[%s0 + $0x450] sm:$0xff]
  %v153 = vld [vmem:[%s0 + $0x458] sm:$0xff]
  %v154 = vld [vmem:[%s0 + $0x460] sm:$0xff]
  %v155 = vld [vmem:[%s0 + $0x468] sm:$0xff]
  %v156 = vld [vmem:[%s0 + $0x470] sm:$0xff]
  %v157 = vld [vmem:[%s0 + $0x478] sm:$0xff]
  %v158 = vld [vmem:[%s0 + $0x480] sm:$0xff]
  %v159 = vld [vmem:[%s0 + $0x488] sm:$0xff]
  %v160 = vld [vmem:[%s0 + $0x490] sm:$0xff]
  %v161 = vld [vmem:[%s0 + $0x498] sm:$0xff]
  %v162 = vld [vmem:[%s0 + $0x4a0] sm:$0xff]
  %v163 = vld [vmem:[%s0 + $0x4a8] sm:$0xff]
  %v164 = vld [vmem:[%s0 + $0x4b0] sm:$0xff]
  %v165 = vld [vmem:[%s0 + $0x4b8] sm:$0xff]
  %v166 = vld [vmem:[%s0 + $0x4c0] sm:$0xff]
  %v167 = vld [vmem:[%s0 + $0x4c8] sm:$0xff]
  %v168 = vld [vmem:[%s0 + $0x4d0] sm:$0xff]
  %v169 = vld [vmem:[%s0 + $0x4d8] sm:$0xff]
  %v170 = vld [vmem:[%s0 + $0x4e0] sm:$0xff]
  %v171 = vld [vmem:[%s0 + $0x4e8] sm:$0xff]
  %v172 = vld [vmem:[%s0 + $0x4f0] sm:$0xff]
  %v173 = vld [vmem:[%s0 + $0x4f8] sm:$0xff]
  %v174 = vld [vmem:[%s0 + $0x500] sm:$0xff]
  %v175 = vld [vmem:[%s0 + $0x508] sm:$0xff]
  %v176 = vld [vmem:[%s0 + $0x510] sm:$0xff]
  %v177 = vld [vmem:[%s0 + $0x518] sm:$0xff]
  %v178 = vld [vmem:[%s0 + $0x520] sm:$0xff]
  %v179 = vld [vmem:[%s0 + $0x528] sm:$0xff]
  %v180 = vld [vmem:[%s0 + $0x530] sm:$0xff]
  %v181 = vld [vmem:[%s0 + $0x538] sm:$0xff]
  %v182 = vld [vmem:[%s0 + $0x540] sm:$0xff]
  %v183 = vld [vmem:[%s0 + $0x548] sm:$0xff]
  %v184 = vld [vmem:[%s0 + $0x550] sm:$0xff]
  %v185 = vld [vmem:[%s0 + $0x558] sm:$0xff]
  %v186 = vld [vmem:[%s0 + $0x560] sm:$0xff]
  %v187 = vld [vmem:[%s0 + $0x568] sm:$0xff]
  %v188 = vld [vmem:[%s0 + $0x570] sm:$0xff]
  %v189 = vld [vmem:[%s0 + $0x578] sm:$0xff]
  %v190 = vld [vmem:[%s0 + $0x580] sm:$0xff]
  %v191 = vld [vmem:[%s0 + $0x588] sm:$0xff]
  %v192 = vld [vmem:[%s0 + $0x590] sm:$0xff]
  %v193 = vld [vmem:[%s0 + $0x598] sm:$0xff]
  %v194 = vld [vmem:[%s0 + $0x5a0] sm:$0xff]
  %v195 = vld [vmem:[%s0 + $0x5a8] sm:$0xff]
  %v196 = vld [vmem:[%s0 + $0x5b0] sm:$0xff]
  %v197 = vld [vmem:[%s0 + $0x5b8] sm:$0xff]
  %v198 = vld [vmem:[%s0 + $0x5c0] sm:$0xff]
  %v199 = vld [vmem:[%s0 + $0x5c8] sm:$0xff]
  %v200 = vld [vmem:[%s0 + $0x5d0] sm:$0xff]
  %v201 = vld [vmem:[%s0 + $0x5d8] sm:$0xff]
  %v202 = vld [vmem:[%s0 + $0x5e0] sm:$0xff]
  %v203 = vld [vmem:[%s0 + $0x5e8] sm:$0xff]
  %v204 = vld [vmem:[%s0 + $0x5f0] sm:$0xff]
  %v205 = vld [vmem:[%s0 + $0x5f8] sm:$0xff]
  %v206 = vld [vmem:[%s0 + $0x600] sm:$0xff]
  %v207 = vld [vmem:[%s0 + $0x608] sm:$0xff]
  %v208 = vld [vmem:[%s0 + $0x610] sm:$0xff]
  %v209 = vld [vmem:[%s0 + $0x618] sm:$0xff]
  %v210 = vld [vmem:[%s0 + $0x620] sm:$0xff]
  %v211 = vld [vmem:[%s0 + $0x628] sm:$0xff]
  %v212 = vld [vmem:[%s0 + $0x630] sm:$0xff]
  %v213 = vld [vmem:[%s0 + $0x638] sm:$0xff]
  %v214 = vld [vmem:[%s0 + $0x640] sm:$0xff]
  %v215 = vld [vmem:[%s0 + $0x648] sm:$0xff]
  %v216 = vld [vmem:[%s0 + $0x650] sm:$0xff]
  %v217 = vld [vmem:[%s0 + $0x658] sm:$0xff]
  %v218 = vld [vmem:[%s0 + $0x660] sm:$0xff]
  %v219 = vld [vmem:[%s0 + $0x668] sm:$0xff]
  %v220 = vld [vmem:[%s0 + $0x670] sm:$0xff]
  %v221 = vld [vmem:[%s0 + $0x678] sm:$0xff]
  %v222 = vld [vmem:[%s0 + $0x680] sm:$0xff]
  %v223 = vld [vmem:[%s0 + $0x688] sm:$0xff]
  %v224 = vld [vmem:[%s0 + $0x690] sm:$0xff]
  %v225 = vld [vmem:[%s0 + $0x698] sm:$0xff]
  %v226 = vld [vmem:[%s0 + $0x6a0] sm:$0xff]
  %v227 = vld [vmem:[%s0 + $0x6a8] sm:$0xff]
  %v228 = vld [vmem:[%s0 + $0x6b0] sm:$0xff]
  %v229 = vld [vmem:[%s0 + $0x6b8] sm:$0xff]
  %v230 = vld [vmem:[%s0 + $0x6c0] sm:$0xff]
  %v231 = vld [vmem:[%s0 + $0x6c8] sm:$0xff]
  %v232 = vld [vmem:[%s0 + $0x6d0] sm:$0xff]
  %v233 = vld [vmem:[%s0 + $0x6d8] sm:$0xff]
  %v234 = vld [vmem:[%s0 + $0x6e0] sm:$0xff]
  %v235 = vld [vmem:[%s0 + $0x6e8] sm:$0xff]
  %v236 = vld [vmem:[%s0 + $0x6f0] sm:$0xff]
  %v237 = vld [vmem:[%s0 + $0x6f8] sm:$0xff]
  %v238 = vld [vmem:[%s0 + $0x700] sm:$0xff]
  %v239 = vld [vmem:[%s0 + $0x708] sm:$0xff]
  %v240 = vld [vmem:[%s0 + $0x710] sm:$0xff]
  %v241 = vld [vmem:[%s0 + $0x718] sm:$0xff]
  %v242 = vld [vmem:[%s0 + $0x720] sm:$0xff]
  %v243 = vld [vmem:[%s0 + $0x728] sm:$0xff]
  %v244 = vld [vmem:[%s0 + $0x730] sm:$0xff]
  %v245 = vld [vmem:[%s0 + $0x738] sm:$0xff]
  %v246 = vld [vmem:[%s0 + $0x740] sm:$0xff]
  %v247 = vld [vmem:[%s0 + $0x748] sm:$0xff]
  %v248 = vld [vmem:[%s0 + $0x750] sm:$0xff]
  %v249 = vld [vmem:[%s0 + $0x758] sm:$0xff]
  %v250 = vld [vmem:[%s0 + $0x760] sm:$0xff]
  %v251 = vld [vmem:[%s0 + $0x768] sm:$0xff]
  %v252 = vld [vmem:[%s0 + $0x770] sm:$0xff]
  %v253 = vld [vmem:[%s0 + $0x778] sm:$0xff]
  %v254 = vld [vmem:[%s0 + $0x780] sm:$0x3]
  %v255 = vld [vmem:[%s1] sm:$0xff]
  %v256 = vld [vmem:[%s1 + $0x8] sm:$0xff]
  %v257 = vld [vmem:[%s1 + $0x10] sm:$0xff]
  %v258 = vld [vmem:[%s1 + $0x18] sm:$0x7]
  %v259 = vld [vmem:[%s2] sm:$0x1]
  %v261 = vlaneseq
  %v262 = vshrl.u32 %v261, 7
  %v263 = vsub.s32 0, %v262
  %v264 = vrot.slane %v259, %v263
  %vm266 = vcmask 220160
  %v268 = vsel %vm266, %v14, 0
  %v271 = vsel %vm266, %v15, 0
  %v274 = vsel %vm266, %v16, 0
  %v277 = vsel %vm266, %v17, 0
  %v280 = vsel %vm266, %v18, 0
  %v283 = vsel %vm266, %v19, 0
  %v286 = vsel %vm266, %v20, 0
  %v289 = vsel %vm266, %v21, 0
  %v292 = vsel %vm266, %v22, 0
  %v295 = vsel %vm266, %v23, 0
  %v298 = vsel %vm266, %v24, 0
  %v301 = vsel %vm266, %v25, 0
  %v304 = vsel %vm266, %v26, 0
  %v307 = vsel %vm266, %v27, 0
  %v310 = vsel %vm266, %v28, 0
  %v313 = vsel %vm266, %v29, 0
  %v316 = vsel %vm266, %v30, 0
  %v319 = vsel %vm266, %v31, 0
  %v322 = vsel %vm266, %v32, 0
  %v325 = vsel %vm266, %v33, 0
  %v328 = vsel %vm266, %v34, 0
  %v331 = vsel %vm266, %v35, 0
  %v334 = vsel %vm266, %v36, 0
  %v337 = vsel %vm266, %v37, 0
  %v340 = vsel %vm266, %v38, 0
  %v343 = vsel %vm266, %v39, 0
  %v346 = vsel %vm266, %v40, 0
  %v349 = vsel %vm266, %v41, 0
  %v352 = vsel %vm266, %v42, 0
  %v355 = vsel %vm266, %v43, 0
  %v358 = vsel %vm266, %v44, 0
  %v361 = vsel %vm266, %v45, 0
  %v364 = vsel %vm266, %v46, 0
  %v367 = vsel %vm266, %v47, 0
  %v370 = vsel %vm266, %v48, 0
  %v373 = vsel %vm266, %v49, 0
  %v376 = vsel %vm266, %v50, 0
  %v379 = vsel %vm266, %v51, 0
  %v382 = vsel %vm266, %v52, 0
  %v385 = vsel %vm266, %v53, 0
  %v388 = vsel %vm266, %v54, 0
  %v391 = vsel %vm266, %v55, 0
  %v394 = vsel %vm266, %v56, 0
  %v397 = vsel %vm266, %v57, 0
  %v400 = vsel %vm266, %v58, 0
  %v403 = vsel %vm266, %v59, 0
  %v406 = vsel %vm266, %v60, 0
  %v409 = vsel %vm266, %v61, 0
  %v412 = vsel %vm266, %v62, 0
  %v415 = vsel %vm266, %v63, 0
  %v418 = vsel %vm266, %v64, 0
  %v421 = vsel %vm266, %v65, 0
  %v424 = vsel %vm266, %v66, 0
  %v427 = vsel %vm266, %v67, 0
  %v430 = vsel %vm266, %v68, 0
  %v433 = vsel %vm266, %v69, 0
  %v436 = vsel %vm266, %v70, 0
  %v439 = vsel %vm266, %v71, 0
  %v442 = vsel %vm266, %v72, 0
  %v445 = vsel %vm266, %v73, 0
  %v448 = vsel %vm266, %v74, 0
  %v451 = vsel %vm266, %v75, 0
  %v454 = vsel %vm266, %v76, 0
  %v457 = vsel %vm266, %v77, 0
  %v460 = vsel %vm266, %v78, 0
  %v463 = vsel %vm266, %v79, 0
  %v466 = vsel %vm266, %v80, 0
  %v469 = vsel %vm266, %v81, 0
  %v472 = vsel %vm266, %v82, 0
  %v475 = vsel %vm266, %v83, 0
  %v478 = vsel %vm266, %v84, 0
  %v481 = vsel %vm266, %v85, 0
  %v484 = vsel %vm266, %v86, 0
  %v487 = vsel %vm266, %v87, 0
  %v490 = vsel %vm266, %v88, 0
  %v493 = vsel %vm266, %v89, 0
  %v496 = vsel %vm266, %v90, 0
  %v499 = vsel %vm266, %v91, 0
  %v502 = vsel %vm266, %v92, 0
  %v505 = vsel %vm266, %v93, 0
  %v508 = vsel %vm266, %v94, 0
  %v511 = vsel %vm266, %v95, 0
  %v514 = vsel %vm266, %v96, 0
  %v517 = vsel %vm266, %v97, 0
  %v520 = vsel %vm266, %v98, 0
  %v523 = vsel %vm266, %v99, 0
  %v526 = vsel %vm266, %v100, 0
  %v529 = vsel %vm266, %v101, 0
  %v532 = vsel %vm266, %v102, 0
  %v535 = vsel %vm266, %v103, 0
  %v538 = vsel %vm266, %v104, 0
  %v541 = vsel %vm266, %v105, 0
  %v544 = vsel %vm266, %v106, 0
  %v547 = vsel %vm266, %v107, 0
  %v550 = vsel %vm266, %v108, 0
  %v553 = vsel %vm266, %v109, 0
  %v556 = vsel %vm266, %v110, 0
  %v559 = vsel %vm266, %v111, 0
  %v562 = vsel %vm266, %v112, 0
  %v565 = vsel %vm266, %v113, 0
  %v568 = vsel %vm266, %v114, 0
  %v571 = vsel %vm266, %v115, 0
  %v574 = vsel %vm266, %v116, 0
  %v577 = vsel %vm266, %v117, 0
  %v580 = vsel %vm266, %v118, 0
  %v583 = vsel %vm266, %v119, 0
  %v586 = vsel %vm266, %v120, 0
  %v589 = vsel %vm266, %v121, 0
  %v592 = vsel %vm266, %v122, 0
  %v595 = vsel %vm266, %v123, 0
  %v598 = vsel %vm266, %v124, 0
  %v601 = vsel %vm266, %v125, 0
  %v604 = vsel %vm266, %v126, 0
  %v607 = vsel %vm266, %v127, 0
  %v610 = vsel %vm266, %v128, 0
  %v613 = vsel %vm266, %v129, 0
  %v616 = vsel %vm266, %v130, 0
  %v619 = vsel %vm266, %v131, 0
  %v622 = vsel %vm266, %v132, 0
  %v625 = vsel %vm266, %v133, 0
  %v628 = vsel %vm266, %v134, 0
  %v631 = vsel %vm266, %v135, 0
  %v634 = vsel %vm266, %v136, 0
  %v637 = vsel %vm266, %v137, 0
  %v640 = vsel %vm266, %v138, 0
  %v643 = vsel %vm266, %v139, 0
  %v646 = vsel %vm266, %v140, 0
  %v649 = vsel %vm266, %v141, 0
  %v652 = vsel %vm266, %v142, 0
  %v655 = vsel %vm266, %v143, 0
  %v658 = vsel %vm266, %v144, 0
  %v661 = vsel %vm266, %v145, 0
  %v664 = vsel %vm266, %v146, 0
  %v667 = vsel %vm266, %v147, 0
  %v670 = vsel %vm266, %v148, 0
  %v673 = vsel %vm266, %v149, 0
  %v676 = vsel %vm266, %v150, 0
  %v679 = vsel %vm266, %v151, 0
  %v682 = vsel %vm266, %v152, 0
  %v685 = vsel %vm266, %v153, 0
  %v688 = vsel %vm266, %v154, 0
  %v691 = vsel %vm266, %v155, 0
  %v694 = vsel %vm266, %v156, 0
  %v697 = vsel %vm266, %v157, 0
  %v700 = vsel %vm266, %v158, 0
  %v703 = vsel %vm266, %v159, 0
  %v706 = vsel %vm266, %v160, 0
  %v709 = vsel %vm266, %v161, 0
  %v712 = vsel %vm266, %v162, 0
  %v715 = vsel %vm266, %v163, 0
  %v718 = vsel %vm266, %v164, 0
  %v721 = vsel %vm266, %v165, 0
  %v724 = vsel %vm266, %v166, 0
  %v727 = vsel %vm266, %v167, 0
  %v730 = vsel %vm266, %v168, 0
  %v733 = vsel %vm266, %v169, 0
  %v736 = vsel %vm266, %v170, 0
  %v739 = vsel %vm266, %v171, 0
  %v742 = vsel %vm266, %v172, 0
  %v745 = vsel %vm266, %v173, 0
  %v748 = vsel %vm266, %v174, 0
  %v751 = vsel %vm266, %v175, 0
  %v754 = vsel %vm266, %v176, 0
  %v757 = vsel %vm266, %v177, 0
  %v760 = vsel %vm266, %v178, 0
  %v763 = vsel %vm266, %v179, 0
  %v766 = vsel %vm266, %v180, 0
  %v769 = vsel %vm266, %v181, 0
  %v772 = vsel %vm266, %v182, 0
  %v775 = vsel %vm266, %v183, 0
  %v778 = vsel %vm266, %v184, 0
  %v781 = vsel %vm266, %v185, 0
  %v784 = vsel %vm266, %v186, 0
  %v787 = vsel %vm266, %v187, 0
  %v790 = vsel %vm266, %v188, 0
  %v793 = vsel %vm266, %v189, 0
  %v796 = vsel %vm266, %v190, 0
  %v799 = vsel %vm266, %v191, 0
  %v802 = vsel %vm266, %v192, 0
  %v805 = vsel %vm266, %v193, 0
  %v808 = vsel %vm266, %v194, 0
  %v811 = vsel %vm266, %v195, 0
  %v814 = vsel %vm266, %v196, 0
  %v817 = vsel %vm266, %v197, 0
  %v820 = vsel %vm266, %v198, 0
  %v823 = vsel %vm266, %v199, 0
  %v826 = vsel %vm266, %v200, 0
  %v829 = vsel %vm266, %v201, 0
  %v832 = vsel %vm266, %v202, 0
  %v835 = vsel %vm266, %v203, 0
  %v838 = vsel %vm266, %v204, 0
  %v841 = vsel %vm266, %v205, 0
  %v844 = vsel %vm266, %v206, 0
  %v847 = vsel %vm266, %v207, 0
  %v850 = vsel %vm266, %v208, 0
  %v853 = vsel %vm266, %v209, 0
  %v856 = vsel %vm266, %v210, 0
  %v859 = vsel %vm266, %v211, 0
  %v862 = vsel %vm266, %v212, 0
  %v865 = vsel %vm266, %v213, 0
  %v868 = vsel %vm266, %v214, 0
  %v871 = vsel %vm266, %v215, 0
  %v874 = vsel %vm266, %v216, 0
  %v877 = vsel %vm266, %v217, 0
  %v880 = vsel %vm266, %v218, 0
  %v883 = vsel %vm266, %v219, 0
  %v886 = vsel %vm266, %v220, 0
  %v889 = vsel %vm266, %v221, 0
  %v892 = vsel %vm266, %v222, 0
  %v895 = vsel %vm266, %v223, 0
  %v898 = vsel %vm266, %v224, 0
  %v901 = vsel %vm266, %v225, 0
  %v904 = vsel %vm266, %v226, 0
  %v907 = vsel %vm266, %v227, 0
  %v910 = vsel %vm266, %v228, 0
  %v913 = vsel %vm266, %v229, 0
  %v916 = vsel %vm266, %v230, 0
  %v919 = vsel %vm266, %v231, 0
  %v922 = vsel %vm266, %v232, 0
  %v925 = vsel %vm266, %v233, 0
  %v928 = vsel %vm266, %v234, 0
  %v931 = vsel %vm266, %v235, 0
  %v934 = vsel %vm266, %v236, 0
  %v937 = vsel %vm266, %v237, 0
  %v940 = vsel %vm266, %v238, 0
  %v943 = vsel %vm266, %v239, 0
  %v946 = vsel %vm266, %v240, 0
  %v949 = vsel %vm266, %v241, 0
  %v952 = vsel %vm266, %v242, 0
  %v955 = vsel %vm266, %v243, 0
  %v958 = vsel %vm266, %v244, 0
  %v961 = vsel %vm266, %v245, 0
  %v964 = vsel %vm266, %v246, 0
  %v967 = vsel %vm266, %v247, 0
  %v970 = vsel %vm266, %v248, 0
  %v973 = vsel %vm266, %v249, 0
  %v976 = vsel %vm266, %v250, 0
  %v979 = vsel %vm266, %v251, 0
  %v982 = vsel %vm266, %v252, 0
  %v985 = vsel %vm266, %v253, 0
  %v988 = vsel %vm266, %v254, 0
  %vm990 = vcmask 1042432
  %v992 = vsel %vm990, %v258, 0
  %994 = vmatprep.subr.mxu0 0.0
  %995 = vmatpush1.msra.mxu0 %v255
  %996 = vmatprep.subr.mxu0 0.0
  %997 = vmatpush1.msra.mxu0 %v256
  %998 = vmatprep.subr.mxu0 0.0
  %999 = vmatpush1.msra.mxu0 %v257
  %1000 = vmatprep.subr.mxu0 0.0
  %1001 = vmatpush1.msra.mxu0 %v992
  %1002 = vmatprep.subr.mxu0 0.0
  %1003 = vmatpush1.msra.mxu0 0.0
  %1004 = vmatprep.subr.mxu0 0.0
  %1005 = vmatpush1.msra.mxu0 0.0
  %1006 = vmatprep.subr.mxu0 0.0
  %1007 = vmatpush1.msra.mxu0 0.0
  %1008 = vmatprep.subr.mxu0 0.0
  %1009 = vmatpush1.msra.mxu0 0.0
  %1010 = vmatprep.subr.mxu0 0.0
  %1011 = vmatpush1.msra.mxu0 0.0
  %1012 = vmatprep.subr.mxu0 0.0
  %1013 = vmatpush1.msra.mxu0 0.0
  %1014 = vmatprep.subr.mxu0 0.0
  %1015 = vmatpush1.msra.mxu0 0.0
  %1016 = vmatprep.subr.mxu0 0.0
  %1017 = vmatpush1.msra.mxu0 0.0
  %1018 = vmatprep.subr.mxu0 0.0
  %1019 = vmatpush1.msra.mxu0 0.0
  %1020 = vmatprep.subr.mxu0 0.0
  %1021 = vmatpush1.msra.mxu0 0.0
  %1022 = vmatprep.subr.mxu0 0.0
  %1023 = vmatpush1.msra.mxu0 0.0
  %1024 = vmatprep.subr.mxu0 0.0
  %1025 = vmatpush1.msra.mxu0 0.0
  %1026 = vmatprep.subr.mxu0 0.0
  %1027 = vmatpush1.msra.mxu0 0.0
  %1028 = vmatprep.subr.mxu0 0.0
  %1029 = vmatpush1.msra.mxu0 0.0
  %1030 = vmatprep.subr.mxu0 0.0
  %1031 = vmatpush1.msra.mxu0 0.0
  %1032 = vmatprep.subr.mxu0 0.0
  %1033 = vmatpush1.msra.mxu0 0.0
  %1034 = vmatprep.subr.mxu0 0.0
  %1035 = vmatpush1.msra.mxu0 0.0
  %1036 = vmatprep.subr.mxu0 0.0
  %1037 = vmatpush1.msra.mxu0 0.0
  %1038 = vmatprep.subr.mxu0 0.0
  %1039 = vmatpush1.msra.mxu0 0.0
  %1040 = vmatprep.subr.mxu0 0.0
  %1041 = vmatpush1.msra.mxu0 0.0
  %1042 = vmatprep.subr.mxu0 0.0
  %1043 = vmatpush1.msra.mxu0 0.0
  %1044 = vmatprep.subr.mxu0 0.0
  %1045 = vmatpush1.msra.mxu0 0.0
  %1046 = vmatprep.subr.mxu0 0.0
  %1047 = vmatpush1.msra.mxu0 0.0
  %1048 = vmatprep.subr.mxu0 0.0
  %1049 = vmatpush1.msra.mxu0 0.0
  %1050 = vmatprep.subr.mxu0 0.0
  %1051 = vmatpush1.msra.mxu0 0.0
  %1052 = vmatprep.subr.mxu0 0.0
  %1053 = vmatpush1.msra.mxu0 0.0
  %1054 = vmatprep.subr.mxu0 0.0
  %1055 = vmatpush1.msra.mxu0 0.0
  %1056 = vmatprep.subr.mxu0 0.0
  %1057 = vmatpush1.msra.mxu0 0.0
  %1058 = vmatprep.mubr.f32.mxu0 0.0
  %1059 = vmatmul.mubr.f32.gmra.mrb[0].mxu0 %v268
  %v1060 = vpop.f32.mrb[0].mxu0
  %v1061 = vadd.f32 %v264, %v1060
  %v1062 = vpop.f32.mrb[0].mxu0
  %1063 = vmatprep.mubr.f32.mxu0 0.0
  %1064 = vmatmul.mubr.f32.gmra.mrb[0].mxu0 %v271
  %v1065 = vpop.f32.mrb[0].mxu0
  %v1066 = vadd.f32 %v264, %v1065
  %v1067 = vpop.f32.mrb[0].mxu0
  %1068 = vmatprep.mubr.f32.mxu0 0.0
  %1069 = vmatmul.mubr.f32.gmra.mrb[0].mxu0 %v274
  %v1070 = vpop.f32.mrb[0].mxu0
  %v1071 = vadd.f32 %v264, %v1070
  %v1072 = vpop.f32.mrb[0].mxu0
  %1073 = vmatprep.mubr.f32.mxu0 0.0
  %1074 = vmatmul.mubr.f32.gmra.mrb[0].mxu0 %v277
  %v1075 = vpop.f32.mrb[0].mxu0
  %v1076 = vadd.f32 %v264, %v1075
  %v1077 = vpop.f32.mrb[0].mxu0
  %1078 = vmatprep.mubr.f32.mxu0 0.0
  %1079 = vmatmul.mubr.f32.gmra.mrb[0].mxu0 %v280
  %v1080 = vpop.f32.mrb[0].mxu0
  %v1081 = vadd.f32 %v264, %v1080
  %v1082 = vpop.f32.mrb[0].mxu0
  %1083 = vmatprep.mubr.f32.mxu0 0.0
  %1084 = vmatmul.mubr.f32.gmra.mrb[0].mxu0 %v283
  %v1085 = vpop.f32.mrb[0].mxu0
  %v1086 = vadd.f32 %v264, %v1085
  %v1087 = vpop.f32.mrb[0].mxu0
  %1088 = vmatprep.mubr.f32.mxu0 0.0
  %1089 = vmatmul.mubr.f32.gmra.mrb[0].mxu0 %v286
  %v1090 = vpop.f32.mrb[0].mxu0
  %v1091 = vadd.f32 %v264, %v1090
  %v1092 = vpop.f32.mrb[0].mxu0
  %1093 = vmatprep.mubr.f32.mxu0 0.0
  %1094 = vmatmul.mubr.f32.gmra.mrb[0].mxu0 %v289
  %v1095 = vpop.f32.mrb[0].mxu0
  %v1096 = vadd.f32 %v264, %v1095
  %v1097 = vpop.f32.mrb[0].mxu0
  %1098 = vmatprep.mubr.f32.mxu0 0.0
  %1099 = vmatmul.mubr.f32.gmra.mrb[0].mxu0 %v292
  %v1100 = vpop.f32.mrb[0].mxu0
  %v1101 = vadd.f32 %v264, %v1100
  %v1102 = vpop.f32.mrb[0].mxu0
  %1103 = vmatprep.mubr.f32.mxu0 0.0
  %1104 = vmatmul.mubr.f32.gmra.mrb[0].mxu0 %v295
  %v1105 = vpop.f32.mrb[0].mxu0
  %v1106 = vadd.f32 %v264, %v1105
  %v1107 = vpop.f32.mrb[0].mxu0
  %1108 = vmatprep.mubr.f32.mxu0 0.0
  %1109 = vmatmul.mubr.f32.gmra.mrb[0].mxu0 %v298
  %v1110 = vpop.f32.mrb[0].mxu0
  %v1111 = vadd.f32 %v264, %v1110
  %v1112 = vpop.f32.mrb[0].mxu0
  %1113 = vmatprep.mubr.f32.mxu0 0.0
  %1114 = vmatmul.mubr.f32.gmra.mrb[0].mxu0 %v301
  %v1115 = vpop.f32.mrb[0].mxu0
  %v1116 = vadd.f32 %v264, %v1115
  %v1117 = vpop.f32.mrb[0].mxu0
  %1118 = vmatprep.mubr.f32.mxu0 0.0
  %1119 = vmatmul.mubr.f32.gmra.mrb[0].mxu0 %v304
  %v1120 = vpop.f32.mrb[0].mxu0
  %v1121 = vadd.f32 %v264, %v1120
  %v1122 = vpop.f32.mrb[0].mxu0
  %1123 = vmatprep.mubr.f32.mxu0 0.0
  %1124 = vmatmul.mubr.f32.gmra.mrb[0].mxu0 %v307
  %v1125 = vpop.f32.mrb[0].mxu0
  %v1126 = vadd.f32 %v264, %v1125
  %v1127 = vpop.f32.mrb[0].mxu0
  %1128 = vmatprep.mubr.f32.mxu0 0.0
  %1129 = vmatmul.mubr.f32.gmra.mrb[0].mxu0 %v310
  %v1130 = vpop.f32.mrb[0].mxu0
  %v1131 = vadd.f32 %v264, %v1130
  %v1132 = vpop.f32.mrb[0].mxu0
  %1133 = vmatprep.mubr.f32.mxu0 0.0
  %1134 = vmatmul.mubr.f32.gmra.mrb[0].mxu0 %v313
  %v1135 = vpop.f32.mrb[0].mxu0
  %v1136 = vadd.f32 %v264, %v1135
  %v1137 = vpop.f32.mrb[0].mxu0
  %1138 = vmatprep.mubr.f32.mxu0 0.0
  %1139 = vmatmul.mubr.f32.gmra.mrb[0].mxu0 %v316
  %v1140 = vpop.f32.mrb[0].mxu0
  %v1141 = vadd.f32 %v264, %v1140
  %v1142 = vpop.f32.mrb[0].mxu0
  %1143 = vmatprep.mubr.f32.mxu0 0.0
  %1144 = vmatmul.mubr.f32.gmra.mrb[0].mxu0 %v319
  %v1145 = vpop.f32.mrb[0].mxu0
  %v1146 = vadd.f32 %v264, %v1145
  %v1147 = vpop.f32.mrb[0].mxu0
  %1148 = vmatprep.mubr.f32.mxu0 0.0
  %1149 = vmatmul.mubr.f32.gmra.mrb[0].mxu0 %v322
  %v1150 = vpop.f32.mrb[0].mxu0
  %v1151 = vadd.f32 %v264, %v1150
  %v1152 = vpop.f32.mrb[0].mxu0
  %1153 = vmatprep.mubr.f32.mxu0 0.0
  %1154 = vmatmul.mubr.f32.gmra.mrb[0].mxu0 %v325
  %v1155 = vpop.f32.mrb[0].mxu0
  %v1156 = vadd.f32 %v264, %v1155
  %v1157 = vpop.f32.mrb[0].mxu0
  %1158 = vmatprep.mubr.f32.mxu0 0.0
  %1159 = vmatmul.mubr.f32.gmra.mrb[0].mxu0 %v328
  %v1160 = vpop.f32.mrb[0].mxu0
  %v1161 = vadd.f32 %v264, %v1160
  %v1162 = vpop.f32.mrb[0].mxu0
  %1163 = vmatprep.mubr.f32.mxu0 0.0
  %1164 = vmatmul.mubr.f32.gmra.mrb[0].mxu0 %v331
  %v1165 = vpop.f32.mrb[0].mxu0
  %v1166 = vadd.f32 %v264, %v1165
  %v1167 = vpop.f32.mrb[0].mxu0
  %1168 = vmatprep.mubr.f32.mxu0 0.0
  %1169 = vmatmul.mubr.f32.gmra.mrb[0].mxu0 %v334
  %v1170 = vpop.f32.mrb[0].mxu0
  %v1171 = vadd.f32 %v264, %v1170
  %v1172 = vpop.f32.mrb[0].mxu0
  %1173 = vmatprep.mubr.f32.mxu0 0.0
  %1174 = vmatmul.mubr.f32.gmra.mrb[0].mxu0 %v337
  %v1175 = vpop.f32.mrb[0].mxu0
  %v1176 = vadd.f32 %v264, %v1175
  %v1177 = vpop.f32.mrb[0].mxu0
  %1178 = vmatprep.mubr.f32.mxu0 0.0
  %1179 = vmatmul.mubr.f32.gmra.mrb[0].mxu0 %v340
  %v1180 = vpop.f32.mrb[0].mxu0
  %v1181 = vadd.f32 %v264, %v1180
  %v1182 = vpop.f32.mrb[0].mxu0
  %1183 = vmatprep.mubr.f32.mxu0 0.0
  %1184 = vmatmul.mubr.f32.gmra.mrb[0].mxu0 %v343
  %v1185 = vpop.f32.mrb[0].mxu0
  %v1186 = vadd.f32 %v264, %v1185
  %v1187 = vpop.f32.mrb[0].mxu0
  %1188 = vmatprep.mubr.f32.mxu0 0.0
  %1189 = vmatmul.mubr.f32.gmra.mrb[0].mxu0 %v346
  %v1190 = vpop.f32.mrb[0].mxu0
  %v1191 = vadd.f32 %v264, %v1190
  %v1192 = vpop.f32.mrb[0].mxu0
  %1193 = vmatprep.mubr.f32.mxu0 0.0
  %1194 = vmatmul.mubr.f32.gmra.mrb[0].mxu0 %v349
  %v1195 = vpop.f32.mrb[0].mxu0
  %v1196 = vadd.f32 %v264, %v1195
  %v1197 = vpop.f32.mrb[0].mxu0
  %1198 = vmatprep.mubr.f32.mxu0 0.0
  %1199 = vmatmul.mubr.f32.gmra.mrb[0].mxu0 %v352
  %v1200 = vpop.f32.mrb[0].mxu0
  %v1201 = vadd.f32 %v264, %v1200
  %v1202 = vpop.f32.mrb[0].mxu0
  %1203 = vmatprep.mubr.f32.mxu0 0.0
  %1204 = vmatmul.mubr.f32.gmra.mrb[0].mxu0 %v355
  %v1205 = vpop.f32.mrb[0].mxu0
  %v1206 = vadd.f32 %v264, %v1205
  %v1207 = vpop.f32.mrb[0].mxu0
  %1208 = vmatprep.mubr.f32.mxu0 0.0
  %1209 = vmatmul.mubr.f32.gmra.mrb[0].mxu0 %v358
  %v1210 = vpop.f32.mrb[0].mxu0
  %v1211 = vadd.f32 %v264, %v1210
  %v1212 = vpop.f32.mrb[0].mxu0
  %1213 = vmatprep.mubr.f32.mxu0 0.0
  %1214 = vmatmul.mubr.f32.gmra.mrb[0].mxu0 %v361
  %v1215 = vpop.f32.mrb[0].mxu0
  %v1216 = vadd.f32 %v264, %v1215
  %v1217 = vpop.f32.mrb[0].mxu0
  %1218 = vmatprep.mubr.f32.mxu0 0.0
  %1219 = vmatmul.mubr.f32.gmra.mrb[0].mxu0 %v364
  %v1220 = vpop.f32.mrb[0].mxu0
  %v1221 = vadd.f32 %v264, %v1220
  %v1222 = vpop.f32.mrb[0].mxu0
  %1223 = vmatprep.mubr.f32.mxu0 0.0
  %1224 = vmatmul.mubr.f32.gmra.mrb[0].mxu0 %v367
  %v1225 = vpop.f32.mrb[0].mxu0
  %v1226 = vadd.f32 %v264, %v1225
  %v1227 = vpop.f32.mrb[0].mxu0
  %1228 = vmatprep.mubr.f32.mxu0 0.0
  %1229 = vmatmul.mubr.f32.gmra.mrb[0].mxu0 %v370
  %v1230 = vpop.f32.mrb[0].mxu0
  %v1231 = vadd.f32 %v264, %v1230
  %v1232 = vpop.f32.mrb[0].mxu0
  %1233 = vmatprep.mubr.f32.mxu0 0.0
  %1234 = vmatmul.mubr.f32.gmra.mrb[0].mxu0 %v373
  %v1235 = vpop.f32.mrb[0].mxu0
  %v1236 = vadd.f32 %v264, %v1235
  %v1237 = vpop.f32.mrb[0].mxu0
  %1238 = vmatprep.mubr.f32.mxu0 0.0
  %1239 = vmatmul.mubr.f32.gmra.mrb[0].mxu0 %v376
  %v1240 = vpop.f32.mrb[0].mxu0
  %v1241 = vadd.f32 %v264, %v1240
  %v1242 = vpop.f32.mrb[0].mxu0
  %1243 = vmatprep.mubr.f32.mxu0 0.0
  %1244 = vmatmul.mubr.f32.gmra.mrb[0].mxu0 %v379
  %v1245 = vpop.f32.mrb[0].mxu0
  %v1246 = vadd.f32 %v264, %v1245
  %v1247 = vpop.f32.mrb[0].mxu0
  %1248 = vmatprep.mubr.f32.mxu0 0.0
  %1249 = vmatmul.mubr.f32.gmra.mrb[0].mxu0 %v382
  %v1250 = vpop.f32.mrb[0].mxu0
  %v1251 = vadd.f32 %v264, %v1250
  %v1252 = vpop.f32.mrb[0].mxu0
  %1253 = vmatprep.mubr.f32.mxu0 0.0
  %1254 = vmatmul.mubr.f32.gmra.mrb[0].mxu0 %v385
  %v1255 = vpop.f32.mrb[0].mxu0
  %v1256 = vadd.f32 %v264, %v1255
  %v1257 = vpop.f32.mrb[0].mxu0
  %1258 = vmatprep.mubr.f32.mxu0 0.0
  %1259 = vmatmul.mubr.f32.gmra.mrb[0].mxu0 %v388
  %v1260 = vpop.f32.mrb[0].mxu0
  %v1261 = vadd.f32 %v264, %v1260
  %v1262 = vpop.f32.mrb[0].mxu0
  %1263 = vmatprep.mubr.f32.mxu0 0.0
  %1264 = vmatmul.mubr.f32.gmra.mrb[0].mxu0 %v391
  %v1265 = vpop.f32.mrb[0].mxu0
  %v1266 = vadd.f32 %v264, %v1265
  %v1267 = vpop.f32.mrb[0].mxu0
  %1268 = vmatprep.mubr.f32.mxu0 0.0
  %1269 = vmatmul.mubr.f32.gmra.mrb[0].mxu0 %v394
  %v1270 = vpop.f32.mrb[0].mxu0
  %v1271 = vadd.f32 %v264, %v1270
  %v1272 = vpop.f32.mrb[0].mxu0
  %1273 = vmatprep.mubr.f32.mxu0 0.0
  %1274 = vmatmul.mubr.f32.gmra.mrb[0].mxu0 %v397
  %v1275 = vpop.f32.mrb[0].mxu0
  %v1276 = vadd.f32 %v264, %v1275
  %v1277 = vpop.f32.mrb[0].mxu0
  %1278 = vmatprep.mubr.f32.mxu0 0.0
  %1279 = vmatmul.mubr.f32.gmra.mrb[0].mxu0 %v400
  %v1280 = vpop.f32.mrb[0].mxu0
  %v1281 = vadd.f32 %v264, %v1280
  %v1282 = vpop.f32.mrb[0].mxu0
  %1283 = vmatprep.mubr.f32.mxu0 0.0
  %1284 = vmatmul.mubr.f32.gmra.mrb[0].mxu0 %v403
  %v1285 = vpop.f32.mrb[0].mxu0
  %v1286 = vadd.f32 %v264, %v1285
  %v1287 = vpop.f32.mrb[0].mxu0
  %1288 = vmatprep.mubr.f32.mxu0 0.0
  %1289 = vmatmul.mubr.f32.gmra.mrb[0].mxu0 %v406
  %v1290 = vpop.f32.mrb[0].mxu0
  %v1291 = vadd.f32 %v264, %v1290
  %v1292 = vpop.f32.mrb[0].mxu0
  %1293 = vmatprep.mubr.f32.mxu0 0.0
  %1294 = vmatmul.mubr.f32.gmra.mrb[0].mxu0 %v409
  %v1295 = vpop.f32.mrb[0].mxu0
  %v1296 = vadd.f32 %v264, %v1295
  %v1297 = vpop.f32.mrb[0].mxu0
  %1298 = vmatprep.mubr.f32.mxu0 0.0
  %1299 = vmatmul.mubr.f32.gmra.mrb[0].mxu0 %v412
  %v1300 = vpop.f32.mrb[0].mxu0
  %v1301 = vadd.f32 %v264, %v1300
  %v1302 = vpop.f32.mrb[0].mxu0
  %1303 = vmatprep.mubr.f32.mxu0 0.0
  %1304 = vmatmul.mubr.f32.gmra.mrb[0].mxu0 %v415
  %v1305 = vpop.f32.mrb[0].mxu0
  %v1306 = vadd.f32 %v264, %v1305
  %v1307 = vpop.f32.mrb[0].mxu0
  %1308 = vmatprep.mubr.f32.mxu0 0.0
  %1309 = vmatmul.mubr.f32.gmra.mrb[0].mxu0 %v418
  %v1310 = vpop.f32.mrb[0].mxu0
  %v1311 = vadd.f32 %v264, %v1310
  %v1312 = vpop.f32.mrb[0].mxu0
  %1313 = vmatprep.mubr.f32.mxu0 0.0
  %1314 = vmatmul.mubr.f32.gmra.mrb[0].mxu0 %v421
  %v1315 = vpop.f32.mrb[0].mxu0
  %v1316 = vadd.f32 %v264, %v1315
  %v1317 = vpop.f32.mrb[0].mxu0
  %1318 = vmatprep.mubr.f32.mxu0 0.0
  %1319 = vmatmul.mubr.f32.gmra.mrb[0].mxu0 %v424
  %v1320 = vpop.f32.mrb[0].mxu0
  %v1321 = vadd.f32 %v264, %v1320
  %v1322 = vpop.f32.mrb[0].mxu0
  %1323 = vmatprep.mubr.f32.mxu0 0.0
  %1324 = vmatmul.mubr.f32.gmra.mrb[0].mxu0 %v427
  %v1325 = vpop.f32.mrb[0].mxu0
  %v1326 = vadd.f32 %v264, %v1325
  %v1327 = vpop.f32.mrb[0].mxu0
  %1328 = vmatprep.mubr.f32.mxu0 0.0
  %1329 = vmatmul.mubr.f32.gmra.mrb[0].mxu0 %v430
  %v1330 = vpop.f32.mrb[0].mxu0
  %v1331 = vadd.f32 %v264, %v1330
  %v1332 = vpop.f32.mrb[0].mxu0
  %1333 = vmatprep.mubr.f32.mxu0 0.0
  %1334 = vmatmul.mubr.f32.gmra.mrb[0].mxu0 %v433
  %v1335 = vpop.f32.mrb[0].mxu0
  %v1336 = vadd.f32 %v264, %v1335
  %v1337 = vpop.f32.mrb[0].mxu0
  %1338 = vmatprep.mubr.f32.mxu0 0.0
  %1339 = vmatmul.mubr.f32.gmra.mrb[0].mxu0 %v436
  %v1340 = vpop.f32.mrb[0].mxu0
  %v1341 = vadd.f32 %v264, %v1340
  %v1342 = vpop.f32.mrb[0].mxu0
  %1343 = vmatprep.mubr.f32.mxu0 0.0
  %1344 = vmatmul.mubr.f32.gmra.mrb[0].mxu0 %v439
  %v1345 = vpop.f32.mrb[0].mxu0
  %v1346 = vadd.f32 %v264, %v1345
  %v1347 = vpop.f32.mrb[0].mxu0
  %1348 = vmatprep.mubr.f32.mxu0 0.0
  %1349 = vmatmul.mubr.f32.gmra.mrb[0].mxu0 %v442
  %v1350 = vpop.f32.mrb[0].mxu0
  %v1351 = vadd.f32 %v264, %v1350
  %v1352 = vpop.f32.mrb[0].mxu0
  %1353 = vmatprep.mubr.f32.mxu0 0.0
  %1354 = vmatmul.mubr.f32.gmra.mrb[0].mxu0 %v445
  %v1355 = vpop.f32.mrb[0].mxu0
  %v1356 = vadd.f32 %v264, %v1355
  %v1357 = vpop.f32.mrb[0].mxu0
  %1358 = vmatprep.mubr.f32.mxu0 0.0
  %1359 = vmatmul.mubr.f32.gmra.mrb[0].mxu0 %v448
  %v1360 = vpop.f32.mrb[0].mxu0
  %v1361 = vadd.f32 %v264, %v1360
  %v1362 = vpop.f32.mrb[0].mxu0
  %1363 = vmatprep.mubr.f32.mxu0 0.0
  %1364 = vmatmul.mubr.f32.gmra.mrb[0].mxu0 %v451
  %v1365 = vpop.f32.mrb[0].mxu0
  %v1366 = vadd.f32 %v264, %v1365
  %v1367 = vpop.f32.mrb[0].mxu0
  %1368 = vmatprep.mubr.f32.mxu0 0.0
  %1369 = vmatmul.mubr.f32.gmra.mrb[0].mxu0 %v454
  %v1370 = vpop.f32.mrb[0].mxu0
  %v1371 = vadd.f32 %v264, %v1370
  %v1372 = vpop.f32.mrb[0].mxu0
  %1373 = vmatprep.mubr.f32.mxu0 0.0
  %1374 = vmatmul.mubr.f32.gmra.mrb[0].mxu0 %v457
  %v1375 = vpop.f32.mrb[0].mxu0
  %v1376 = vadd.f32 %v264, %v1375
  %v1377 = vpop.f32.mrb[0].mxu0
  %1378 = vmatprep.mubr.f32.mxu0 0.0
  %1379 = vmatmul.mubr.f32.gmra.mrb[0].mxu0 %v460
  %v1380 = vpop.f32.mrb[0].mxu0
  %v1381 = vadd.f32 %v264, %v1380
  %v1382 = vpop.f32.mrb[0].mxu0
  %1383 = vmatprep.mubr.f32.mxu0 0.0
  %1384 = vmatmul.mubr.f32.gmra.mrb[0].mxu0 %v463
  %v1385 = vpop.f32.mrb[0].mxu0
  %v1386 = vadd.f32 %v264, %v1385
  %v1387 = vpop.f32.mrb[0].mxu0
  %1388 = vmatprep.mubr.f32.mxu0 0.0
  %1389 = vmatmul.mubr.f32.gmra.mrb[0].mxu0 %v466
  %v1390 = vpop.f32.mrb[0].mxu0
  %v1391 = vadd.f32 %v264, %v1390
  %v1392 = vpop.f32.mrb[0].mxu0
  %1393 = vmatprep.mubr.f32.mxu0 0.0
  %1394 = vmatmul.mubr.f32.gmra.mrb[0].mxu0 %v469
  %v1395 = vpop.f32.mrb[0].mxu0
  %v1396 = vadd.f32 %v264, %v1395
  %v1397 = vpop.f32.mrb[0].mxu0
  %1398 = vmatprep.mubr.f32.mxu0 0.0
  %1399 = vmatmul.mubr.f32.gmra.mrb[0].mxu0 %v472
  %v1400 = vpop.f32.mrb[0].mxu0
  %v1401 = vadd.f32 %v264, %v1400
  %v1402 = vpop.f32.mrb[0].mxu0
  %1403 = vmatprep.mubr.f32.mxu0 0.0
  %1404 = vmatmul.mubr.f32.gmra.mrb[0].mxu0 %v475
  %v1405 = vpop.f32.mrb[0].mxu0
  %v1406 = vadd.f32 %v264, %v1405
  %v1407 = vpop.f32.mrb[0].mxu0
  %1408 = vmatprep.mubr.f32.mxu0 0.0
  %1409 = vmatmul.mubr.f32.gmra.mrb[0].mxu0 %v478
  %v1410 = vpop.f32.mrb[0].mxu0
  %v1411 = vadd.f32 %v264, %v1410
  %v1412 = vpop.f32.mrb[0].mxu0
  %1413 = vmatprep.mubr.f32.mxu0 0.0
  %1414 = vmatmul.mubr.f32.gmra.mrb[0].mxu0 %v481
  %v1415 = vpop.f32.mrb[0].mxu0
  %v1416 = vadd.f32 %v264, %v1415
  %v1417 = vpop.f32.mrb[0].mxu0
  %1418 = vmatprep.mubr.f32.mxu0 0.0
  %1419 = vmatmul.mubr.f32.gmra.mrb[0].mxu0 %v484
  %v1420 = vpop.f32.mrb[0].mxu0
  %v1421 = vadd.f32 %v264, %v1420
  %v1422 = vpop.f32.mrb[0].mxu0
  %1423 = vmatprep.mubr.f32.mxu0 0.0
  %1424 = vmatmul.mubr.f32.gmra.mrb[0].mxu0 %v487
  %v1425 = vpop.f32.mrb[0].mxu0
  %v1426 = vadd.f32 %v264, %v1425
  %v1427 = vpop.f32.mrb[0].mxu0
  %1428 = vmatprep.mubr.f32.mxu0 0.0
  %1429 = vmatmul.mubr.f32.gmra.mrb[0].mxu0 %v490
  %v1430 = vpop.f32.mrb[0].mxu0
  %v1431 = vadd.f32 %v264, %v1430
  %v1432 = vpop.f32.mrb[0].mxu0
  %1433 = vmatprep.mubr.f32.mxu0 0.0
  %1434 = vmatmul.mubr.f32.gmra.mrb[0].mxu0 %v493
  %v1435 = vpop.f32.mrb[0].mxu0
  %v1436 = vadd.f32 %v264, %v1435
  %v1437 = vpop.f32.mrb[0].mxu0
  %1438 = vmatprep.mubr.f32.mxu0 0.0
  %1439 = vmatmul.mubr.f32.gmra.mrb[0].mxu0 %v496
  %v1440 = vpop.f32.mrb[0].mxu0
  %v1441 = vadd.f32 %v264, %v1440
  %v1442 = vpop.f32.mrb[0].mxu0
  %1443 = vmatprep.mubr.f32.mxu0 0.0
  %1444 = vmatmul.mubr.f32.gmra.mrb[0].mxu0 %v499
  %v1445 = vpop.f32.mrb[0].mxu0
  %v1446 = vadd.f32 %v264, %v1445
  %v1447 = vpop.f32.mrb[0].mxu0
  %1448 = vmatprep.mubr.f32.mxu0 0.0
  %1449 = vmatmul.mubr.f32.gmra.mrb[0].mxu0 %v502
  %v1450 = vpop.f32.mrb[0].mxu0
  %v1451 = vadd.f32 %v264, %v1450
  %v1452 = vpop.f32.mrb[0].mxu0
  %1453 = vmatprep.mubr.f32.mxu0 0.0
  %1454 = vmatmul.mubr.f32.gmra.mrb[0].mxu0 %v505
  %v1455 = vpop.f32.mrb[0].mxu0
  %v1456 = vadd.f32 %v264, %v1455
  %v1457 = vpop.f32.mrb[0].mxu0
  %1458 = vmatprep.mubr.f32.mxu0 0.0
  %1459 = vmatmul.mubr.f32.gmra.mrb[0].mxu0 %v508
  %v1460 = vpop.f32.mrb[0].mxu0
  %v1461 = vadd.f32 %v264, %v1460
  %v1462 = vpop.f32.mrb[0].mxu0
  %1463 = vmatprep.mubr.f32.mxu0 0.0
  %1464 = vmatmul.mubr.f32.gmra.mrb[0].mxu0 %v511
  %v1465 = vpop.f32.mrb[0].mxu0
  %v1466 = vadd.f32 %v264, %v1465
  %v1467 = vpop.f32.mrb[0].mxu0
  %1468 = vmatprep.mubr.f32.mxu0 0.0
  %1469 = vmatmul.mubr.f32.gmra.mrb[0].mxu0 %v514
  %v1470 = vpop.f32.mrb[0].mxu0
  %v1471 = vadd.f32 %v264, %v1470
  %v1472 = vpop.f32.mrb[0].mxu0
  %1473 = vmatprep.mubr.f32.mxu0 0.0
  %1474 = vmatmul.mubr.f32.gmra.mrb[0].mxu0 %v517
  %v1475 = vpop.f32.mrb[0].mxu0
  %v1476 = vadd.f32 %v264, %v1475
  %v1477 = vpop.f32.mrb[0].mxu0
  %1478 = vmatprep.mubr.f32.mxu0 0.0
  %1479 = vmatmul.mubr.f32.gmra.mrb[0].mxu0 %v520
  %v1480 = vpop.f32.mrb[0].mxu0
  %v1481 = vadd.f32 %v264, %v1480
  %v1482 = vpop.f32.mrb[0].mxu0
  %1483 = vmatprep.mubr.f32.mxu0 0.0
  %1484 = vmatmul.mubr.f32.gmra.mrb[0].mxu0 %v523
  %v1485 = vpop.f32.mrb[0].mxu0
  %v1486 = vadd.f32 %v264, %v1485
  %v1487 = vpop.f32.mrb[0].mxu0
  %1488 = vmatprep.mubr.f32.mxu0 0.0
  %1489 = vmatmul.mubr.f32.gmra.mrb[0].mxu0 %v526
  %v1490 = vpop.f32.mrb[0].mxu0
  %v1491 = vadd.f32 %v264, %v1490
  %v1492 = vpop.f32.mrb[0].mxu0
  %1493 = vmatprep.mubr.f32.mxu0 0.0
  %1494 = vmatmul.mubr.f32.gmra.mrb[0].mxu0 %v529
  %v1495 = vpop.f32.mrb[0].mxu0
  %v1496 = vadd.f32 %v264, %v1495
  %v1497 = vpop.f32.mrb[0].mxu0
  %1498 = vmatprep.mubr.f32.mxu0 0.0
  %1499 = vmatmul.mubr.f32.gmra.mrb[0].mxu0 %v532
  %v1500 = vpop.f32.mrb[0].mxu0
  %v1501 = vadd.f32 %v264, %v1500
  %v1502 = vpop.f32.mrb[0].mxu0
  %1503 = vmatprep.mubr.f32.mxu0 0.0
  %1504 = vmatmul.mubr.f32.gmra.mrb[0].mxu0 %v535
  %v1505 = vpop.f32.mrb[0].mxu0
  %v1506 = vadd.f32 %v264, %v1505
  %v1507 = vpop.f32.mrb[0].mxu0
  %1508 = vmatprep.mubr.f32.mxu0 0.0
  %1509 = vmatmul.mubr.f32.gmra.mrb[0].mxu0 %v538
  %v1510 = vpop.f32.mrb[0].mxu0
  %v1511 = vadd.f32 %v264, %v1510
  %v1512 = vpop.f32.mrb[0].mxu0
  %1513 = vmatprep.mubr.f32.mxu0 0.0
  %1514 = vmatmul.mubr.f32.gmra.mrb[0].mxu0 %v541
  %v1515 = vpop.f32.mrb[0].mxu0
  %v1516 = vadd.f32 %v264, %v1515
  %v1517 = vpop.f32.mrb[0].mxu0
  %1518 = vmatprep.mubr.f32.mxu0 0.0
  %1519 = vmatmul.mubr.f32.gmra.mrb[0].mxu0 %v544
  %v1520 = vpop.f32.mrb[0].mxu0
  %v1521 = vadd.f32 %v264, %v1520
  %v1522 = vpop.f32.mrb[0].mxu0
  %1523 = vmatprep.mubr.f32.mxu0 0.0
  %1524 = vmatmul.mubr.f32.gmra.mrb[0].mxu0 %v547
  %v1525 = vpop.f32.mrb[0].mxu0
  %v1526 = vadd.f32 %v264, %v1525
  %v1527 = vpop.f32.mrb[0].mxu0
  %1528 = vmatprep.mubr.f32.mxu0 0.0
  %1529 = vmatmul.mubr.f32.gmra.mrb[0].mxu0 %v550
  %v1530 = vpop.f32.mrb[0].mxu0
  %v1531 = vadd.f32 %v264, %v1530
  %v1532 = vpop.f32.mrb[0].mxu0
  %1533 = vmatprep.mubr.f32.mxu0 0.0
  %1534 = vmatmul.mubr.f32.gmra.mrb[0].mxu0 %v553
  %v1535 = vpop.f32.mrb[0].mxu0
  %v1536 = vadd.f32 %v264, %v1535
  %v1537 = vpop.f32.mrb[0].mxu0
  %1538 = vmatprep.mubr.f32.mxu0 0.0
  %1539 = vmatmul.mubr.f32.gmra.mrb[0].mxu0 %v556
  %v1540 = vpop.f32.mrb[0].mxu0
  %v1541 = vadd.f32 %v264, %v1540
  %v1542 = vpop.f32.mrb[0].mxu0
  %1543 = vmatprep.mubr.f32.mxu0 0.0
  %1544 = vmatmul.mubr.f32.gmra.mrb[0].mxu0 %v559
  %v1545 = vpop.f32.mrb[0].mxu0
  %v1546 = vadd.f32 %v264, %v1545
  %v1547 = vpop.f32.mrb[0].mxu0
  %1548 = vmatprep.mubr.f32.mxu0 0.0
  %1549 = vmatmul.mubr.f32.gmra.mrb[0].mxu0 %v562
  %v1550 = vpop.f32.mrb[0].mxu0
  %v1551 = vadd.f32 %v264, %v1550
  %v1552 = vpop.f32.mrb[0].mxu0
  %1553 = vmatprep.mubr.f32.mxu0 0.0
  %1554 = vmatmul.mubr.f32.gmra.mrb[0].mxu0 %v565
  %v1555 = vpop.f32.mrb[0].mxu0
  %v1556 = vadd.f32 %v264, %v1555
  %v1557 = vpop.f32.mrb[0].mxu0
  %1558 = vmatprep.mubr.f32.mxu0 0.0
  %1559 = vmatmul.mubr.f32.gmra.mrb[0].mxu0 %v568
  %v1560 = vpop.f32.mrb[0].mxu0
  %v1561 = vadd.f32 %v264, %v1560
  %v1562 = vpop.f32.mrb[0].mxu0
  %1563 = vmatprep.mubr.f32.mxu0 0.0
  %1564 = vmatmul.mubr.f32.gmra.mrb[0].mxu0 %v571
  %v1565 = vpop.f32.mrb[0].mxu0
  %v1566 = vadd.f32 %v264, %v1565
  %v1567 = vpop.f32.mrb[0].mxu0
  %1568 = vmatprep.mubr.f32.mxu0 0.0
  %1569 = vmatmul.mubr.f32.gmra.mrb[0].mxu0 %v574
  %v1570 = vpop.f32.mrb[0].mxu0
  %v1571 = vadd.f32 %v264, %v1570
  %v1572 = vpop.f32.mrb[0].mxu0
  %1573 = vmatprep.mubr.f32.mxu0 0.0
  %1574 = vmatmul.mubr.f32.gmra.mrb[0].mxu0 %v577
  %v1575 = vpop.f32.mrb[0].mxu0
  %v1576 = vadd.f32 %v264, %v1575
  %v1577 = vpop.f32.mrb[0].mxu0
  %1578 = vmatprep.mubr.f32.mxu0 0.0
  %1579 = vmatmul.mubr.f32.gmra.mrb[0].mxu0 %v580
  %v1580 = vpop.f32.mrb[0].mxu0
  %v1581 = vadd.f32 %v264, %v1580
  %v1582 = vpop.f32.mrb[0].mxu0
  %1583 = vmatprep.mubr.f32.mxu0 0.0
  %1584 = vmatmul.mubr.f32.gmra.mrb[0].mxu0 %v583
  %v1585 = vpop.f32.mrb[0].mxu0
  %v1586 = vadd.f32 %v264, %v1585
  %v1587 = vpop.f32.mrb[0].mxu0
  %1588 = vmatprep.mubr.f32.mxu0 0.0
  %1589 = vmatmul.mubr.f32.gmra.mrb[0].mxu0 %v586
  %v1590 = vpop.f32.mrb[0].mxu0
  %v1591 = vadd.f32 %v264, %v1590
  %v1592 = vpop.f32.mrb[0].mxu0
  %1593 = vmatprep.mubr.f32.mxu0 0.0
  %1594 = vmatmul.mubr.f32.gmra.mrb[0].mxu0 %v589
  %v1595 = vpop.f32.mrb[0].mxu0
  %v1596 = vadd.f32 %v264, %v1595
  %v1597 = vpop.f32.mrb[0].mxu0
  %1598 = vmatprep.mubr.f32.mxu0 0.0
  %1599 = vmatmul.mubr.f32.gmra.mrb[0].mxu0 %v592
  %v1600 = vpop.f32.mrb[0].mxu0
  %v1601 = vadd.f32 %v264, %v1600
  %v1602 = vpop.f32.mrb[0].mxu0
  %1603 = vmatprep.mubr.f32.mxu0 0.0
  %1604 = vmatmul.mubr.f32.gmra.mrb[0].mxu0 %v595
  %v1605 = vpop.f32.mrb[0].mxu0
  %v1606 = vadd.f32 %v264, %v1605
  %v1607 = vpop.f32.mrb[0].mxu0
  %1608 = vmatprep.mubr.f32.mxu0 0.0
  %1609 = vmatmul.mubr.f32.gmra.mrb[0].mxu0 %v598
  %v1610 = vpop.f32.mrb[0].mxu0
  %v1611 = vadd.f32 %v264, %v1610
  %v1612 = vpop.f32.mrb[0].mxu0
  %1613 = vmatprep.mubr.f32.mxu0 0.0
  %1614 = vmatmul.mubr.f32.gmra.mrb[0].mxu0 %v601
  %v1615 = vpop.f32.mrb[0].mxu0
  %v1616 = vadd.f32 %v264, %v1615
  %v1617 = vpop.f32.mrb[0].mxu0
  %1618 = vmatprep.mubr.f32.mxu0 0.0
  %1619 = vmatmul.mubr.f32.gmra.mrb[0].mxu0 %v604
  %v1620 = vpop.f32.mrb[0].mxu0
  %v1621 = vadd.f32 %v264, %v1620
  %v1622 = vpop.f32.mrb[0].mxu0
  %1623 = vmatprep.mubr.f32.mxu0 0.0
  %1624 = vmatmul.mubr.f32.gmra.mrb[0].mxu0 %v607
  %v1625 = vpop.f32.mrb[0].mxu0
  %v1626 = vadd.f32 %v264, %v1625
  %v1627 = vpop.f32.mrb[0].mxu0
  %1628 = vmatprep.mubr.f32.mxu0 0.0
  %1629 = vmatmul.mubr.f32.gmra.mrb[0].mxu0 %v610
  %v1630 = vpop.f32.mrb[0].mxu0
  %v1631 = vadd.f32 %v264, %v1630
  %v1632 = vpop.f32.mrb[0].mxu0
  %1633 = vmatprep.mubr.f32.mxu0 0.0
  %1634 = vmatmul.mubr.f32.gmra.mrb[0].mxu0 %v613
  %v1635 = vpop.f32.mrb[0].mxu0
  %v1636 = vadd.f32 %v264, %v1635
  %v1637 = vpop.f32.mrb[0].mxu0
  %1638 = vmatprep.mubr.f32.mxu0 0.0
  %1639 = vmatmul.mubr.f32.gmra.mrb[0].mxu0 %v616
  %v1640 = vpop.f32.mrb[0].mxu0
  %v1641 = vadd.f32 %v264, %v1640
  %v1642 = vpop.f32.mrb[0].mxu0
  %1643 = vmatprep.mubr.f32.mxu0 0.0
  %1644 = vmatmul.mubr.f32.gmra.mrb[0].mxu0 %v619
  %v1645 = vpop.f32.mrb[0].mxu0
  %v1646 = vadd.f32 %v264, %v1645
  %v1647 = vpop.f32.mrb[0].mxu0
  %1648 = vmatprep.mubr.f32.mxu0 0.0
  %1649 = vmatmul.mubr.f32.gmra.mrb[0].mxu0 %v622
  %v1650 = vpop.f32.mrb[0].mxu0
  %v1651 = vadd.f32 %v264, %v1650
  %v1652 = vpop.f32.mrb[0].mxu0
  %1653 = vmatprep.mubr.f32.mxu0 0.0
  %1654 = vmatmul.mubr.f32.gmra.mrb[0].mxu0 %v625
  %v1655 = vpop.f32.mrb[0].mxu0
  %v1656 = vadd.f32 %v264, %v1655
  %v1657 = vpop.f32.mrb[0].mxu0
  %1658 = vmatprep.mubr.f32.mxu0 0.0
  %1659 = vmatmul.mubr.f32.gmra.mrb[0].mxu0 %v628
  %v1660 = vpop.f32.mrb[0].mxu0
  %v1661 = vadd.f32 %v264, %v1660
  %v1662 = vpop.f32.mrb[0].mxu0
  %1663 = vmatprep.mubr.f32.mxu0 0.0
  %1664 = vmatmul.mubr.f32.gmra.mrb[0].mxu0 %v631
  %v1665 = vpop.f32.mrb[0].mxu0
  %v1666 = vadd.f32 %v264, %v1665
  %v1667 = vpop.f32.mrb[0].mxu0
  %1668 = vmatprep.mubr.f32.mxu0 0.0
  %1669 = vmatmul.mubr.f32.gmra.mrb[0].mxu0 %v634
  %v1670 = vpop.f32.mrb[0].mxu0
  %v1671 = vadd.f32 %v264, %v1670
  %v1672 = vpop.f32.mrb[0].mxu0
  %1673 = vmatprep.mubr.f32.mxu0 0.0
  %1674 = vmatmul.mubr.f32.gmra.mrb[0].mxu0 %v637
  %v1675 = vpop.f32.mrb[0].mxu0
  %v1676 = vadd.f32 %v264, %v1675
  %v1677 = vpop.f32.mrb[0].mxu0
  %1678 = vmatprep.mubr.f32.mxu0 0.0
  %1679 = vmatmul.mubr.f32.gmra.mrb[0].mxu0 %v640
  %v1680 = vpop.f32.mrb[0].mxu0
  %v1681 = vadd.f32 %v264, %v1680
  %v1682 = vpop.f32.mrb[0].mxu0
  %1683 = vmatprep.mubr.f32.mxu0 0.0
  %1684 = vmatmul.mubr.f32.gmra.mrb[0].mxu0 %v643
  %v1685 = vpop.f32.mrb[0].mxu0
  %v1686 = vadd.f32 %v264, %v1685
  %v1687 = vpop.f32.mrb[0].mxu0
  %1688 = vmatprep.mubr.f32.mxu0 0.0
  %1689 = vmatmul.mubr.f32.gmra.mrb[0].mxu0 %v646
  %v1690 = vpop.f32.mrb[0].mxu0
  %v1691 = vadd.f32 %v264, %v1690
  %v1692 = vpop.f32.mrb[0].mxu0
  %1693 = vmatprep.mubr.f32.mxu0 0.0
  %1694 = vmatmul.mubr.f32.gmra.mrb[0].mxu0 %v649
  %v1695 = vpop.f32.mrb[0].mxu0
  %v1696 = vadd.f32 %v264, %v1695
  %v1697 = vpop.f32.mrb[0].mxu0
  %1698 = vmatprep.mubr.f32.mxu0 0.0
  %1699 = vmatmul.mubr.f32.gmra.mrb[0].mxu0 %v652
  %v1700 = vpop.f32.mrb[0].mxu0
  %v1701 = vadd.f32 %v264, %v1700
  %v1702 = vpop.f32.mrb[0].mxu0
  %1703 = vmatprep.mubr.f32.mxu0 0.0
  %1704 = vmatmul.mubr.f32.gmra.mrb[0].mxu0 %v655
  %v1705 = vpop.f32.mrb[0].mxu0
  %v1706 = vadd.f32 %v264, %v1705
  %v1707 = vpop.f32.mrb[0].mxu0
  %1708 = vmatprep.mubr.f32.mxu0 0.0
  %1709 = vmatmul.mubr.f32.gmra.mrb[0].mxu0 %v658
  %v1710 = vpop.f32.mrb[0].mxu0
  %v1711 = vadd.f32 %v264, %v1710
  %v1712 = vpop.f32.mrb[0].mxu0
  %1713 = vmatprep.mubr.f32.mxu0 0.0
  %1714 = vmatmul.mubr.f32.gmra.mrb[0].mxu0 %v661
  %v1715 = vpop.f32.mrb[0].mxu0
  %v1716 = vadd.f32 %v264, %v1715
  %v1717 = vpop.f32.mrb[0].mxu0
  %1718 = vmatprep.mubr.f32.mxu0 0.0
  %1719 = vmatmul.mubr.f32.gmra.mrb[0].mxu0 %v664
  %v1720 = vpop.f32.mrb[0].mxu0
  %v1721 = vadd.f32 %v264, %v1720
  %v1722 = vpop.f32.mrb[0].mxu0
  %1723 = vmatprep.mubr.f32.mxu0 0.0
  %1724 = vmatmul.mubr.f32.gmra.mrb[0].mxu0 %v667
  %v1725 = vpop.f32.mrb[0].mxu0
  %v1726 = vadd.f32 %v264, %v1725
  %v1727 = vpop.f32.mrb[0].mxu0
  %1728 = vmatprep.mubr.f32.mxu0 0.0
  %1729 = vmatmul.mubr.f32.gmra.mrb[0].mxu0 %v670
  %v1730 = vpop.f32.mrb[0].mxu0
  %v1731 = vadd.f32 %v264, %v1730
  %v1732 = vpop.f32.mrb[0].mxu0
  %1733 = vmatprep.mubr.f32.mxu0 0.0
  %1734 = vmatmul.mubr.f32.gmra.mrb[0].mxu0 %v673
  %v1735 = vpop.f32.mrb[0].mxu0
  %v1736 = vadd.f32 %v264, %v1735
  %v1737 = vpop.f32.mrb[0].mxu0
  %1738 = vmatprep.mubr.f32.mxu0 0.0
  %1739 = vmatmul.mubr.f32.gmra.mrb[0].mxu0 %v676
  %v1740 = vpop.f32.mrb[0].mxu0
  %v1741 = vadd.f32 %v264, %v1740
  %v1742 = vpop.f32.mrb[0].mxu0
  %1743 = vmatprep.mubr.f32.mxu0 0.0
  %1744 = vmatmul.mubr.f32.gmra.mrb[0].mxu0 %v679
  %v1745 = vpop.f32.mrb[0].mxu0
  %v1746 = vadd.f32 %v264, %v1745
  %v1747 = vpop.f32.mrb[0].mxu0
  %1748 = vmatprep.mubr.f32.mxu0 0.0
  %1749 = vmatmul.mubr.f32.gmra.mrb[0].mxu0 %v682
  %v1750 = vpop.f32.mrb[0].mxu0
  %v1751 = vadd.f32 %v264, %v1750
  %v1752 = vpop.f32.mrb[0].mxu0
  %1753 = vmatprep.mubr.f32.mxu0 0.0
  %1754 = vmatmul.mubr.f32.gmra.mrb[0].mxu0 %v685
  %v1755 = vpop.f32.mrb[0].mxu0
  %v1756 = vadd.f32 %v264, %v1755
  %v1757 = vpop.f32.mrb[0].mxu0
  %1758 = vmatprep.mubr.f32.mxu0 0.0
  %1759 = vmatmul.mubr.f32.gmra.mrb[0].mxu0 %v688
  %v1760 = vpop.f32.mrb[0].mxu0
  %v1761 = vadd.f32 %v264, %v1760
  %v1762 = vpop.f32.mrb[0].mxu0
  %1763 = vmatprep.mubr.f32.mxu0 0.0
  %1764 = vmatmul.mubr.f32.gmra.mrb[0].mxu0 %v691
  %v1765 = vpop.f32.mrb[0].mxu0
  %v1766 = vadd.f32 %v264, %v1765
  %v1767 = vpop.f32.mrb[0].mxu0
  %1768 = vmatprep.mubr.f32.mxu0 0.0
  %1769 = vmatmul.mubr.f32.gmra.mrb[0].mxu0 %v694
  %v1770 = vpop.f32.mrb[0].mxu0
  %v1771 = vadd.f32 %v264, %v1770
  %v1772 = vpop.f32.mrb[0].mxu0
  %1773 = vmatprep.mubr.f32.mxu0 0.0
  %1774 = vmatmul.mubr.f32.gmra.mrb[0].mxu0 %v697
  %v1775 = vpop.f32.mrb[0].mxu0
  %v1776 = vadd.f32 %v264, %v1775
  %v1777 = vpop.f32.mrb[0].mxu0
  %1778 = vmatprep.mubr.f32.mxu0 0.0
  %1779 = vmatmul.mubr.f32.gmra.mrb[0].mxu0 %v700
  %v1780 = vpop.f32.mrb[0].mxu0
  %v1781 = vadd.f32 %v264, %v1780
  %v1782 = vpop.f32.mrb[0].mxu0
  %1783 = vmatprep.mubr.f32.mxu0 0.0
  %1784 = vmatmul.mubr.f32.gmra.mrb[0].mxu0 %v703
  %v1785 = vpop.f32.mrb[0].mxu0
  %v1786 = vadd.f32 %v264, %v1785
  %v1787 = vpop.f32.mrb[0].mxu0
  %1788 = vmatprep.mubr.f32.mxu0 0.0
  %1789 = vmatmul.mubr.f32.gmra.mrb[0].mxu0 %v706
  %v1790 = vpop.f32.mrb[0].mxu0
  %v1791 = vadd.f32 %v264, %v1790
  %v1792 = vpop.f32.mrb[0].mxu0
  %1793 = vmatprep.mubr.f32.mxu0 0.0
  %1794 = vmatmul.mubr.f32.gmra.mrb[0].mxu0 %v709
  %v1795 = vpop.f32.mrb[0].mxu0
  %v1796 = vadd.f32 %v264, %v1795
  %v1797 = vpop.f32.mrb[0].mxu0
  %1798 = vmatprep.mubr.f32.mxu0 0.0
  %1799 = vmatmul.mubr.f32.gmra.mrb[0].mxu0 %v712
  %v1800 = vpop.f32.mrb[0].mxu0
  %v1801 = vadd.f32 %v264, %v1800
  %v1802 = vpop.f32.mrb[0].mxu0
  %1803 = vmatprep.mubr.f32.mxu0 0.0
  %1804 = vmatmul.mubr.f32.gmra.mrb[0].mxu0 %v715
  %v1805 = vpop.f32.mrb[0].mxu0
  %v1806 = vadd.f32 %v264, %v1805
  %v1807 = vpop.f32.mrb[0].mxu0
  %1808 = vmatprep.mubr.f32.mxu0 0.0
  %1809 = vmatmul.mubr.f32.gmra.mrb[0].mxu0 %v718
  %v1810 = vpop.f32.mrb[0].mxu0
  %v1811 = vadd.f32 %v264, %v1810
  %v1812 = vpop.f32.mrb[0].mxu0
  %1813 = vmatprep.mubr.f32.mxu0 0.0
  %1814 = vmatmul.mubr.f32.gmra.mrb[0].mxu0 %v721
  %v1815 = vpop.f32.mrb[0].mxu0
  %v1816 = vadd.f32 %v264, %v1815
  %v1817 = vpop.f32.mrb[0].mxu0
  %1818 = vmatprep.mubr.f32.mxu0 0.0
  %1819 = vmatmul.mubr.f32.gmra.mrb[0].mxu0 %v724
  %v1820 = vpop.f32.mrb[0].mxu0
  %v1821 = vadd.f32 %v264, %v1820
  %v1822 = vpop.f32.mrb[0].mxu0
  %1823 = vmatprep.mubr.f32.mxu0 0.0
  %1824 = vmatmul.mubr.f32.gmra.mrb[0].mxu0 %v727
  %v1825 = vpop.f32.mrb[0].mxu0
  %v1826 = vadd.f32 %v264, %v1825
  %v1827 = vpop.f32.mrb[0].mxu0
  %1828 = vmatprep.mubr.f32.mxu0 0.0
  %1829 = vmatmul.mubr.f32.gmra.mrb[0].mxu0 %v730
  %v1830 = vpop.f32.mrb[0].mxu0
  %v1831 = vadd.f32 %v264, %v1830
  %v1832 = vpop.f32.mrb[0].mxu0
  %1833 = vmatprep.mubr.f32.mxu0 0.0
  %1834 = vmatmul.mubr.f32.gmra.mrb[0].mxu0 %v733
  %v1835 = vpop.f32.mrb[0].mxu0
  %v1836 = vadd.f32 %v264, %v1835
  %v1837 = vpop.f32.mrb[0].mxu0
  %1838 = vmatprep.mubr.f32.mxu0 0.0
  %1839 = vmatmul.mubr.f32.gmra.mrb[0].mxu0 %v736
  %v1840 = vpop.f32.mrb[0].mxu0
  %v1841 = vadd.f32 %v264, %v1840
  %v1842 = vpop.f32.mrb[0].mxu0
  %1843 = vmatprep.mubr.f32.mxu0 0.0
  %1844 = vmatmul.mubr.f32.gmra.mrb[0].mxu0 %v739
  %v1845 = vpop.f32.mrb[0].mxu0
  %v1846 = vadd.f32 %v264, %v1845
  %v1847 = vpop.f32.mrb[0].mxu0
  %1848 = vmatprep.mubr.f32.mxu0 0.0
  %1849 = vmatmul.mubr.f32.gmra.mrb[0].mxu0 %v742
  %v1850 = vpop.f32.mrb[0].mxu0
  %v1851 = vadd.f32 %v264, %v1850
  %v1852 = vpop.f32.mrb[0].mxu0
  %1853 = vmatprep.mubr.f32.mxu0 0.0
  %1854 = vmatmul.mubr.f32.gmra.mrb[0].mxu0 %v745
  %v1855 = vpop.f32.mrb[0].mxu0
  %v1856 = vadd.f32 %v264, %v1855
  %v1857 = vpop.f32.mrb[0].mxu0
  %1858 = vmatprep.mubr.f32.mxu0 0.0
  %1859 = vmatmul.mubr.f32.gmra.mrb[0].mxu0 %v748
  %v1860 = vpop.f32.mrb[0].mxu0
  %v1861 = vadd.f32 %v264, %v1860
  %v1862 = vpop.f32.mrb[0].mxu0
  %1863 = vmatprep.mubr.f32.mxu0 0.0
  %1864 = vmatmul.mubr.f32.gmra.mrb[0].mxu0 %v751
  %v1865 = vpop.f32.mrb[0].mxu0
  %v1866 = vadd.f32 %v264, %v1865
  %v1867 = vpop.f32.mrb[0].mxu0
  %1868 = vmatprep.mubr.f32.mxu0 0.0
  %1869 = vmatmul.mubr.f32.gmra.mrb[0].mxu0 %v754
  %v1870 = vpop.f32.mrb[0].mxu0
  %v1871 = vadd.f32 %v264, %v1870
  %v1872 = vpop.f32.mrb[0].mxu0
  %1873 = vmatprep.mubr.f32.mxu0 0.0
  %1874 = vmatmul.mubr.f32.gmra.mrb[0].mxu0 %v757
  %v1875 = vpop.f32.mrb[0].mxu0
  %v1876 = vadd.f32 %v264, %v1875
  %v1877 = vpop.f32.mrb[0].mxu0
  %1878 = vmatprep.mubr.f32.mxu0 0.0
  %1879 = vmatmul.mubr.f32.gmra.mrb[0].mxu0 %v760
  %v1880 = vpop.f32.mrb[0].mxu0
  %v1881 = vadd.f32 %v264, %v1880
  %v1882 = vpop.f32.mrb[0].mxu0
  %1883 = vmatprep.mubr.f32.mxu0 0.0
  %1884 = vmatmul.mubr.f32.gmra.mrb[0].mxu0 %v763
  %v1885 = vpop.f32.mrb[0].mxu0
  %v1886 = vadd.f32 %v264, %v1885
  %v1887 = vpop.f32.mrb[0].mxu0
  %1888 = vmatprep.mubr.f32.mxu0 0.0
  %1889 = vmatmul.mubr.f32.gmra.mrb[0].mxu0 %v766
  %v1890 = vpop.f32.mrb[0].mxu0
  %v1891 = vadd.f32 %v264, %v1890
  %v1892 = vpop.f32.mrb[0].mxu0
  %1893 = vmatprep.mubr.f32.mxu0 0.0
  %1894 = vmatmul.mubr.f32.gmra.mrb[0].mxu0 %v769
  %v1895 = vpop.f32.mrb[0].mxu0
  %v1896 = vadd.f32 %v264, %v1895
  %v1897 = vpop.f32.mrb[0].mxu0
  %1898 = vmatprep.mubr.f32.mxu0 0.0
  %1899 = vmatmul.mubr.f32.gmra.mrb[0].mxu0 %v772
  %v1900 = vpop.f32.mrb[0].mxu0
  %v1901 = vadd.f32 %v264, %v1900
  %v1902 = vpop.f32.mrb[0].mxu0
  %1903 = vmatprep.mubr.f32.mxu0 0.0
  %1904 = vmatmul.mubr.f32.gmra.mrb[0].mxu0 %v775
  %v1905 = vpop.f32.mrb[0].mxu0
  %v1906 = vadd.f32 %v264, %v1905
  %v1907 = vpop.f32.mrb[0].mxu0
  %1908 = vmatprep.mubr.f32.mxu0 0.0
  %1909 = vmatmul.mubr.f32.gmra.mrb[0].mxu0 %v778
  %v1910 = vpop.f32.mrb[0].mxu0
  %v1911 = vadd.f32 %v264, %v1910
  %v1912 = vpop.f32.mrb[0].mxu0
  %1913 = vmatprep.mubr.f32.mxu0 0.0
  %1914 = vmatmul.mubr.f32.gmra.mrb[0].mxu0 %v781
  %v1915 = vpop.f32.mrb[0].mxu0
  %v1916 = vadd.f32 %v264, %v1915
  %v1917 = vpop.f32.mrb[0].mxu0
  %1918 = vmatprep.mubr.f32.mxu0 0.0
  %1919 = vmatmul.mubr.f32.gmra.mrb[0].mxu0 %v784
  %v1920 = vpop.f32.mrb[0].mxu0
  %v1921 = vadd.f32 %v264, %v1920
  %v1922 = vpop.f32.mrb[0].mxu0
  %1923 = vmatprep.mubr.f32.mxu0 0.0
  %1924 = vmatmul.mubr.f32.gmra.mrb[0].mxu0 %v787
  %v1925 = vpop.f32.mrb[0].mxu0
  %v1926 = vadd.f32 %v264, %v1925
  %v1927 = vpop.f32.mrb[0].mxu0
  %1928 = vmatprep.mubr.f32.mxu0 0.0
  %1929 = vmatmul.mubr.f32.gmra.mrb[0].mxu0 %v790
  %v1930 = vpop.f32.mrb[0].mxu0
  %v1931 = vadd.f32 %v264, %v1930
  %v1932 = vpop.f32.mrb[0].mxu0
  %1933 = vmatprep.mubr.f32.mxu0 0.0
  %1934 = vmatmul.mubr.f32.gmra.mrb[0].mxu0 %v793
  %v1935 = vpop.f32.mrb[0].mxu0
  %v1936 = vadd.f32 %v264, %v1935
  %v1937 = vpop.f32.mrb[0].mxu0
  %1938 = vmatprep.mubr.f32.mxu0 0.0
  %1939 = vmatmul.mubr.f32.gmra.mrb[0].mxu0 %v796
  %v1940 = vpop.f32.mrb[0].mxu0
  %v1941 = vadd.f32 %v264, %v1940
  %v1942 = vpop.f32.mrb[0].mxu0
  %1943 = vmatprep.mubr.f32.mxu0 0.0
  %1944 = vmatmul.mubr.f32.gmra.mrb[0].mxu0 %v799
  %v1945 = vpop.f32.mrb[0].mxu0
  %v1946 = vadd.f32 %v264, %v1945
  %v1947 = vpop.f32.mrb[0].mxu0
  %1948 = vmatprep.mubr.f32.mxu0 0.0
  %1949 = vmatmul.mubr.f32.gmra.mrb[0].mxu0 %v802
  %v1950 = vpop.f32.mrb[0].mxu0
  %v1951 = vadd.f32 %v264, %v1950
  %v1952 = vpop.f32.mrb[0].mxu0
  %1953 = vmatprep.mubr.f32.mxu0 0.0
  %1954 = vmatmul.mubr.f32.gmra.mrb[0].mxu0 %v805
  %v1955 = vpop.f32.mrb[0].mxu0
  %v1956 = vadd.f32 %v264, %v1955
  %v1957 = vpop.f32.mrb[0].mxu0
  %1958 = vmatprep.mubr.f32.mxu0 0.0
  %1959 = vmatmul.mubr.f32.gmra.mrb[0].mxu0 %v808
  %v1960 = vpop.f32.mrb[0].mxu0
  %v1961 = vadd.f32 %v264, %v1960
  %v1962 = vpop.f32.mrb[0].mxu0
  %1963 = vmatprep.mubr.f32.mxu0 0.0
  %1964 = vmatmul.mubr.f32.gmra.mrb[0].mxu0 %v811
  %v1965 = vpop.f32.mrb[0].mxu0
  %v1966 = vadd.f32 %v264, %v1965
  %v1967 = vpop.f32.mrb[0].mxu0
  %1968 = vmatprep.mubr.f32.mxu0 0.0
  %1969 = vmatmul.mubr.f32.gmra.mrb[0].mxu0 %v814
  %v1970 = vpop.f32.mrb[0].mxu0
  %v1971 = vadd.f32 %v264, %v1970
  %v1972 = vpop.f32.mrb[0].mxu0
  %1973 = vmatprep.mubr.f32.mxu0 0.0
  %1974 = vmatmul.mubr.f32.gmra.mrb[0].mxu0 %v817
  %v1975 = vpop.f32.mrb[0].mxu0
  %v1976 = vadd.f32 %v264, %v1975
  %v1977 = vpop.f32.mrb[0].mxu0
  %1978 = vmatprep.mubr.f32.mxu0 0.0
  %1979 = vmatmul.mubr.f32.gmra.mrb[0].mxu0 %v820
  %v1980 = vpop.f32.mrb[0].mxu0
  %v1981 = vadd.f32 %v264, %v1980
  %v1982 = vpop.f32.mrb[0].mxu0
  %1983 = vmatprep.mubr.f32.mxu0 0.0
  %1984 = vmatmul.mubr.f32.gmra.mrb[0].mxu0 %v823
  %v1985 = vpop.f32.mrb[0].mxu0
  %v1986 = vadd.f32 %v264, %v1985
  %v1987 = vpop.f32.mrb[0].mxu0
  %1988 = vmatprep.mubr.f32.mxu0 0.0
  %1989 = vmatmul.mubr.f32.gmra.mrb[0].mxu0 %v826
  %v1990 = vpop.f32.mrb[0].mxu0
  %v1991 = vadd.f32 %v264, %v1990
  %v1992 = vpop.f32.mrb[0].mxu0
  %1993 = vmatprep.mubr.f32.mxu0 0.0
  %1994 = vmatmul.mubr.f32.gmra.mrb[0].mxu0 %v829
  %v1995 = vpop.f32.mrb[0].mxu0
  %v1996 = vadd.f32 %v264, %v1995
  %v1997 = vpop.f32.mrb[0].mxu0
  %1998 = vmatprep.mubr.f32.mxu0 0.0
  %1999 = vmatmul.mubr.f32.gmra.mrb[0].mxu0 %v832
  %v2000 = vpop.f32.mrb[0].mxu0
  %v2001 = vadd.f32 %v264, %v2000
  %v2002 = vpop.f32.mrb[0].mxu0
  %2003 = vmatprep.mubr.f32.mxu0 0.0
  %2004 = vmatmul.mubr.f32.gmra.mrb[0].mxu0 %v835
  %v2005 = vpop.f32.mrb[0].mxu0
  %v2006 = vadd.f32 %v264, %v2005
  %v2007 = vpop.f32.mrb[0].mxu0
  %2008 = vmatprep.mubr.f32.mxu0 0.0
  %2009 = vmatmul.mubr.f32.gmra.mrb[0].mxu0 %v838
  %v2010 = vpop.f32.mrb[0].mxu0
  %v2011 = vadd.f32 %v264, %v2010
  %v2012 = vpop.f32.mrb[0].mxu0
  %2013 = vmatprep.mubr.f32.mxu0 0.0
  %2014 = vmatmul.mubr.f32.gmra.mrb[0].mxu0 %v841
  %v2015 = vpop.f32.mrb[0].mxu0
  %v2016 = vadd.f32 %v264, %v2015
  %v2017 = vpop.f32.mrb[0].mxu0
  %2018 = vmatprep.mubr.f32.mxu0 0.0
  %2019 = vmatmul.mubr.f32.gmra.mrb[0].mxu0 %v844
  %v2020 = vpop.f32.mrb[0].mxu0
  %v2021 = vadd.f32 %v264, %v2020
  %v2022 = vpop.f32.mrb[0].mxu0
  %2023 = vmatprep.mubr.f32.mxu0 0.0
  %2024 = vmatmul.mubr.f32.gmra.mrb[0].mxu0 %v847
  %v2025 = vpop.f32.mrb[0].mxu0
  %v2026 = vadd.f32 %v264, %v2025
  %v2027 = vpop.f32.mrb[0].mxu0
  %2028 = vmatprep.mubr.f32.mxu0 0.0
  %2029 = vmatmul.mubr.f32.gmra.mrb[0].mxu0 %v850
  %v2030 = vpop.f32.mrb[0].mxu0
  %v2031 = vadd.f32 %v264, %v2030
  %v2032 = vpop.f32.mrb[0].mxu0
  %2033 = vmatprep.mubr.f32.mxu0 0.0
  %2034 = vmatmul.mubr.f32.gmra.mrb[0].mxu0 %v853
  %v2035 = vpop.f32.mrb[0].mxu0
  %v2036 = vadd.f32 %v264, %v2035
  %v2037 = vpop.f32.mrb[0].mxu0
  %2038 = vmatprep.mubr.f32.mxu0 0.0
  %2039 = vmatmul.mubr.f32.gmra.mrb[0].mxu0 %v856
  %v2040 = vpop.f32.mrb[0].mxu0
  %v2041 = vadd.f32 %v264, %v2040
  %v2042 = vpop.f32.mrb[0].mxu0
  %2043 = vmatprep.mubr.f32.mxu0 0.0
  %2044 = vmatmul.mubr.f32.gmra.mrb[0].mxu0 %v859
  %v2045 = vpop.f32.mrb[0].mxu0
  %v2046 = vadd.f32 %v264, %v2045
  %v2047 = vpop.f32.mrb[0].mxu0
  %2048 = vmatprep.mubr.f32.mxu0 0.0
  %2049 = vmatmul.mubr.f32.gmra.mrb[0].mxu0 %v862
  %v2050 = vpop.f32.mrb[0].mxu0
  %v2051 = vadd.f32 %v264, %v2050
  %v2052 = vpop.f32.mrb[0].mxu0
  %2053 = vmatprep.mubr.f32.mxu0 0.0
  %2054 = vmatmul.mubr.f32.gmra.mrb[0].mxu0 %v865
  %v2055 = vpop.f32.mrb[0].mxu0
  %v2056 = vadd.f32 %v264, %v2055
  %v2057 = vpop.f32.mrb[0].mxu0
  %2058 = vmatprep.mubr.f32.mxu0 0.0
  %2059 = vmatmul.mubr.f32.gmra.mrb[0].mxu0 %v868
  %v2060 = vpop.f32.mrb[0].mxu0
  %v2061 = vadd.f32 %v264, %v2060
  %v2062 = vpop.f32.mrb[0].mxu0
  %2063 = vmatprep.mubr.f32.mxu0 0.0
  %2064 = vmatmul.mubr.f32.gmra.mrb[0].mxu0 %v871
  %v2065 = vpop.f32.mrb[0].mxu0
  %v2066 = vadd.f32 %v264, %v2065
  %v2067 = vpop.f32.mrb[0].mxu0
  %2068 = vmatprep.mubr.f32.mxu0 0.0
  %2069 = vmatmul.mubr.f32.gmra.mrb[0].mxu0 %v874
  %v2070 = vpop.f32.mrb[0].mxu0
  %v2071 = vadd.f32 %v264, %v2070
  %v2072 = vpop.f32.mrb[0].mxu0
  %2073 = vmatprep.mubr.f32.mxu0 0.0
  %2074 = vmatmul.mubr.f32.gmra.mrb[0].mxu0 %v877
  %v2075 = vpop.f32.mrb[0].mxu0
  %v2076 = vadd.f32 %v264, %v2075
  %v2077 = vpop.f32.mrb[0].mxu0
  %2078 = vmatprep.mubr.f32.mxu0 0.0
  %2079 = vmatmul.mubr.f32.gmra.mrb[0].mxu0 %v880
  %v2080 = vpop.f32.mrb[0].mxu0
  %v2081 = vadd.f32 %v264, %v2080
  %v2082 = vpop.f32.mrb[0].mxu0
  %2083 = vmatprep.mubr.f32.mxu0 0.0
  %2084 = vmatmul.mubr.f32.gmra.mrb[0].mxu0 %v883
  %v2085 = vpop.f32.mrb[0].mxu0
  %v2086 = vadd.f32 %v264, %v2085
  %v2087 = vpop.f32.mrb[0].mxu0
  %2088 = vmatprep.mubr.f32.mxu0 0.0
  %2089 = vmatmul.mubr.f32.gmra.mrb[0].mxu0 %v886
  %v2090 = vpop.f32.mrb[0].mxu0
  %v2091 = vadd.f32 %v264, %v2090
  %v2092 = vpop.f32.mrb[0].mxu0
  %2093 = vmatprep.mubr.f32.mxu0 0.0
  %2094 = vmatmul.mubr.f32.gmra.mrb[0].mxu0 %v889
  %v2095 = vpop.f32.mrb[0].mxu0
  %v2096 = vadd.f32 %v264, %v2095
  %v2097 = vpop.f32.mrb[0].mxu0
  %2098 = vmatprep.mubr.f32.mxu0 0.0
  %2099 = vmatmul.mubr.f32.gmra.mrb[0].mxu0 %v892
  %v2100 = vpop.f32.mrb[0].mxu0
  %v2101 = vadd.f32 %v264, %v2100
  %v2102 = vpop.f32.mrb[0].mxu0
  %2103 = vmatprep.mubr.f32.mxu0 0.0
  %2104 = vmatmul.mubr.f32.gmra.mrb[0].mxu0 %v895
  %v2105 = vpop.f32.mrb[0].mxu0
  %v2106 = vadd.f32 %v264, %v2105
  %v2107 = vpop.f32.mrb[0].mxu0
  %2108 = vmatprep.mubr.f32.mxu0 0.0
  %2109 = vmatmul.mubr.f32.gmra.mrb[0].mxu0 %v898
  %v2110 = vpop.f32.mrb[0].mxu0
  %v2111 = vadd.f32 %v264, %v2110
  %v2112 = vpop.f32.mrb[0].mxu0
  %2113 = vmatprep.mubr.f32.mxu0 0.0
  %2114 = vmatmul.mubr.f32.gmra.mrb[0].mxu0 %v901
  %v2115 = vpop.f32.mrb[0].mxu0
  %v2116 = vadd.f32 %v264, %v2115
  %v2117 = vpop.f32.mrb[0].mxu0
  %2118 = vmatprep.mubr.f32.mxu0 0.0
  %2119 = vmatmul.mubr.f32.gmra.mrb[0].mxu0 %v904
  %v2120 = vpop.f32.mrb[0].mxu0
  %v2121 = vadd.f32 %v264, %v2120
  %v2122 = vpop.f32.mrb[0].mxu0
  %2123 = vmatprep.mubr.f32.mxu0 0.0
  %2124 = vmatmul.mubr.f32.gmra.mrb[0].mxu0 %v907
  %v2125 = vpop.f32.mrb[0].mxu0
  %v2126 = vadd.f32 %v264, %v2125
  %v2127 = vpop.f32.mrb[0].mxu0
  %2128 = vmatprep.mubr.f32.mxu0 0.0
  %2129 = vmatmul.mubr.f32.gmra.mrb[0].mxu0 %v910
  %v2130 = vpop.f32.mrb[0].mxu0
  %v2131 = vadd.f32 %v264, %v2130
  %v2132 = vpop.f32.mrb[0].mxu0
  %2133 = vmatprep.mubr.f32.mxu0 0.0
  %2134 = vmatmul.mubr.f32.gmra.mrb[0].mxu0 %v913
  %v2135 = vpop.f32.mrb[0].mxu0
  %v2136 = vadd.f32 %v264, %v2135
  %v2137 = vpop.f32.mrb[0].mxu0
  %2138 = vmatprep.mubr.f32.mxu0 0.0
  %2139 = vmatmul.mubr.f32.gmra.mrb[0].mxu0 %v916
  %v2140 = vpop.f32.mrb[0].mxu0
  %v2141 = vadd.f32 %v264, %v2140
  %v2142 = vpop.f32.mrb[0].mxu0
  %2143 = vmatprep.mubr.f32.mxu0 0.0
  %2144 = vmatmul.mubr.f32.gmra.mrb[0].mxu0 %v919
  %v2145 = vpop.f32.mrb[0].mxu0
  %v2146 = vadd.f32 %v264, %v2145
  %v2147 = vpop.f32.mrb[0].mxu0
  %2148 = vmatprep.mubr.f32.mxu0 0.0
  %2149 = vmatmul.mubr.f32.gmra.mrb[0].mxu0 %v922
  %v2150 = vpop.f32.mrb[0].mxu0
  %v2151 = vadd.f32 %v264, %v2150
  %v2152 = vpop.f32.mrb[0].mxu0
  %2153 = vmatprep.mubr.f32.mxu0 0.0
  %2154 = vmatmul.mubr.f32.gmra.mrb[0].mxu0 %v925
  %v2155 = vpop.f32.mrb[0].mxu0
  %v2156 = vadd.f32 %v264, %v2155
  %v2157 = vpop.f32.mrb[0].mxu0
  %2158 = vmatprep.mubr.f32.mxu0 0.0
  %2159 = vmatmul.mubr.f32.gmra.mrb[0].mxu0 %v928
  %v2160 = vpop.f32.mrb[0].mxu0
  %v2161 = vadd.f32 %v264, %v2160
  %v2162 = vpop.f32.mrb[0].mxu0
  %2163 = vmatprep.mubr.f32.mxu0 0.0
  %2164 = vmatmul.mubr.f32.gmra.mrb[0].mxu0 %v931
  %v2165 = vpop.f32.mrb[0].mxu0
  %v2166 = vadd.f32 %v264, %v2165
  %v2167 = vpop.f32.mrb[0].mxu0
  %2168 = vmatprep.mubr.f32.mxu0 0.0
  %2169 = vmatmul.mubr.f32.gmra.mrb[0].mxu0 %v934
  %v2170 = vpop.f32.mrb[0].mxu0
  %v2171 = vadd.f32 %v264, %v2170
  %v2172 = vpop.f32.mrb[0].mxu0
  %2173 = vmatprep.mubr.f32.mxu0 0.0
  %2174 = vmatmul.mubr.f32.gmra.mrb[0].mxu0 %v937
  %v2175 = vpop.f32.mrb[0].mxu0
  %v2176 = vadd.f32 %v264, %v2175
  %v2177 = vpop.f32.mrb[0].mxu0
  %2178 = vmatprep.mubr.f32.mxu0 0.0
  %2179 = vmatmul.mubr.f32.gmra.mrb[0].mxu0 %v940
  %v2180 = vpop.f32.mrb[0].mxu0
  %v2181 = vadd.f32 %v264, %v2180
  %v2182 = vpop.f32.mrb[0].mxu0
  %2183 = vmatprep.mubr.f32.mxu0 0.0
  %2184 = vmatmul.mubr.f32.gmra.mrb[0].mxu0 %v943
  %v2185 = vpop.f32.mrb[0].mxu0
  %v2186 = vadd.f32 %v264, %v2185
  %v2187 = vpop.f32.mrb[0].mxu0
  %2188 = vmatprep.mubr.f32.mxu0 0.0
  %2189 = vmatmul.mubr.f32.gmra.mrb[0].mxu0 %v946
  %v2190 = vpop.f32.mrb[0].mxu0
  %v2191 = vadd.f32 %v264, %v2190
  %v2192 = vpop.f32.mrb[0].mxu0
  %2193 = vmatprep.mubr.f32.mxu0 0.0
  %2194 = vmatmul.mubr.f32.gmra.mrb[0].mxu0 %v949
  %v2195 = vpop.f32.mrb[0].mxu0
  %v2196 = vadd.f32 %v264, %v2195
  %v2197 = vpop.f32.mrb[0].mxu0
  %2198 = vmatprep.mubr.f32.mxu0 0.0
  %2199 = vmatmul.mubr.f32.gmra.mrb[0].mxu0 %v952
  %v2200 = vpop.f32.mrb[0].mxu0
  %v2201 = vadd.f32 %v264, %v2200
  %v2202 = vpop.f32.mrb[0].mxu0
  %2203 = vmatprep.mubr.f32.mxu0 0.0
  %2204 = vmatmul.mubr.f32.gmra.mrb[0].mxu0 %v955
  %v2205 = vpop.f32.mrb[0].mxu0
  %v2206 = vadd.f32 %v264, %v2205
  %v2207 = vpop.f32.mrb[0].mxu0
  %2208 = vmatprep.mubr.f32.mxu0 0.0
  %2209 = vmatmul.mubr.f32.gmra.mrb[0].mxu0 %v958
  %v2210 = vpop.f32.mrb[0].mxu0
  %v2211 = vadd.f32 %v264, %v2210
  %v2212 = vpop.f32.mrb[0].mxu0
  %2213 = vmatprep.mubr.f32.mxu0 0.0
  %2214 = vmatmul.mubr.f32.gmra.mrb[0].mxu0 %v961
  %v2215 = vpop.f32.mrb[0].mxu0
  %v2216 = vadd.f32 %v264, %v2215
  %v2217 = vpop.f32.mrb[0].mxu0
  %2218 = vmatprep.mubr.f32.mxu0 0.0
  %2219 = vmatmul.mubr.f32.gmra.mrb[0].mxu0 %v964
  %v2220 = vpop.f32.mrb[0].mxu0
  %v2221 = vadd.f32 %v264, %v2220
  %v2222 = vpop.f32.mrb[0].mxu0
  %2223 = vmatprep.mubr.f32.mxu0 0.0
  %2224 = vmatmul.mubr.f32.gmra.mrb[0].mxu0 %v967
  %v2225 = vpop.f32.mrb[0].mxu0
  %v2226 = vadd.f32 %v264, %v2225
  %v2227 = vpop.f32.mrb[0].mxu0
  %2228 = vmatprep.mubr.f32.mxu0 0.0
  %2229 = vmatmul.mubr.f32.gmra.mrb[0].mxu0 %v970
  %v2230 = vpop.f32.mrb[0].mxu0
  %v2231 = vadd.f32 %v264, %v2230
  %v2232 = vpop.f32.mrb[0].mxu0
  %2233 = vmatprep.mubr.f32.mxu0 0.0
  %2234 = vmatmul.mubr.f32.gmra.mrb[0].mxu0 %v973
  %v2235 = vpop.f32.mrb[0].mxu0
  %v2236 = vadd.f32 %v264, %v2235
  %v2237 = vpop.f32.mrb[0].mxu0
  %2238 = vmatprep.mubr.f32.mxu0 0.0
  %2239 = vmatmul.mubr.f32.gmra.mrb[0].mxu0 %v976
  %v2240 = vpop.f32.mrb[0].mxu0
  %v2241 = vadd.f32 %v264, %v2240
  %v2242 = vpop.f32.mrb[0].mxu0
  %2243 = vmatprep.mubr.f32.mxu0 0.0
  %2244 = vmatmul.mubr.f32.gmra.mrb[0].mxu0 %v979
  %v2245 = vpop.f32.mrb[0].mxu0
  %v2246 = vadd.f32 %v264, %v2245
  %v2247 = vpop.f32.mrb[0].mxu0
  %2248 = vmatprep.mubr.f32.mxu0 0.0
  %2249 = vmatmul.mubr.f32.gmra.mrb[0].mxu0 %v982
  %v2250 = vpop.f32.mrb[0].mxu0
  %v2251 = vadd.f32 %v264, %v2250
  %v2252 = vpop.f32.mrb[0].mxu0
  %2253 = vmatprep.mubr.f32.mxu0 0.0
  %2254 = vmatmul.mubr.f32.gmra.mrb[0].mxu0 %v985
  %v2255 = vpop.f32.mrb[0].mxu0
  %v2256 = vadd.f32 %v264, %v2255
  %v2257 = vpop.f32.mrb[0].mxu0
  %2258 = vmatprep.mubr.f32.mxu0 0.0
  %2259 = vmatmul.mubr.f32.gmra.mrb[0].mxu0 %v988
  %v2260 = vpop.f32.mrb[0].mxu0
  %v2261 = vadd.f32 %v264, %v2260
  %v2262 = vpop.f32.mrb[0].mxu0
  %2263 = vdwg.mxu0
  %v2264 = vmax.f32 %v1061, 0.0
  %v2265 = vmax.f32 %v1066, 0.0
  %v2266 = vmax.f32 %v1071, 0.0
  %v2267 = vmax.f32 %v1076, 0.0
  %v2268 = vmax.f32 %v1081, 0.0
  %v2269 = vmax.f32 %v1086, 0.0
  %v2270 = vmax.f32 %v1091, 0.0
  %v2271 = vmax.f32 %v1096, 0.0
  %v2272 = vmax.f32 %v1101, 0.0
  %v2273 = vmax.f32 %v1106, 0.0
  %v2274 = vmax.f32 %v1111, 0.0
  %v2275 = vmax.f32 %v1116, 0.0
  %v2276 = vmax.f32 %v1121, 0.0
  %v2277 = vmax.f32 %v1126, 0.0
  %v2278 = vmax.f32 %v1131, 0.0
  %v2279 = vmax.f32 %v1136, 0.0
  %v2280 = vmax.f32 %v1141, 0.0
  %v2281 = vmax.f32 %v1146, 0.0
  %v2282 = vmax.f32 %v1151, 0.0
  %v2283 = vmax.f32 %v1156, 0.0
  %v2284 = vmax.f32 %v1161, 0.0
  %v2285 = vmax.f32 %v1166, 0.0
  %v2286 = vmax.f32 %v1171, 0.0
  %v2287 = vmax.f32 %v1176, 0.0
  %v2288 = vmax.f32 %v1181, 0.0
  %v2289 = vmax.f32 %v1186, 0.0
  %v2290 = vmax.f32 %v1191, 0.0
  %v2291 = vmax.f32 %v1196, 0.0
  %v2292 = vmax.f32 %v1201, 0.0
  %v2293 = vmax.f32 %v1206, 0.0
  %v2294 = vmax.f32 %v1211, 0.0
  %v2295 = vmax.f32 %v1216, 0.0
  %v2296 = vmax.f32 %v1221, 0.0
  %v2297 = vmax.f32 %v1226, 0.0
  %v2298 = vmax.f32 %v1231, 0.0
  %v2299 = vmax.f32 %v1236, 0.0
  %v2300 = vmax.f32 %v1241, 0.0
  %v2301 = vmax.f32 %v1246, 0.0
  %v2302 = vmax.f32 %v1251, 0.0
  %v2303 = vmax.f32 %v1256, 0.0
  %v2304 = vmax.f32 %v1261, 0.0
  %v2305 = vmax.f32 %v1266, 0.0
  %v2306 = vmax.f32 %v1271, 0.0
  %v2307 = vmax.f32 %v1276, 0.0
  %v2308 = vmax.f32 %v1281, 0.0
  %v2309 = vmax.f32 %v1286, 0.0
  %v2310 = vmax.f32 %v1291, 0.0
  %v2311 = vmax.f32 %v1296, 0.0
  %v2312 = vmax.f32 %v1301, 0.0
  %v2313 = vmax.f32 %v1306, 0.0
  %v2314 = vmax.f32 %v1311, 0.0
  %v2315 = vmax.f32 %v1316, 0.0
  %v2316 = vmax.f32 %v1321, 0.0
  %v2317 = vmax.f32 %v1326, 0.0
  %v2318 = vmax.f32 %v1331, 0.0
  %v2319 = vmax.f32 %v1336, 0.0
  %v2320 = vmax.f32 %v1341, 0.0
  %v2321 = vmax.f32 %v1346, 0.0
  %v2322 = vmax.f32 %v1351, 0.0
  %v2323 = vmax.f32 %v1356, 0.0
  %v2324 = vmax.f32 %v1361, 0.0
  %v2325 = vmax.f32 %v1366, 0.0
  %v2326 = vmax.f32 %v1371, 0.0
  %v2327 = vmax.f32 %v1376, 0.0
  %v2328 = vmax.f32 %v1381, 0.0
  %v2329 = vmax.f32 %v1386, 0.0
  %v2330 = vmax.f32 %v1391, 0.0
  %v2331 = vmax.f32 %v1396, 0.0
  %v2332 = vmax.f32 %v1401, 0.0
  %v2333 = vmax.f32 %v1406, 0.0
  %v2334 = vmax.f32 %v1411, 0.0
  %v2335 = vmax.f32 %v1416, 0.0
  %v2336 = vmax.f32 %v1421, 0.0
  %v2337 = vmax.f32 %v1426, 0.0
  %v2338 = vmax.f32 %v1431, 0.0
  %v2339 = vmax.f32 %v1436, 0.0
  %v2340 = vmax.f32 %v1441, 0.0
  %v2341 = vmax.f32 %v1446, 0.0
  %v2342 = vmax.f32 %v1451, 0.0
  %v2343 = vmax.f32 %v1456, 0.0
  %v2344 = vmax.f32 %v1461, 0.0
  %v2345 = vmax.f32 %v1466, 0.0
  %v2346 = vmax.f32 %v1471, 0.0
  %v2347 = vmax.f32 %v1476, 0.0
  %v2348 = vmax.f32 %v1481, 0.0
  %v2349 = vmax.f32 %v1486, 0.0
  %v2350 = vmax.f32 %v1491, 0.0
  %v2351 = vmax.f32 %v1496, 0.0
  %v2352 = vmax.f32 %v1501, 0.0
  %v2353 = vmax.f32 %v1506, 0.0
  %v2354 = vmax.f32 %v1511, 0.0
  %v2355 = vmax.f32 %v1516, 0.0
  %v2356 = vmax.f32 %v1521, 0.0
  %v2357 = vmax.f32 %v1526, 0.0
  %v2358 = vmax.f32 %v1531, 0.0
  %v2359 = vmax.f32 %v1536, 0.0
  %v2360 = vmax.f32 %v1541, 0.0
  %v2361 = vmax.f32 %v1546, 0.0
  %v2362 = vmax.f32 %v1551, 0.0
  %v2363 = vmax.f32 %v1556, 0.0
  %v2364 = vmax.f32 %v1561, 0.0
  %v2365 = vmax.f32 %v1566, 0.0
  %v2366 = vmax.f32 %v1571, 0.0
  %v2367 = vmax.f32 %v1576, 0.0
  %v2368 = vmax.f32 %v1581, 0.0
  %v2369 = vmax.f32 %v1586, 0.0
  %v2370 = vmax.f32 %v1591, 0.0
  %v2371 = vmax.f32 %v1596, 0.0
  %v2372 = vmax.f32 %v1601, 0.0
  %v2373 = vmax.f32 %v1606, 0.0
  %v2374 = vmax.f32 %v1611, 0.0
  %v2375 = vmax.f32 %v1616, 0.0
  %v2376 = vmax.f32 %v1621, 0.0
  %v2377 = vmax.f32 %v1626, 0.0
  %v2378 = vmax.f32 %v1631, 0.0
  %v2379 = vmax.f32 %v1636, 0.0
  %v2380 = vmax.f32 %v1641, 0.0
  %v2381 = vmax.f32 %v1646, 0.0
  %v2382 = vmax.f32 %v1651, 0.0
  %v2383 = vmax.f32 %v1656, 0.0
  %v2384 = vmax.f32 %v1661, 0.0
  %v2385 = vmax.f32 %v1666, 0.0
  %v2386 = vmax.f32 %v1671, 0.0
  %v2387 = vmax.f32 %v1676, 0.0
  %v2388 = vmax.f32 %v1681, 0.0
  %v2389 = vmax.f32 %v1686, 0.0
  %v2390 = vmax.f32 %v1691, 0.0
  %v2391 = vmax.f32 %v1696, 0.0
  %v2392 = vmax.f32 %v1701, 0.0
  %v2393 = vmax.f32 %v1706, 0.0
  %v2394 = vmax.f32 %v1711, 0.0
  %v2395 = vmax.f32 %v1716, 0.0
  %v2396 = vmax.f32 %v1721, 0.0
  %v2397 = vmax.f32 %v1726, 0.0
  %v2398 = vmax.f32 %v1731, 0.0
  %v2399 = vmax.f32 %v1736, 0.0
  %v2400 = vmax.f32 %v1741, 0.0
  %v2401 = vmax.f32 %v1746, 0.0
  %v2402 = vmax.f32 %v1751, 0.0
  %v2403 = vmax.f32 %v1756, 0.0
  %v2404 = vmax.f32 %v1761, 0.0
  %v2405 = vmax.f32 %v1766, 0.0
  %v2406 = vmax.f32 %v1771, 0.0
  %v2407 = vmax.f32 %v1776, 0.0
  %v2408 = vmax.f32 %v1781, 0.0
  %v2409 = vmax.f32 %v1786, 0.0
  %v2410 = vmax.f32 %v1791, 0.0
  %v2411 = vmax.f32 %v1796, 0.0
  %v2412 = vmax.f32 %v1801, 0.0
  %v2413 = vmax.f32 %v1806, 0.0
  %v2414 = vmax.f32 %v1811, 0.0
  %v2415 = vmax.f32 %v1816, 0.0
  %v2416 = vmax.f32 %v1821, 0.0
  %v2417 = vmax.f32 %v1826, 0.0
  %v2418 = vmax.f32 %v1831, 0.0
  %v2419 = vmax.f32 %v1836, 0.0
  %v2420 = vmax.f32 %v1841, 0.0
  %v2421 = vmax.f32 %v1846, 0.0
  %v2422 = vmax.f32 %v1851, 0.0
  %v2423 = vmax.f32 %v1856, 0.0
  %v2424 = vmax.f32 %v1861, 0.0
  %v2425 = vmax.f32 %v1866, 0.0
  %v2426 = vmax.f32 %v1871, 0.0
  %v2427 = vmax.f32 %v1876, 0.0
  %v2428 = vmax.f32 %v1881, 0.0
  %v2429 = vmax.f32 %v1886, 0.0
  %v2430 = vmax.f32 %v1891, 0.0
  %v2431 = vmax.f32 %v1896, 0.0
  %v2432 = vmax.f32 %v1901, 0.0
  %v2433 = vmax.f32 %v1906, 0.0
  %v2434 = vmax.f32 %v1911, 0.0
  %v2435 = vmax.f32 %v1916, 0.0
  %v2436 = vmax.f32 %v1921, 0.0
  %v2437 = vmax.f32 %v1926, 0.0
  %v2438 = vmax.f32 %v1931, 0.0
  %v2439 = vmax.f32 %v1936, 0.0
  %v2440 = vmax.f32 %v1941, 0.0
  %v2441 = vmax.f32 %v1946, 0.0
  %v2442 = vmax.f32 %v1951, 0.0
  %v2443 = vmax.f32 %v1956, 0.0
  %v2444 = vmax.f32 %v1961, 0.0
  %v2445 = vmax.f32 %v1966, 0.0
  %v2446 = vmax.f32 %v1971, 0.0
  %v2447 = vmax.f32 %v1976, 0.0
  %v2448 = vmax.f32 %v1981, 0.0
  %v2449 = vmax.f32 %v1986, 0.0
  %v2450 = vmax.f32 %v1991, 0.0
  %v2451 = vmax.f32 %v1996, 0.0
  %v2452 = vmax.f32 %v2001, 0.0
  %v2453 = vmax.f32 %v2006, 0.0
  %v2454 = vmax.f32 %v2011, 0.0
  %v2455 = vmax.f32 %v2016, 0.0
  %v2456 = vmax.f32 %v2021, 0.0
  %v2457 = vmax.f32 %v2026, 0.0
  %v2458 = vmax.f32 %v2031, 0.0
  %v2459 = vmax.f32 %v2036, 0.0
  %v2460 = vmax.f32 %v2041, 0.0
  %v2461 = vmax.f32 %v2046, 0.0
  %v2462 = vmax.f32 %v2051, 0.0
  %v2463 = vmax.f32 %v2056, 0.0
  %v2464 = vmax.f32 %v2061, 0.0
  %v2465 = vmax.f32 %v2066, 0.0
  %v2466 = vmax.f32 %v2071, 0.0
  %v2467 = vmax.f32 %v2076, 0.0
  %v2468 = vmax.f32 %v2081, 0.0
  %v2469 = vmax.f32 %v2086, 0.0
  %v2470 = vmax.f32 %v2091, 0.0
  %v2471 = vmax.f32 %v2096, 0.0
  %v2472 = vmax.f32 %v2101, 0.0
  %v2473 = vmax.f32 %v2106, 0.0
  %v2474 = vmax.f32 %v2111, 0.0
  %v2475 = vmax.f32 %v2116, 0.0
  %v2476 = vmax.f32 %v2121, 0.0
  %v2477 = vmax.f32 %v2126, 0.0
  %v2478 = vmax.f32 %v2131, 0.0
  %v2479 = vmax.f32 %v2136, 0.0
  %v2480 = vmax.f32 %v2141, 0.0
  %v2481 = vmax.f32 %v2146, 0.0
  %v2482 = vmax.f32 %v2151, 0.0
  %v2483 = vmax.f32 %v2156, 0.0
  %v2484 = vmax.f32 %v2161, 0.0
  %v2485 = vmax.f32 %v2166, 0.0
  %v2486 = vmax.f32 %v2171, 0.0
  %v2487 = vmax.f32 %v2176, 0.0
  %v2488 = vmax.f32 %v2181, 0.0
  %v2489 = vmax.f32 %v2186, 0.0
  %v2490 = vmax.f32 %v2191, 0.0
  %v2491 = vmax.f32 %v2196, 0.0
  %v2492 = vmax.f32 %v2201, 0.0
  %v2493 = vmax.f32 %v2206, 0.0
  %v2494 = vmax.f32 %v2211, 0.0
  %v2495 = vmax.f32 %v2216, 0.0
  %v2496 = vmax.f32 %v2221, 0.0
  %v2497 = vmax.f32 %v2226, 0.0
  %v2498 = vmax.f32 %v2231, 0.0
  %v2499 = vmax.f32 %v2236, 0.0
  %v2500 = vmax.f32 %v2241, 0.0
  %v2501 = vmax.f32 %v2246, 0.0
  %v2502 = vmax.f32 %v2251, 0.0
  %v2503 = vmax.f32 %v2256, 0.0
  %v2504 = vmax.f32 %v2261, 0.0
  %vm2505 = vcmask 523264
  %2506 = vst.msk [vmem:[%s3] sm:$0xff] %vm2505, %v2264
  %2507 = vst.msk [vmem:[%s3 + $0x8] sm:$0xff] %vm2505, %v2265
  %2508 = vst.msk [vmem:[%s3 + $0x10] sm:$0xff] %vm2505, %v2266
  %2509 = vst.msk [vmem:[%s3 + $0x18] sm:$0xff] %vm2505, %v2267
  %2510 = vst.msk [vmem:[%s3 + $0x20] sm:$0xff] %vm2505, %v2268
  %2511 = vst.msk [vmem:[%s3 + $0x28] sm:$0xff] %vm2505, %v2269
  %2512 = vst.msk [vmem:[%s3 + $0x30] sm:$0xff] %vm2505, %v2270
  %2513 = vst.msk [vmem:[%s3 + $0x38] sm:$0xff] %vm2505, %v2271
  %2514 = vst.msk [vmem:[%s3 + $0x40] sm:$0xff] %vm2505, %v2272
  %2515 = vst.msk [vmem:[%s3 + $0x48] sm:$0xff] %vm2505, %v2273
  %2516 = vst.msk [vmem:[%s3 + $0x50] sm:$0xff] %vm2505, %v2274
  %2517 = vst.msk [vmem:[%s3 + $0x58] sm:$0xff] %vm2505, %v2275
  %2518 = vst.msk [vmem:[%s3 + $0x60] sm:$0xff] %vm2505, %v2276
  %2519 = vst.msk [vmem:[%s3 + $0x68] sm:$0xff] %vm2505, %v2277
  %2520 = vst.msk [vmem:[%s3 + $0x70] sm:$0xff] %vm2505, %v2278
  %2521 = vst.msk [vmem:[%s3 + $0x78] sm:$0xff] %vm2505, %v2279
  %2522 = vst.msk [vmem:[%s3 + $0x80] sm:$0xff] %vm2505, %v2280
  %2523 = vst.msk [vmem:[%s3 + $0x88] sm:$0xff] %vm2505, %v2281
  %2524 = vst.msk [vmem:[%s3 + $0x90] sm:$0xff] %vm2505, %v2282
  %2525 = vst.msk [vmem:[%s3 + $0x98] sm:$0xff] %vm2505, %v2283
  %2526 = vst.msk [vmem:[%s3 + $0xa0] sm:$0xff] %vm2505, %v2284
  %2527 = vst.msk [vmem:[%s3 + $0xa8] sm:$0xff] %vm2505, %v2285
  %2528 = vst.msk [vmem:[%s3 + $0xb0] sm:$0xff] %vm2505, %v2286
  %2529 = vst.msk [vmem:[%s3 + $0xb8] sm:$0xff] %vm2505, %v2287
  %2530 = vst.msk [vmem:[%s3 + $0xc0] sm:$0xff] %vm2505, %v2288
  %2531 = vst.msk [vmem:[%s3 + $0xc8] sm:$0xff] %vm2505, %v2289
  %2532 = vst.msk [vmem:[%s3 + $0xd0] sm:$0xff] %vm2505, %v2290
  %2533 = vst.msk [vmem:[%s3 + $0xd8] sm:$0xff] %vm2505, %v2291
  %2534 = vst.msk [vmem:[%s3 + $0xe0] sm:$0xff] %vm2505, %v2292
  %2535 = vst.msk [vmem:[%s3 + $0xe8] sm:$0xff] %vm2505, %v2293
  %2536 = vst.msk [vmem:[%s3 + $0xf0] sm:$0xff] %vm2505, %v2294
  %2537 = vst.msk [vmem:[%s3 + $0xf8] sm:$0xff] %vm2505, %v2295
  %2538 = vst.msk [vmem:[%s3 + $0x100] sm:$0xff] %vm2505, %v2296
  %2539 = vst.msk [vmem:[%s3 + $0x108] sm:$0xff] %vm2505, %v2297
  %2540 = vst.msk [vmem:[%s3 + $0x110] sm:$0xff] %vm2505, %v2298
  %2541 = vst.msk [vmem:[%s3 + $0x118] sm:$0xff] %vm2505, %v2299
  %2542 = vst.msk [vmem:[%s3 + $0x120] sm:$0xff] %vm2505, %v2300
  %2543 = vst.msk [vmem:[%s3 + $0x128] sm:$0xff] %vm2505, %v2301
  %2544 = vst.msk [vmem:[%s3 + $0x130] sm:$0xff] %vm2505, %v2302
  %2545 = vst.msk [vmem:[%s3 + $0x138] sm:$0xff] %vm2505, %v2303
  %2546 = vst.msk [vmem:[%s3 + $0x140] sm:$0xff] %vm2505, %v2304
  %2547 = vst.msk [vmem:[%s3 + $0x148] sm:$0xff] %vm2505, %v2305
  %2548 = vst.msk [vmem:[%s3 + $0x150] sm:$0xff] %vm2505, %v2306
  %2549 = vst.msk [vmem:[%s3 + $0x158] sm:$0xff] %vm2505, %v2307
  %2550 = vst.msk [vmem:[%s3 + $0x160] sm:$0xff] %vm2505, %v2308
  %2551 = vst.msk [vmem:[%s3 + $0x168] sm:$0xff] %vm2505, %v2309
  %2552 = vst.msk [vmem:[%s3 + $0x170] sm:$0xff] %vm2505, %v2310
  %2553 = vst.msk [vmem:[%s3 + $0x178] sm:$0xff] %vm2505, %v2311
  %2554 = vst.msk [vmem:[%s3 + $0x180] sm:$0xff] %vm2505, %v2312
  %2555 = vst.msk [vmem:[%s3 + $0x188] sm:$0xff] %vm2505, %v2313
  %2556 = vst.msk [vmem:[%s3 + $0x190] sm:$0xff] %vm2505, %v2314
  %2557 = vst.msk [vmem:[%s3 + $0x198] sm:$0xff] %vm2505, %v2315
  %2558 = vst.msk [vmem:[%s3 + $0x1a0] sm:$0xff] %vm2505, %v2316
  %2559 = vst.msk [vmem:[%s3 + $0x1a8] sm:$0xff] %vm2505, %v2317
  %2560 = vst.msk [vmem:[%s3 + $0x1b0] sm:$0xff] %vm2505, %v2318
  %2561 = vst.msk [vmem:[%s3 + $0x1b8] sm:$0xff] %vm2505, %v2319
  %2562 = vst.msk [vmem:[%s3 + $0x1c0] sm:$0xff] %vm2505, %v2320
  %2563 = vst.msk [vmem:[%s3 + $0x1c8] sm:$0xff] %vm2505, %v2321
  %2564 = vst.msk [vmem:[%s3 + $0x1d0] sm:$0xff] %vm2505, %v2322
  %2565 = vst.msk [vmem:[%s3 + $0x1d8] sm:$0xff] %vm2505, %v2323
  %2566 = vst.msk [vmem:[%s3 + $0x1e0] sm:$0xff] %vm2505, %v2324
  %2567 = vst.msk [vmem:[%s3 + $0x1e8] sm:$0xff] %vm2505, %v2325
  %2568 = vst.msk [vmem:[%s3 + $0x1f0] sm:$0xff] %vm2505, %v2326
  %2569 = vst.msk [vmem:[%s3 + $0x1f8] sm:$0xff] %vm2505, %v2327
  %2570 = vst.msk [vmem:[%s3 + $0x200] sm:$0xff] %vm2505, %v2328
  %2571 = vst.msk [vmem:[%s3 + $0x208] sm:$0xff] %vm2505, %v2329
  %2572 = vst.msk [vmem:[%s3 + $0x210] sm:$0xff] %vm2505, %v2330
  %2573 = vst.msk [vmem:[%s3 + $0x218] sm:$0xff] %vm2505, %v2331
  %2574 = vst.msk [vmem:[%s3 + $0x220] sm:$0xff] %vm2505, %v2332
  %2575 = vst.msk [vmem:[%s3 + $0x228] sm:$0xff] %vm2505, %v2333
  %2576 = vst.msk [vmem:[%s3 + $0x230] sm:$0xff] %vm2505, %v2334
  %2577 = vst.msk [vmem:[%s3 + $0x238] sm:$0xff] %vm2505, %v2335
  %2578 = vst.msk [vmem:[%s3 + $0x240] sm:$0xff] %vm2505, %v2336
  %2579 = vst.msk [vmem:[%s3 + $0x248] sm:$0xff] %vm2505, %v2337
  %2580 = vst.msk [vmem:[%s3 + $0x250] sm:$0xff] %vm2505, %v2338
  %2581 = vst.msk [vmem:[%s3 + $0x258] sm:$0xff] %vm2505, %v2339
  %2582 = vst.msk [vmem:[%s3 + $0x260] sm:$0xff] %vm2505, %v2340
  %2583 = vst.msk [vmem:[%s3 + $0x268] sm:$0xff] %vm2505, %v2341
  %2584 = vst.msk [vmem:[%s3 + $0x270] sm:$0xff] %vm2505, %v2342
  %2585 = vst.msk [vmem:[%s3 + $0x278] sm:$0xff] %vm2505, %v2343
  %2586 = vst.msk [vmem:[%s3 + $0x280] sm:$0xff] %vm2505, %v2344
  %2587 = vst.msk [vmem:[%s3 + $0x288] sm:$0xff] %vm2505, %v2345
  %2588 = vst.msk [vmem:[%s3 + $0x290] sm:$0xff] %vm2505, %v2346
  %2589 = vst.msk [vmem:[%s3 + $0x298] sm:$0xff] %vm2505, %v2347
  %2590 = vst.msk [vmem:[%s3 + $0x2a0] sm:$0xff] %vm2505, %v2348
  %2591 = vst.msk [vmem:[%s3 + $0x2a8] sm:$0xff] %vm2505, %v2349
  %2592 = vst.msk [vmem:[%s3 + $0x2b0] sm:$0xff] %vm2505, %v2350
  %2593 = vst.msk [vmem:[%s3 + $0x2b8] sm:$0xff] %vm2505, %v2351
  %2594 = vst.msk [vmem:[%s3 + $0x2c0] sm:$0xff] %vm2505, %v2352
  %2595 = vst.msk [vmem:[%s3 + $0x2c8] sm:$0xff] %vm2505, %v2353
  %2596 = vst.msk [vmem:[%s3 + $0x2d0] sm:$0xff] %vm2505, %v2354
  %2597 = vst.msk [vmem:[%s3 + $0x2d8] sm:$0xff] %vm2505, %v2355
  %2598 = vst.msk [vmem:[%s3 + $0x2e0] sm:$0xff] %vm2505, %v2356
  %2599 = vst.msk [vmem:[%s3 + $0x2e8] sm:$0xff] %vm2505, %v2357
  %2600 = vst.msk [vmem:[%s3 + $0x2f0] sm:$0xff] %vm2505, %v2358
  %2601 = vst.msk [vmem:[%s3 + $0x2f8] sm:$0xff] %vm2505, %v2359
  %2602 = vst.msk [vmem:[%s3 + $0x300] sm:$0xff] %vm2505, %v2360
  %2603 = vst.msk [vmem:[%s3 + $0x308] sm:$0xff] %vm2505, %v2361
  %2604 = vst.msk [vmem:[%s3 + $0x310] sm:$0xff] %vm2505, %v2362
  %2605 = vst.msk [vmem:[%s3 + $0x318] sm:$0xff] %vm2505, %v2363
  %2606 = vst.msk [vmem:[%s3 + $0x320] sm:$0xff] %vm2505, %v2364
  %2607 = vst.msk [vmem:[%s3 + $0x328] sm:$0xff] %vm2505, %v2365
  %2608 = vst.msk [vmem:[%s3 + $0x330] sm:$0xff] %vm2505, %v2366
  %2609 = vst.msk [vmem:[%s3 + $0x338] sm:$0xff] %vm2505, %v2367
  %2610 = vst.msk [vmem:[%s3 + $0x340] sm:$0xff] %vm2505, %v2368
  %2611 = vst.msk [vmem:[%s3 + $0x348] sm:$0xff] %vm2505, %v2369
  %2612 = vst.msk [vmem:[%s3 + $0x350] sm:$0xff] %vm2505, %v2370
  %2613 = vst.msk [vmem:[%s3 + $0x358] sm:$0xff] %vm2505, %v2371
  %2614 = vst.msk [vmem:[%s3 + $0x360] sm:$0xff] %vm2505, %v2372
  %2615 = vst.msk [vmem:[%s3 + $0x368] sm:$0xff] %vm2505, %v2373
  %2616 = vst.msk [vmem:[%s3 + $0x370] sm:$0xff] %vm2505, %v2374
  %2617 = vst.msk [vmem:[%s3 + $0x378] sm:$0xff] %vm2505, %v2375
  %2618 = vst.msk [vmem:[%s3 + $0x380] sm:$0xff] %vm2505, %v2376
  %2619 = vst.msk [vmem:[%s3 + $0x388] sm:$0xff] %vm2505, %v2377
  %2620 = vst.msk [vmem:[%s3 + $0x390] sm:$0xff] %vm2505, %v2378
  %2621 = vst.msk [vmem:[%s3 + $0x398] sm:$0xff] %vm2505, %v2379
  %2622 = vst.msk [vmem:[%s3 + $0x3a0] sm:$0xff] %vm2505, %v2380
  %2623 = vst.msk [vmem:[%s3 + $0x3a8] sm:$0xff] %vm2505, %v2381
  %2624 = vst.msk [vmem:[%s3 + $0x3b0] sm:$0xff] %vm2505, %v2382
  %2625 = vst.msk [vmem:[%s3 + $0x3b8] sm:$0xff] %vm2505, %v2383
  %2626 = vst.msk [vmem:[%s3 + $0x3c0] sm:$0xff] %vm2505, %v2384
  %2627 = vst.msk [vmem:[%s3 + $0x3c8] sm:$0xff] %vm2505, %v2385
  %2628 = vst.msk [vmem:[%s3 + $0x3d0] sm:$0xff] %vm2505, %v2386
  %2629 = vst.msk [vmem:[%s3 + $0x3d8] sm:$0xff] %vm2505, %v2387
  %2630 = vst.msk [vmem:[%s3 + $0x3e0] sm:$0xff] %vm2505, %v2388
  %2631 = vst.msk [vmem:[%s3 + $0x3e8] sm:$0xff] %vm2505, %v2389
  %2632 = vst.msk [vmem:[%s3 + $0x3f0] sm:$0xff] %vm2505, %v2390
  %2633 = vst.msk [vmem:[%s3 + $0x3f8] sm:$0xff] %vm2505, %v2391
  %2634 = vst.msk [vmem:[%s3 + $0x400] sm:$0xff] %vm2505, %v2392
  %2635 = vst.msk [vmem:[%s3 + $0x408] sm:$0xff] %vm2505, %v2393
  %2636 = vst.msk [vmem:[%s3 + $0x410] sm:$0xff] %vm2505, %v2394
  %2637 = vst.msk [vmem:[%s3 + $0x418] sm:$0xff] %vm2505, %v2395
  %2638 = vst.msk [vmem:[%s3 + $0x420] sm:$0xff] %vm2505, %v2396
  %2639 = vst.msk [vmem:[%s3 + $0x428] sm:$0xff] %vm2505, %v2397
  %2640 = vst.msk [vmem:[%s3 + $0x430] sm:$0xff] %vm2505, %v2398
  %2641 = vst.msk [vmem:[%s3 + $0x438] sm:$0xff] %vm2505, %v2399
  %2642 = vst.msk [vmem:[%s3 + $0x440] sm:$0xff] %vm2505, %v2400
  %2643 = vst.msk [vmem:[%s3 + $0x448] sm:$0xff] %vm2505, %v2401
  %2644 = vst.msk [vmem:[%s3 + $0x450] sm:$0xff] %vm2505, %v2402
  %2645 = vst.msk [vmem:[%s3 + $0x458] sm:$0xff] %vm2505, %v2403
  %2646 = vst.msk [vmem:[%s3 + $0x460] sm:$0xff] %vm2505, %v2404
  %2647 = vst.msk [vmem:[%s3 + $0x468] sm:$0xff] %vm2505, %v2405
  %2648 = vst.msk [vmem:[%s3 + $0x470] sm:$0xff] %vm2505, %v2406
  %2649 = vst.msk [vmem:[%s3 + $0x478] sm:$0xff] %vm2505, %v2407
  %2650 = vst.msk [vmem:[%s3 + $0x480] sm:$0xff] %vm2505, %v2408
  %2651 = vst.msk [vmem:[%s3 + $0x488] sm:$0xff] %vm2505, %v2409
  %2652 = vst.msk [vmem:[%s3 + $0x490] sm:$0xff] %vm2505, %v2410
  %2653 = vst.msk [vmem:[%s3 + $0x498] sm:$0xff] %vm2505, %v2411
  %2654 = vst.msk [vmem:[%s3 + $0x4a0] sm:$0xff] %vm2505, %v2412
  %2655 = vst.msk [vmem:[%s3 + $0x4a8] sm:$0xff] %vm2505, %v2413
  %2656 = vst.msk [vmem:[%s3 + $0x4b0] sm:$0xff] %vm2505, %v2414
  %2657 = vst.msk [vmem:[%s3 + $0x4b8] sm:$0xff] %vm2505, %v2415
  %2658 = vst.msk [vmem:[%s3 + $0x4c0] sm:$0xff] %vm2505, %v2416
  %2659 = vst.msk [vmem:[%s3 + $0x4c8] sm:$0xff] %vm2505, %v2417
  %2660 = vst.msk [vmem:[%s3 + $0x4d0] sm:$0xff] %vm2505, %v2418
  %2661 = vst.msk [vmem:[%s3 + $0x4d8] sm:$0xff] %vm2505, %v2419
  %2662 = vst.msk [vmem:[%s3 + $0x4e0] sm:$0xff] %vm2505, %v2420
  %2663 = vst.msk [vmem:[%s3 + $0x4e8] sm:$0xff] %vm2505, %v2421
  %2664 = vst.msk [vmem:[%s3 + $0x4f0] sm:$0xff] %vm2505, %v2422
  %2665 = vst.msk [vmem:[%s3 + $0x4f8] sm:$0xff] %vm2505, %v2423
  %2666 = vst.msk [vmem:[%s3 + $0x500] sm:$0xff] %vm2505, %v2424
  %2667 = vst.msk [vmem:[%s3 + $0x508] sm:$0xff] %vm2505, %v2425
  %2668 = vst.msk [vmem:[%s3 + $0x510] sm:$0xff] %vm2505, %v2426
  %2669 = vst.msk [vmem:[%s3 + $0x518] sm:$0xff] %vm2505, %v2427
  %2670 = vst.msk [vmem:[%s3 + $0x520] sm:$0xff] %vm2505, %v2428
  %2671 = vst.msk [vmem:[%s3 + $0x528] sm:$0xff] %vm2505, %v2429
  %2672 = vst.msk [vmem:[%s3 + $0x530] sm:$0xff] %vm2505, %v2430
  %2673 = vst.msk [vmem:[%s3 + $0x538] sm:$0xff] %vm2505, %v2431
  %2674 = vst.msk [vmem:[%s3 + $0x540] sm:$0xff] %vm2505, %v2432
  %2675 = vst.msk [vmem:[%s3 + $0x548] sm:$0xff] %vm2505, %v2433
  %2676 = vst.msk [vmem:[%s3 + $0x550] sm:$0xff] %vm2505, %v2434
  %2677 = vst.msk [vmem:[%s3 + $0x558] sm:$0xff] %vm2505, %v2435
  %2678 = vst.msk [vmem:[%s3 + $0x560] sm:$0xff] %vm2505, %v2436
  %2679 = vst.msk [vmem:[%s3 + $0x568] sm:$0xff] %vm2505, %v2437
  %2680 = vst.msk [vmem:[%s3 + $0x570] sm:$0xff] %vm2505, %v2438
  %2681 = vst.msk [vmem:[%s3 + $0x578] sm:$0xff] %vm2505, %v2439
  %2682 = vst.msk [vmem:[%s3 + $0x580] sm:$0xff] %vm2505, %v2440
  %2683 = vst.msk [vmem:[%s3 + $0x588] sm:$0xff] %vm2505, %v2441
  %2684 = vst.msk [vmem:[%s3 + $0x590] sm:$0xff] %vm2505, %v2442
  %2685 = vst.msk [vmem:[%s3 + $0x598] sm:$0xff] %vm2505, %v2443
  %2686 = vst.msk [vmem:[%s3 + $0x5a0] sm:$0xff] %vm2505, %v2444
  %2687 = vst.msk [vmem:[%s3 + $0x5a8] sm:$0xff] %vm2505, %v2445
  %2688 = vst.msk [vmem:[%s3 + $0x5b0] sm:$0xff] %vm2505, %v2446
  %2689 = vst.msk [vmem:[%s3 + $0x5b8] sm:$0xff] %vm2505, %v2447
  %2690 = vst.msk [vmem:[%s3 + $0x5c0] sm:$0xff] %vm2505, %v2448
  %2691 = vst.msk [vmem:[%s3 + $0x5c8] sm:$0xff] %vm2505, %v2449
  %2692 = vst.msk [vmem:[%s3 + $0x5d0] sm:$0xff] %vm2505, %v2450
  %2693 = vst.msk [vmem:[%s3 + $0x5d8] sm:$0xff] %vm2505, %v2451
  %2694 = vst.msk [vmem:[%s3 + $0x5e0] sm:$0xff] %vm2505, %v2452
  %2695 = vst.msk [vmem:[%s3 + $0x5e8] sm:$0xff] %vm2505, %v2453
  %2696 = vst.msk [vmem:[%s3 + $0x5f0] sm:$0xff] %vm2505, %v2454
  %2697 = vst.msk [vmem:[%s3 + $0x5f8] sm:$0xff] %vm2505, %v2455
  %2698 = vst.msk [vmem:[%s3 + $0x600] sm:$0xff] %vm2505, %v2456
  %2699 = vst.msk [vmem:[%s3 + $0x608] sm:$0xff] %vm2505, %v2457
  %2700 = vst.msk [vmem:[%s3 + $0x610] sm:$0xff] %vm2505, %v2458
  %2701 = vst.msk [vmem:[%s3 + $0x618] sm:$0xff] %vm2505, %v2459
  %2702 = vst.msk [vmem:[%s3 + $0x620] sm:$0xff] %vm2505, %v2460
  %2703 = vst.msk [vmem:[%s3 + $0x628] sm:$0xff] %vm2505, %v2461
  %2704 = vst.msk [vmem:[%s3 + $0x630] sm:$0xff] %vm2505, %v2462
  %2705 = vst.msk [vmem:[%s3 + $0x638] sm:$0xff] %vm2505, %v2463
  %2706 = vst.msk [vmem:[%s3 + $0x640] sm:$0xff] %vm2505, %v2464
  %2707 = vst.msk [vmem:[%s3 + $0x648] sm:$0xff] %vm2505, %v2465
  %2708 = vst.msk [vmem:[%s3 + $0x650] sm:$0xff] %vm2505, %v2466
  %2709 = vst.msk [vmem:[%s3 + $0x658] sm:$0xff] %vm2505, %v2467
  %2710 = vst.msk [vmem:[%s3 + $0x660] sm:$0xff] %vm2505, %v2468
  %2711 = vst.msk [vmem:[%s3 + $0x668] sm:$0xff] %vm2505, %v2469
  %2712 = vst.msk [vmem:[%s3 + $0x670] sm:$0xff] %vm2505, %v2470
  %2713 = vst.msk [vmem:[%s3 + $0x678] sm:$0xff] %vm2505, %v2471
  %2714 = vst.msk [vmem:[%s3 + $0x680] sm:$0xff] %vm2505, %v2472
  %2715 = vst.msk [vmem:[%s3 + $0x688] sm:$0xff] %vm2505, %v2473
  %2716 = vst.msk [vmem:[%s3 + $0x690] sm:$0xff] %vm2505, %v2474
  %2717 = vst.msk [vmem:[%s3 + $0x698] sm:$0xff] %vm2505, %v2475
  %2718 = vst.msk [vmem:[%s3 + $0x6a0] sm:$0xff] %vm2505, %v2476
  %2719 = vst.msk [vmem:[%s3 + $0x6a8] sm:$0xff] %vm2505, %v2477
  %2720 = vst.msk [vmem:[%s3 + $0x6b0] sm:$0xff] %vm2505, %v2478
  %2721 = vst.msk [vmem:[%s3 + $0x6b8] sm:$0xff] %vm2505, %v2479
  %2722 = vst.msk [vmem:[%s3 + $0x6c0] sm:$0xff] %vm2505, %v2480
  %2723 = vst.msk [vmem:[%s3 + $0x6c8] sm:$0xff] %vm2505, %v2481
  %2724 = vst.msk [vmem:[%s3 + $0x6d0] sm:$0xff] %vm2505, %v2482
  %2725 = vst.msk [vmem:[%s3 + $0x6d8] sm:$0xff] %vm2505, %v2483
  %2726 = vst.msk [vmem:[%s3 + $0x6e0] sm:$0xff] %vm2505, %v2484
  %2727 = vst.msk [vmem:[%s3 + $0x6e8] sm:$0xff] %vm2505, %v2485
  %2728 = vst.msk [vmem:[%s3 + $0x6f0] sm:$0xff] %vm2505, %v2486
  %2729 = vst.msk [vmem:[%s3 + $0x6f8] sm:$0xff] %vm2505, %v2487
  %2730 = vst.msk [vmem:[%s3 + $0x700] sm:$0xff] %vm2505, %v2488
  %2731 = vst.msk [vmem:[%s3 + $0x708] sm:$0xff] %vm2505, %v2489
  %2732 = vst.msk [vmem:[%s3 + $0x710] sm:$0xff] %vm2505, %v2490
  %2733 = vst.msk [vmem:[%s3 + $0x718] sm:$0xff] %vm2505, %v2491
  %2734 = vst.msk [vmem:[%s3 + $0x720] sm:$0xff] %vm2505, %v2492
  %2735 = vst.msk [vmem:[%s3 + $0x728] sm:$0xff] %vm2505, %v2493
  %2736 = vst.msk [vmem:[%s3 + $0x730] sm:$0xff] %vm2505, %v2494
  %2737 = vst.msk [vmem:[%s3 + $0x738] sm:$0xff] %vm2505, %v2495
  %2738 = vst.msk [vmem:[%s3 + $0x740] sm:$0xff] %vm2505, %v2496
  %2739 = vst.msk [vmem:[%s3 + $0x748] sm:$0xff] %vm2505, %v2497
  %2740 = vst.msk [vmem:[%s3 + $0x750] sm:$0xff] %vm2505, %v2498
  %2741 = vst.msk [vmem:[%s3 + $0x758] sm:$0xff] %vm2505, %v2499
  %2742 = vst.msk [vmem:[%s3 + $0x760] sm:$0xff] %vm2505, %v2500
  %2743 = vst.msk [vmem:[%s3 + $0x768] sm:$0xff] %vm2505, %v2501
  %2744 = vst.msk [vmem:[%s3 + $0x770] sm:$0xff] %vm2505, %v2502
  %2745 = vst.msk [vmem:[%s3 + $0x778] sm:$0xff] %vm2505, %v2503
  %vm2746 = vcmask 517120
  %2747 = vst.msk [vmem:[%s3 + $0x780] sm:$0x3] %vm2746, %v2504
  // Predicated region
  $region14: #{squeezenet2d_forward.27} parent=0 // pred_check
    _
  $region15: #{squeezenet2d_forward.27} parent=0 // pred_check_branch
    %2749 = sbr.rel (0) target = $region17
  $region16: #{squeezenet2d_forward.27} parent=0 // pred_region
    _
  $region17: #{squeezenet2d_forward.27} parent=0 // pred_fallthru
    _
  // Predicated region
  $region18: #{squeezenet2d_forward.27} parent=0 // pred_check
    _
  $region19: #{squeezenet2d_forward.27} parent=0 // pred_check_branch
    %2751 = sbr.rel (0) target = $region21
  $region20: #{squeezenet2d_forward.27} parent=0 // pred_region
    _
  $region21: #{squeezenet2d_forward.27} parent=0 // pred_fallthru
    _

// kernel: squeezenet2d_forward.28
$region0: #{squeezenet2d_forward.28}
  #allocation0 [shape = 'u32[]', space=smem, size = 0x4, offset = 0x4, fixed_abs, tag = 'smem constant byte address 0x4 - core index']
  #allocation1 [shape = 'u32[144,128]{1,0:T(1,128)}', space=vmem, size = 0x12000, scoped, tag = 'internal scratch']
  %s0 = inlined_call_operand.vmem [shape: f32[450,64], index: 0, kind: input, shape index: {}]
  %s1 = inlined_call_operand.vmem [shape: f32[64,16], index: 1, kind: input, shape index: {}]
  %s2 = inlined_call_operand.vmem [shape: f32[1,16], index: 2, kind: input, shape index: {}]
  %s3 = inlined_call_operand.vmem [shape: f32[450,16], index: 3, kind: output, shape index: {}]
  %s4 = sld [smem:[#allocation0]]
  $region22: #{squeezenet2d_forward.28} parent=0
    _
  %s6 = ssub.s32 1, %s4
  %s7 = scalar_select 0, %s6, %s4
  // Predicated region
  $region2: #{squeezenet2d_forward.28} parent=0 // pred_check
    _
  $region3: #{squeezenet2d_forward.28} parent=0 // pred_check_branch
    %9 = sbr.rel (0) target = $region5
  $region4: #{squeezenet2d_forward.28} parent=0 // pred_region
    _
  $region5: #{squeezenet2d_forward.28} parent=0 // pred_fallthru
    _
  // Predicated region
  $region6: #{squeezenet2d_forward.28} parent=0 // pred_check
    _
  $region7: #{squeezenet2d_forward.28} parent=0 // pred_check_branch
    %11 = sbr.rel (0) target = $region9
  $region8: #{squeezenet2d_forward.28} parent=0 // pred_region
    _
  $region9: #{squeezenet2d_forward.28} parent=0 // pred_fallthru
    _
  // Predicated region
  $region10: #{squeezenet2d_forward.28} parent=0 // pred_check
    _
  $region11: #{squeezenet2d_forward.28} parent=0 // pred_check_branch
    %13 = sbr.rel (0) target = $region13
  $region12: #{squeezenet2d_forward.28} parent=0 // pred_region
    _
  $region13: #{squeezenet2d_forward.28} parent=0 // pred_fallthru
    _
  %v14 = vld [vmem:[%s0] sm:$0xff]
  %v15 = vld [vmem:[%s0 + $0x8] sm:$0xff]
  %v16 = vld [vmem:[%s0 + $0x10] sm:$0xff]
  %v17 = vld [vmem:[%s0 + $0x18] sm:$0xff]
  %v18 = vld [vmem:[%s0 + $0x20] sm:$0xff]
  %v19 = vld [vmem:[%s0 + $0x28] sm:$0xff]
  %v20 = vld [vmem:[%s0 + $0x30] sm:$0xff]
  %v21 = vld [vmem:[%s0 + $0x38] sm:$0xff]
  %v22 = vld [vmem:[%s0 + $0x40] sm:$0xff]
  %v23 = vld [vmem:[%s0 + $0x48] sm:$0xff]
  %v24 = vld [vmem:[%s0 + $0x50] sm:$0xff]
  %v25 = vld [vmem:[%s0 + $0x58] sm:$0xff]
  %v26 = vld [vmem:[%s0 + $0x60] sm:$0xff]
  %v27 = vld [vmem:[%s0 + $0x68] sm:$0xff]
  %v28 = vld [vmem:[%s0 + $0x70] sm:$0xff]
  %v29 = vld [vmem:[%s0 + $0x78] sm:$0xff]
  %v30 = vld [vmem:[%s0 + $0x80] sm:$0xff]
  %v31 = vld [vmem:[%s0 + $0x88] sm:$0xff]
  %v32 = vld [vmem:[%s0 + $0x90] sm:$0xff]
  %v33 = vld [vmem:[%s0 + $0x98] sm:$0xff]
  %v34 = vld [vmem:[%s0 + $0xa0] sm:$0xff]
  %v35 = vld [vmem:[%s0 + $0xa8] sm:$0xff]
  %v36 = vld [vmem:[%s0 + $0xb0] sm:$0xff]
  %v37 = vld [vmem:[%s0 + $0xb8] sm:$0xff]
  %v38 = vld [vmem:[%s0 + $0xc0] sm:$0xff]
  %v39 = vld [vmem:[%s0 + $0xc8] sm:$0xff]
  %v40 = vld [vmem:[%s0 + $0xd0] sm:$0xff]
  %v41 = vld [vmem:[%s0 + $0xd8] sm:$0xff]
  %v42 = vld [vmem:[%s0 + $0xe0] sm:$0xff]
  %v43 = vld [vmem:[%s0 + $0xe8] sm:$0xff]
  %v44 = vld [vmem:[%s0 + $0xf0] sm:$0xff]
  %v45 = vld [vmem:[%s0 + $0xf8] sm:$0xff]
  %v46 = vld [vmem:[%s0 + $0x100] sm:$0xff]
  %v47 = vld [vmem:[%s0 + $0x108] sm:$0xff]
  %v48 = vld [vmem:[%s0 + $0x110] sm:$0xff]
  %v49 = vld [vmem:[%s0 + $0x118] sm:$0xff]
  %v50 = vld [vmem:[%s0 + $0x120] sm:$0xff]
  %v51 = vld [vmem:[%s0 + $0x128] sm:$0xff]
  %v52 = vld [vmem:[%s0 + $0x130] sm:$0xff]
  %v53 = vld [vmem:[%s0 + $0x138] sm:$0xff]
  %v54 = vld [vmem:[%s0 + $0x140] sm:$0xff]
  %v55 = vld [vmem:[%s0 + $0x148] sm:$0xff]
  %v56 = vld [vmem:[%s0 + $0x150] sm:$0xff]
  %v57 = vld [vmem:[%s0 + $0x158] sm:$0xff]
  %v58 = vld [vmem:[%s0 + $0x160] sm:$0xff]
  %v59 = vld [vmem:[%s0 + $0x168] sm:$0xff]
  %v60 = vld [vmem:[%s0 + $0x170] sm:$0xff]
  %v61 = vld [vmem:[%s0 + $0x178] sm:$0xff]
  %v62 = vld [vmem:[%s0 + $0x180] sm:$0xff]
  %v63 = vld [vmem:[%s0 + $0x188] sm:$0xff]
  %v64 = vld [vmem:[%s0 + $0x190] sm:$0xff]
  %v65 = vld [vmem:[%s0 + $0x198] sm:$0xff]
  %v66 = vld [vmem:[%s0 + $0x1a0] sm:$0xff]
  %v67 = vld [vmem:[%s0 + $0x1a8] sm:$0xff]
  %v68 = vld [vmem:[%s0 + $0x1b0] sm:$0xff]
  %v69 = vld [vmem:[%s0 + $0x1b8] sm:$0xff]
  %v70 = vld [vmem:[%s0 + $0x1c0] sm:$0x3]
  %v71 = vld [vmem:[%s1] sm:$0xff]
  %v72 = vld [vmem:[%s1 + $0x8] sm:$0xff]
  %v73 = vld [vmem:[%s1 + $0x10] sm:$0xff]
  %v74 = vld [vmem:[%s1 + $0x18] sm:$0xff]
  %v75 = vld [vmem:[%s1 + $0x20] sm:$0xff]
  %v76 = vld [vmem:[%s1 + $0x28] sm:$0xff]
  %v77 = vld [vmem:[%s1 + $0x30] sm:$0xff]
  %v78 = vld [vmem:[%s1 + $0x38] sm:$0xff]
  %v79 = vld [vmem:[%s2] sm:$0x1]
  %v81 = vlaneseq
  %v82 = vshrl.u32 %v81, 7
  %v83 = vsub.s32 0, %v82
  %v84 = vrot.slane %v79, %v83
  %vm86 = vcmask 523264
  %v88 = vsel %vm86, %v14, 0
  %v91 = vsel %vm86, %v15, 0
  %v94 = vsel %vm86, %v16, 0
  %v97 = vsel %vm86, %v17, 0
  %v100 = vsel %vm86, %v18, 0
  %v103 = vsel %vm86, %v19, 0
  %v106 = vsel %vm86, %v20, 0
  %v109 = vsel %vm86, %v21, 0
  %v112 = vsel %vm86, %v22, 0
  %v115 = vsel %vm86, %v23, 0
  %v118 = vsel %vm86, %v24, 0
  %v121 = vsel %vm86, %v25, 0
  %v124 = vsel %vm86, %v26, 0
  %v127 = vsel %vm86, %v27, 0
  %v130 = vsel %vm86, %v28, 0
  %v133 = vsel %vm86, %v29, 0
  %v136 = vsel %vm86, %v30, 0
  %v139 = vsel %vm86, %v31, 0
  %v142 = vsel %vm86, %v32, 0
  %v145 = vsel %vm86, %v33, 0
  %v148 = vsel %vm86, %v34, 0
  %v151 = vsel %vm86, %v35, 0
  %v154 = vsel %vm86, %v36, 0
  %v157 = vsel %vm86, %v37, 0
  %v160 = vsel %vm86, %v38, 0
  %v163 = vsel %vm86, %v39, 0
  %v166 = vsel %vm86, %v40, 0
  %v169 = vsel %vm86, %v41, 0
  %v172 = vsel %vm86, %v42, 0
  %v175 = vsel %vm86, %v43, 0
  %v178 = vsel %vm86, %v44, 0
  %v181 = vsel %vm86, %v45, 0
  %v184 = vsel %vm86, %v46, 0
  %v187 = vsel %vm86, %v47, 0
  %v190 = vsel %vm86, %v48, 0
  %v193 = vsel %vm86, %v49, 0
  %v196 = vsel %vm86, %v50, 0
  %v199 = vsel %vm86, %v51, 0
  %v202 = vsel %vm86, %v52, 0
  %v205 = vsel %vm86, %v53, 0
  %v208 = vsel %vm86, %v54, 0
  %v211 = vsel %vm86, %v55, 0
  %v214 = vsel %vm86, %v56, 0
  %v217 = vsel %vm86, %v57, 0
  %v220 = vsel %vm86, %v58, 0
  %v223 = vsel %vm86, %v59, 0
  %v226 = vsel %vm86, %v60, 0
  %v229 = vsel %vm86, %v61, 0
  %v232 = vsel %vm86, %v62, 0
  %v235 = vsel %vm86, %v63, 0
  %v238 = vsel %vm86, %v64, 0
  %v241 = vsel %vm86, %v65, 0
  %v244 = vsel %vm86, %v66, 0
  %v247 = vsel %vm86, %v67, 0
  %v250 = vsel %vm86, %v68, 0
  %v253 = vsel %vm86, %v69, 0
  %v256 = vsel %vm86, %v70, 0
  %258 = vmatprep.subr.mxu0 0.0
  %259 = vmatpush1.msra.mxu0 %v71
  %260 = vmatprep.subr.mxu0 0.0
  %261 = vmatpush1.msra.mxu0 %v72
  %262 = vmatprep.subr.mxu0 0.0
  %263 = vmatpush1.msra.mxu0 %v73
  %264 = vmatprep.subr.mxu0 0.0
  %265 = vmatpush1.msra.mxu0 %v74
  %266 = vmatprep.subr.mxu0 0.0
  %267 = vmatpush1.msra.mxu0 %v75
  %268 = vmatprep.subr.mxu0 0.0
  %269 = vmatpush1.msra.mxu0 %v76
  %270 = vmatprep.subr.mxu0 0.0
  %271 = vmatpush1.msra.mxu0 %v77
  %272 = vmatprep.subr.mxu0 0.0
  %273 = vmatpush1.msra.mxu0 %v78
  %274 = vmatprep.subr.mxu0 0.0
  %275 = vmatpush1.msra.mxu0 0.0
  %276 = vmatprep.subr.mxu0 0.0
  %277 = vmatpush1.msra.mxu0 0.0
  %278 = vmatprep.subr.mxu0 0.0
  %279 = vmatpush1.msra.mxu0 0.0
  %280 = vmatprep.subr.mxu0 0.0
  %281 = vmatpush1.msra.mxu0 0.0
  %282 = vmatprep.subr.mxu0 0.0
  %283 = vmatpush1.msra.mxu0 0.0
  %284 = vmatprep.subr.mxu0 0.0
  %285 = vmatpush1.msra.mxu0 0.0
  %286 = vmatprep.subr.mxu0 0.0
  %287 = vmatpush1.msra.mxu0 0.0
  %288 = vmatprep.subr.mxu0 0.0
  %289 = vmatpush1.msra.mxu0 0.0
  %290 = vmatprep.subr.mxu0 0.0
  %291 = vmatpush1.msra.mxu0 0.0
  %292 = vmatprep.subr.mxu0 0.0
  %293 = vmatpush1.msra.mxu0 0.0
  %294 = vmatprep.subr.mxu0 0.0
  %295 = vmatpush1.msra.mxu0 0.0
  %296 = vmatprep.subr.mxu0 0.0
  %297 = vmatpush1.msra.mxu0 0.0
  %298 = vmatprep.subr.mxu0 0.0
  %299 = vmatpush1.msra.mxu0 0.0
  %300 = vmatprep.subr.mxu0 0.0
  %301 = vmatpush1.msra.mxu0 0.0
  %302 = vmatprep.subr.mxu0 0.0
  %303 = vmatpush1.msra.mxu0 0.0
  %304 = vmatprep.subr.mxu0 0.0
  %305 = vmatpush1.msra.mxu0 0.0
  %306 = vmatprep.subr.mxu0 0.0
  %307 = vmatpush1.msra.mxu0 0.0
  %308 = vmatprep.subr.mxu0 0.0
  %309 = vmatpush1.msra.mxu0 0.0
  %310 = vmatprep.subr.mxu0 0.0
  %311 = vmatpush1.msra.mxu0 0.0
  %312 = vmatprep.subr.mxu0 0.0
  %313 = vmatpush1.msra.mxu0 0.0
  %314 = vmatprep.subr.mxu0 0.0
  %315 = vmatpush1.msra.mxu0 0.0
  %316 = vmatprep.subr.mxu0 0.0
  %317 = vmatpush1.msra.mxu0 0.0
  %318 = vmatprep.subr.mxu0 0.0
  %319 = vmatpush1.msra.mxu0 0.0
  %320 = vmatprep.subr.mxu0 0.0
  %321 = vmatpush1.msra.mxu0 0.0
  %322 = vmatprep.mubr.f32.mxu0 0.0
  %323 = vmatmul.mubr.f32.gmra.mrb[0].mxu0 %v88
  %v324 = vpop.f32.mrb[0].mxu0
  %v325 = vadd.f32 %v84, %v324
  %v326 = vpop.f32.mrb[0].mxu0
  %327 = vmatprep.mubr.f32.mxu0 0.0
  %328 = vmatmul.mubr.f32.gmra.mrb[0].mxu0 %v91
  %v329 = vpop.f32.mrb[0].mxu0
  %v330 = vadd.f32 %v84, %v329
  %v331 = vpop.f32.mrb[0].mxu0
  %332 = vmatprep.mubr.f32.mxu0 0.0
  %333 = vmatmul.mubr.f32.gmra.mrb[0].mxu0 %v94
  %v334 = vpop.f32.mrb[0].mxu0
  %v335 = vadd.f32 %v84, %v334
  %v336 = vpop.f32.mrb[0].mxu0
  %337 = vmatprep.mubr.f32.mxu0 0.0
  %338 = vmatmul.mubr.f32.gmra.mrb[0].mxu0 %v97
  %v339 = vpop.f32.mrb[0].mxu0
  %v340 = vadd.f32 %v84, %v339
  %v341 = vpop.f32.mrb[0].mxu0
  %342 = vmatprep.mubr.f32.mxu0 0.0
  %343 = vmatmul.mubr.f32.gmra.mrb[0].mxu0 %v100
  %v344 = vpop.f32.mrb[0].mxu0
  %v345 = vadd.f32 %v84, %v344
  %v346 = vpop.f32.mrb[0].mxu0
  %347 = vmatprep.mubr.f32.mxu0 0.0
  %348 = vmatmul.mubr.f32.gmra.mrb[0].mxu0 %v103
  %v349 = vpop.f32.mrb[0].mxu0
  %v350 = vadd.f32 %v84, %v349
  %v351 = vpop.f32.mrb[0].mxu0
  %352 = vmatprep.mubr.f32.mxu0 0.0
  %353 = vmatmul.mubr.f32.gmra.mrb[0].mxu0 %v106
  %v354 = vpop.f32.mrb[0].mxu0
  %v355 = vadd.f32 %v84, %v354
  %v356 = vpop.f32.mrb[0].mxu0
  %357 = vmatprep.mubr.f32.mxu0 0.0
  %358 = vmatmul.mubr.f32.gmra.mrb[0].mxu0 %v109
  %v359 = vpop.f32.mrb[0].mxu0
  %v360 = vadd.f32 %v84, %v359
  %v361 = vpop.f32.mrb[0].mxu0
  %362 = vmatprep.mubr.f32.mxu0 0.0
  %363 = vmatmul.mubr.f32.gmra.mrb[0].mxu0 %v112
  %v364 = vpop.f32.mrb[0].mxu0
  %v365 = vadd.f32 %v84, %v364
  %v366 = vpop.f32.mrb[0].mxu0
  %367 = vmatprep.mubr.f32.mxu0 0.0
  %368 = vmatmul.mubr.f32.gmra.mrb[0].mxu0 %v115
  %v369 = vpop.f32.mrb[0].mxu0
  %v370 = vadd.f32 %v84, %v369
  %v371 = vpop.f32.mrb[0].mxu0
  %372 = vmatprep.mubr.f32.mxu0 0.0
  %373 = vmatmul.mubr.f32.gmra.mrb[0].mxu0 %v118
  %v374 = vpop.f32.mrb[0].mxu0
  %v375 = vadd.f32 %v84, %v374
  %v376 = vpop.f32.mrb[0].mxu0
  %377 = vmatprep.mubr.f32.mxu0 0.0
  %378 = vmatmul.mubr.f32.gmra.mrb[0].mxu0 %v121
  %v379 = vpop.f32.mrb[0].mxu0
  %v380 = vadd.f32 %v84, %v379
  %v381 = vpop.f32.mrb[0].mxu0
  %382 = vmatprep.mubr.f32.mxu0 0.0
  %383 = vmatmul.mubr.f32.gmra.mrb[0].mxu0 %v124
  %v384 = vpop.f32.mrb[0].mxu0
  %v385 = vadd.f32 %v84, %v384
  %v386 = vpop.f32.mrb[0].mxu0
  %387 = vmatprep.mubr.f32.mxu0 0.0
  %388 = vmatmul.mubr.f32.gmra.mrb[0].mxu0 %v127
  %v389 = vpop.f32.mrb[0].mxu0
  %v390 = vadd.f32 %v84, %v389
  %v391 = vpop.f32.mrb[0].mxu0
  %392 = vmatprep.mubr.f32.mxu0 0.0
  %393 = vmatmul.mubr.f32.gmra.mrb[0].mxu0 %v130
  %v394 = vpop.f32.mrb[0].mxu0
  %v395 = vadd.f32 %v84, %v394
  %v396 = vpop.f32.mrb[0].mxu0
  %397 = vmatprep.mubr.f32.mxu0 0.0
  %398 = vmatmul.mubr.f32.gmra.mrb[0].mxu0 %v133
  %v399 = vpop.f32.mrb[0].mxu0
  %v400 = vadd.f32 %v84, %v399
  %v401 = vpop.f32.mrb[0].mxu0
  %402 = vmatprep.mubr.f32.mxu0 0.0
  %403 = vmatmul.mubr.f32.gmra.mrb[0].mxu0 %v136
  %v404 = vpop.f32.mrb[0].mxu0
  %v405 = vadd.f32 %v84, %v404
  %v406 = vpop.f32.mrb[0].mxu0
  %407 = vmatprep.mubr.f32.mxu0 0.0
  %408 = vmatmul.mubr.f32.gmra.mrb[0].mxu0 %v139
  %v409 = vpop.f32.mrb[0].mxu0
  %v410 = vadd.f32 %v84, %v409
  %v411 = vpop.f32.mrb[0].mxu0
  %412 = vmatprep.mubr.f32.mxu0 0.0
  %413 = vmatmul.mubr.f32.gmra.mrb[0].mxu0 %v142
  %v414 = vpop.f32.mrb[0].mxu0
  %v415 = vadd.f32 %v84, %v414
  %v416 = vpop.f32.mrb[0].mxu0
  %417 = vmatprep.mubr.f32.mxu0 0.0
  %418 = vmatmul.mubr.f32.gmra.mrb[0].mxu0 %v145
  %v419 = vpop.f32.mrb[0].mxu0
  %v420 = vadd.f32 %v84, %v419
  %v421 = vpop.f32.mrb[0].mxu0
  %422 = vmatprep.mubr.f32.mxu0 0.0
  %423 = vmatmul.mubr.f32.gmra.mrb[0].mxu0 %v148
  %v424 = vpop.f32.mrb[0].mxu0
  %v425 = vadd.f32 %v84, %v424
  %v426 = vpop.f32.mrb[0].mxu0
  %427 = vmatprep.mubr.f32.mxu0 0.0
  %428 = vmatmul.mubr.f32.gmra.mrb[0].mxu0 %v151
  %v429 = vpop.f32.mrb[0].mxu0
  %v430 = vadd.f32 %v84, %v429
  %v431 = vpop.f32.mrb[0].mxu0
  %432 = vmatprep.mubr.f32.mxu0 0.0
  %433 = vmatmul.mubr.f32.gmra.mrb[0].mxu0 %v154
  %v434 = vpop.f32.mrb[0].mxu0
  %v435 = vadd.f32 %v84, %v434
  %v436 = vpop.f32.mrb[0].mxu0
  %437 = vmatprep.mubr.f32.mxu0 0.0
  %438 = vmatmul.mubr.f32.gmra.mrb[0].mxu0 %v157
  %v439 = vpop.f32.mrb[0].mxu0
  %v440 = vadd.f32 %v84, %v439
  %v441 = vpop.f32.mrb[0].mxu0
  %442 = vmatprep.mubr.f32.mxu0 0.0
  %443 = vmatmul.mubr.f32.gmra.mrb[0].mxu0 %v160
  %v444 = vpop.f32.mrb[0].mxu0
  %v445 = vadd.f32 %v84, %v444
  %v446 = vpop.f32.mrb[0].mxu0
  %447 = vmatprep.mubr.f32.mxu0 0.0
  %448 = vmatmul.mubr.f32.gmra.mrb[0].mxu0 %v163
  %v449 = vpop.f32.mrb[0].mxu0
  %v450 = vadd.f32 %v84, %v449
  %v451 = vpop.f32.mrb[0].mxu0
  %452 = vmatprep.mubr.f32.mxu0 0.0
  %453 = vmatmul.mubr.f32.gmra.mrb[0].mxu0 %v166
  %v454 = vpop.f32.mrb[0].mxu0
  %v455 = vadd.f32 %v84, %v454
  %v456 = vpop.f32.mrb[0].mxu0
  %457 = vmatprep.mubr.f32.mxu0 0.0
  %458 = vmatmul.mubr.f32.gmra.mrb[0].mxu0 %v169
  %v459 = vpop.f32.mrb[0].mxu0
  %v460 = vadd.f32 %v84, %v459
  %v461 = vpop.f32.mrb[0].mxu0
  %462 = vmatprep.mubr.f32.mxu0 0.0
  %463 = vmatmul.mubr.f32.gmra.mrb[0].mxu0 %v172
  %v464 = vpop.f32.mrb[0].mxu0
  %v465 = vadd.f32 %v84, %v464
  %v466 = vpop.f32.mrb[0].mxu0
  %467 = vmatprep.mubr.f32.mxu0 0.0
  %468 = vmatmul.mubr.f32.gmra.mrb[0].mxu0 %v175
  %v469 = vpop.f32.mrb[0].mxu0
  %v470 = vadd.f32 %v84, %v469
  %v471 = vpop.f32.mrb[0].mxu0
  %472 = vmatprep.mubr.f32.mxu0 0.0
  %473 = vmatmul.mubr.f32.gmra.mrb[0].mxu0 %v178
  %v474 = vpop.f32.mrb[0].mxu0
  %v475 = vadd.f32 %v84, %v474
  %v476 = vpop.f32.mrb[0].mxu0
  %477 = vmatprep.mubr.f32.mxu0 0.0
  %478 = vmatmul.mubr.f32.gmra.mrb[0].mxu0 %v181
  %v479 = vpop.f32.mrb[0].mxu0
  %v480 = vadd.f32 %v84, %v479
  %v481 = vpop.f32.mrb[0].mxu0
  %482 = vmatprep.mubr.f32.mxu0 0.0
  %483 = vmatmul.mubr.f32.gmra.mrb[0].mxu0 %v184
  %v484 = vpop.f32.mrb[0].mxu0
  %v485 = vadd.f32 %v84, %v484
  %v486 = vpop.f32.mrb[0].mxu0
  %487 = vmatprep.mubr.f32.mxu0 0.0
  %488 = vmatmul.mubr.f32.gmra.mrb[0].mxu0 %v187
  %v489 = vpop.f32.mrb[0].mxu0
  %v490 = vadd.f32 %v84, %v489
  %v491 = vpop.f32.mrb[0].mxu0
  %492 = vmatprep.mubr.f32.mxu0 0.0
  %493 = vmatmul.mubr.f32.gmra.mrb[0].mxu0 %v190
  %v494 = vpop.f32.mrb[0].mxu0
  %v495 = vadd.f32 %v84, %v494
  %v496 = vpop.f32.mrb[0].mxu0
  %497 = vmatprep.mubr.f32.mxu0 0.0
  %498 = vmatmul.mubr.f32.gmra.mrb[0].mxu0 %v193
  %v499 = vpop.f32.mrb[0].mxu0
  %v500 = vadd.f32 %v84, %v499
  %v501 = vpop.f32.mrb[0].mxu0
  %502 = vmatprep.mubr.f32.mxu0 0.0
  %503 = vmatmul.mubr.f32.gmra.mrb[0].mxu0 %v196
  %v504 = vpop.f32.mrb[0].mxu0
  %v505 = vadd.f32 %v84, %v504
  %v506 = vpop.f32.mrb[0].mxu0
  %507 = vmatprep.mubr.f32.mxu0 0.0
  %508 = vmatmul.mubr.f32.gmra.mrb[0].mxu0 %v199
  %v509 = vpop.f32.mrb[0].mxu0
  %v510 = vadd.f32 %v84, %v509
  %v511 = vpop.f32.mrb[0].mxu0
  %512 = vmatprep.mubr.f32.mxu0 0.0
  %513 = vmatmul.mubr.f32.gmra.mrb[0].mxu0 %v202
  %v514 = vpop.f32.mrb[0].mxu0
  %v515 = vadd.f32 %v84, %v514
  %v516 = vpop.f32.mrb[0].mxu0
  %517 = vmatprep.mubr.f32.mxu0 0.0
  %518 = vmatmul.mubr.f32.gmra.mrb[0].mxu0 %v205
  %v519 = vpop.f32.mrb[0].mxu0
  %v520 = vadd.f32 %v84, %v519
  %v521 = vpop.f32.mrb[0].mxu0
  %522 = vmatprep.mubr.f32.mxu0 0.0
  %523 = vmatmul.mubr.f32.gmra.mrb[0].mxu0 %v208
  %v524 = vpop.f32.mrb[0].mxu0
  %v525 = vadd.f32 %v84, %v524
  %v526 = vpop.f32.mrb[0].mxu0
  %527 = vmatprep.mubr.f32.mxu0 0.0
  %528 = vmatmul.mubr.f32.gmra.mrb[0].mxu0 %v211
  %v529 = vpop.f32.mrb[0].mxu0
  %v530 = vadd.f32 %v84, %v529
  %v531 = vpop.f32.mrb[0].mxu0
  %532 = vmatprep.mubr.f32.mxu0 0.0
  %533 = vmatmul.mubr.f32.gmra.mrb[0].mxu0 %v214
  %v534 = vpop.f32.mrb[0].mxu0
  %v535 = vadd.f32 %v84, %v534
  %v536 = vpop.f32.mrb[0].mxu0
  %537 = vmatprep.mubr.f32.mxu0 0.0
  %538 = vmatmul.mubr.f32.gmra.mrb[0].mxu0 %v217
  %v539 = vpop.f32.mrb[0].mxu0
  %v540 = vadd.f32 %v84, %v539
  %v541 = vpop.f32.mrb[0].mxu0
  %542 = vmatprep.mubr.f32.mxu0 0.0
  %543 = vmatmul.mubr.f32.gmra.mrb[0].mxu0 %v220
  %v544 = vpop.f32.mrb[0].mxu0
  %v545 = vadd.f32 %v84, %v544
  %v546 = vpop.f32.mrb[0].mxu0
  %547 = vmatprep.mubr.f32.mxu0 0.0
  %548 = vmatmul.mubr.f32.gmra.mrb[0].mxu0 %v223
  %v549 = vpop.f32.mrb[0].mxu0
  %v550 = vadd.f32 %v84, %v549
  %v551 = vpop.f32.mrb[0].mxu0
  %552 = vmatprep.mubr.f32.mxu0 0.0
  %553 = vmatmul.mubr.f32.gmra.mrb[0].mxu0 %v226
  %v554 = vpop.f32.mrb[0].mxu0
  %v555 = vadd.f32 %v84, %v554
  %v556 = vpop.f32.mrb[0].mxu0
  %557 = vmatprep.mubr.f32.mxu0 0.0
  %558 = vmatmul.mubr.f32.gmra.mrb[0].mxu0 %v229
  %v559 = vpop.f32.mrb[0].mxu0
  %v560 = vadd.f32 %v84, %v559
  %v561 = vpop.f32.mrb[0].mxu0
  %562 = vmatprep.mubr.f32.mxu0 0.0
  %563 = vmatmul.mubr.f32.gmra.mrb[0].mxu0 %v232
  %v564 = vpop.f32.mrb[0].mxu0
  %v565 = vadd.f32 %v84, %v564
  %v566 = vpop.f32.mrb[0].mxu0
  %567 = vmatprep.mubr.f32.mxu0 0.0
  %568 = vmatmul.mubr.f32.gmra.mrb[0].mxu0 %v235
  %v569 = vpop.f32.mrb[0].mxu0
  %v570 = vadd.f32 %v84, %v569
  %v571 = vpop.f32.mrb[0].mxu0
  %572 = vmatprep.mubr.f32.mxu0 0.0
  %573 = vmatmul.mubr.f32.gmra.mrb[0].mxu0 %v238
  %v574 = vpop.f32.mrb[0].mxu0
  %v575 = vadd.f32 %v84, %v574
  %v576 = vpop.f32.mrb[0].mxu0
  %577 = vmatprep.mubr.f32.mxu0 0.0
  %578 = vmatmul.mubr.f32.gmra.mrb[0].mxu0 %v241
  %v579 = vpop.f32.mrb[0].mxu0
  %v580 = vadd.f32 %v84, %v579
  %v581 = vpop.f32.mrb[0].mxu0
  %582 = vmatprep.mubr.f32.mxu0 0.0
  %583 = vmatmul.mubr.f32.gmra.mrb[0].mxu0 %v244
  %v584 = vpop.f32.mrb[0].mxu0
  %v585 = vadd.f32 %v84, %v584
  %v586 = vpop.f32.mrb[0].mxu0
  %587 = vmatprep.mubr.f32.mxu0 0.0
  %588 = vmatmul.mubr.f32.gmra.mrb[0].mxu0 %v247
  %v589 = vpop.f32.mrb[0].mxu0
  %v590 = vadd.f32 %v84, %v589
  %v591 = vpop.f32.mrb[0].mxu0
  %592 = vmatprep.mubr.f32.mxu0 0.0
  %593 = vmatmul.mubr.f32.gmra.mrb[0].mxu0 %v250
  %v594 = vpop.f32.mrb[0].mxu0
  %v595 = vadd.f32 %v84, %v594
  %v596 = vpop.f32.mrb[0].mxu0
  %597 = vmatprep.mubr.f32.mxu0 0.0
  %598 = vmatmul.mubr.f32.gmra.mrb[0].mxu0 %v253
  %v599 = vpop.f32.mrb[0].mxu0
  %v600 = vadd.f32 %v84, %v599
  %v601 = vpop.f32.mrb[0].mxu0
  %602 = vmatprep.mubr.f32.mxu0 0.0
  %603 = vmatmul.mubr.f32.gmra.mrb[0].mxu0 %v256
  %v604 = vpop.f32.mrb[0].mxu0
  %v605 = vadd.f32 %v84, %v604
  %v606 = vpop.f32.mrb[0].mxu0
  %607 = vdwg.mxu0
  %v608 = vmax.f32 %v325, 0.0
  %v609 = vmax.f32 %v330, 0.0
  %v610 = vmax.f32 %v335, 0.0
  %v611 = vmax.f32 %v340, 0.0
  %v612 = vmax.f32 %v345, 0.0
  %v613 = vmax.f32 %v350, 0.0
  %v614 = vmax.f32 %v355, 0.0
  %v615 = vmax.f32 %v360, 0.0
  %v616 = vmax.f32 %v365, 0.0
  %v617 = vmax.f32 %v370, 0.0
  %v618 = vmax.f32 %v375, 0.0
  %v619 = vmax.f32 %v380, 0.0
  %v620 = vmax.f32 %v385, 0.0
  %v621 = vmax.f32 %v390, 0.0
  %v622 = vmax.f32 %v395, 0.0
  %v623 = vmax.f32 %v400, 0.0
  %v624 = vmax.f32 %v405, 0.0
  %v625 = vmax.f32 %v410, 0.0
  %v626 = vmax.f32 %v415, 0.0
  %v627 = vmax.f32 %v420, 0.0
  %v628 = vmax.f32 %v425, 0.0
  %v629 = vmax.f32 %v430, 0.0
  %v630 = vmax.f32 %v435, 0.0
  %v631 = vmax.f32 %v440, 0.0
  %v632 = vmax.f32 %v445, 0.0
  %v633 = vmax.f32 %v450, 0.0
  %v634 = vmax.f32 %v455, 0.0
  %v635 = vmax.f32 %v460, 0.0
  %v636 = vmax.f32 %v465, 0.0
  %v637 = vmax.f32 %v470, 0.0
  %v638 = vmax.f32 %v475, 0.0
  %v639 = vmax.f32 %v480, 0.0
  %v640 = vmax.f32 %v485, 0.0
  %v641 = vmax.f32 %v490, 0.0
  %v642 = vmax.f32 %v495, 0.0
  %v643 = vmax.f32 %v500, 0.0
  %v644 = vmax.f32 %v505, 0.0
  %v645 = vmax.f32 %v510, 0.0
  %v646 = vmax.f32 %v515, 0.0
  %v647 = vmax.f32 %v520, 0.0
  %v648 = vmax.f32 %v525, 0.0
  %v649 = vmax.f32 %v530, 0.0
  %v650 = vmax.f32 %v535, 0.0
  %v651 = vmax.f32 %v540, 0.0
  %v652 = vmax.f32 %v545, 0.0
  %v653 = vmax.f32 %v550, 0.0
  %v654 = vmax.f32 %v555, 0.0
  %v655 = vmax.f32 %v560, 0.0
  %v656 = vmax.f32 %v565, 0.0
  %v657 = vmax.f32 %v570, 0.0
  %v658 = vmax.f32 %v575, 0.0
  %v659 = vmax.f32 %v580, 0.0
  %v660 = vmax.f32 %v585, 0.0
  %v661 = vmax.f32 %v590, 0.0
  %v662 = vmax.f32 %v595, 0.0
  %v663 = vmax.f32 %v600, 0.0
  %v664 = vmax.f32 %v605, 0.0
  %vm665 = vcmask 130048
  %666 = vst.msk [vmem:[%s3] sm:$0xff] %vm665, %v608
  %667 = vst.msk [vmem:[%s3 + $0x8] sm:$0xff] %vm665, %v609
  %668 = vst.msk [vmem:[%s3 + $0x10] sm:$0xff] %vm665, %v610
  %669 = vst.msk [vmem:[%s3 + $0x18] sm:$0xff] %vm665, %v611
  %670 = vst.msk [vmem:[%s3 + $0x20] sm:$0xff] %vm665, %v612
  %671 = vst.msk [vmem:[%s3 + $0x28] sm:$0xff] %vm665, %v613
  %672 = vst.msk [vmem:[%s3 + $0x30] sm:$0xff] %vm665, %v614
  %673 = vst.msk [vmem:[%s3 + $0x38] sm:$0xff] %vm665, %v615
  %674 = vst.msk [vmem:[%s3 + $0x40] sm:$0xff] %vm665, %v616
  %675 = vst.msk [vmem:[%s3 + $0x48] sm:$0xff] %vm665, %v617
  %676 = vst.msk [vmem:[%s3 + $0x50] sm:$0xff] %vm665, %v618
  %677 = vst.msk [vmem:[%s3 + $0x58] sm:$0xff] %vm665, %v619
  %678 = vst.msk [vmem:[%s3 + $0x60] sm:$0xff] %vm665, %v620
  %679 = vst.msk [vmem:[%s3 + $0x68] sm:$0xff] %vm665, %v621
  %680 = vst.msk [vmem:[%s3 + $0x70] sm:$0xff] %vm665, %v622
  %681 = vst.msk [vmem:[%s3 + $0x78] sm:$0xff] %vm665, %v623
  %682 = vst.msk [vmem:[%s3 + $0x80] sm:$0xff] %vm665, %v624
  %683 = vst.msk [vmem:[%s3 + $0x88] sm:$0xff] %vm665, %v625
  %684 = vst.msk [vmem:[%s3 + $0x90] sm:$0xff] %vm665, %v626
  %685 = vst.msk [vmem:[%s3 + $0x98] sm:$0xff] %vm665, %v627
  %686 = vst.msk [vmem:[%s3 + $0xa0] sm:$0xff] %vm665, %v628
  %687 = vst.msk [vmem:[%s3 + $0xa8] sm:$0xff] %vm665, %v629
  %688 = vst.msk [vmem:[%s3 + $0xb0] sm:$0xff] %vm665, %v630
  %689 = vst.msk [vmem:[%s3 + $0xb8] sm:$0xff] %vm665, %v631
  %690 = vst.msk [vmem:[%s3 + $0xc0] sm:$0xff] %vm665, %v632
  %691 = vst.msk [vmem:[%s3 + $0xc8] sm:$0xff] %vm665, %v633
  %692 = vst.msk [vmem:[%s3 + $0xd0] sm:$0xff] %vm665, %v634
  %693 = vst.msk [vmem:[%s3 + $0xd8] sm:$0xff] %vm665, %v635
  %694 = vst.msk [vmem:[%s3 + $0xe0] sm:$0xff] %vm665, %v636
  %695 = vst.msk [vmem:[%s3 + $0xe8] sm:$0xff] %vm665, %v637
  %696 = vst.msk [vmem:[%s3 + $0xf0] sm:$0xff] %vm665, %v638
  %697 = vst.msk [vmem:[%s3 + $0xf8] sm:$0xff] %vm665, %v639
  %698 = vst.msk [vmem:[%s3 + $0x100] sm:$0xff] %vm665, %v640
  %699 = vst.msk [vmem:[%s3 + $0x108] sm:$0xff] %vm665, %v641
  %700 = vst.msk [vmem:[%s3 + $0x110] sm:$0xff] %vm665, %v642
  %701 = vst.msk [vmem:[%s3 + $0x118] sm:$0xff] %vm665, %v643
  %702 = vst.msk [vmem:[%s3 + $0x120] sm:$0xff] %vm665, %v644
  %703 = vst.msk [vmem:[%s3 + $0x128] sm:$0xff] %vm665, %v645
  %704 = vst.msk [vmem:[%s3 + $0x130] sm:$0xff] %vm665, %v646
  %705 = vst.msk [vmem:[%s3 + $0x138] sm:$0xff] %vm665, %v647
  %706 = vst.msk [vmem:[%s3 + $0x140] sm:$0xff] %vm665, %v648
  %707 = vst.msk [vmem:[%s3 + $0x148] sm:$0xff] %vm665, %v649
  %708 = vst.msk [vmem:[%s3 + $0x150] sm:$0xff] %vm665, %v650
  %709 = vst.msk [vmem:[%s3 + $0x158] sm:$0xff] %vm665, %v651
  %710 = vst.msk [vmem:[%s3 + $0x160] sm:$0xff] %vm665, %v652
  %711 = vst.msk [vmem:[%s3 + $0x168] sm:$0xff] %vm665, %v653
  %712 = vst.msk [vmem:[%s3 + $0x170] sm:$0xff] %vm665, %v654
  %713 = vst.msk [vmem:[%s3 + $0x178] sm:$0xff] %vm665, %v655
  %714 = vst.msk [vmem:[%s3 + $0x180] sm:$0xff] %vm665, %v656
  %715 = vst.msk [vmem:[%s3 + $0x188] sm:$0xff] %vm665, %v657
  %716 = vst.msk [vmem:[%s3 + $0x190] sm:$0xff] %vm665, %v658
  %717 = vst.msk [vmem:[%s3 + $0x198] sm:$0xff] %vm665, %v659
  %718 = vst.msk [vmem:[%s3 + $0x1a0] sm:$0xff] %vm665, %v660
  %719 = vst.msk [vmem:[%s3 + $0x1a8] sm:$0xff] %vm665, %v661
  %720 = vst.msk [vmem:[%s3 + $0x1b0] sm:$0xff] %vm665, %v662
  %721 = vst.msk [vmem:[%s3 + $0x1b8] sm:$0xff] %vm665, %v663
  %vm722 = vcmask 123904
  %723 = vst.msk [vmem:[%s3 + $0x1c0] sm:$0x3] %vm722, %v664
  // Predicated region
  $region14: #{squeezenet2d_forward.28} parent=0 // pred_check
    _
  $region15: #{squeezenet2d_forward.28} parent=0 // pred_check_branch
    %725 = sbr.rel (0) target = $region17
  $region16: #{squeezenet2d_forward.28} parent=0 // pred_region
    _
  $region17: #{squeezenet2d_forward.28} parent=0 // pred_fallthru
    _
  // Predicated region
  $region18: #{squeezenet2d_forward.28} parent=0 // pred_check
    _
  $region19: #{squeezenet2d_forward.28} parent=0 // pred_check_branch
    %727 = sbr.rel (0) target = $region21
  $region20: #{squeezenet2d_forward.28} parent=0 // pred_region
    _
  $region21: #{squeezenet2d_forward.28} parent=0 // pred_fallthru
    _

// kernel: squeezenet2d_forward.30
$region0: #{squeezenet2d_forward.30}
  #allocation0 [shape = 'u32[]', space=smem, size = 0x4, offset = 0x4, fixed_abs, tag = 'smem constant byte address 0x4 - core index']
  #allocation1 [shape = 'u32[144,128]{1,0:T(1,128)}', space=vmem, size = 0x12000, scoped, tag = 'internal scratch']
  %s0 = inlined_call_operand.vmem [shape: f32[450,144], index: 0, kind: input, shape index: {}]
  %s1 = inlined_call_operand.vmem [shape: f32[144,64], index: 1, kind: input, shape index: {}]
  %s2 = inlined_call_operand.vmem [shape: f32[1,64], index: 2, kind: input, shape index: {}]
  %s3 = inlined_call_operand.vmem [shape: f32[450,64], index: 3, kind: output, shape index: {}]
  %s4 = sld [smem:[#allocation0]]
  $region22: #{squeezenet2d_forward.30} parent=0
    _
  %s6 = ssub.s32 1, %s4
  %s7 = scalar_select 0, %s6, %s4
  // Predicated region
  $region2: #{squeezenet2d_forward.30} parent=0 // pred_check
    _
  $region3: #{squeezenet2d_forward.30} parent=0 // pred_check_branch
    %9 = sbr.rel (0) target = $region5
  $region4: #{squeezenet2d_forward.30} parent=0 // pred_region
    _
  $region5: #{squeezenet2d_forward.30} parent=0 // pred_fallthru
    _
  // Predicated region
  $region6: #{squeezenet2d_forward.30} parent=0 // pred_check
    _
  $region7: #{squeezenet2d_forward.30} parent=0 // pred_check_branch
    %11 = sbr.rel (0) target = $region9
  $region8: #{squeezenet2d_forward.30} parent=0 // pred_region
    _
  $region9: #{squeezenet2d_forward.30} parent=0 // pred_fallthru
    _
  // Predicated region
  $region10: #{squeezenet2d_forward.30} parent=0 // pred_check
    _
  $region11: #{squeezenet2d_forward.30} parent=0 // pred_check_branch
    %13 = sbr.rel (0) target = $region13
  $region12: #{squeezenet2d_forward.30} parent=0 // pred_region
    _
  $region13: #{squeezenet2d_forward.30} parent=0 // pred_fallthru
    _
  %v14 = vld [vmem:[%s0] sm:$0xff]
  %v15 = vld [vmem:[%s0 + $0x8] sm:$0xff]
  %v16 = vld [vmem:[%s0 + $0x10] sm:$0xff]
  %v17 = vld [vmem:[%s0 + $0x18] sm:$0xff]
  %v18 = vld [vmem:[%s0 + $0x20] sm:$0xff]
  %v19 = vld [vmem:[%s0 + $0x28] sm:$0xff]
  %v20 = vld [vmem:[%s0 + $0x30] sm:$0xff]
  %v21 = vld [vmem:[%s0 + $0x38] sm:$0xff]
  %v22 = vld [vmem:[%s0 + $0x40] sm:$0xff]
  %v23 = vld [vmem:[%s0 + $0x48] sm:$0xff]
  %v24 = vld [vmem:[%s0 + $0x50] sm:$0xff]
  %v25 = vld [vmem:[%s0 + $0x58] sm:$0xff]
  %v26 = vld [vmem:[%s0 + $0x60] sm:$0xff]
  %v27 = vld [vmem:[%s0 + $0x68] sm:$0xff]
  %v28 = vld [vmem:[%s0 + $0x70] sm:$0xff]
  %v29 = vld [vmem:[%s0 + $0x78] sm:$0xff]
  %v30 = vld [vmem:[%s0 + $0x80] sm:$0xff]
  %v31 = vld [vmem:[%s0 + $0x88] sm:$0xff]
  %v32 = vld [vmem:[%s0 + $0x90] sm:$0xff]
  %v33 = vld [vmem:[%s0 + $0x98] sm:$0xff]
  %v34 = vld [vmem:[%s0 + $0xa0] sm:$0xff]
  %v35 = vld [vmem:[%s0 + $0xa8] sm:$0xff]
  %v36 = vld [vmem:[%s0 + $0xb0] sm:$0xff]
  %v37 = vld [vmem:[%s0 + $0xb8] sm:$0xff]
  %v38 = vld [vmem:[%s0 + $0xc0] sm:$0xff]
  %v39 = vld [vmem:[%s0 + $0xc8] sm:$0xff]
  %v40 = vld [vmem:[%s0 + $0xd0] sm:$0xff]
  %v41 = vld [vmem:[%s0 + $0xd8] sm:$0xff]
  %v42 = vld [vmem:[%s0 + $0xe0] sm:$0xff]
  %v43 = vld [vmem:[%s0 + $0xe8] sm:$0xff]
  %v44 = vld [vmem:[%s0 + $0xf0] sm:$0xff]
  %v45 = vld [vmem:[%s0 + $0xf8] sm:$0xff]
  %v46 = vld [vmem:[%s0 + $0x100] sm:$0xff]
  %v47 = vld [vmem:[%s0 + $0x108] sm:$0xff]
  %v48 = vld [vmem:[%s0 + $0x110] sm:$0xff]
  %v49 = vld [vmem:[%s0 + $0x118] sm:$0xff]
  %v50 = vld [vmem:[%s0 + $0x120] sm:$0xff]
  %v51 = vld [vmem:[%s0 + $0x128] sm:$0xff]
  %v52 = vld [vmem:[%s0 + $0x130] sm:$0xff]
  %v53 = vld [vmem:[%s0 + $0x138] sm:$0xff]
  %v54 = vld [vmem:[%s0 + $0x140] sm:$0xff]
  %v55 = vld [vmem:[%s0 + $0x148] sm:$0xff]
  %v56 = vld [vmem:[%s0 + $0x150] sm:$0xff]
  %v57 = vld [vmem:[%s0 + $0x158] sm:$0xff]
  %v58 = vld [vmem:[%s0 + $0x160] sm:$0xff]
  %v59 = vld [vmem:[%s0 + $0x168] sm:$0xff]
  %v60 = vld [vmem:[%s0 + $0x170] sm:$0xff]
  %v61 = vld [vmem:[%s0 + $0x178] sm:$0xff]
  %v62 = vld [vmem:[%s0 + $0x180] sm:$0xff]
  %v63 = vld [vmem:[%s0 + $0x188] sm:$0xff]
  %v64 = vld [vmem:[%s0 + $0x190] sm:$0xff]
  %v65 = vld [vmem:[%s0 + $0x198] sm:$0xff]
  %v66 = vld [vmem:[%s0 + $0x1a0] sm:$0xff]
  %v67 = vld [vmem:[%s0 + $0x1a8] sm:$0xff]
  %v68 = vld [vmem:[%s0 + $0x1b0] sm:$0xff]
  %v69 = vld [vmem:[%s0 + $0x1b8] sm:$0xff]
  %v70 = vld [vmem:[%s0 + $0x1c0] sm:$0xff]
  %v71 = vld [vmem:[%s0 + $0x1c8] sm:$0xff]
  %v72 = vld [vmem:[%s0 + $0x1d0] sm:$0xff]
  %v73 = vld [vmem:[%s0 + $0x1d8] sm:$0xff]
  %v74 = vld [vmem:[%s0 + $0x1e0] sm:$0xff]
  %v75 = vld [vmem:[%s0 + $0x1e8] sm:$0xff]
  %v76 = vld [vmem:[%s0 + $0x1f0] sm:$0xff]
  %v77 = vld [vmem:[%s0 + $0x1f8] sm:$0xff]
  %v78 = vld [vmem:[%s0 + $0x200] sm:$0xff]
  %v79 = vld [vmem:[%s0 + $0x208] sm:$0xff]
  %v80 = vld [vmem:[%s0 + $0x210] sm:$0xff]
  %v81 = vld [vmem:[%s0 + $0x218] sm:$0xff]
  %v82 = vld [vmem:[%s0 + $0x220] sm:$0xff]
  %v83 = vld [vmem:[%s0 + $0x228] sm:$0xff]
  %v84 = vld [vmem:[%s0 + $0x230] sm:$0xff]
  %v85 = vld [vmem:[%s0 + $0x238] sm:$0xff]
  %v86 = vld [vmem:[%s0 + $0x240] sm:$0xff]
  %v87 = vld [vmem:[%s0 + $0x248] sm:$0xff]
  %v88 = vld [vmem:[%s0 + $0x250] sm:$0xff]
  %v89 = vld [vmem:[%s0 + $0x258] sm:$0xff]
  %v90 = vld [vmem:[%s0 + $0x260] sm:$0xff]
  %v91 = vld [vmem:[%s0 + $0x268] sm:$0xff]
  %v92 = vld [vmem:[%s0 + $0x270] sm:$0xff]
  %v93 = vld [vmem:[%s0 + $0x278] sm:$0xff]
  %v94 = vld [vmem:[%s0 + $0x280] sm:$0xff]
  %v95 = vld [vmem:[%s0 + $0x288] sm:$0xff]
  %v96 = vld [vmem:[%s0 + $0x290] sm:$0xff]
  %v97 = vld [vmem:[%s0 + $0x298] sm:$0xff]
  %v98 = vld [vmem:[%s0 + $0x2a0] sm:$0xff]
  %v99 = vld [vmem:[%s0 + $0x2a8] sm:$0xff]
  %v100 = vld [vmem:[%s0 + $0x2b0] sm:$0xff]
  %v101 = vld [vmem:[%s0 + $0x2b8] sm:$0xff]
  %v102 = vld [vmem:[%s0 + $0x2c0] sm:$0xff]
  %v103 = vld [vmem:[%s0 + $0x2c8] sm:$0xff]
  %v104 = vld [vmem:[%s0 + $0x2d0] sm:$0xff]
  %v105 = vld [vmem:[%s0 + $0x2d8] sm:$0xff]
  %v106 = vld [vmem:[%s0 + $0x2e0] sm:$0xff]
  %v107 = vld [vmem:[%s0 + $0x2e8] sm:$0xff]
  %v108 = vld [vmem:[%s0 + $0x2f0] sm:$0xff]
  %v109 = vld [vmem:[%s0 + $0x2f8] sm:$0xff]
  %v110 = vld [vmem:[%s0 + $0x300] sm:$0xff]
  %v111 = vld [vmem:[%s0 + $0x308] sm:$0xff]
  %v112 = vld [vmem:[%s0 + $0x310] sm:$0xff]
  %v113 = vld [vmem:[%s0 + $0x318] sm:$0xff]
  %v114 = vld [vmem:[%s0 + $0x320] sm:$0xff]
  %v115 = vld [vmem:[%s0 + $0x328] sm:$0xff]
  %v116 = vld [vmem:[%s0 + $0x330] sm:$0xff]
  %v117 = vld [vmem:[%s0 + $0x338] sm:$0xff]
  %v118 = vld [vmem:[%s0 + $0x340] sm:$0xff]
  %v119 = vld [vmem:[%s0 + $0x348] sm:$0xff]
  %v120 = vld [vmem:[%s0 + $0x350] sm:$0xff]
  %v121 = vld [vmem:[%s0 + $0x358] sm:$0xff]
  %v122 = vld [vmem:[%s0 + $0x360] sm:$0xff]
  %v123 = vld [vmem:[%s0 + $0x368] sm:$0xff]
  %v124 = vld [vmem:[%s0 + $0x370] sm:$0xff]
  %v125 = vld [vmem:[%s0 + $0x378] sm:$0xff]
  %v126 = vld [vmem:[%s0 + $0x380] sm:$0x3]
  %v127 = vld [vmem:[%s0 + $0x388] sm:$0x3]
  %v128 = vld [vmem:[%s1] sm:$0xff]
  %v129 = vld [vmem:[%s1 + $0x8] sm:$0xff]
  %v130 = vld [vmem:[%s1 + $0x10] sm:$0xff]
  %v131 = vld [vmem:[%s1 + $0x18] sm:$0xff]
  %v132 = vld [vmem:[%s1 + $0x20] sm:$0xff]
  %v133 = vld [vmem:[%s1 + $0x28] sm:$0xff]
  %v134 = vld [vmem:[%s1 + $0x30] sm:$0xff]
  %v135 = vld [vmem:[%s1 + $0x38] sm:$0xff]
  %v136 = vld [vmem:[%s1 + $0x40] sm:$0xff]
  %v137 = vld [vmem:[%s1 + $0x48] sm:$0xff]
  %v138 = vld [vmem:[%s1 + $0x50] sm:$0xff]
  %v139 = vld [vmem:[%s1 + $0x58] sm:$0xff]
  %v140 = vld [vmem:[%s1 + $0x60] sm:$0xff]
  %v141 = vld [vmem:[%s1 + $0x68] sm:$0xff]
  %v142 = vld [vmem:[%s1 + $0x70] sm:$0xff]
  %v143 = vld [vmem:[%s1 + $0x78] sm:$0xff]
  %v144 = vld [vmem:[%s1 + $0x80] sm:$0xff]
  %v145 = vld [vmem:[%s1 + $0x88] sm:$0xff]
  %v146 = vld [vmem:[%s2] sm:$0x1]
  %v148 = vlaneseq
  %v149 = vshrl.u32 %v148, 7
  %v150 = vsub.s32 0, %v149
  %v151 = vrot.slane %v146, %v150
  %vm153 = vcmask 130048
  %v155 = vsel %vm153, %v15, 0
  %v158 = vsel %vm153, %v17, 0
  %v161 = vsel %vm153, %v19, 0
  %v164 = vsel %vm153, %v21, 0
  %v167 = vsel %vm153, %v23, 0
  %v170 = vsel %vm153, %v25, 0
  %v173 = vsel %vm153, %v27, 0
  %v176 = vsel %vm153, %v29, 0
  %v179 = vsel %vm153, %v31, 0
  %v182 = vsel %vm153, %v33, 0
  %v185 = vsel %vm153, %v35, 0
  %v188 = vsel %vm153, %v37, 0
  %v191 = vsel %vm153, %v39, 0
  %v194 = vsel %vm153, %v41, 0
  %v197 = vsel %vm153, %v43, 0
  %v200 = vsel %vm153, %v45, 0
  %v203 = vsel %vm153, %v47, 0
  %v206 = vsel %vm153, %v49, 0
  %v209 = vsel %vm153, %v51, 0
  %v212 = vsel %vm153, %v53, 0
  %v215 = vsel %vm153, %v55, 0
  %v218 = vsel %vm153, %v57, 0
  %v221 = vsel %vm153, %v59, 0
  %v224 = vsel %vm153, %v61, 0
  %v227 = vsel %vm153, %v63, 0
  %v230 = vsel %vm153, %v65, 0
  %v233 = vsel %vm153, %v67, 0
  %v236 = vsel %vm153, %v69, 0
  %v239 = vsel %vm153, %v71, 0
  %v242 = vsel %vm153, %v73, 0
  %v245 = vsel %vm153, %v75, 0
  %v248 = vsel %vm153, %v77, 0
  %v251 = vsel %vm153, %v79, 0
  %v254 = vsel %vm153, %v81, 0
  %v257 = vsel %vm153, %v83, 0
  %v260 = vsel %vm153, %v85, 0
  %v263 = vsel %vm153, %v87, 0
  %v266 = vsel %vm153, %v89, 0
  %v269 = vsel %vm153, %v91, 0
  %v272 = vsel %vm153, %v93, 0
  %v275 = vsel %vm153, %v95, 0
  %v278 = vsel %vm153, %v97, 0
  %v281 = vsel %vm153, %v99, 0
  %v284 = vsel %vm153, %v101, 0
  %v287 = vsel %vm153, %v103, 0
  %v290 = vsel %vm153, %v105, 0
  %v293 = vsel %vm153, %v107, 0
  %v296 = vsel %vm153, %v109, 0
  %v299 = vsel %vm153, %v111, 0
  %v302 = vsel %vm153, %v113, 0
  %v305 = vsel %vm153, %v115, 0
  %v308 = vsel %vm153, %v117, 0
  %v311 = vsel %vm153, %v119, 0
  %v314 = vsel %vm153, %v121, 0
  %v317 = vsel %vm153, %v123, 0
  %v320 = vsel %vm153, %v125, 0
  %v323 = vsel %vm153, %v127, 0
  %325 = vmatprep.subr.mxu0 0.0
  %326 = vmatpush1.msra.mxu0 %v128
  %327 = vmatprep.subr.mxu0 0.0
  %328 = vmatpush1.msra.mxu0 %v129
  %329 = vmatprep.subr.mxu0 0.0
  %330 = vmatpush1.msra.mxu0 %v130
  %331 = vmatprep.subr.mxu0 0.0
  %332 = vmatpush1.msra.mxu0 %v131
  %333 = vmatprep.subr.mxu0 0.0
  %334 = vmatpush1.msra.mxu0 %v132
  %335 = vmatprep.subr.mxu0 0.0
  %336 = vmatpush1.msra.mxu0 %v133
  %337 = vmatprep.subr.mxu0 0.0
  %338 = vmatpush1.msra.mxu0 %v134
  %339 = vmatprep.subr.mxu0 0.0
  %340 = vmatpush1.msra.mxu0 %v135
  %341 = vmatprep.subr.mxu0 0.0
  %342 = vmatpush1.msra.mxu0 %v136
  %343 = vmatprep.subr.mxu0 0.0
  %344 = vmatpush1.msra.mxu0 %v137
  %345 = vmatprep.subr.mxu0 0.0
  %346 = vmatpush1.msra.mxu0 %v138
  %347 = vmatprep.subr.mxu0 0.0
  %348 = vmatpush1.msra.mxu0 %v139
  %349 = vmatprep.subr.mxu0 0.0
  %350 = vmatpush1.msra.mxu0 %v140
  %351 = vmatprep.subr.mxu0 0.0
  %352 = vmatpush1.msra.mxu0 %v141
  %353 = vmatprep.subr.mxu0 0.0
  %354 = vmatpush1.msra.mxu0 %v142
  %355 = vmatprep.subr.mxu0 0.0
  %356 = vmatpush1.msra.mxu0 %v143
  %357 = vmatprep.subr.mxu0 0.0
  %358 = vmatpush1.msra.mxu0 %v144
  %359 = vmatprep.subr.mxu0 0.0
  %360 = vmatpush1.msra.mxu0 %v145
  %361 = vmatprep.subr.mxu0 0.0
  %362 = vmatpush1.msra.mxu0 0.0
  %363 = vmatprep.subr.mxu0 0.0
  %364 = vmatpush1.msra.mxu0 0.0
  %365 = vmatprep.subr.mxu0 0.0
  %366 = vmatpush1.msra.mxu0 0.0
  %367 = vmatprep.subr.mxu0 0.0
  %368 = vmatpush1.msra.mxu0 0.0
  %369 = vmatprep.subr.mxu0 0.0
  %370 = vmatpush1.msra.mxu0 0.0
  %371 = vmatprep.subr.mxu0 0.0
  %372 = vmatpush1.msra.mxu0 0.0
  %373 = vmatprep.subr.mxu0 0.0
  %374 = vmatpush1.msra.mxu0 0.0
  %375 = vmatprep.subr.mxu0 0.0
  %376 = vmatpush1.msra.mxu0 0.0
  %377 = vmatprep.subr.mxu0 0.0
  %378 = vmatpush1.msra.mxu0 0.0
  %379 = vmatprep.subr.mxu0 0.0
  %380 = vmatpush1.msra.mxu0 0.0
  %381 = vmatprep.subr.mxu0 0.0
  %382 = vmatpush1.msra.mxu0 0.0
  %383 = vmatprep.subr.mxu0 0.0
  %384 = vmatpush1.msra.mxu0 0.0
  %385 = vmatprep.subr.mxu0 0.0
  %386 = vmatpush1.msra.mxu0 0.0
  %387 = vmatprep.subr.mxu0 0.0
  %388 = vmatpush1.msra.mxu0 0.0
  %389 = vmatprep.mubr.f32.mxu0 %v155
  %390 = vmatmul.mubr.f32.gmra.mrb[0].mxu0 %v14
  %v391 = vpop.f32.mrb[0].mxu0
  %v392 = vadd.f32 %v151, %v391
  %v393 = vpop.f32.mrb[0].mxu0
  %394 = vmatprep.mubr.f32.mxu0 %v158
  %395 = vmatmul.mubr.f32.gmra.mrb[0].mxu0 %v16
  %v396 = vpop.f32.mrb[0].mxu0
  %v397 = vadd.f32 %v151, %v396
  %v398 = vpop.f32.mrb[0].mxu0
  %399 = vmatprep.mubr.f32.mxu0 %v161
  %400 = vmatmul.mubr.f32.gmra.mrb[0].mxu0 %v18
  %v401 = vpop.f32.mrb[0].mxu0
  %v402 = vadd.f32 %v151, %v401
  %v403 = vpop.f32.mrb[0].mxu0
  %404 = vmatprep.mubr.f32.mxu0 %v164
  %405 = vmatmul.mubr.f32.gmra.mrb[0].mxu0 %v20
  %v406 = vpop.f32.mrb[0].mxu0
  %v407 = vadd.f32 %v151, %v406
  %v408 = vpop.f32.mrb[0].mxu0
  %409 = vmatprep.mubr.f32.mxu0 %v167
  %410 = vmatmul.mubr.f32.gmra.mrb[0].mxu0 %v22
  %v411 = vpop.f32.mrb[0].mxu0
  %v412 = vadd.f32 %v151, %v411
  %v413 = vpop.f32.mrb[0].mxu0
  %414 = vmatprep.mubr.f32.mxu0 %v170
  %415 = vmatmul.mubr.f32.gmra.mrb[0].mxu0 %v24
  %v416 = vpop.f32.mrb[0].mxu0
  %v417 = vadd.f32 %v151, %v416
  %v418 = vpop.f32.mrb[0].mxu0
  %419 = vmatprep.mubr.f32.mxu0 %v173
  %420 = vmatmul.mubr.f32.gmra.mrb[0].mxu0 %v26
  %v421 = vpop.f32.mrb[0].mxu0
  %v422 = vadd.f32 %v151, %v421
  %v423 = vpop.f32.mrb[0].mxu0
  %424 = vmatprep.mubr.f32.mxu0 %v176
  %425 = vmatmul.mubr.f32.gmra.mrb[0].mxu0 %v28
  %v426 = vpop.f32.mrb[0].mxu0
  %v427 = vadd.f32 %v151, %v426
  %v428 = vpop.f32.mrb[0].mxu0
  %429 = vmatprep.mubr.f32.mxu0 %v179
  %430 = vmatmul.mubr.f32.gmra.mrb[0].mxu0 %v30
  %v431 = vpop.f32.mrb[0].mxu0
  %v432 = vadd.f32 %v151, %v431
  %v433 = vpop.f32.mrb[0].mxu0
  %434 = vmatprep.mubr.f32.mxu0 %v182
  %435 = vmatmul.mubr.f32.gmra.mrb[0].mxu0 %v32
  %v436 = vpop.f32.mrb[0].mxu0
  %v437 = vadd.f32 %v151, %v436
  %v438 = vpop.f32.mrb[0].mxu0
  %439 = vmatprep.mubr.f32.mxu0 %v185
  %440 = vmatmul.mubr.f32.gmra.mrb[0].mxu0 %v34
  %v441 = vpop.f32.mrb[0].mxu0
  %v442 = vadd.f32 %v151, %v441
  %v443 = vpop.f32.mrb[0].mxu0
  %444 = vmatprep.mubr.f32.mxu0 %v188
  %445 = vmatmul.mubr.f32.gmra.mrb[0].mxu0 %v36
  %v446 = vpop.f32.mrb[0].mxu0
  %v447 = vadd.f32 %v151, %v446
  %v448 = vpop.f32.mrb[0].mxu0
  %449 = vmatprep.mubr.f32.mxu0 %v191
  %450 = vmatmul.mubr.f32.gmra.mrb[0].mxu0 %v38
  %v451 = vpop.f32.mrb[0].mxu0
  %v452 = vadd.f32 %v151, %v451
  %v453 = vpop.f32.mrb[0].mxu0
  %454 = vmatprep.mubr.f32.mxu0 %v194
  %455 = vmatmul.mubr.f32.gmra.mrb[0].mxu0 %v40
  %v456 = vpop.f32.mrb[0].mxu0
  %v457 = vadd.f32 %v151, %v456
  %v458 = vpop.f32.mrb[0].mxu0
  %459 = vmatprep.mubr.f32.mxu0 %v197
  %460 = vmatmul.mubr.f32.gmra.mrb[0].mxu0 %v42
  %v461 = vpop.f32.mrb[0].mxu0
  %v462 = vadd.f32 %v151, %v461
  %v463 = vpop.f32.mrb[0].mxu0
  %464 = vmatprep.mubr.f32.mxu0 %v200
  %465 = vmatmul.mubr.f32.gmra.mrb[0].mxu0 %v44
  %v466 = vpop.f32.mrb[0].mxu0
  %v467 = vadd.f32 %v151, %v466
  %v468 = vpop.f32.mrb[0].mxu0
  %469 = vmatprep.mubr.f32.mxu0 %v203
  %470 = vmatmul.mubr.f32.gmra.mrb[0].mxu0 %v46
  %v471 = vpop.f32.mrb[0].mxu0
  %v472 = vadd.f32 %v151, %v471
  %v473 = vpop.f32.mrb[0].mxu0
  %474 = vmatprep.mubr.f32.mxu0 %v206
  %475 = vmatmul.mubr.f32.gmra.mrb[0].mxu0 %v48
  %v476 = vpop.f32.mrb[0].mxu0
  %v477 = vadd.f32 %v151, %v476
  %v478 = vpop.f32.mrb[0].mxu0
  %479 = vmatprep.mubr.f32.mxu0 %v209
  %480 = vmatmul.mubr.f32.gmra.mrb[0].mxu0 %v50
  %v481 = vpop.f32.mrb[0].mxu0
  %v482 = vadd.f32 %v151, %v481
  %v483 = vpop.f32.mrb[0].mxu0
  %484 = vmatprep.mubr.f32.mxu0 %v212
  %485 = vmatmul.mubr.f32.gmra.mrb[0].mxu0 %v52
  %v486 = vpop.f32.mrb[0].mxu0
  %v487 = vadd.f32 %v151, %v486
  %v488 = vpop.f32.mrb[0].mxu0
  %489 = vmatprep.mubr.f32.mxu0 %v215
  %490 = vmatmul.mubr.f32.gmra.mrb[0].mxu0 %v54
  %v491 = vpop.f32.mrb[0].mxu0
  %v492 = vadd.f32 %v151, %v491
  %v493 = vpop.f32.mrb[0].mxu0
  %494 = vmatprep.mubr.f32.mxu0 %v218
  %495 = vmatmul.mubr.f32.gmra.mrb[0].mxu0 %v56
  %v496 = vpop.f32.mrb[0].mxu0
  %v497 = vadd.f32 %v151, %v496
  %v498 = vpop.f32.mrb[0].mxu0
  %499 = vmatprep.mubr.f32.mxu0 %v221
  %500 = vmatmul.mubr.f32.gmra.mrb[0].mxu0 %v58
  %v501 = vpop.f32.mrb[0].mxu0
  %v502 = vadd.f32 %v151, %v501
  %v503 = vpop.f32.mrb[0].mxu0
  %504 = vmatprep.mubr.f32.mxu0 %v224
  %505 = vmatmul.mubr.f32.gmra.mrb[0].mxu0 %v60
  %v506 = vpop.f32.mrb[0].mxu0
  %v507 = vadd.f32 %v151, %v506
  %v508 = vpop.f32.mrb[0].mxu0
  %509 = vmatprep.mubr.f32.mxu0 %v227
  %510 = vmatmul.mubr.f32.gmra.mrb[0].mxu0 %v62
  %v511 = vpop.f32.mrb[0].mxu0
  %v512 = vadd.f32 %v151, %v511
  %v513 = vpop.f32.mrb[0].mxu0
  %514 = vmatprep.mubr.f32.mxu0 %v230
  %515 = vmatmul.mubr.f32.gmra.mrb[0].mxu0 %v64
  %v516 = vpop.f32.mrb[0].mxu0
  %v517 = vadd.f32 %v151, %v516
  %v518 = vpop.f32.mrb[0].mxu0
  %519 = vmatprep.mubr.f32.mxu0 %v233
  %520 = vmatmul.mubr.f32.gmra.mrb[0].mxu0 %v66
  %v521 = vpop.f32.mrb[0].mxu0
  %v522 = vadd.f32 %v151, %v521
  %v523 = vpop.f32.mrb[0].mxu0
  %524 = vmatprep.mubr.f32.mxu0 %v236
  %525 = vmatmul.mubr.f32.gmra.mrb[0].mxu0 %v68
  %v526 = vpop.f32.mrb[0].mxu0
  %v527 = vadd.f32 %v151, %v526
  %v528 = vpop.f32.mrb[0].mxu0
  %529 = vmatprep.mubr.f32.mxu0 %v239
  %530 = vmatmul.mubr.f32.gmra.mrb[0].mxu0 %v70
  %v531 = vpop.f32.mrb[0].mxu0
  %v532 = vadd.f32 %v151, %v531
  %v533 = vpop.f32.mrb[0].mxu0
  %534 = vmatprep.mubr.f32.mxu0 %v242
  %535 = vmatmul.mubr.f32.gmra.mrb[0].mxu0 %v72
  %v536 = vpop.f32.mrb[0].mxu0
  %v537 = vadd.f32 %v151, %v536
  %v538 = vpop.f32.mrb[0].mxu0
  %539 = vmatprep.mubr.f32.mxu0 %v245
  %540 = vmatmul.mubr.f32.gmra.mrb[0].mxu0 %v74
  %v541 = vpop.f32.mrb[0].mxu0
  %v542 = vadd.f32 %v151, %v541
  %v543 = vpop.f32.mrb[0].mxu0
  %544 = vmatprep.mubr.f32.mxu0 %v248
  %545 = vmatmul.mubr.f32.gmra.mrb[0].mxu0 %v76
  %v546 = vpop.f32.mrb[0].mxu0
  %v547 = vadd.f32 %v151, %v546
  %v548 = vpop.f32.mrb[0].mxu0
  %549 = vmatprep.mubr.f32.mxu0 %v251
  %550 = vmatmul.mubr.f32.gmra.mrb[0].mxu0 %v78
  %v551 = vpop.f32.mrb[0].mxu0
  %v552 = vadd.f32 %v151, %v551
  %v553 = vpop.f32.mrb[0].mxu0
  %554 = vmatprep.mubr.f32.mxu0 %v254
  %555 = vmatmul.mubr.f32.gmra.mrb[0].mxu0 %v80
  %v556 = vpop.f32.mrb[0].mxu0
  %v557 = vadd.f32 %v151, %v556
  %v558 = vpop.f32.mrb[0].mxu0
  %559 = vmatprep.mubr.f32.mxu0 %v257
  %560 = vmatmul.mubr.f32.gmra.mrb[0].mxu0 %v82
  %v561 = vpop.f32.mrb[0].mxu0
  %v562 = vadd.f32 %v151, %v561
  %v563 = vpop.f32.mrb[0].mxu0
  %564 = vmatprep.mubr.f32.mxu0 %v260
  %565 = vmatmul.mubr.f32.gmra.mrb[0].mxu0 %v84
  %v566 = vpop.f32.mrb[0].mxu0
  %v567 = vadd.f32 %v151, %v566
  %v568 = vpop.f32.mrb[0].mxu0
  %569 = vmatprep.mubr.f32.mxu0 %v263
  %570 = vmatmul.mubr.f32.gmra.mrb[0].mxu0 %v86
  %v571 = vpop.f32.mrb[0].mxu0
  %v572 = vadd.f32 %v151, %v571
  %v573 = vpop.f32.mrb[0].mxu0
  %574 = vmatprep.mubr.f32.mxu0 %v266
  %575 = vmatmul.mubr.f32.gmra.mrb[0].mxu0 %v88
  %v576 = vpop.f32.mrb[0].mxu0
  %v577 = vadd.f32 %v151, %v576
  %v578 = vpop.f32.mrb[0].mxu0
  %579 = vmatprep.mubr.f32.mxu0 %v269
  %580 = vmatmul.mubr.f32.gmra.mrb[0].mxu0 %v90
  %v581 = vpop.f32.mrb[0].mxu0
  %v582 = vadd.f32 %v151, %v581
  %v583 = vpop.f32.mrb[0].mxu0
  %584 = vmatprep.mubr.f32.mxu0 %v272
  %585 = vmatmul.mubr.f32.gmra.mrb[0].mxu0 %v92
  %v586 = vpop.f32.mrb[0].mxu0
  %v587 = vadd.f32 %v151, %v586
  %v588 = vpop.f32.mrb[0].mxu0
  %589 = vmatprep.mubr.f32.mxu0 %v275
  %590 = vmatmul.mubr.f32.gmra.mrb[0].mxu0 %v94
  %v591 = vpop.f32.mrb[0].mxu0
  %v592 = vadd.f32 %v151, %v591
  %v593 = vpop.f32.mrb[0].mxu0
  %594 = vmatprep.mubr.f32.mxu0 %v278
  %595 = vmatmul.mubr.f32.gmra.mrb[0].mxu0 %v96
  %v596 = vpop.f32.mrb[0].mxu0
  %v597 = vadd.f32 %v151, %v596
  %v598 = vpop.f32.mrb[0].mxu0
  %599 = vmatprep.mubr.f32.mxu0 %v281
  %600 = vmatmul.mubr.f32.gmra.mrb[0].mxu0 %v98
  %v601 = vpop.f32.mrb[0].mxu0
  %v602 = vadd.f32 %v151, %v601
  %v603 = vpop.f32.mrb[0].mxu0
  %604 = vmatprep.mubr.f32.mxu0 %v284
  %605 = vmatmul.mubr.f32.gmra.mrb[0].mxu0 %v100
  %v606 = vpop.f32.mrb[0].mxu0
  %v607 = vadd.f32 %v151, %v606
  %v608 = vpop.f32.mrb[0].mxu0
  %609 = vmatprep.mubr.f32.mxu0 %v287
  %610 = vmatmul.mubr.f32.gmra.mrb[0].mxu0 %v102
  %v611 = vpop.f32.mrb[0].mxu0
  %v612 = vadd.f32 %v151, %v611
  %v613 = vpop.f32.mrb[0].mxu0
  %614 = vmatprep.mubr.f32.mxu0 %v290
  %615 = vmatmul.mubr.f32.gmra.mrb[0].mxu0 %v104
  %v616 = vpop.f32.mrb[0].mxu0
  %v617 = vadd.f32 %v151, %v616
  %v618 = vpop.f32.mrb[0].mxu0
  %619 = vmatprep.mubr.f32.mxu0 %v293
  %620 = vmatmul.mubr.f32.gmra.mrb[0].mxu0 %v106
  %v621 = vpop.f32.mrb[0].mxu0
  %v622 = vadd.f32 %v151, %v621
  %v623 = vpop.f32.mrb[0].mxu0
  %624 = vmatprep.mubr.f32.mxu0 %v296
  %625 = vmatmul.mubr.f32.gmra.mrb[0].mxu0 %v108
  %v626 = vpop.f32.mrb[0].mxu0
  %v627 = vadd.f32 %v151, %v626
  %v628 = vpop.f32.mrb[0].mxu0
  %629 = vmatprep.mubr.f32.mxu0 %v299
  %630 = vmatmul.mubr.f32.gmra.mrb[0].mxu0 %v110
  %v631 = vpop.f32.mrb[0].mxu0
  %v632 = vadd.f32 %v151, %v631
  %v633 = vpop.f32.mrb[0].mxu0
  %634 = vmatprep.mubr.f32.mxu0 %v302
  %635 = vmatmul.mubr.f32.gmra.mrb[0].mxu0 %v112
  %v636 = vpop.f32.mrb[0].mxu0
  %v637 = vadd.f32 %v151, %v636
  %v638 = vpop.f32.mrb[0].mxu0
  %639 = vmatprep.mubr.f32.mxu0 %v305
  %640 = vmatmul.mubr.f32.gmra.mrb[0].mxu0 %v114
  %v641 = vpop.f32.mrb[0].mxu0
  %v642 = vadd.f32 %v151, %v641
  %v643 = vpop.f32.mrb[0].mxu0
  %644 = vmatprep.mubr.f32.mxu0 %v308
  %645 = vmatmul.mubr.f32.gmra.mrb[0].mxu0 %v116
  %v646 = vpop.f32.mrb[0].mxu0
  %v647 = vadd.f32 %v151, %v646
  %v648 = vpop.f32.mrb[0].mxu0
  %649 = vmatprep.mubr.f32.mxu0 %v311
  %650 = vmatmul.mubr.f32.gmra.mrb[0].mxu0 %v118
  %v651 = vpop.f32.mrb[0].mxu0
  %v652 = vadd.f32 %v151, %v651
  %v653 = vpop.f32.mrb[0].mxu0
  %654 = vmatprep.mubr.f32.mxu0 %v314
  %655 = vmatmul.mubr.f32.gmra.mrb[0].mxu0 %v120
  %v656 = vpop.f32.mrb[0].mxu0
  %v657 = vadd.f32 %v151, %v656
  %v658 = vpop.f32.mrb[0].mxu0
  %659 = vmatprep.mubr.f32.mxu0 %v317
  %660 = vmatmul.mubr.f32.gmra.mrb[0].mxu0 %v122
  %v661 = vpop.f32.mrb[0].mxu0
  %v662 = vadd.f32 %v151, %v661
  %v663 = vpop.f32.mrb[0].mxu0
  %664 = vmatprep.mubr.f32.mxu0 %v320
  %665 = vmatmul.mubr.f32.gmra.mrb[0].mxu0 %v124
  %v666 = vpop.f32.mrb[0].mxu0
  %v667 = vadd.f32 %v151, %v666
  %v668 = vpop.f32.mrb[0].mxu0
  %669 = vmatprep.mubr.f32.mxu0 %v323
  %670 = vmatmul.mubr.f32.gmra.mrb[0].mxu0 %v126
  %v671 = vpop.f32.mrb[0].mxu0
  %v672 = vadd.f32 %v151, %v671
  %v673 = vpop.f32.mrb[0].mxu0
  %674 = vdwg.mxu0
  %v675 = vmax.f32 %v392, 0.0
  %v676 = vmax.f32 %v397, 0.0
  %v677 = vmax.f32 %v402, 0.0
  %v678 = vmax.f32 %v407, 0.0
  %v679 = vmax.f32 %v412, 0.0
  %v680 = vmax.f32 %v417, 0.0
  %v681 = vmax.f32 %v422, 0.0
  %v682 = vmax.f32 %v427, 0.0
  %v683 = vmax.f32 %v432, 0.0
  %v684 = vmax.f32 %v437, 0.0
  %v685 = vmax.f32 %v442, 0.0
  %v686 = vmax.f32 %v447, 0.0
  %v687 = vmax.f32 %v452, 0.0
  %v688 = vmax.f32 %v457, 0.0
  %v689 = vmax.f32 %v462, 0.0
  %v690 = vmax.f32 %v467, 0.0
  %v691 = vmax.f32 %v472, 0.0
  %v692 = vmax.f32 %v477, 0.0
  %v693 = vmax.f32 %v482, 0.0
  %v694 = vmax.f32 %v487, 0.0
  %v695 = vmax.f32 %v492, 0.0
  %v696 = vmax.f32 %v497, 0.0
  %v697 = vmax.f32 %v502, 0.0
  %v698 = vmax.f32 %v507, 0.0
  %v699 = vmax.f32 %v512, 0.0
  %v700 = vmax.f32 %v517, 0.0
  %v701 = vmax.f32 %v522, 0.0
  %v702 = vmax.f32 %v527, 0.0
  %v703 = vmax.f32 %v532, 0.0
  %v704 = vmax.f32 %v537, 0.0
  %v705 = vmax.f32 %v542, 0.0
  %v706 = vmax.f32 %v547, 0.0
  %v707 = vmax.f32 %v552, 0.0
  %v708 = vmax.f32 %v557, 0.0
  %v709 = vmax.f32 %v562, 0.0
  %v710 = vmax.f32 %v567, 0.0
  %v711 = vmax.f32 %v572, 0.0
  %v712 = vmax.f32 %v577, 0.0
  %v713 = vmax.f32 %v582, 0.0
  %v714 = vmax.f32 %v587, 0.0
  %v715 = vmax.f32 %v592, 0.0
  %v716 = vmax.f32 %v597, 0.0
  %v717 = vmax.f32 %v602, 0.0
  %v718 = vmax.f32 %v607, 0.0
  %v719 = vmax.f32 %v612, 0.0
  %v720 = vmax.f32 %v617, 0.0
  %v721 = vmax.f32 %v622, 0.0
  %v722 = vmax.f32 %v627, 0.0
  %v723 = vmax.f32 %v632, 0.0
  %v724 = vmax.f32 %v637, 0.0
  %v725 = vmax.f32 %v642, 0.0
  %v726 = vmax.f32 %v647, 0.0
  %v727 = vmax.f32 %v652, 0.0
  %v728 = vmax.f32 %v657, 0.0
  %v729 = vmax.f32 %v662, 0.0
  %v730 = vmax.f32 %v667, 0.0
  %v731 = vmax.f32 %v672, 0.0
  %vm732 = vcmask 523264
  %733 = vst.msk [vmem:[%s3] sm:$0xff] %vm732, %v675
  %734 = vst.msk [vmem:[%s3 + $0x8] sm:$0xff] %vm732, %v676
  %735 = vst.msk [vmem:[%s3 + $0x10] sm:$0xff] %vm732, %v677
  %736 = vst.msk [vmem:[%s3 + $0x18] sm:$0xff] %vm732, %v678
  %737 = vst.msk [vmem:[%s3 + $0x20] sm:$0xff] %vm732, %v679
  %738 = vst.msk [vmem:[%s3 + $0x28] sm:$0xff] %vm732, %v680
  %739 = vst.msk [vmem:[%s3 + $0x30] sm:$0xff] %vm732, %v681
  %740 = vst.msk [vmem:[%s3 + $0x38] sm:$0xff] %vm732, %v682
  %741 = vst.msk [vmem:[%s3 + $0x40] sm:$0xff] %vm732, %v683
  %742 = vst.msk [vmem:[%s3 + $0x48] sm:$0xff] %vm732, %v684
  %743 = vst.msk [vmem:[%s3 + $0x50] sm:$0xff] %vm732, %v685
  %744 = vst.msk [vmem:[%s3 + $0x58] sm:$0xff] %vm732, %v686
  %745 = vst.msk [vmem:[%s3 + $0x60] sm:$0xff] %vm732, %v687
  %746 = vst.msk [vmem:[%s3 + $0x68] sm:$0xff] %vm732, %v688
  %747 = vst.msk [vmem:[%s3 + $0x70] sm:$0xff] %vm732, %v689
  %748 = vst.msk [vmem:[%s3 + $0x78] sm:$0xff] %vm732, %v690
  %749 = vst.msk [vmem:[%s3 + $0x80] sm:$0xff] %vm732, %v691
  %750 = vst.msk [vmem:[%s3 + $0x88] sm:$0xff] %vm732, %v692
  %751 = vst.msk [vmem:[%s3 + $0x90] sm:$0xff] %vm732, %v693
  %752 = vst.msk [vmem:[%s3 + $0x98] sm:$0xff] %vm732, %v694
  %753 = vst.msk [vmem:[%s3 + $0xa0] sm:$0xff] %vm732, %v695
  %754 = vst.msk [vmem:[%s3 + $0xa8] sm:$0xff] %vm732, %v696
  %755 = vst.msk [vmem:[%s3 + $0xb0] sm:$0xff] %vm732, %v697
  %756 = vst.msk [vmem:[%s3 + $0xb8] sm:$0xff] %vm732, %v698
  %757 = vst.msk [vmem:[%s3 + $0xc0] sm:$0xff] %vm732, %v699
  %758 = vst.msk [vmem:[%s3 + $0xc8] sm:$0xff] %vm732, %v700
  %759 = vst.msk [vmem:[%s3 + $0xd0] sm:$0xff] %vm732, %v701
  %760 = vst.msk [vmem:[%s3 + $0xd8] sm:$0xff] %vm732, %v702
  %761 = vst.msk [vmem:[%s3 + $0xe0] sm:$0xff] %vm732, %v703
  %762 = vst.msk [vmem:[%s3 + $0xe8] sm:$0xff] %vm732, %v704
  %763 = vst.msk [vmem:[%s3 + $0xf0] sm:$0xff] %vm732, %v705
  %764 = vst.msk [vmem:[%s3 + $0xf8] sm:$0xff] %vm732, %v706
  %765 = vst.msk [vmem:[%s3 + $0x100] sm:$0xff] %vm732, %v707
  %766 = vst.msk [vmem:[%s3 + $0x108] sm:$0xff] %vm732, %v708
  %767 = vst.msk [vmem:[%s3 + $0x110] sm:$0xff] %vm732, %v709
  %768 = vst.msk [vmem:[%s3 + $0x118] sm:$0xff] %vm732, %v710
  %769 = vst.msk [vmem:[%s3 + $0x120] sm:$0xff] %vm732, %v711
  %770 = vst.msk [vmem:[%s3 + $0x128] sm:$0xff] %vm732, %v712
  %771 = vst.msk [vmem:[%s3 + $0x130] sm:$0xff] %vm732, %v713
  %772 = vst.msk [vmem:[%s3 + $0x138] sm:$0xff] %vm732, %v714
  %773 = vst.msk [vmem:[%s3 + $0x140] sm:$0xff] %vm732, %v715
  %774 = vst.msk [vmem:[%s3 + $0x148] sm:$0xff] %vm732, %v716
  %775 = vst.msk [vmem:[%s3 + $0x150] sm:$0xff] %vm732, %v717
  %776 = vst.msk [vmem:[%s3 + $0x158] sm:$0xff] %vm732, %v718
  %777 = vst.msk [vmem:[%s3 + $0x160] sm:$0xff] %vm732, %v719
  %778 = vst.msk [vmem:[%s3 + $0x168] sm:$0xff] %vm732, %v720
  %779 = vst.msk [vmem:[%s3 + $0x170] sm:$0xff] %vm732, %v721
  %780 = vst.msk [vmem:[%s3 + $0x178] sm:$0xff] %vm732, %v722
  %781 = vst.msk [vmem:[%s3 + $0x180] sm:$0xff] %vm732, %v723
  %782 = vst.msk [vmem:[%s3 + $0x188] sm:$0xff] %vm732, %v724
  %783 = vst.msk [vmem:[%s3 + $0x190] sm:$0xff] %vm732, %v725
  %784 = vst.msk [vmem:[%s3 + $0x198] sm:$0xff] %vm732, %v726
  %785 = vst.msk [vmem:[%s3 + $0x1a0] sm:$0xff] %vm732, %v727
  %786 = vst.msk [vmem:[%s3 + $0x1a8] sm:$0xff] %vm732, %v728
  %787 = vst.msk [vmem:[%s3 + $0x1b0] sm:$0xff] %vm732, %v729
  %788 = vst.msk [vmem:[%s3 + $0x1b8] sm:$0xff] %vm732, %v730
  %vm789 = vcmask 517120
  %790 = vst.msk [vmem:[%s3 + $0x1c0] sm:$0x3] %vm789, %v731
  // Predicated region
  $region14: #{squeezenet2d_forward.30} parent=0 // pred_check
    _
  $region15: #{squeezenet2d_forward.30} parent=0 // pred_check_branch
    %792 = sbr.rel (0) target = $region17
  $region16: #{squeezenet2d_forward.30} parent=0 // pred_region
    _
  $region17: #{squeezenet2d_forward.30} parent=0 // pred_fallthru
    _
  // Predicated region
  $region18: #{squeezenet2d_forward.30} parent=0 // pred_check
    _
  $region19: #{squeezenet2d_forward.30} parent=0 // pred_check_branch
    %794 = sbr.rel (0) target = $region21
  $region20: #{squeezenet2d_forward.30} parent=0 // pred_region
    _
  $region21: #{squeezenet2d_forward.30} parent=0 // pred_fallthru
    _

// kernel: squeezenet2d_forward.29
$region0: #{squeezenet2d_forward.29}
  #allocation0 [shape = 'u32[]', space=smem, size = 0x4, offset = 0x4, fixed_abs, tag = 'smem constant byte address 0x4 - core index']
  #allocation1 [shape = 'u32[144,128]{1,0:T(1,128)}', space=vmem, size = 0x12000, scoped, tag = 'internal scratch']
  %s0 = inlined_call_operand.vmem [shape: f32[450,16], index: 0, kind: input, shape index: {}]
  %s1 = inlined_call_operand.vmem [shape: f32[16,64], index: 1, kind: input, shape index: {}]
  %s2 = inlined_call_operand.vmem [shape: f32[1,64], index: 2, kind: input, shape index: {}]
  %s3 = inlined_call_operand.vmem [shape: f32[450,64], index: 3, kind: output, shape index: {}]
  %s4 = sld [smem:[#allocation0]]
  $region22: #{squeezenet2d_forward.29} parent=0
    _
  %s6 = ssub.s32 1, %s4
  %s7 = scalar_select 0, %s6, %s4
  // Predicated region
  $region2: #{squeezenet2d_forward.29} parent=0 // pred_check
    _
  $region3: #{squeezenet2d_forward.29} parent=0 // pred_check_branch
    %9 = sbr.rel (0) target = $region5
  $region4: #{squeezenet2d_forward.29} parent=0 // pred_region
    _
  $region5: #{squeezenet2d_forward.29} parent=0 // pred_fallthru
    _
  // Predicated region
  $region6: #{squeezenet2d_forward.29} parent=0 // pred_check
    _
  $region7: #{squeezenet2d_forward.29} parent=0 // pred_check_branch
    %11 = sbr.rel (0) target = $region9
  $region8: #{squeezenet2d_forward.29} parent=0 // pred_region
    _
  $region9: #{squeezenet2d_forward.29} parent=0 // pred_fallthru
    _
  // Predicated region
  $region10: #{squeezenet2d_forward.29} parent=0 // pred_check
    _
  $region11: #{squeezenet2d_forward.29} parent=0 // pred_check_branch
    %13 = sbr.rel (0) target = $region13
  $region12: #{squeezenet2d_forward.29} parent=0 // pred_region
    _
  $region13: #{squeezenet2d_forward.29} parent=0 // pred_fallthru
    _
  %v14 = vld [vmem:[%s0] sm:$0xff]
  %v15 = vld [vmem:[%s0 + $0x8] sm:$0xff]
  %v16 = vld [vmem:[%s0 + $0x10] sm:$0xff]
  %v17 = vld [vmem:[%s0 + $0x18] sm:$0xff]
  %v18 = vld [vmem:[%s0 + $0x20] sm:$0xff]
  %v19 = vld [vmem:[%s0 + $0x28] sm:$0xff]
  %v20 = vld [vmem:[%s0 + $0x30] sm:$0xff]
  %v21 = vld [vmem:[%s0 + $0x38] sm:$0xff]
  %v22 = vld [vmem:[%s0 + $0x40] sm:$0xff]
  %v23 = vld [vmem:[%s0 + $0x48] sm:$0xff]
  %v24 = vld [vmem:[%s0 + $0x50] sm:$0xff]
  %v25 = vld [vmem:[%s0 + $0x58] sm:$0xff]
  %v26 = vld [vmem:[%s0 + $0x60] sm:$0xff]
  %v27 = vld [vmem:[%s0 + $0x68] sm:$0xff]
  %v28 = vld [vmem:[%s0 + $0x70] sm:$0xff]
  %v29 = vld [vmem:[%s0 + $0x78] sm:$0xff]
  %v30 = vld [vmem:[%s0 + $0x80] sm:$0xff]
  %v31 = vld [vmem:[%s0 + $0x88] sm:$0xff]
  %v32 = vld [vmem:[%s0 + $0x90] sm:$0xff]
  %v33 = vld [vmem:[%s0 + $0x98] sm:$0xff]
  %v34 = vld [vmem:[%s0 + $0xa0] sm:$0xff]
  %v35 = vld [vmem:[%s0 + $0xa8] sm:$0xff]
  %v36 = vld [vmem:[%s0 + $0xb0] sm:$0xff]
  %v37 = vld [vmem:[%s0 + $0xb8] sm:$0xff]
  %v38 = vld [vmem:[%s0 + $0xc0] sm:$0xff]
  %v39 = vld [vmem:[%s0 + $0xc8] sm:$0xff]
  %v40 = vld [vmem:[%s0 + $0xd0] sm:$0xff]
  %v41 = vld [vmem:[%s0 + $0xd8] sm:$0xff]
  %v42 = vld [vmem:[%s0 + $0xe0] sm:$0xff]
  %v43 = vld [vmem:[%s0 + $0xe8] sm:$0xff]
  %v44 = vld [vmem:[%s0 + $0xf0] sm:$0xff]
  %v45 = vld [vmem:[%s0 + $0xf8] sm:$0xff]
  %v46 = vld [vmem:[%s0 + $0x100] sm:$0xff]
  %v47 = vld [vmem:[%s0 + $0x108] sm:$0xff]
  %v48 = vld [vmem:[%s0 + $0x110] sm:$0xff]
  %v49 = vld [vmem:[%s0 + $0x118] sm:$0xff]
  %v50 = vld [vmem:[%s0 + $0x120] sm:$0xff]
  %v51 = vld [vmem:[%s0 + $0x128] sm:$0xff]
  %v52 = vld [vmem:[%s0 + $0x130] sm:$0xff]
  %v53 = vld [vmem:[%s0 + $0x138] sm:$0xff]
  %v54 = vld [vmem:[%s0 + $0x140] sm:$0xff]
  %v55 = vld [vmem:[%s0 + $0x148] sm:$0xff]
  %v56 = vld [vmem:[%s0 + $0x150] sm:$0xff]
  %v57 = vld [vmem:[%s0 + $0x158] sm:$0xff]
  %v58 = vld [vmem:[%s0 + $0x160] sm:$0xff]
  %v59 = vld [vmem:[%s0 + $0x168] sm:$0xff]
  %v60 = vld [vmem:[%s0 + $0x170] sm:$0xff]
  %v61 = vld [vmem:[%s0 + $0x178] sm:$0xff]
  %v62 = vld [vmem:[%s0 + $0x180] sm:$0xff]
  %v63 = vld [vmem:[%s0 + $0x188] sm:$0xff]
  %v64 = vld [vmem:[%s0 + $0x190] sm:$0xff]
  %v65 = vld [vmem:[%s0 + $0x198] sm:$0xff]
  %v66 = vld [vmem:[%s0 + $0x1a0] sm:$0xff]
  %v67 = vld [vmem:[%s0 + $0x1a8] sm:$0xff]
  %v68 = vld [vmem:[%s0 + $0x1b0] sm:$0xff]
  %v69 = vld [vmem:[%s0 + $0x1b8] sm:$0xff]
  %v70 = vld [vmem:[%s0 + $0x1c0] sm:$0x3]
  %v71 = vld [vmem:[%s1] sm:$0xff]
  %v72 = vld [vmem:[%s1 + $0x8] sm:$0xff]
  %v73 = vld [vmem:[%s2] sm:$0x1]
  %v75 = vlaneseq
  %v76 = vshrl.u32 %v75, 7
  %v77 = vsub.s32 0, %v76
  %v78 = vrot.slane %v73, %v77
  %vm80 = vcmask 130048
  %v82 = vsel %vm80, %v14, 0
  %v85 = vsel %vm80, %v15, 0
  %v88 = vsel %vm80, %v16, 0
  %v91 = vsel %vm80, %v17, 0
  %v94 = vsel %vm80, %v18, 0
  %v97 = vsel %vm80, %v19, 0
  %v100 = vsel %vm80, %v20, 0
  %v103 = vsel %vm80, %v21, 0
  %v106 = vsel %vm80, %v22, 0
  %v109 = vsel %vm80, %v23, 0
  %v112 = vsel %vm80, %v24, 0
  %v115 = vsel %vm80, %v25, 0
  %v118 = vsel %vm80, %v26, 0
  %v121 = vsel %vm80, %v27, 0
  %v124 = vsel %vm80, %v28, 0
  %v127 = vsel %vm80, %v29, 0
  %v130 = vsel %vm80, %v30, 0
  %v133 = vsel %vm80, %v31, 0
  %v136 = vsel %vm80, %v32, 0
  %v139 = vsel %vm80, %v33, 0
  %v142 = vsel %vm80, %v34, 0
  %v145 = vsel %vm80, %v35, 0
  %v148 = vsel %vm80, %v36, 0
  %v151 = vsel %vm80, %v37, 0
  %v154 = vsel %vm80, %v38, 0
  %v157 = vsel %vm80, %v39, 0
  %v160 = vsel %vm80, %v40, 0
  %v163 = vsel %vm80, %v41, 0
  %v166 = vsel %vm80, %v42, 0
  %v169 = vsel %vm80, %v43, 0
  %v172 = vsel %vm80, %v44, 0
  %v175 = vsel %vm80, %v45, 0
  %v178 = vsel %vm80, %v46, 0
  %v181 = vsel %vm80, %v47, 0
  %v184 = vsel %vm80, %v48, 0
  %v187 = vsel %vm80, %v49, 0
  %v190 = vsel %vm80, %v50, 0
  %v193 = vsel %vm80, %v51, 0
  %v196 = vsel %vm80, %v52, 0
  %v199 = vsel %vm80, %v53, 0
  %v202 = vsel %vm80, %v54, 0
  %v205 = vsel %vm80, %v55, 0
  %v208 = vsel %vm80, %v56, 0
  %v211 = vsel %vm80, %v57, 0
  %v214 = vsel %vm80, %v58, 0
  %v217 = vsel %vm80, %v59, 0
  %v220 = vsel %vm80, %v60, 0
  %v223 = vsel %vm80, %v61, 0
  %v226 = vsel %vm80, %v62, 0
  %v229 = vsel %vm80, %v63, 0
  %v232 = vsel %vm80, %v64, 0
  %v235 = vsel %vm80, %v65, 0
  %v238 = vsel %vm80, %v66, 0
  %v241 = vsel %vm80, %v67, 0
  %v244 = vsel %vm80, %v68, 0
  %v247 = vsel %vm80, %v69, 0
  %v250 = vsel %vm80, %v70, 0
  %252 = vmatprep.subr.mxu0 0.0
  %253 = vmatpush1.msra.mxu0 %v71
  %254 = vmatprep.subr.mxu0 0.0
  %255 = vmatpush1.msra.mxu0 %v72
  %256 = vmatprep.subr.mxu0 0.0
  %257 = vmatpush1.msra.mxu0 0.0
  %258 = vmatprep.subr.mxu0 0.0
  %259 = vmatpush1.msra.mxu0 0.0
  %260 = vmatprep.subr.mxu0 0.0
  %261 = vmatpush1.msra.mxu0 0.0
  %262 = vmatprep.subr.mxu0 0.0
  %263 = vmatpush1.msra.mxu0 0.0
  %264 = vmatprep.subr.mxu0 0.0
  %265 = vmatpush1.msra.mxu0 0.0
  %266 = vmatprep.subr.mxu0 0.0
  %267 = vmatpush1.msra.mxu0 0.0
  %268 = vmatprep.subr.mxu0 0.0
  %269 = vmatpush1.msra.mxu0 0.0
  %270 = vmatprep.subr.mxu0 0.0
  %271 = vmatpush1.msra.mxu0 0.0
  %272 = vmatprep.subr.mxu0 0.0
  %273 = vmatpush1.msra.mxu0 0.0
  %274 = vmatprep.subr.mxu0 0.0
  %275 = vmatpush1.msra.mxu0 0.0
  %276 = vmatprep.subr.mxu0 0.0
  %277 = vmatpush1.msra.mxu0 0.0
  %278 = vmatprep.subr.mxu0 0.0
  %279 = vmatpush1.msra.mxu0 0.0
  %280 = vmatprep.subr.mxu0 0.0
  %281 = vmatpush1.msra.mxu0 0.0
  %282 = vmatprep.subr.mxu0 0.0
  %283 = vmatpush1.msra.mxu0 0.0
  %284 = vmatprep.subr.mxu0 0.0
  %285 = vmatpush1.msra.mxu0 0.0
  %286 = vmatprep.subr.mxu0 0.0
  %287 = vmatpush1.msra.mxu0 0.0
  %288 = vmatprep.subr.mxu0 0.0
  %289 = vmatpush1.msra.mxu0 0.0
  %290 = vmatprep.subr.mxu0 0.0
  %291 = vmatpush1.msra.mxu0 0.0
  %292 = vmatprep.subr.mxu0 0.0
  %293 = vmatpush1.msra.mxu0 0.0
  %294 = vmatprep.subr.mxu0 0.0
  %295 = vmatpush1.msra.mxu0 0.0
  %296 = vmatprep.subr.mxu0 0.0
  %297 = vmatpush1.msra.mxu0 0.0
  %298 = vmatprep.subr.mxu0 0.0
  %299 = vmatpush1.msra.mxu0 0.0
  %300 = vmatprep.subr.mxu0 0.0
  %301 = vmatpush1.msra.mxu0 0.0
  %302 = vmatprep.subr.mxu0 0.0
  %303 = vmatpush1.msra.mxu0 0.0
  %304 = vmatprep.subr.mxu0 0.0
  %305 = vmatpush1.msra.mxu0 0.0
  %306 = vmatprep.subr.mxu0 0.0
  %307 = vmatpush1.msra.mxu0 0.0
  %308 = vmatprep.subr.mxu0 0.0
  %309 = vmatpush1.msra.mxu0 0.0
  %310 = vmatprep.subr.mxu0 0.0
  %311 = vmatpush1.msra.mxu0 0.0
  %312 = vmatprep.subr.mxu0 0.0
  %313 = vmatpush1.msra.mxu0 0.0
  %314 = vmatprep.subr.mxu0 0.0
  %315 = vmatpush1.msra.mxu0 0.0
  %316 = vmatprep.mubr.f32.mxu0 0.0
  %317 = vmatmul.mubr.f32.gmra.mrb[0].mxu0 %v82
  %v318 = vpop.f32.mrb[0].mxu0
  %v319 = vadd.f32 %v78, %v318
  %v320 = vpop.f32.mrb[0].mxu0
  %321 = vmatprep.mubr.f32.mxu0 0.0
  %322 = vmatmul.mubr.f32.gmra.mrb[0].mxu0 %v85
  %v323 = vpop.f32.mrb[0].mxu0
  %v324 = vadd.f32 %v78, %v323
  %v325 = vpop.f32.mrb[0].mxu0
  %326 = vmatprep.mubr.f32.mxu0 0.0
  %327 = vmatmul.mubr.f32.gmra.mrb[0].mxu0 %v88
  %v328 = vpop.f32.mrb[0].mxu0
  %v329 = vadd.f32 %v78, %v328
  %v330 = vpop.f32.mrb[0].mxu0
  %331 = vmatprep.mubr.f32.mxu0 0.0
  %332 = vmatmul.mubr.f32.gmra.mrb[0].mxu0 %v91
  %v333 = vpop.f32.mrb[0].mxu0
  %v334 = vadd.f32 %v78, %v333
  %v335 = vpop.f32.mrb[0].mxu0
  %336 = vmatprep.mubr.f32.mxu0 0.0
  %337 = vmatmul.mubr.f32.gmra.mrb[0].mxu0 %v94
  %v338 = vpop.f32.mrb[0].mxu0
  %v339 = vadd.f32 %v78, %v338
  %v340 = vpop.f32.mrb[0].mxu0
  %341 = vmatprep.mubr.f32.mxu0 0.0
  %342 = vmatmul.mubr.f32.gmra.mrb[0].mxu0 %v97
  %v343 = vpop.f32.mrb[0].mxu0
  %v344 = vadd.f32 %v78, %v343
  %v345 = vpop.f32.mrb[0].mxu0
  %346 = vmatprep.mubr.f32.mxu0 0.0
  %347 = vmatmul.mubr.f32.gmra.mrb[0].mxu0 %v100
  %v348 = vpop.f32.mrb[0].mxu0
  %v349 = vadd.f32 %v78, %v348
  %v350 = vpop.f32.mrb[0].mxu0
  %351 = vmatprep.mubr.f32.mxu0 0.0
  %352 = vmatmul.mubr.f32.gmra.mrb[0].mxu0 %v103
  %v353 = vpop.f32.mrb[0].mxu0
  %v354 = vadd.f32 %v78, %v353
  %v355 = vpop.f32.mrb[0].mxu0
  %356 = vmatprep.mubr.f32.mxu0 0.0
  %357 = vmatmul.mubr.f32.gmra.mrb[0].mxu0 %v106
  %v358 = vpop.f32.mrb[0].mxu0
  %v359 = vadd.f32 %v78, %v358
  %v360 = vpop.f32.mrb[0].mxu0
  %361 = vmatprep.mubr.f32.mxu0 0.0
  %362 = vmatmul.mubr.f32.gmra.mrb[0].mxu0 %v109
  %v363 = vpop.f32.mrb[0].mxu0
  %v364 = vadd.f32 %v78, %v363
  %v365 = vpop.f32.mrb[0].mxu0
  %366 = vmatprep.mubr.f32.mxu0 0.0
  %367 = vmatmul.mubr.f32.gmra.mrb[0].mxu0 %v112
  %v368 = vpop.f32.mrb[0].mxu0
  %v369 = vadd.f32 %v78, %v368
  %v370 = vpop.f32.mrb[0].mxu0
  %371 = vmatprep.mubr.f32.mxu0 0.0
  %372 = vmatmul.mubr.f32.gmra.mrb[0].mxu0 %v115
  %v373 = vpop.f32.mrb[0].mxu0
  %v374 = vadd.f32 %v78, %v373
  %v375 = vpop.f32.mrb[0].mxu0
  %376 = vmatprep.mubr.f32.mxu0 0.0
  %377 = vmatmul.mubr.f32.gmra.mrb[0].mxu0 %v118
  %v378 = vpop.f32.mrb[0].mxu0
  %v379 = vadd.f32 %v78, %v378
  %v380 = vpop.f32.mrb[0].mxu0
  %381 = vmatprep.mubr.f32.mxu0 0.0
  %382 = vmatmul.mubr.f32.gmra.mrb[0].mxu0 %v121
  %v383 = vpop.f32.mrb[0].mxu0
  %v384 = vadd.f32 %v78, %v383
  %v385 = vpop.f32.mrb[0].mxu0
  %386 = vmatprep.mubr.f32.mxu0 0.0
  %387 = vmatmul.mubr.f32.gmra.mrb[0].mxu0 %v124
  %v388 = vpop.f32.mrb[0].mxu0
  %v389 = vadd.f32 %v78, %v388
  %v390 = vpop.f32.mrb[0].mxu0
  %391 = vmatprep.mubr.f32.mxu0 0.0
  %392 = vmatmul.mubr.f32.gmra.mrb[0].mxu0 %v127
  %v393 = vpop.f32.mrb[0].mxu0
  %v394 = vadd.f32 %v78, %v393
  %v395 = vpop.f32.mrb[0].mxu0
  %396 = vmatprep.mubr.f32.mxu0 0.0
  %397 = vmatmul.mubr.f32.gmra.mrb[0].mxu0 %v130
  %v398 = vpop.f32.mrb[0].mxu0
  %v399 = vadd.f32 %v78, %v398
  %v400 = vpop.f32.mrb[0].mxu0
  %401 = vmatprep.mubr.f32.mxu0 0.0
  %402 = vmatmul.mubr.f32.gmra.mrb[0].mxu0 %v133
  %v403 = vpop.f32.mrb[0].mxu0
  %v404 = vadd.f32 %v78, %v403
  %v405 = vpop.f32.mrb[0].mxu0
  %406 = vmatprep.mubr.f32.mxu0 0.0
  %407 = vmatmul.mubr.f32.gmra.mrb[0].mxu0 %v136
  %v408 = vpop.f32.mrb[0].mxu0
  %v409 = vadd.f32 %v78, %v408
  %v410 = vpop.f32.mrb[0].mxu0
  %411 = vmatprep.mubr.f32.mxu0 0.0
  %412 = vmatmul.mubr.f32.gmra.mrb[0].mxu0 %v139
  %v413 = vpop.f32.mrb[0].mxu0
  %v414 = vadd.f32 %v78, %v413
  %v415 = vpop.f32.mrb[0].mxu0
  %416 = vmatprep.mubr.f32.mxu0 0.0
  %417 = vmatmul.mubr.f32.gmra.mrb[0].mxu0 %v142
  %v418 = vpop.f32.mrb[0].mxu0
  %v419 = vadd.f32 %v78, %v418
  %v420 = vpop.f32.mrb[0].mxu0
  %421 = vmatprep.mubr.f32.mxu0 0.0
  %422 = vmatmul.mubr.f32.gmra.mrb[0].mxu0 %v145
  %v423 = vpop.f32.mrb[0].mxu0
  %v424 = vadd.f32 %v78, %v423
  %v425 = vpop.f32.mrb[0].mxu0
  %426 = vmatprep.mubr.f32.mxu0 0.0
  %427 = vmatmul.mubr.f32.gmra.mrb[0].mxu0 %v148
  %v428 = vpop.f32.mrb[0].mxu0
  %v429 = vadd.f32 %v78, %v428
  %v430 = vpop.f32.mrb[0].mxu0
  %431 = vmatprep.mubr.f32.mxu0 0.0
  %432 = vmatmul.mubr.f32.gmra.mrb[0].mxu0 %v151
  %v433 = vpop.f32.mrb[0].mxu0
  %v434 = vadd.f32 %v78, %v433
  %v435 = vpop.f32.mrb[0].mxu0
  %436 = vmatprep.mubr.f32.mxu0 0.0
  %437 = vmatmul.mubr.f32.gmra.mrb[0].mxu0 %v154
  %v438 = vpop.f32.mrb[0].mxu0
  %v439 = vadd.f32 %v78, %v438
  %v440 = vpop.f32.mrb[0].mxu0
  %441 = vmatprep.mubr.f32.mxu0 0.0
  %442 = vmatmul.mubr.f32.gmra.mrb[0].mxu0 %v157
  %v443 = vpop.f32.mrb[0].mxu0
  %v444 = vadd.f32 %v78, %v443
  %v445 = vpop.f32.mrb[0].mxu0
  %446 = vmatprep.mubr.f32.mxu0 0.0
  %447 = vmatmul.mubr.f32.gmra.mrb[0].mxu0 %v160
  %v448 = vpop.f32.mrb[0].mxu0
  %v449 = vadd.f32 %v78, %v448
  %v450 = vpop.f32.mrb[0].mxu0
  %451 = vmatprep.mubr.f32.mxu0 0.0
  %452 = vmatmul.mubr.f32.gmra.mrb[0].mxu0 %v163
  %v453 = vpop.f32.mrb[0].mxu0
  %v454 = vadd.f32 %v78, %v453
  %v455 = vpop.f32.mrb[0].mxu0
  %456 = vmatprep.mubr.f32.mxu0 0.0
  %457 = vmatmul.mubr.f32.gmra.mrb[0].mxu0 %v166
  %v458 = vpop.f32.mrb[0].mxu0
  %v459 = vadd.f32 %v78, %v458
  %v460 = vpop.f32.mrb[0].mxu0
  %461 = vmatprep.mubr.f32.mxu0 0.0
  %462 = vmatmul.mubr.f32.gmra.mrb[0].mxu0 %v169
  %v463 = vpop.f32.mrb[0].mxu0
  %v464 = vadd.f32 %v78, %v463
  %v465 = vpop.f32.mrb[0].mxu0
  %466 = vmatprep.mubr.f32.mxu0 0.0
  %467 = vmatmul.mubr.f32.gmra.mrb[0].mxu0 %v172
  %v468 = vpop.f32.mrb[0].mxu0
  %v469 = vadd.f32 %v78, %v468
  %v470 = vpop.f32.mrb[0].mxu0
  %471 = vmatprep.mubr.f32.mxu0 0.0
  %472 = vmatmul.mubr.f32.gmra.mrb[0].mxu0 %v175
  %v473 = vpop.f32.mrb[0].mxu0
  %v474 = vadd.f32 %v78, %v473
  %v475 = vpop.f32.mrb[0].mxu0
  %476 = vmatprep.mubr.f32.mxu0 0.0
  %477 = vmatmul.mubr.f32.gmra.mrb[0].mxu0 %v178
  %v478 = vpop.f32.mrb[0].mxu0
  %v479 = vadd.f32 %v78, %v478
  %v480 = vpop.f32.mrb[0].mxu0
  %481 = vmatprep.mubr.f32.mxu0 0.0
  %482 = vmatmul.mubr.f32.gmra.mrb[0].mxu0 %v181
  %v483 = vpop.f32.mrb[0].mxu0
  %v484 = vadd.f32 %v78, %v483
  %v485 = vpop.f32.mrb[0].mxu0
  %486 = vmatprep.mubr.f32.mxu0 0.0
  %487 = vmatmul.mubr.f32.gmra.mrb[0].mxu0 %v184
  %v488 = vpop.f32.mrb[0].mxu0
  %v489 = vadd.f32 %v78, %v488
  %v490 = vpop.f32.mrb[0].mxu0
  %491 = vmatprep.mubr.f32.mxu0 0.0
  %492 = vmatmul.mubr.f32.gmra.mrb[0].mxu0 %v187
  %v493 = vpop.f32.mrb[0].mxu0
  %v494 = vadd.f32 %v78, %v493
  %v495 = vpop.f32.mrb[0].mxu0
  %496 = vmatprep.mubr.f32.mxu0 0.0
  %497 = vmatmul.mubr.f32.gmra.mrb[0].mxu0 %v190
  %v498 = vpop.f32.mrb[0].mxu0
  %v499 = vadd.f32 %v78, %v498
  %v500 = vpop.f32.mrb[0].mxu0
  %501 = vmatprep.mubr.f32.mxu0 0.0
  %502 = vmatmul.mubr.f32.gmra.mrb[0].mxu0 %v193
  %v503 = vpop.f32.mrb[0].mxu0
  %v504 = vadd.f32 %v78, %v503
  %v505 = vpop.f32.mrb[0].mxu0
  %506 = vmatprep.mubr.f32.mxu0 0.0
  %507 = vmatmul.mubr.f32.gmra.mrb[0].mxu0 %v196
  %v508 = vpop.f32.mrb[0].mxu0
  %v509 = vadd.f32 %v78, %v508
  %v510 = vpop.f32.mrb[0].mxu0
  %511 = vmatprep.mubr.f32.mxu0 0.0
  %512 = vmatmul.mubr.f32.gmra.mrb[0].mxu0 %v199
  %v513 = vpop.f32.mrb[0].mxu0
  %v514 = vadd.f32 %v78, %v513
  %v515 = vpop.f32.mrb[0].mxu0
  %516 = vmatprep.mubr.f32.mxu0 0.0
  %517 = vmatmul.mubr.f32.gmra.mrb[0].mxu0 %v202
  %v518 = vpop.f32.mrb[0].mxu0
  %v519 = vadd.f32 %v78, %v518
  %v520 = vpop.f32.mrb[0].mxu0
  %521 = vmatprep.mubr.f32.mxu0 0.0
  %522 = vmatmul.mubr.f32.gmra.mrb[0].mxu0 %v205
  %v523 = vpop.f32.mrb[0].mxu0
  %v524 = vadd.f32 %v78, %v523
  %v525 = vpop.f32.mrb[0].mxu0
  %526 = vmatprep.mubr.f32.mxu0 0.0
  %527 = vmatmul.mubr.f32.gmra.mrb[0].mxu0 %v208
  %v528 = vpop.f32.mrb[0].mxu0
  %v529 = vadd.f32 %v78, %v528
  %v530 = vpop.f32.mrb[0].mxu0
  %531 = vmatprep.mubr.f32.mxu0 0.0
  %532 = vmatmul.mubr.f32.gmra.mrb[0].mxu0 %v211
  %v533 = vpop.f32.mrb[0].mxu0
  %v534 = vadd.f32 %v78, %v533
  %v535 = vpop.f32.mrb[0].mxu0
  %536 = vmatprep.mubr.f32.mxu0 0.0
  %537 = vmatmul.mubr.f32.gmra.mrb[0].mxu0 %v214
  %v538 = vpop.f32.mrb[0].mxu0
  %v539 = vadd.f32 %v78, %v538
  %v540 = vpop.f32.mrb[0].mxu0
  %541 = vmatprep.mubr.f32.mxu0 0.0
  %542 = vmatmul.mubr.f32.gmra.mrb[0].mxu0 %v217
  %v543 = vpop.f32.mrb[0].mxu0
  %v544 = vadd.f32 %v78, %v543
  %v545 = vpop.f32.mrb[0].mxu0
  %546 = vmatprep.mubr.f32.mxu0 0.0
  %547 = vmatmul.mubr.f32.gmra.mrb[0].mxu0 %v220
  %v548 = vpop.f32.mrb[0].mxu0
  %v549 = vadd.f32 %v78, %v548
  %v550 = vpop.f32.mrb[0].mxu0
  %551 = vmatprep.mubr.f32.mxu0 0.0
  %552 = vmatmul.mubr.f32.gmra.mrb[0].mxu0 %v223
  %v553 = vpop.f32.mrb[0].mxu0
  %v554 = vadd.f32 %v78, %v553
  %v555 = vpop.f32.mrb[0].mxu0
  %556 = vmatprep.mubr.f32.mxu0 0.0
  %557 = vmatmul.mubr.f32.gmra.mrb[0].mxu0 %v226
  %v558 = vpop.f32.mrb[0].mxu0
  %v559 = vadd.f32 %v78, %v558
  %v560 = vpop.f32.mrb[0].mxu0
  %561 = vmatprep.mubr.f32.mxu0 0.0
  %562 = vmatmul.mubr.f32.gmra.mrb[0].mxu0 %v229
  %v563 = vpop.f32.mrb[0].mxu0
  %v564 = vadd.f32 %v78, %v563
  %v565 = vpop.f32.mrb[0].mxu0
  %566 = vmatprep.mubr.f32.mxu0 0.0
  %567 = vmatmul.mubr.f32.gmra.mrb[0].mxu0 %v232
  %v568 = vpop.f32.mrb[0].mxu0
  %v569 = vadd.f32 %v78, %v568
  %v570 = vpop.f32.mrb[0].mxu0
  %571 = vmatprep.mubr.f32.mxu0 0.0
  %572 = vmatmul.mubr.f32.gmra.mrb[0].mxu0 %v235
  %v573 = vpop.f32.mrb[0].mxu0
  %v574 = vadd.f32 %v78, %v573
  %v575 = vpop.f32.mrb[0].mxu0
  %576 = vmatprep.mubr.f32.mxu0 0.0
  %577 = vmatmul.mubr.f32.gmra.mrb[0].mxu0 %v238
  %v578 = vpop.f32.mrb[0].mxu0
  %v579 = vadd.f32 %v78, %v578
  %v580 = vpop.f32.mrb[0].mxu0
  %581 = vmatprep.mubr.f32.mxu0 0.0
  %582 = vmatmul.mubr.f32.gmra.mrb[0].mxu0 %v241
  %v583 = vpop.f32.mrb[0].mxu0
  %v584 = vadd.f32 %v78, %v583
  %v585 = vpop.f32.mrb[0].mxu0
  %586 = vmatprep.mubr.f32.mxu0 0.0
  %587 = vmatmul.mubr.f32.gmra.mrb[0].mxu0 %v244
  %v588 = vpop.f32.mrb[0].mxu0
  %v589 = vadd.f32 %v78, %v588
  %v590 = vpop.f32.mrb[0].mxu0
  %591 = vmatprep.mubr.f32.mxu0 0.0
  %592 = vmatmul.mubr.f32.gmra.mrb[0].mxu0 %v247
  %v593 = vpop.f32.mrb[0].mxu0
  %v594 = vadd.f32 %v78, %v593
  %v595 = vpop.f32.mrb[0].mxu0
  %596 = vmatprep.mubr.f32.mxu0 0.0
  %597 = vmatmul.mubr.f32.gmra.mrb[0].mxu0 %v250
  %v598 = vpop.f32.mrb[0].mxu0
  %v599 = vadd.f32 %v78, %v598
  %v600 = vpop.f32.mrb[0].mxu0
  %601 = vdwg.mxu0
  %v602 = vmax.f32 %v319, 0.0
  %v603 = vmax.f32 %v324, 0.0
  %v604 = vmax.f32 %v329, 0.0
  %v605 = vmax.f32 %v334, 0.0
  %v606 = vmax.f32 %v339, 0.0
  %v607 = vmax.f32 %v344, 0.0
  %v608 = vmax.f32 %v349, 0.0
  %v609 = vmax.f32 %v354, 0.0
  %v610 = vmax.f32 %v359, 0.0
  %v611 = vmax.f32 %v364, 0.0
  %v612 = vmax.f32 %v369, 0.0
  %v613 = vmax.f32 %v374, 0.0
  %v614 = vmax.f32 %v379, 0.0
  %v615 = vmax.f32 %v384, 0.0
  %v616 = vmax.f32 %v389, 0.0
  %v617 = vmax.f32 %v394, 0.0
  %v618 = vmax.f32 %v399, 0.0
  %v619 = vmax.f32 %v404, 0.0
  %v620 = vmax.f32 %v409, 0.0
  %v621 = vmax.f32 %v414, 0.0
  %v622 = vmax.f32 %v419, 0.0
  %v623 = vmax.f32 %v424, 0.0
  %v624 = vmax.f32 %v429, 0.0
  %v625 = vmax.f32 %v434, 0.0
  %v626 = vmax.f32 %v439, 0.0
  %v627 = vmax.f32 %v444, 0.0
  %v628 = vmax.f32 %v449, 0.0
  %v629 = vmax.f32 %v454, 0.0
  %v630 = vmax.f32 %v459, 0.0
  %v631 = vmax.f32 %v464, 0.0
  %v632 = vmax.f32 %v469, 0.0
  %v633 = vmax.f32 %v474, 0.0
  %v634 = vmax.f32 %v479, 0.0
  %v635 = vmax.f32 %v484, 0.0
  %v636 = vmax.f32 %v489, 0.0
  %v637 = vmax.f32 %v494, 0.0
  %v638 = vmax.f32 %v499, 0.0
  %v639 = vmax.f32 %v504, 0.0
  %v640 = vmax.f32 %v509, 0.0
  %v641 = vmax.f32 %v514, 0.0
  %v642 = vmax.f32 %v519, 0.0
  %v643 = vmax.f32 %v524, 0.0
  %v644 = vmax.f32 %v529, 0.0
  %v645 = vmax.f32 %v534, 0.0
  %v646 = vmax.f32 %v539, 0.0
  %v647 = vmax.f32 %v544, 0.0
  %v648 = vmax.f32 %v549, 0.0
  %v649 = vmax.f32 %v554, 0.0
  %v650 = vmax.f32 %v559, 0.0
  %v651 = vmax.f32 %v564, 0.0
  %v652 = vmax.f32 %v569, 0.0
  %v653 = vmax.f32 %v574, 0.0
  %v654 = vmax.f32 %v579, 0.0
  %v655 = vmax.f32 %v584, 0.0
  %v656 = vmax.f32 %v589, 0.0
  %v657 = vmax.f32 %v594, 0.0
  %v658 = vmax.f32 %v599, 0.0
  %vm659 = vcmask 523264
  %660 = vst.msk [vmem:[%s3] sm:$0xff] %vm659, %v602
  %661 = vst.msk [vmem:[%s3 + $0x8] sm:$0xff] %vm659, %v603
  %662 = vst.msk [vmem:[%s3 + $0x10] sm:$0xff] %vm659, %v604
  %663 = vst.msk [vmem:[%s3 + $0x18] sm:$0xff] %vm659, %v605
  %664 = vst.msk [vmem:[%s3 + $0x20] sm:$0xff] %vm659, %v606
  %665 = vst.msk [vmem:[%s3 + $0x28] sm:$0xff] %vm659, %v607
  %666 = vst.msk [vmem:[%s3 + $0x30] sm:$0xff] %vm659, %v608
  %667 = vst.msk [vmem:[%s3 + $0x38] sm:$0xff] %vm659, %v609
  %668 = vst.msk [vmem:[%s3 + $0x40] sm:$0xff] %vm659, %v610
  %669 = vst.msk [vmem:[%s3 + $0x48] sm:$0xff] %vm659, %v611
  %670 = vst.msk [vmem:[%s3 + $0x50] sm:$0xff] %vm659, %v612
  %671 = vst.msk [vmem:[%s3 + $0x58] sm:$0xff] %vm659, %v613
  %672 = vst.msk [vmem:[%s3 + $0x60] sm:$0xff] %vm659, %v614
  %673 = vst.msk [vmem:[%s3 + $0x68] sm:$0xff] %vm659, %v615
  %674 = vst.msk [vmem:[%s3 + $0x70] sm:$0xff] %vm659, %v616
  %675 = vst.msk [vmem:[%s3 + $0x78] sm:$0xff] %vm659, %v617
  %676 = vst.msk [vmem:[%s3 + $0x80] sm:$0xff] %vm659, %v618
  %677 = vst.msk [vmem:[%s3 + $0x88] sm:$0xff] %vm659, %v619
  %678 = vst.msk [vmem:[%s3 + $0x90] sm:$0xff] %vm659, %v620
  %679 = vst.msk [vmem:[%s3 + $0x98] sm:$0xff] %vm659, %v621
  %680 = vst.msk [vmem:[%s3 + $0xa0] sm:$0xff] %vm659, %v622
  %681 = vst.msk [vmem:[%s3 + $0xa8] sm:$0xff] %vm659, %v623
  %682 = vst.msk [vmem:[%s3 + $0xb0] sm:$0xff] %vm659, %v624
  %683 = vst.msk [vmem:[%s3 + $0xb8] sm:$0xff] %vm659, %v625
  %684 = vst.msk [vmem:[%s3 + $0xc0] sm:$0xff] %vm659, %v626
  %685 = vst.msk [vmem:[%s3 + $0xc8] sm:$0xff] %vm659, %v627
  %686 = vst.msk [vmem:[%s3 + $0xd0] sm:$0xff] %vm659, %v628
  %687 = vst.msk [vmem:[%s3 + $0xd8] sm:$0xff] %vm659, %v629
  %688 = vst.msk [vmem:[%s3 + $0xe0] sm:$0xff] %vm659, %v630
  %689 = vst.msk [vmem:[%s3 + $0xe8] sm:$0xff] %vm659, %v631
  %690 = vst.msk [vmem:[%s3 + $0xf0] sm:$0xff] %vm659, %v632
  %691 = vst.msk [vmem:[%s3 + $0xf8] sm:$0xff] %vm659, %v633
  %692 = vst.msk [vmem:[%s3 + $0x100] sm:$0xff] %vm659, %v634
  %693 = vst.msk [vmem:[%s3 + $0x108] sm:$0xff] %vm659, %v635
  %694 = vst.msk [vmem:[%s3 + $0x110] sm:$0xff] %vm659, %v636
  %695 = vst.msk [vmem:[%s3 + $0x118] sm:$0xff] %vm659, %v637
  %696 = vst.msk [vmem:[%s3 + $0x120] sm:$0xff] %vm659, %v638
  %697 = vst.msk [vmem:[%s3 + $0x128] sm:$0xff] %vm659, %v639
  %698 = vst.msk [vmem:[%s3 + $0x130] sm:$0xff] %vm659, %v640
  %699 = vst.msk [vmem:[%s3 + $0x138] sm:$0xff] %vm659, %v641
  %700 = vst.msk [vmem:[%s3 + $0x140] sm:$0xff] %vm659, %v642
  %701 = vst.msk [vmem:[%s3 + $0x148] sm:$0xff] %vm659, %v643
  %702 = vst.msk [vmem:[%s3 + $0x150] sm:$0xff] %vm659, %v644
  %703 = vst.msk [vmem:[%s3 + $0x158] sm:$0xff] %vm659, %v645
  %704 = vst.msk [vmem:[%s3 + $0x160] sm:$0xff] %vm659, %v646
  %705 = vst.msk [vmem:[%s3 + $0x168] sm:$0xff] %vm659, %v647
  %706 = vst.msk [vmem:[%s3 + $0x170] sm:$0xff] %vm659, %v648
  %707 = vst.msk [vmem:[%s3 + $0x178] sm:$0xff] %vm659, %v649
  %708 = vst.msk [vmem:[%s3 + $0x180] sm:$0xff] %vm659, %v650
  %709 = vst.msk [vmem:[%s3 + $0x188] sm:$0xff] %vm659, %v651
  %710 = vst.msk [vmem:[%s3 + $0x190] sm:$0xff] %vm659, %v652
  %711 = vst.msk [vmem:[%s3 + $0x198] sm:$0xff] %vm659, %v653
  %712 = vst.msk [vmem:[%s3 + $0x1a0] sm:$0xff] %vm659, %v654
  %713 = vst.msk [vmem:[%s3 + $0x1a8] sm:$0xff] %vm659, %v655
  %714 = vst.msk [vmem:[%s3 + $0x1b0] sm:$0xff] %vm659, %v656
  %715 = vst.msk [vmem:[%s3 + $0x1b8] sm:$0xff] %vm659, %v657
  %vm716 = vcmask 517120
  %717 = vst.msk [vmem:[%s3 + $0x1c0] sm:$0x3] %vm716, %v658
  // Predicated region
  $region14: #{squeezenet2d_forward.29} parent=0 // pred_check
    _
  $region15: #{squeezenet2d_forward.29} parent=0 // pred_check_branch
    %719 = sbr.rel (0) target = $region17
  $region16: #{squeezenet2d_forward.29} parent=0 // pred_region
    _
  $region17: #{squeezenet2d_forward.29} parent=0 // pred_fallthru
    _
  // Predicated region
  $region18: #{squeezenet2d_forward.29} parent=0 // pred_check
    _
  $region19: #{squeezenet2d_forward.29} parent=0 // pred_check_branch
    %721 = sbr.rel (0) target = $region21
  $region20: #{squeezenet2d_forward.29} parent=0 // pred_region
    _
  $region21: #{squeezenet2d_forward.29} parent=0 // pred_fallthru
    _

// kernel: squeezenet2d_forward.31
$region0: #{squeezenet2d_forward.31}
  #allocation0 [shape = 'u32[]', space=smem, size = 0x4, offset = 0x4, fixed_abs, tag = 'smem constant byte address 0x4 - core index']
  #allocation1 [shape = 'u32[144,128]{1,0:T(1,128)}', space=vmem, size = 0x12000, scoped, tag = 'internal scratch']
  %s0 = inlined_call_operand.vmem [shape: f32[450,128], index: 0, kind: input, shape index: {}]
  %s1 = inlined_call_operand.vmem [shape: f32[128,16], index: 1, kind: input, shape index: {}]
  %s2 = inlined_call_operand.vmem [shape: f32[1,16], index: 2, kind: input, shape index: {}]
  %s3 = inlined_call_operand.vmem [shape: f32[450,16], index: 3, kind: output, shape index: {}]
  %s4 = sld [smem:[#allocation0]]
  $region22: #{squeezenet2d_forward.31} parent=0
    _
  %s6 = ssub.s32 1, %s4
  %s7 = scalar_select 0, %s6, %s4
  // Predicated region
  $region2: #{squeezenet2d_forward.31} parent=0 // pred_check
    _
  $region3: #{squeezenet2d_forward.31} parent=0 // pred_check_branch
    %9 = sbr.rel (0) target = $region5
  $region4: #{squeezenet2d_forward.31} parent=0 // pred_region
    _
  $region5: #{squeezenet2d_forward.31} parent=0 // pred_fallthru
    _
  // Predicated region
  $region6: #{squeezenet2d_forward.31} parent=0 // pred_check
    _
  $region7: #{squeezenet2d_forward.31} parent=0 // pred_check_branch
    %11 = sbr.rel (0) target = $region9
  $region8: #{squeezenet2d_forward.31} parent=0 // pred_region
    _
  $region9: #{squeezenet2d_forward.31} parent=0 // pred_fallthru
    _
  // Predicated region
  $region10: #{squeezenet2d_forward.31} parent=0 // pred_check
    _
  $region11: #{squeezenet2d_forward.31} parent=0 // pred_check_branch
    %13 = sbr.rel (0) target = $region13
  $region12: #{squeezenet2d_forward.31} parent=0 // pred_region
    _
  $region13: #{squeezenet2d_forward.31} parent=0 // pred_fallthru
    _
  %v14 = vld [vmem:[%s0] sm:$0xff]
  %v15 = vld [vmem:[%s0 + $0x8] sm:$0xff]
  %v16 = vld [vmem:[%s0 + $0x10] sm:$0xff]
  %v17 = vld [vmem:[%s0 + $0x18] sm:$0xff]
  %v18 = vld [vmem:[%s0 + $0x20] sm:$0xff]
  %v19 = vld [vmem:[%s0 + $0x28] sm:$0xff]
  %v20 = vld [vmem:[%s0 + $0x30] sm:$0xff]
  %v21 = vld [vmem:[%s0 + $0x38] sm:$0xff]
  %v22 = vld [vmem:[%s0 + $0x40] sm:$0xff]
  %v23 = vld [vmem:[%s0 + $0x48] sm:$0xff]
  %v24 = vld [vmem:[%s0 + $0x50] sm:$0xff]
  %v25 = vld [vmem:[%s0 + $0x58] sm:$0xff]
  %v26 = vld [vmem:[%s0 + $0x60] sm:$0xff]
  %v27 = vld [vmem:[%s0 + $0x68] sm:$0xff]
  %v28 = vld [vmem:[%s0 + $0x70] sm:$0xff]
  %v29 = vld [vmem:[%s0 + $0x78] sm:$0xff]
  %v30 = vld [vmem:[%s0 + $0x80] sm:$0xff]
  %v31 = vld [vmem:[%s0 + $0x88] sm:$0xff]
  %v32 = vld [vmem:[%s0 + $0x90] sm:$0xff]
  %v33 = vld [vmem:[%s0 + $0x98] sm:$0xff]
  %v34 = vld [vmem:[%s0 + $0xa0] sm:$0xff]
  %v35 = vld [vmem:[%s0 + $0xa8] sm:$0xff]
  %v36 = vld [vmem:[%s0 + $0xb0] sm:$0xff]
  %v37 = vld [vmem:[%s0 + $0xb8] sm:$0xff]
  %v38 = vld [vmem:[%s0 + $0xc0] sm:$0xff]
  %v39 = vld [vmem:[%s0 + $0xc8] sm:$0xff]
  %v40 = vld [vmem:[%s0 + $0xd0] sm:$0xff]
  %v41 = vld [vmem:[%s0 + $0xd8] sm:$0xff]
  %v42 = vld [vmem:[%s0 + $0xe0] sm:$0xff]
  %v43 = vld [vmem:[%s0 + $0xe8] sm:$0xff]
  %v44 = vld [vmem:[%s0 + $0xf0] sm:$0xff]
  %v45 = vld [vmem:[%s0 + $0xf8] sm:$0xff]
  %v46 = vld [vmem:[%s0 + $0x100] sm:$0xff]
  %v47 = vld [vmem:[%s0 + $0x108] sm:$0xff]
  %v48 = vld [vmem:[%s0 + $0x110] sm:$0xff]
  %v49 = vld [vmem:[%s0 + $0x118] sm:$0xff]
  %v50 = vld [vmem:[%s0 + $0x120] sm:$0xff]
  %v51 = vld [vmem:[%s0 + $0x128] sm:$0xff]
  %v52 = vld [vmem:[%s0 + $0x130] sm:$0xff]
  %v53 = vld [vmem:[%s0 + $0x138] sm:$0xff]
  %v54 = vld [vmem:[%s0 + $0x140] sm:$0xff]
  %v55 = vld [vmem:[%s0 + $0x148] sm:$0xff]
  %v56 = vld [vmem:[%s0 + $0x150] sm:$0xff]
  %v57 = vld [vmem:[%s0 + $0x158] sm:$0xff]
  %v58 = vld [vmem:[%s0 + $0x160] sm:$0xff]
  %v59 = vld [vmem:[%s0 + $0x168] sm:$0xff]
  %v60 = vld [vmem:[%s0 + $0x170] sm:$0xff]
  %v61 = vld [vmem:[%s0 + $0x178] sm:$0xff]
  %v62 = vld [vmem:[%s0 + $0x180] sm:$0xff]
  %v63 = vld [vmem:[%s0 + $0x188] sm:$0xff]
  %v64 = vld [vmem:[%s0 + $0x190] sm:$0xff]
  %v65 = vld [vmem:[%s0 + $0x198] sm:$0xff]
  %v66 = vld [vmem:[%s0 + $0x1a0] sm:$0xff]
  %v67 = vld [vmem:[%s0 + $0x1a8] sm:$0xff]
  %v68 = vld [vmem:[%s0 + $0x1b0] sm:$0xff]
  %v69 = vld [vmem:[%s0 + $0x1b8] sm:$0xff]
  %v70 = vld [vmem:[%s0 + $0x1c0] sm:$0x3]
  %v71 = vld [vmem:[%s1] sm:$0xff]
  %v72 = vld [vmem:[%s1 + $0x8] sm:$0xff]
  %v73 = vld [vmem:[%s1 + $0x10] sm:$0xff]
  %v74 = vld [vmem:[%s1 + $0x18] sm:$0xff]
  %v75 = vld [vmem:[%s1 + $0x20] sm:$0xff]
  %v76 = vld [vmem:[%s1 + $0x28] sm:$0xff]
  %v77 = vld [vmem:[%s1 + $0x30] sm:$0xff]
  %v78 = vld [vmem:[%s1 + $0x38] sm:$0xff]
  %v79 = vld [vmem:[%s1 + $0x40] sm:$0xff]
  %v80 = vld [vmem:[%s1 + $0x48] sm:$0xff]
  %v81 = vld [vmem:[%s1 + $0x50] sm:$0xff]
  %v82 = vld [vmem:[%s1 + $0x58] sm:$0xff]
  %v83 = vld [vmem:[%s1 + $0x60] sm:$0xff]
  %v84 = vld [vmem:[%s1 + $0x68] sm:$0xff]
  %v85 = vld [vmem:[%s1 + $0x70] sm:$0xff]
  %v86 = vld [vmem:[%s1 + $0x78] sm:$0xff]
  %v87 = vld [vmem:[%s2] sm:$0x1]
  %v89 = vlaneseq
  %v90 = vshrl.u32 %v89, 7
  %v91 = vsub.s32 0, %v90
  %v92 = vrot.slane %v87, %v91
  %94 = vmatprep.subr.mxu0 0.0
  %95 = vmatpush1.msra.mxu0 %v71
  %96 = vmatprep.subr.mxu0 0.0
  %97 = vmatpush1.msra.mxu0 %v72
  %98 = vmatprep.subr.mxu0 0.0
  %99 = vmatpush1.msra.mxu0 %v73
  %100 = vmatprep.subr.mxu0 0.0
  %101 = vmatpush1.msra.mxu0 %v74
  %102 = vmatprep.subr.mxu0 0.0
  %103 = vmatpush1.msra.mxu0 %v75
  %104 = vmatprep.subr.mxu0 0.0
  %105 = vmatpush1.msra.mxu0 %v76
  %106 = vmatprep.subr.mxu0 0.0
  %107 = vmatpush1.msra.mxu0 %v77
  %108 = vmatprep.subr.mxu0 0.0
  %109 = vmatpush1.msra.mxu0 %v78
  %110 = vmatprep.subr.mxu0 0.0
  %111 = vmatpush1.msra.mxu0 %v79
  %112 = vmatprep.subr.mxu0 0.0
  %113 = vmatpush1.msra.mxu0 %v80
  %114 = vmatprep.subr.mxu0 0.0
  %115 = vmatpush1.msra.mxu0 %v81
  %116 = vmatprep.subr.mxu0 0.0
  %117 = vmatpush1.msra.mxu0 %v82
  %118 = vmatprep.subr.mxu0 0.0
  %119 = vmatpush1.msra.mxu0 %v83
  %120 = vmatprep.subr.mxu0 0.0
  %121 = vmatpush1.msra.mxu0 %v84
  %122 = vmatprep.subr.mxu0 0.0
  %123 = vmatpush1.msra.mxu0 %v85
  %124 = vmatprep.subr.mxu0 0.0
  %125 = vmatpush1.msra.mxu0 %v86
  %126 = vmatprep.subr.mxu0 0.0
  %127 = vmatpush1.msra.mxu0 0.0
  %128 = vmatprep.subr.mxu0 0.0
  %129 = vmatpush1.msra.mxu0 0.0
  %130 = vmatprep.subr.mxu0 0.0
  %131 = vmatpush1.msra.mxu0 0.0
  %132 = vmatprep.subr.mxu0 0.0
  %133 = vmatpush1.msra.mxu0 0.0
  %134 = vmatprep.subr.mxu0 0.0
  %135 = vmatpush1.msra.mxu0 0.0
  %136 = vmatprep.subr.mxu0 0.0
  %137 = vmatpush1.msra.mxu0 0.0
  %138 = vmatprep.subr.mxu0 0.0
  %139 = vmatpush1.msra.mxu0 0.0
  %140 = vmatprep.subr.mxu0 0.0
  %141 = vmatpush1.msra.mxu0 0.0
  %142 = vmatprep.subr.mxu0 0.0
  %143 = vmatpush1.msra.mxu0 0.0
  %144 = vmatprep.subr.mxu0 0.0
  %145 = vmatpush1.msra.mxu0 0.0
  %146 = vmatprep.subr.mxu0 0.0
  %147 = vmatpush1.msra.mxu0 0.0
  %148 = vmatprep.subr.mxu0 0.0
  %149 = vmatpush1.msra.mxu0 0.0
  %150 = vmatprep.subr.mxu0 0.0
  %151 = vmatpush1.msra.mxu0 0.0
  %152 = vmatprep.subr.mxu0 0.0
  %153 = vmatpush1.msra.mxu0 0.0
  %154 = vmatprep.subr.mxu0 0.0
  %155 = vmatpush1.msra.mxu0 0.0
  %156 = vmatprep.subr.mxu0 0.0
  %157 = vmatpush1.msra.mxu0 0.0
  %158 = vmatprep.mubr.f32.mxu0 0.0
  %159 = vmatmul.mubr.f32.gmra.mrb[0].mxu0 %v14
  %v160 = vpop.f32.mrb[0].mxu0
  %v161 = vadd.f32 %v92, %v160
  %v162 = vpop.f32.mrb[0].mxu0
  %163 = vmatprep.mubr.f32.mxu0 0.0
  %164 = vmatmul.mubr.f32.gmra.mrb[0].mxu0 %v15
  %v165 = vpop.f32.mrb[0].mxu0
  %v166 = vadd.f32 %v92, %v165
  %v167 = vpop.f32.mrb[0].mxu0
  %168 = vmatprep.mubr.f32.mxu0 0.0
  %169 = vmatmul.mubr.f32.gmra.mrb[0].mxu0 %v16
  %v170 = vpop.f32.mrb[0].mxu0
  %v171 = vadd.f32 %v92, %v170
  %v172 = vpop.f32.mrb[0].mxu0
  %173 = vmatprep.mubr.f32.mxu0 0.0
  %174 = vmatmul.mubr.f32.gmra.mrb[0].mxu0 %v17
  %v175 = vpop.f32.mrb[0].mxu0
  %v176 = vadd.f32 %v92, %v175
  %v177 = vpop.f32.mrb[0].mxu0
  %178 = vmatprep.mubr.f32.mxu0 0.0
  %179 = vmatmul.mubr.f32.gmra.mrb[0].mxu0 %v18
  %v180 = vpop.f32.mrb[0].mxu0
  %v181 = vadd.f32 %v92, %v180
  %v182 = vpop.f32.mrb[0].mxu0
  %183 = vmatprep.mubr.f32.mxu0 0.0
  %184 = vmatmul.mubr.f32.gmra.mrb[0].mxu0 %v19
  %v185 = vpop.f32.mrb[0].mxu0
  %v186 = vadd.f32 %v92, %v185
  %v187 = vpop.f32.mrb[0].mxu0
  %188 = vmatprep.mubr.f32.mxu0 0.0
  %189 = vmatmul.mubr.f32.gmra.mrb[0].mxu0 %v20
  %v190 = vpop.f32.mrb[0].mxu0
  %v191 = vadd.f32 %v92, %v190
  %v192 = vpop.f32.mrb[0].mxu0
  %193 = vmatprep.mubr.f32.mxu0 0.0
  %194 = vmatmul.mubr.f32.gmra.mrb[0].mxu0 %v21
  %v195 = vpop.f32.mrb[0].mxu0
  %v196 = vadd.f32 %v92, %v195
  %v197 = vpop.f32.mrb[0].mxu0
  %198 = vmatprep.mubr.f32.mxu0 0.0
  %199 = vmatmul.mubr.f32.gmra.mrb[0].mxu0 %v22
  %v200 = vpop.f32.mrb[0].mxu0
  %v201 = vadd.f32 %v92, %v200
  %v202 = vpop.f32.mrb[0].mxu0
  %203 = vmatprep.mubr.f32.mxu0 0.0
  %204 = vmatmul.mubr.f32.gmra.mrb[0].mxu0 %v23
  %v205 = vpop.f32.mrb[0].mxu0
  %v206 = vadd.f32 %v92, %v205
  %v207 = vpop.f32.mrb[0].mxu0
  %208 = vmatprep.mubr.f32.mxu0 0.0
  %209 = vmatmul.mubr.f32.gmra.mrb[0].mxu0 %v24
  %v210 = vpop.f32.mrb[0].mxu0
  %v211 = vadd.f32 %v92, %v210
  %v212 = vpop.f32.mrb[0].mxu0
  %213 = vmatprep.mubr.f32.mxu0 0.0
  %214 = vmatmul.mubr.f32.gmra.mrb[0].mxu0 %v25
  %v215 = vpop.f32.mrb[0].mxu0
  %v216 = vadd.f32 %v92, %v215
  %v217 = vpop.f32.mrb[0].mxu0
  %218 = vmatprep.mubr.f32.mxu0 0.0
  %219 = vmatmul.mubr.f32.gmra.mrb[0].mxu0 %v26
  %v220 = vpop.f32.mrb[0].mxu0
  %v221 = vadd.f32 %v92, %v220
  %v222 = vpop.f32.mrb[0].mxu0
  %223 = vmatprep.mubr.f32.mxu0 0.0
  %224 = vmatmul.mubr.f32.gmra.mrb[0].mxu0 %v27
  %v225 = vpop.f32.mrb[0].mxu0
  %v226 = vadd.f32 %v92, %v225
  %v227 = vpop.f32.mrb[0].mxu0
  %228 = vmatprep.mubr.f32.mxu0 0.0
  %229 = vmatmul.mubr.f32.gmra.mrb[0].mxu0 %v28
  %v230 = vpop.f32.mrb[0].mxu0
  %v231 = vadd.f32 %v92, %v230
  %v232 = vpop.f32.mrb[0].mxu0
  %233 = vmatprep.mubr.f32.mxu0 0.0
  %234 = vmatmul.mubr.f32.gmra.mrb[0].mxu0 %v29
  %v235 = vpop.f32.mrb[0].mxu0
  %v236 = vadd.f32 %v92, %v235
  %v237 = vpop.f32.mrb[0].mxu0
  %238 = vmatprep.mubr.f32.mxu0 0.0
  %239 = vmatmul.mubr.f32.gmra.mrb[0].mxu0 %v30
  %v240 = vpop.f32.mrb[0].mxu0
  %v241 = vadd.f32 %v92, %v240
  %v242 = vpop.f32.mrb[0].mxu0
  %243 = vmatprep.mubr.f32.mxu0 0.0
  %244 = vmatmul.mubr.f32.gmra.mrb[0].mxu0 %v31
  %v245 = vpop.f32.mrb[0].mxu0
  %v246 = vadd.f32 %v92, %v245
  %v247 = vpop.f32.mrb[0].mxu0
  %248 = vmatprep.mubr.f32.mxu0 0.0
  %249 = vmatmul.mubr.f32.gmra.mrb[0].mxu0 %v32
  %v250 = vpop.f32.mrb[0].mxu0
  %v251 = vadd.f32 %v92, %v250
  %v252 = vpop.f32.mrb[0].mxu0
  %253 = vmatprep.mubr.f32.mxu0 0.0
  %254 = vmatmul.mubr.f32.gmra.mrb[0].mxu0 %v33
  %v255 = vpop.f32.mrb[0].mxu0
  %v256 = vadd.f32 %v92, %v255
  %v257 = vpop.f32.mrb[0].mxu0
  %258 = vmatprep.mubr.f32.mxu0 0.0
  %259 = vmatmul.mubr.f32.gmra.mrb[0].mxu0 %v34
  %v260 = vpop.f32.mrb[0].mxu0
  %v261 = vadd.f32 %v92, %v260
  %v262 = vpop.f32.mrb[0].mxu0
  %263 = vmatprep.mubr.f32.mxu0 0.0
  %264 = vmatmul.mubr.f32.gmra.mrb[0].mxu0 %v35
  %v265 = vpop.f32.mrb[0].mxu0
  %v266 = vadd.f32 %v92, %v265
  %v267 = vpop.f32.mrb[0].mxu0
  %268 = vmatprep.mubr.f32.mxu0 0.0
  %269 = vmatmul.mubr.f32.gmra.mrb[0].mxu0 %v36
  %v270 = vpop.f32.mrb[0].mxu0
  %v271 = vadd.f32 %v92, %v270
  %v272 = vpop.f32.mrb[0].mxu0
  %273 = vmatprep.mubr.f32.mxu0 0.0
  %274 = vmatmul.mubr.f32.gmra.mrb[0].mxu0 %v37
  %v275 = vpop.f32.mrb[0].mxu0
  %v276 = vadd.f32 %v92, %v275
  %v277 = vpop.f32.mrb[0].mxu0
  %278 = vmatprep.mubr.f32.mxu0 0.0
  %279 = vmatmul.mubr.f32.gmra.mrb[0].mxu0 %v38
  %v280 = vpop.f32.mrb[0].mxu0
  %v281 = vadd.f32 %v92, %v280
  %v282 = vpop.f32.mrb[0].mxu0
  %283 = vmatprep.mubr.f32.mxu0 0.0
  %284 = vmatmul.mubr.f32.gmra.mrb[0].mxu0 %v39
  %v285 = vpop.f32.mrb[0].mxu0
  %v286 = vadd.f32 %v92, %v285
  %v287 = vpop.f32.mrb[0].mxu0
  %288 = vmatprep.mubr.f32.mxu0 0.0
  %289 = vmatmul.mubr.f32.gmra.mrb[0].mxu0 %v40
  %v290 = vpop.f32.mrb[0].mxu0
  %v291 = vadd.f32 %v92, %v290
  %v292 = vpop.f32.mrb[0].mxu0
  %293 = vmatprep.mubr.f32.mxu0 0.0
  %294 = vmatmul.mubr.f32.gmra.mrb[0].mxu0 %v41
  %v295 = vpop.f32.mrb[0].mxu0
  %v296 = vadd.f32 %v92, %v295
  %v297 = vpop.f32.mrb[0].mxu0
  %298 = vmatprep.mubr.f32.mxu0 0.0
  %299 = vmatmul.mubr.f32.gmra.mrb[0].mxu0 %v42
  %v300 = vpop.f32.mrb[0].mxu0
  %v301 = vadd.f32 %v92, %v300
  %v302 = vpop.f32.mrb[0].mxu0
  %303 = vmatprep.mubr.f32.mxu0 0.0
  %304 = vmatmul.mubr.f32.gmra.mrb[0].mxu0 %v43
  %v305 = vpop.f32.mrb[0].mxu0
  %v306 = vadd.f32 %v92, %v305
  %v307 = vpop.f32.mrb[0].mxu0
  %308 = vmatprep.mubr.f32.mxu0 0.0
  %309 = vmatmul.mubr.f32.gmra.mrb[0].mxu0 %v44
  %v310 = vpop.f32.mrb[0].mxu0
  %v311 = vadd.f32 %v92, %v310
  %v312 = vpop.f32.mrb[0].mxu0
  %313 = vmatprep.mubr.f32.mxu0 0.0
  %314 = vmatmul.mubr.f32.gmra.mrb[0].mxu0 %v45
  %v315 = vpop.f32.mrb[0].mxu0
  %v316 = vadd.f32 %v92, %v315
  %v317 = vpop.f32.mrb[0].mxu0
  %318 = vmatprep.mubr.f32.mxu0 0.0
  %319 = vmatmul.mubr.f32.gmra.mrb[0].mxu0 %v46
  %v320 = vpop.f32.mrb[0].mxu0
  %v321 = vadd.f32 %v92, %v320
  %v322 = vpop.f32.mrb[0].mxu0
  %323 = vmatprep.mubr.f32.mxu0 0.0
  %324 = vmatmul.mubr.f32.gmra.mrb[0].mxu0 %v47
  %v325 = vpop.f32.mrb[0].mxu0
  %v326 = vadd.f32 %v92, %v325
  %v327 = vpop.f32.mrb[0].mxu0
  %328 = vmatprep.mubr.f32.mxu0 0.0
  %329 = vmatmul.mubr.f32.gmra.mrb[0].mxu0 %v48
  %v330 = vpop.f32.mrb[0].mxu0
  %v331 = vadd.f32 %v92, %v330
  %v332 = vpop.f32.mrb[0].mxu0
  %333 = vmatprep.mubr.f32.mxu0 0.0
  %334 = vmatmul.mubr.f32.gmra.mrb[0].mxu0 %v49
  %v335 = vpop.f32.mrb[0].mxu0
  %v336 = vadd.f32 %v92, %v335
  %v337 = vpop.f32.mrb[0].mxu0
  %338 = vmatprep.mubr.f32.mxu0 0.0
  %339 = vmatmul.mubr.f32.gmra.mrb[0].mxu0 %v50
  %v340 = vpop.f32.mrb[0].mxu0
  %v341 = vadd.f32 %v92, %v340
  %v342 = vpop.f32.mrb[0].mxu0
  %343 = vmatprep.mubr.f32.mxu0 0.0
  %344 = vmatmul.mubr.f32.gmra.mrb[0].mxu0 %v51
  %v345 = vpop.f32.mrb[0].mxu0
  %v346 = vadd.f32 %v92, %v345
  %v347 = vpop.f32.mrb[0].mxu0
  %348 = vmatprep.mubr.f32.mxu0 0.0
  %349 = vmatmul.mubr.f32.gmra.mrb[0].mxu0 %v52
  %v350 = vpop.f32.mrb[0].mxu0
  %v351 = vadd.f32 %v92, %v350
  %v352 = vpop.f32.mrb[0].mxu0
  %353 = vmatprep.mubr.f32.mxu0 0.0
  %354 = vmatmul.mubr.f32.gmra.mrb[0].mxu0 %v53
  %v355 = vpop.f32.mrb[0].mxu0
  %v356 = vadd.f32 %v92, %v355
  %v357 = vpop.f32.mrb[0].mxu0
  %358 = vmatprep.mubr.f32.mxu0 0.0
  %359 = vmatmul.mubr.f32.gmra.mrb[0].mxu0 %v54
  %v360 = vpop.f32.mrb[0].mxu0
  %v361 = vadd.f32 %v92, %v360
  %v362 = vpop.f32.mrb[0].mxu0
  %363 = vmatprep.mubr.f32.mxu0 0.0
  %364 = vmatmul.mubr.f32.gmra.mrb[0].mxu0 %v55
  %v365 = vpop.f32.mrb[0].mxu0
  %v366 = vadd.f32 %v92, %v365
  %v367 = vpop.f32.mrb[0].mxu0
  %368 = vmatprep.mubr.f32.mxu0 0.0
  %369 = vmatmul.mubr.f32.gmra.mrb[0].mxu0 %v56
  %v370 = vpop.f32.mrb[0].mxu0
  %v371 = vadd.f32 %v92, %v370
  %v372 = vpop.f32.mrb[0].mxu0
  %373 = vmatprep.mubr.f32.mxu0 0.0
  %374 = vmatmul.mubr.f32.gmra.mrb[0].mxu0 %v57
  %v375 = vpop.f32.mrb[0].mxu0
  %v376 = vadd.f32 %v92, %v375
  %v377 = vpop.f32.mrb[0].mxu0
  %378 = vmatprep.mubr.f32.mxu0 0.0
  %379 = vmatmul.mubr.f32.gmra.mrb[0].mxu0 %v58
  %v380 = vpop.f32.mrb[0].mxu0
  %v381 = vadd.f32 %v92, %v380
  %v382 = vpop.f32.mrb[0].mxu0
  %383 = vmatprep.mubr.f32.mxu0 0.0
  %384 = vmatmul.mubr.f32.gmra.mrb[0].mxu0 %v59
  %v385 = vpop.f32.mrb[0].mxu0
  %v386 = vadd.f32 %v92, %v385
  %v387 = vpop.f32.mrb[0].mxu0
  %388 = vmatprep.mubr.f32.mxu0 0.0
  %389 = vmatmul.mubr.f32.gmra.mrb[0].mxu0 %v60
  %v390 = vpop.f32.mrb[0].mxu0
  %v391 = vadd.f32 %v92, %v390
  %v392 = vpop.f32.mrb[0].mxu0
  %393 = vmatprep.mubr.f32.mxu0 0.0
  %394 = vmatmul.mubr.f32.gmra.mrb[0].mxu0 %v61
  %v395 = vpop.f32.mrb[0].mxu0
  %v396 = vadd.f32 %v92, %v395
  %v397 = vpop.f32.mrb[0].mxu0
  %398 = vmatprep.mubr.f32.mxu0 0.0
  %399 = vmatmul.mubr.f32.gmra.mrb[0].mxu0 %v62
  %v400 = vpop.f32.mrb[0].mxu0
  %v401 = vadd.f32 %v92, %v400
  %v402 = vpop.f32.mrb[0].mxu0
  %403 = vmatprep.mubr.f32.mxu0 0.0
  %404 = vmatmul.mubr.f32.gmra.mrb[0].mxu0 %v63
  %v405 = vpop.f32.mrb[0].mxu0
  %v406 = vadd.f32 %v92, %v405
  %v407 = vpop.f32.mrb[0].mxu0
  %408 = vmatprep.mubr.f32.mxu0 0.0
  %409 = vmatmul.mubr.f32.gmra.mrb[0].mxu0 %v64
  %v410 = vpop.f32.mrb[0].mxu0
  %v411 = vadd.f32 %v92, %v410
  %v412 = vpop.f32.mrb[0].mxu0
  %413 = vmatprep.mubr.f32.mxu0 0.0
  %414 = vmatmul.mubr.f32.gmra.mrb[0].mxu0 %v65
  %v415 = vpop.f32.mrb[0].mxu0
  %v416 = vadd.f32 %v92, %v415
  %v417 = vpop.f32.mrb[0].mxu0
  %418 = vmatprep.mubr.f32.mxu0 0.0
  %419 = vmatmul.mubr.f32.gmra.mrb[0].mxu0 %v66
  %v420 = vpop.f32.mrb[0].mxu0
  %v421 = vadd.f32 %v92, %v420
  %v422 = vpop.f32.mrb[0].mxu0
  %423 = vmatprep.mubr.f32.mxu0 0.0
  %424 = vmatmul.mubr.f32.gmra.mrb[0].mxu0 %v67
  %v425 = vpop.f32.mrb[0].mxu0
  %v426 = vadd.f32 %v92, %v425
  %v427 = vpop.f32.mrb[0].mxu0
  %428 = vmatprep.mubr.f32.mxu0 0.0
  %429 = vmatmul.mubr.f32.gmra.mrb[0].mxu0 %v68
  %v430 = vpop.f32.mrb[0].mxu0
  %v431 = vadd.f32 %v92, %v430
  %v432 = vpop.f32.mrb[0].mxu0
  %433 = vmatprep.mubr.f32.mxu0 0.0
  %434 = vmatmul.mubr.f32.gmra.mrb[0].mxu0 %v69
  %v435 = vpop.f32.mrb[0].mxu0
  %v436 = vadd.f32 %v92, %v435
  %v437 = vpop.f32.mrb[0].mxu0
  %438 = vmatprep.mubr.f32.mxu0 0.0
  %439 = vmatmul.mubr.f32.gmra.mrb[0].mxu0 %v70
  %v440 = vpop.f32.mrb[0].mxu0
  %v441 = vadd.f32 %v92, %v440
  %v442 = vpop.f32.mrb[0].mxu0
  %443 = vdwg.mxu0
  %v444 = vmax.f32 %v161, 0.0
  %v445 = vmax.f32 %v166, 0.0
  %v446 = vmax.f32 %v171, 0.0
  %v447 = vmax.f32 %v176, 0.0
  %v448 = vmax.f32 %v181, 0.0
  %v449 = vmax.f32 %v186, 0.0
  %v450 = vmax.f32 %v191, 0.0
  %v451 = vmax.f32 %v196, 0.0
  %v452 = vmax.f32 %v201, 0.0
  %v453 = vmax.f32 %v206, 0.0
  %v454 = vmax.f32 %v211, 0.0
  %v455 = vmax.f32 %v216, 0.0
  %v456 = vmax.f32 %v221, 0.0
  %v457 = vmax.f32 %v226, 0.0
  %v458 = vmax.f32 %v231, 0.0
  %v459 = vmax.f32 %v236, 0.0
  %v460 = vmax.f32 %v241, 0.0
  %v461 = vmax.f32 %v246, 0.0
  %v462 = vmax.f32 %v251, 0.0
  %v463 = vmax.f32 %v256, 0.0
  %v464 = vmax.f32 %v261, 0.0
  %v465 = vmax.f32 %v266, 0.0
  %v466 = vmax.f32 %v271, 0.0
  %v467 = vmax.f32 %v276, 0.0
  %v468 = vmax.f32 %v281, 0.0
  %v469 = vmax.f32 %v286, 0.0
  %v470 = vmax.f32 %v291, 0.0
  %v471 = vmax.f32 %v296, 0.0
  %v472 = vmax.f32 %v301, 0.0
  %v473 = vmax.f32 %v306, 0.0
  %v474 = vmax.f32 %v311, 0.0
  %v475 = vmax.f32 %v316, 0.0
  %v476 = vmax.f32 %v321, 0.0
  %v477 = vmax.f32 %v326, 0.0
  %v478 = vmax.f32 %v331, 0.0
  %v479 = vmax.f32 %v336, 0.0
  %v480 = vmax.f32 %v341, 0.0
  %v481 = vmax.f32 %v346, 0.0
  %v482 = vmax.f32 %v351, 0.0
  %v483 = vmax.f32 %v356, 0.0
  %v484 = vmax.f32 %v361, 0.0
  %v485 = vmax.f32 %v366, 0.0
  %v486 = vmax.f32 %v371, 0.0
  %v487 = vmax.f32 %v376, 0.0
  %v488 = vmax.f32 %v381, 0.0
  %v489 = vmax.f32 %v386, 0.0
  %v490 = vmax.f32 %v391, 0.0
  %v491 = vmax.f32 %v396, 0.0
  %v492 = vmax.f32 %v401, 0.0
  %v493 = vmax.f32 %v406, 0.0
  %v494 = vmax.f32 %v411, 0.0
  %v495 = vmax.f32 %v416, 0.0
  %v496 = vmax.f32 %v421, 0.0
  %v497 = vmax.f32 %v426, 0.0
  %v498 = vmax.f32 %v431, 0.0
  %v499 = vmax.f32 %v436, 0.0
  %v500 = vmax.f32 %v441, 0.0
  %vm501 = vcmask 130048
  %502 = vst.msk [vmem:[%s3] sm:$0xff] %vm501, %v444
  %503 = vst.msk [vmem:[%s3 + $0x8] sm:$0xff] %vm501, %v445
  %504 = vst.msk [vmem:[%s3 + $0x10] sm:$0xff] %vm501, %v446
  %505 = vst.msk [vmem:[%s3 + $0x18] sm:$0xff] %vm501, %v447
  %506 = vst.msk [vmem:[%s3 + $0x20] sm:$0xff] %vm501, %v448
  %507 = vst.msk [vmem:[%s3 + $0x28] sm:$0xff] %vm501, %v449
  %508 = vst.msk [vmem:[%s3 + $0x30] sm:$0xff] %vm501, %v450
  %509 = vst.msk [vmem:[%s3 + $0x38] sm:$0xff] %vm501, %v451
  %510 = vst.msk [vmem:[%s3 + $0x40] sm:$0xff] %vm501, %v452
  %511 = vst.msk [vmem:[%s3 + $0x48] sm:$0xff] %vm501, %v453
  %512 = vst.msk [vmem:[%s3 + $0x50] sm:$0xff] %vm501, %v454
  %513 = vst.msk [vmem:[%s3 + $0x58] sm:$0xff] %vm501, %v455
  %514 = vst.msk [vmem:[%s3 + $0x60] sm:$0xff] %vm501, %v456
  %515 = vst.msk [vmem:[%s3 + $0x68] sm:$0xff] %vm501, %v457
  %516 = vst.msk [vmem:[%s3 + $0x70] sm:$0xff] %vm501, %v458
  %517 = vst.msk [vmem:[%s3 + $0x78] sm:$0xff] %vm501, %v459
  %518 = vst.msk [vmem:[%s3 + $0x80] sm:$0xff] %vm501, %v460
  %519 = vst.msk [vmem:[%s3 + $0x88] sm:$0xff] %vm501, %v461
  %520 = vst.msk [vmem:[%s3 + $0x90] sm:$0xff] %vm501, %v462
  %521 = vst.msk [vmem:[%s3 + $0x98] sm:$0xff] %vm501, %v463
  %522 = vst.msk [vmem:[%s3 + $0xa0] sm:$0xff] %vm501, %v464
  %523 = vst.msk [vmem:[%s3 + $0xa8] sm:$0xff] %vm501, %v465
  %524 = vst.msk [vmem:[%s3 + $0xb0] sm:$0xff] %vm501, %v466
  %525 = vst.msk [vmem:[%s3 + $0xb8] sm:$0xff] %vm501, %v467
  %526 = vst.msk [vmem:[%s3 + $0xc0] sm:$0xff] %vm501, %v468
  %527 = vst.msk [vmem:[%s3 + $0xc8] sm:$0xff] %vm501, %v469
  %528 = vst.msk [vmem:[%s3 + $0xd0] sm:$0xff] %vm501, %v470
  %529 = vst.msk [vmem:[%s3 + $0xd8] sm:$0xff] %vm501, %v471
  %530 = vst.msk [vmem:[%s3 + $0xe0] sm:$0xff] %vm501, %v472
  %531 = vst.msk [vmem:[%s3 + $0xe8] sm:$0xff] %vm501, %v473
  %532 = vst.msk [vmem:[%s3 + $0xf0] sm:$0xff] %vm501, %v474
  %533 = vst.msk [vmem:[%s3 + $0xf8] sm:$0xff] %vm501, %v475
  %534 = vst.msk [vmem:[%s3 + $0x100] sm:$0xff] %vm501, %v476
  %535 = vst.msk [vmem:[%s3 + $0x108] sm:$0xff] %vm501, %v477
  %536 = vst.msk [vmem:[%s3 + $0x110] sm:$0xff] %vm501, %v478
  %537 = vst.msk [vmem:[%s3 + $0x118] sm:$0xff] %vm501, %v479
  %538 = vst.msk [vmem:[%s3 + $0x120] sm:$0xff] %vm501, %v480
  %539 = vst.msk [vmem:[%s3 + $0x128] sm:$0xff] %vm501, %v481
  %540 = vst.msk [vmem:[%s3 + $0x130] sm:$0xff] %vm501, %v482
  %541 = vst.msk [vmem:[%s3 + $0x138] sm:$0xff] %vm501, %v483
  %542 = vst.msk [vmem:[%s3 + $0x140] sm:$0xff] %vm501, %v484
  %543 = vst.msk [vmem:[%s3 + $0x148] sm:$0xff] %vm501, %v485
  %544 = vst.msk [vmem:[%s3 + $0x150] sm:$0xff] %vm501, %v486
  %545 = vst.msk [vmem:[%s3 + $0x158] sm:$0xff] %vm501, %v487
  %546 = vst.msk [vmem:[%s3 + $0x160] sm:$0xff] %vm501, %v488
  %547 = vst.msk [vmem:[%s3 + $0x168] sm:$0xff] %vm501, %v489
  %548 = vst.msk [vmem:[%s3 + $0x170] sm:$0xff] %vm501, %v490
  %549 = vst.msk [vmem:[%s3 + $0x178] sm:$0xff] %vm501, %v491
  %550 = vst.msk [vmem:[%s3 + $0x180] sm:$0xff] %vm501, %v492
  %551 = vst.msk [vmem:[%s3 + $0x188] sm:$0xff] %vm501, %v493
  %552 = vst.msk [vmem:[%s3 + $0x190] sm:$0xff] %vm501, %v494
  %553 = vst.msk [vmem:[%s3 + $0x198] sm:$0xff] %vm501, %v495
  %554 = vst.msk [vmem:[%s3 + $0x1a0] sm:$0xff] %vm501, %v496
  %555 = vst.msk [vmem:[%s3 + $0x1a8] sm:$0xff] %vm501, %v497
  %556 = vst.msk [vmem:[%s3 + $0x1b0] sm:$0xff] %vm501, %v498
  %557 = vst.msk [vmem:[%s3 + $0x1b8] sm:$0xff] %vm501, %v499
  %vm558 = vcmask 123904
  %559 = vst.msk [vmem:[%s3 + $0x1c0] sm:$0x3] %vm558, %v500
  // Predicated region
  $region14: #{squeezenet2d_forward.31} parent=0 // pred_check
    _
  $region15: #{squeezenet2d_forward.31} parent=0 // pred_check_branch
    %561 = sbr.rel (0) target = $region17
  $region16: #{squeezenet2d_forward.31} parent=0 // pred_region
    _
  $region17: #{squeezenet2d_forward.31} parent=0 // pred_fallthru
    _
  // Predicated region
  $region18: #{squeezenet2d_forward.31} parent=0 // pred_check
    _
  $region19: #{squeezenet2d_forward.31} parent=0 // pred_check_branch
    %563 = sbr.rel (0) target = $region21
  $region20: #{squeezenet2d_forward.31} parent=0 // pred_region
    _
  $region21: #{squeezenet2d_forward.31} parent=0 // pred_fallthru
    _

// kernel: squeezenet2d_forward.34
$region0: #{squeezenet2d_forward.34}
  #allocation0 [shape = 'u32[]', space=smem, size = 0x4, offset = 0x4, fixed_abs, tag = 'smem constant byte address 0x4 - core index']
  #allocation1 [shape = 'u32[144,128]{1,0:T(1,128)}', space=vmem, size = 0x12000, scoped, tag = 'internal scratch']
  %s0 = inlined_call_operand.vmem [shape: f32[98,128], index: 0, kind: input, shape index: {}]
  %s1 = inlined_call_operand.vmem [shape: f32[128,32], index: 1, kind: input, shape index: {}]
  %s2 = inlined_call_operand.vmem [shape: f32[1,32], index: 2, kind: input, shape index: {}]
  %s3 = inlined_call_operand.vmem [shape: f32[98,32], index: 3, kind: output, shape index: {}]
  %s4 = sld [smem:[#allocation0]]
  $region22: #{squeezenet2d_forward.34} parent=0
    _
  %s6 = ssub.s32 1, %s4
  %s7 = scalar_select 0, %s6, %s4
  // Predicated region
  $region2: #{squeezenet2d_forward.34} parent=0 // pred_check
    _
  $region3: #{squeezenet2d_forward.34} parent=0 // pred_check_branch
    %9 = sbr.rel (0) target = $region5
  $region4: #{squeezenet2d_forward.34} parent=0 // pred_region
    _
  $region5: #{squeezenet2d_forward.34} parent=0 // pred_fallthru
    _
  // Predicated region
  $region6: #{squeezenet2d_forward.34} parent=0 // pred_check
    _
  $region7: #{squeezenet2d_forward.34} parent=0 // pred_check_branch
    %11 = sbr.rel (0) target = $region9
  $region8: #{squeezenet2d_forward.34} parent=0 // pred_region
    _
  $region9: #{squeezenet2d_forward.34} parent=0 // pred_fallthru
    _
  // Predicated region
  $region10: #{squeezenet2d_forward.34} parent=0 // pred_check
    _
  $region11: #{squeezenet2d_forward.34} parent=0 // pred_check_branch
    %13 = sbr.rel (0) target = $region13
  $region12: #{squeezenet2d_forward.34} parent=0 // pred_region
    _
  $region13: #{squeezenet2d_forward.34} parent=0 // pred_fallthru
    _
  %v14 = vld [vmem:[%s0] sm:$0xff]
  %v15 = vld [vmem:[%s0 + $0x8] sm:$0xff]
  %v16 = vld [vmem:[%s0 + $0x10] sm:$0xff]
  %v17 = vld [vmem:[%s0 + $0x18] sm:$0xff]
  %v18 = vld [vmem:[%s0 + $0x20] sm:$0xff]
  %v19 = vld [vmem:[%s0 + $0x28] sm:$0xff]
  %v20 = vld [vmem:[%s0 + $0x30] sm:$0xff]
  %v21 = vld [vmem:[%s0 + $0x38] sm:$0xff]
  %v22 = vld [vmem:[%s0 + $0x40] sm:$0xff]
  %v23 = vld [vmem:[%s0 + $0x48] sm:$0xff]
  %v24 = vld [vmem:[%s0 + $0x50] sm:$0xff]
  %v25 = vld [vmem:[%s0 + $0x58] sm:$0xff]
  %v26 = vld [vmem:[%s0 + $0x60] sm:$0x3]
  %v27 = vld [vmem:[%s1] sm:$0xff]
  %v28 = vld [vmem:[%s1 + $0x8] sm:$0xff]
  %v29 = vld [vmem:[%s1 + $0x10] sm:$0xff]
  %v30 = vld [vmem:[%s1 + $0x18] sm:$0xff]
  %v31 = vld [vmem:[%s1 + $0x20] sm:$0xff]
  %v32 = vld [vmem:[%s1 + $0x28] sm:$0xff]
  %v33 = vld [vmem:[%s1 + $0x30] sm:$0xff]
  %v34 = vld [vmem:[%s1 + $0x38] sm:$0xff]
  %v35 = vld [vmem:[%s1 + $0x40] sm:$0xff]
  %v36 = vld [vmem:[%s1 + $0x48] sm:$0xff]
  %v37 = vld [vmem:[%s1 + $0x50] sm:$0xff]
  %v38 = vld [vmem:[%s1 + $0x58] sm:$0xff]
  %v39 = vld [vmem:[%s1 + $0x60] sm:$0xff]
  %v40 = vld [vmem:[%s1 + $0x68] sm:$0xff]
  %v41 = vld [vmem:[%s1 + $0x70] sm:$0xff]
  %v42 = vld [vmem:[%s1 + $0x78] sm:$0xff]
  %v43 = vld [vmem:[%s2] sm:$0x1]
  %v45 = vlaneseq
  %v46 = vshrl.u32 %v45, 7
  %v47 = vsub.s32 0, %v46
  %v48 = vrot.slane %v43, %v47
  %50 = vmatprep.subr.mxu0 0.0
  %51 = vmatpush1.msra.mxu0 %v27
  %52 = vmatprep.subr.mxu0 0.0
  %53 = vmatpush1.msra.mxu0 %v28
  %54 = vmatprep.subr.mxu0 0.0
  %55 = vmatpush1.msra.mxu0 %v29
  %56 = vmatprep.subr.mxu0 0.0
  %57 = vmatpush1.msra.mxu0 %v30
  %58 = vmatprep.subr.mxu0 0.0
  %59 = vmatpush1.msra.mxu0 %v31
  %60 = vmatprep.subr.mxu0 0.0
  %61 = vmatpush1.msra.mxu0 %v32
  %62 = vmatprep.subr.mxu0 0.0
  %63 = vmatpush1.msra.mxu0 %v33
  %64 = vmatprep.subr.mxu0 0.0
  %65 = vmatpush1.msra.mxu0 %v34
  %66 = vmatprep.subr.mxu0 0.0
  %67 = vmatpush1.msra.mxu0 %v35
  %68 = vmatprep.subr.mxu0 0.0
  %69 = vmatpush1.msra.mxu0 %v36
  %70 = vmatprep.subr.mxu0 0.0
  %71 = vmatpush1.msra.mxu0 %v37
  %72 = vmatprep.subr.mxu0 0.0
  %73 = vmatpush1.msra.mxu0 %v38
  %74 = vmatprep.subr.mxu0 0.0
  %75 = vmatpush1.msra.mxu0 %v39
  %76 = vmatprep.subr.mxu0 0.0
  %77 = vmatpush1.msra.mxu0 %v40
  %78 = vmatprep.subr.mxu0 0.0
  %79 = vmatpush1.msra.mxu0 %v41
  %80 = vmatprep.subr.mxu0 0.0
  %81 = vmatpush1.msra.mxu0 %v42
  %82 = vmatprep.subr.mxu0 0.0
  %83 = vmatpush1.msra.mxu0 0.0
  %84 = vmatprep.subr.mxu0 0.0
  %85 = vmatpush1.msra.mxu0 0.0
  %86 = vmatprep.subr.mxu0 0.0
  %87 = vmatpush1.msra.mxu0 0.0
  %88 = vmatprep.subr.mxu0 0.0
  %89 = vmatpush1.msra.mxu0 0.0
  %90 = vmatprep.subr.mxu0 0.0
  %91 = vmatpush1.msra.mxu0 0.0
  %92 = vmatprep.subr.mxu0 0.0
  %93 = vmatpush1.msra.mxu0 0.0
  %94 = vmatprep.subr.mxu0 0.0
  %95 = vmatpush1.msra.mxu0 0.0
  %96 = vmatprep.subr.mxu0 0.0
  %97 = vmatpush1.msra.mxu0 0.0
  %98 = vmatprep.subr.mxu0 0.0
  %99 = vmatpush1.msra.mxu0 0.0
  %100 = vmatprep.subr.mxu0 0.0
  %101 = vmatpush1.msra.mxu0 0.0
  %102 = vmatprep.subr.mxu0 0.0
  %103 = vmatpush1.msra.mxu0 0.0
  %104 = vmatprep.subr.mxu0 0.0
  %105 = vmatpush1.msra.mxu0 0.0
  %106 = vmatprep.subr.mxu0 0.0
  %107 = vmatpush1.msra.mxu0 0.0
  %108 = vmatprep.subr.mxu0 0.0
  %109 = vmatpush1.msra.mxu0 0.0
  %110 = vmatprep.subr.mxu0 0.0
  %111 = vmatpush1.msra.mxu0 0.0
  %112 = vmatprep.subr.mxu0 0.0
  %113 = vmatpush1.msra.mxu0 0.0
  %114 = vmatprep.mubr.f32.mxu0 0.0
  %115 = vmatmul.mubr.f32.gmra.mrb[0].mxu0 %v14
  %v116 = vpop.f32.mrb[0].mxu0
  %v117 = vadd.f32 %v48, %v116
  %v118 = vpop.f32.mrb[0].mxu0
  %119 = vmatprep.mubr.f32.mxu0 0.0
  %120 = vmatmul.mubr.f32.gmra.mrb[0].mxu0 %v15
  %v121 = vpop.f32.mrb[0].mxu0
  %v122 = vadd.f32 %v48, %v121
  %v123 = vpop.f32.mrb[0].mxu0
  %124 = vmatprep.mubr.f32.mxu0 0.0
  %125 = vmatmul.mubr.f32.gmra.mrb[0].mxu0 %v16
  %v126 = vpop.f32.mrb[0].mxu0
  %v127 = vadd.f32 %v48, %v126
  %v128 = vpop.f32.mrb[0].mxu0
  %129 = vmatprep.mubr.f32.mxu0 0.0
  %130 = vmatmul.mubr.f32.gmra.mrb[0].mxu0 %v17
  %v131 = vpop.f32.mrb[0].mxu0
  %v132 = vadd.f32 %v48, %v131
  %v133 = vpop.f32.mrb[0].mxu0
  %134 = vmatprep.mubr.f32.mxu0 0.0
  %135 = vmatmul.mubr.f32.gmra.mrb[0].mxu0 %v18
  %v136 = vpop.f32.mrb[0].mxu0
  %v137 = vadd.f32 %v48, %v136
  %v138 = vpop.f32.mrb[0].mxu0
  %139 = vmatprep.mubr.f32.mxu0 0.0
  %140 = vmatmul.mubr.f32.gmra.mrb[0].mxu0 %v19
  %v141 = vpop.f32.mrb[0].mxu0
  %v142 = vadd.f32 %v48, %v141
  %v143 = vpop.f32.mrb[0].mxu0
  %144 = vmatprep.mubr.f32.mxu0 0.0
  %145 = vmatmul.mubr.f32.gmra.mrb[0].mxu0 %v20
  %v146 = vpop.f32.mrb[0].mxu0
  %v147 = vadd.f32 %v48, %v146
  %v148 = vpop.f32.mrb[0].mxu0
  %149 = vmatprep.mubr.f32.mxu0 0.0
  %150 = vmatmul.mubr.f32.gmra.mrb[0].mxu0 %v21
  %v151 = vpop.f32.mrb[0].mxu0
  %v152 = vadd.f32 %v48, %v151
  %v153 = vpop.f32.mrb[0].mxu0
  %154 = vmatprep.mubr.f32.mxu0 0.0
  %155 = vmatmul.mubr.f32.gmra.mrb[0].mxu0 %v22
  %v156 = vpop.f32.mrb[0].mxu0
  %v157 = vadd.f32 %v48, %v156
  %v158 = vpop.f32.mrb[0].mxu0
  %159 = vmatprep.mubr.f32.mxu0 0.0
  %160 = vmatmul.mubr.f32.gmra.mrb[0].mxu0 %v23
  %v161 = vpop.f32.mrb[0].mxu0
  %v162 = vadd.f32 %v48, %v161
  %v163 = vpop.f32.mrb[0].mxu0
  %164 = vmatprep.mubr.f32.mxu0 0.0
  %165 = vmatmul.mubr.f32.gmra.mrb[0].mxu0 %v24
  %v166 = vpop.f32.mrb[0].mxu0
  %v167 = vadd.f32 %v48, %v166
  %v168 = vpop.f32.mrb[0].mxu0
  %169 = vmatprep.mubr.f32.mxu0 0.0
  %170 = vmatmul.mubr.f32.gmra.mrb[0].mxu0 %v25
  %v171 = vpop.f32.mrb[0].mxu0
  %v172 = vadd.f32 %v48, %v171
  %v173 = vpop.f32.mrb[0].mxu0
  %174 = vmatprep.mubr.f32.mxu0 0.0
  %175 = vmatmul.mubr.f32.gmra.mrb[0].mxu0 %v26
  %v176 = vpop.f32.mrb[0].mxu0
  %v177 = vadd.f32 %v48, %v176
  %v178 = vpop.f32.mrb[0].mxu0
  %179 = vdwg.mxu0
  %v180 = vmax.f32 %v117, 0.0
  %v181 = vmax.f32 %v122, 0.0
  %v182 = vmax.f32 %v127, 0.0
  %v183 = vmax.f32 %v132, 0.0
  %v184 = vmax.f32 %v137, 0.0
  %v185 = vmax.f32 %v142, 0.0
  %v186 = vmax.f32 %v147, 0.0
  %v187 = vmax.f32 %v152, 0.0
  %v188 = vmax.f32 %v157, 0.0
  %v189 = vmax.f32 %v162, 0.0
  %v190 = vmax.f32 %v167, 0.0
  %v191 = vmax.f32 %v172, 0.0
  %v192 = vmax.f32 %v177, 0.0
  %vm193 = vcmask 261120
  %194 = vst.msk [vmem:[%s3] sm:$0xff] %vm193, %v180
  %195 = vst.msk [vmem:[%s3 + $0x8] sm:$0xff] %vm193, %v181
  %196 = vst.msk [vmem:[%s3 + $0x10] sm:$0xff] %vm193, %v182
  %197 = vst.msk [vmem:[%s3 + $0x18] sm:$0xff] %vm193, %v183
  %198 = vst.msk [vmem:[%s3 + $0x20] sm:$0xff] %vm193, %v184
  %199 = vst.msk [vmem:[%s3 + $0x28] sm:$0xff] %vm193, %v185
  %200 = vst.msk [vmem:[%s3 + $0x30] sm:$0xff] %vm193, %v186
  %201 = vst.msk [vmem:[%s3 + $0x38] sm:$0xff] %vm193, %v187
  %202 = vst.msk [vmem:[%s3 + $0x40] sm:$0xff] %vm193, %v188
  %203 = vst.msk [vmem:[%s3 + $0x48] sm:$0xff] %vm193, %v189
  %204 = vst.msk [vmem:[%s3 + $0x50] sm:$0xff] %vm193, %v190
  %205 = vst.msk [vmem:[%s3 + $0x58] sm:$0xff] %vm193, %v191
  %vm206 = vcmask 254976
  %207 = vst.msk [vmem:[%s3 + $0x60] sm:$0x3] %vm206, %v192
  // Predicated region
  $region14: #{squeezenet2d_forward.34} parent=0 // pred_check
    _
  $region15: #{squeezenet2d_forward.34} parent=0 // pred_check_branch
    %209 = sbr.rel (0) target = $region17
  $region16: #{squeezenet2d_forward.34} parent=0 // pred_region
    _
  $region17: #{squeezenet2d_forward.34} parent=0 // pred_fallthru
    _
  // Predicated region
  $region18: #{squeezenet2d_forward.34} parent=0 // pred_check
    _
  $region19: #{squeezenet2d_forward.34} parent=0 // pred_check_branch
    %211 = sbr.rel (0) target = $region21
  $region20: #{squeezenet2d_forward.34} parent=0 // pred_region
    _
  $region21: #{squeezenet2d_forward.34} parent=0 // pred_fallthru
    _

// kernel: squeezenet2d_forward.36
$region0: #{squeezenet2d_forward.36}
  #allocation0 [shape = 'u32[]', space=smem, size = 0x4, offset = 0x4, fixed_abs, tag = 'smem constant byte address 0x4 - core index']
  #allocation1 [shape = 'u32[144,128]{1,0:T(1,128)}', space=vmem, size = 0x12000, scoped, tag = 'internal scratch']
  %s0 = inlined_call_operand.vmem [shape: f32[98,288], index: 0, kind: input, shape index: {}]
  %s1 = inlined_call_operand.vmem [shape: f32[288,128], index: 1, kind: input, shape index: {}]
  %s2 = inlined_call_operand.vmem [shape: f32[1,128], index: 2, kind: input, shape index: {}]
  %s3 = inlined_call_operand.vmem [shape: f32[98,128], index: 3, kind: output, shape index: {}]
  %s4 = sld [smem:[#allocation0]]
  $region22: #{squeezenet2d_forward.36} parent=0
    _
  %s6 = ssub.s32 1, %s4
  %s7 = scalar_select 0, %s6, %s4
  // Predicated region
  $region2: #{squeezenet2d_forward.36} parent=0 // pred_check
    _
  $region3: #{squeezenet2d_forward.36} parent=0 // pred_check_branch
    %9 = sbr.rel (0) target = $region5
  $region4: #{squeezenet2d_forward.36} parent=0 // pred_region
    _
  $region5: #{squeezenet2d_forward.36} parent=0 // pred_fallthru
    _
  // Predicated region
  $region6: #{squeezenet2d_forward.36} parent=0 // pred_check
    _
  $region7: #{squeezenet2d_forward.36} parent=0 // pred_check_branch
    %11 = sbr.rel (0) target = $region9
  $region8: #{squeezenet2d_forward.36} parent=0 // pred_region
    _
  $region9: #{squeezenet2d_forward.36} parent=0 // pred_fallthru
    _
  // Predicated region
  $region10: #{squeezenet2d_forward.36} parent=0 // pred_check
    _
  $region11: #{squeezenet2d_forward.36} parent=0 // pred_check_branch
    %13 = sbr.rel (0) target = $region13
  $region12: #{squeezenet2d_forward.36} parent=0 // pred_region
    _
  $region13: #{squeezenet2d_forward.36} parent=0 // pred_fallthru
    _
  %v14 = vld [vmem:[%s0] sm:$0xff]
  %v15 = vld [vmem:[%s0 + $0x8] sm:$0xff]
  %v16 = vld [vmem:[%s0 + $0x10] sm:$0xff]
  %v17 = vld [vmem:[%s0 + $0x18] sm:$0xff]
  %v18 = vld [vmem:[%s0 + $0x20] sm:$0xff]
  %v19 = vld [vmem:[%s0 + $0x28] sm:$0xff]
  %v20 = vld [vmem:[%s0 + $0x30] sm:$0xff]
  %v21 = vld [vmem:[%s0 + $0x38] sm:$0xff]
  %v22 = vld [vmem:[%s0 + $0x40] sm:$0xff]
  %v23 = vld [vmem:[%s0 + $0x48] sm:$0xff]
  %v24 = vld [vmem:[%s0 + $0x50] sm:$0xff]
  %v25 = vld [vmem:[%s0 + $0x58] sm:$0xff]
  %v26 = vld [vmem:[%s0 + $0x60] sm:$0xff]
  %v27 = vld [vmem:[%s0 + $0x68] sm:$0xff]
  %v28 = vld [vmem:[%s0 + $0x70] sm:$0xff]
  %v29 = vld [vmem:[%s0 + $0x78] sm:$0xff]
  %v30 = vld [vmem:[%s0 + $0x80] sm:$0xff]
  %v31 = vld [vmem:[%s0 + $0x88] sm:$0xff]
  %v32 = vld [vmem:[%s0 + $0x90] sm:$0xff]
  %v33 = vld [vmem:[%s0 + $0x98] sm:$0xff]
  %v34 = vld [vmem:[%s0 + $0xa0] sm:$0xff]
  %v35 = vld [vmem:[%s0 + $0xa8] sm:$0xff]
  %v36 = vld [vmem:[%s0 + $0xb0] sm:$0xff]
  %v37 = vld [vmem:[%s0 + $0xb8] sm:$0xff]
  %v38 = vld [vmem:[%s0 + $0xc0] sm:$0xff]
  %v39 = vld [vmem:[%s0 + $0xc8] sm:$0xff]
  %v40 = vld [vmem:[%s0 + $0xd0] sm:$0xff]
  %v41 = vld [vmem:[%s0 + $0xd8] sm:$0xff]
  %v42 = vld [vmem:[%s0 + $0xe0] sm:$0xff]
  %v43 = vld [vmem:[%s0 + $0xe8] sm:$0xff]
  %v44 = vld [vmem:[%s0 + $0xf0] sm:$0xff]
  %v45 = vld [vmem:[%s0 + $0xf8] sm:$0xff]
  %v46 = vld [vmem:[%s0 + $0x100] sm:$0xff]
  %v47 = vld [vmem:[%s0 + $0x108] sm:$0xff]
  %v48 = vld [vmem:[%s0 + $0x110] sm:$0xff]
  %v49 = vld [vmem:[%s0 + $0x118] sm:$0xff]
  %v50 = vld [vmem:[%s0 + $0x120] sm:$0x3]
  %v51 = vld [vmem:[%s0 + $0x128] sm:$0x3]
  %v52 = vld [vmem:[%s0 + $0x130] sm:$0x3]
  %v53 = vld [vmem:[%s1] sm:$0xff]
  %v54 = vld [vmem:[%s1 + $0x8] sm:$0xff]
  %v55 = vld [vmem:[%s1 + $0x10] sm:$0xff]
  %v56 = vld [vmem:[%s1 + $0x18] sm:$0xff]
  %v57 = vld [vmem:[%s1 + $0x20] sm:$0xff]
  %v58 = vld [vmem:[%s1 + $0x28] sm:$0xff]
  %v59 = vld [vmem:[%s1 + $0x30] sm:$0xff]
  %v60 = vld [vmem:[%s1 + $0x38] sm:$0xff]
  %v61 = vld [vmem:[%s1 + $0x40] sm:$0xff]
  %v62 = vld [vmem:[%s1 + $0x48] sm:$0xff]
  %v63 = vld [vmem:[%s1 + $0x50] sm:$0xff]
  %v64 = vld [vmem:[%s1 + $0x58] sm:$0xff]
  %v65 = vld [vmem:[%s1 + $0x60] sm:$0xff]
  %v66 = vld [vmem:[%s1 + $0x68] sm:$0xff]
  %v67 = vld [vmem:[%s1 + $0x70] sm:$0xff]
  %v68 = vld [vmem:[%s1 + $0x78] sm:$0xff]
  %v69 = vld [vmem:[%s1 + $0x80] sm:$0xff]
  %v70 = vld [vmem:[%s1 + $0x88] sm:$0xff]
  %v71 = vld [vmem:[%s1 + $0x90] sm:$0xff]
  %v72 = vld [vmem:[%s1 + $0x98] sm:$0xff]
  %v73 = vld [vmem:[%s1 + $0xa0] sm:$0xff]
  %v74 = vld [vmem:[%s1 + $0xa8] sm:$0xff]
  %v75 = vld [vmem:[%s1 + $0xb0] sm:$0xff]
  %v76 = vld [vmem:[%s1 + $0xb8] sm:$0xff]
  %v77 = vld [vmem:[%s1 + $0xc0] sm:$0xff]
  %v78 = vld [vmem:[%s1 + $0xc8] sm:$0xff]
  %v79 = vld [vmem:[%s1 + $0xd0] sm:$0xff]
  %v80 = vld [vmem:[%s1 + $0xd8] sm:$0xff]
  %v81 = vld [vmem:[%s1 + $0xe0] sm:$0xff]
  %v82 = vld [vmem:[%s1 + $0xe8] sm:$0xff]
  %v83 = vld [vmem:[%s1 + $0xf0] sm:$0xff]
  %v84 = vld [vmem:[%s1 + $0xf8] sm:$0xff]
  %v85 = vld [vmem:[%s1 + $0x100] sm:$0xff]
  %v86 = vld [vmem:[%s1 + $0x108] sm:$0xff]
  %v87 = vld [vmem:[%s1 + $0x110] sm:$0xff]
  %v88 = vld [vmem:[%s1 + $0x118] sm:$0xff]
  %v89 = vld [vmem:[%s2] sm:$0x1]
  %v91 = vlaneseq
  %v92 = vshrl.u32 %v91, 7
  %v93 = vsub.s32 0, %v92
  %v94 = vrot.slane %v89, %v93
  %vm96 = vcmask 261120
  %v98 = vsel %vm96, %v16, 0
  %v101 = vsel %vm96, %v19, 0
  %v104 = vsel %vm96, %v22, 0
  %v107 = vsel %vm96, %v25, 0
  %v110 = vsel %vm96, %v28, 0
  %v113 = vsel %vm96, %v31, 0
  %v116 = vsel %vm96, %v34, 0
  %v119 = vsel %vm96, %v37, 0
  %v122 = vsel %vm96, %v40, 0
  %v125 = vsel %vm96, %v43, 0
  %v128 = vsel %vm96, %v46, 0
  %v131 = vsel %vm96, %v49, 0
  %v134 = vsel %vm96, %v52, 0
  %136 = vmatprep.subr.mxu0 0.0
  %137 = vmatpush1.msra.mxu0 %v53
  %138 = vmatprep.subr.mxu0 0.0
  %139 = vmatpush1.msra.mxu0 %v54
  %140 = vmatprep.subr.mxu0 0.0
  %141 = vmatpush1.msra.mxu0 %v55
  %142 = vmatprep.subr.mxu0 0.0
  %143 = vmatpush1.msra.mxu0 %v56
  %144 = vmatprep.subr.mxu0 0.0
  %145 = vmatpush1.msra.mxu0 %v57
  %146 = vmatprep.subr.mxu0 0.0
  %147 = vmatpush1.msra.mxu0 %v58
  %148 = vmatprep.subr.mxu0 0.0
  %149 = vmatpush1.msra.mxu0 %v59
  %150 = vmatprep.subr.mxu0 0.0
  %151 = vmatpush1.msra.mxu0 %v60
  %152 = vmatprep.subr.mxu0 0.0
  %153 = vmatpush1.msra.mxu0 %v61
  %154 = vmatprep.subr.mxu0 0.0
  %155 = vmatpush1.msra.mxu0 %v62
  %156 = vmatprep.subr.mxu0 0.0
  %157 = vmatpush1.msra.mxu0 %v63
  %158 = vmatprep.subr.mxu0 0.0
  %159 = vmatpush1.msra.mxu0 %v64
  %160 = vmatprep.subr.mxu0 0.0
  %161 = vmatpush1.msra.mxu0 %v65
  %162 = vmatprep.subr.mxu0 0.0
  %163 = vmatpush1.msra.mxu0 %v66
  %164 = vmatprep.subr.mxu0 0.0
  %165 = vmatpush1.msra.mxu0 %v67
  %166 = vmatprep.subr.mxu0 0.0
  %167 = vmatpush1.msra.mxu0 %v68
  %168 = vmatprep.subr.mxu0 0.0
  %169 = vmatpush1.msra.mxu0 %v69
  %170 = vmatprep.subr.mxu0 0.0
  %171 = vmatpush1.msra.mxu0 %v70
  %172 = vmatprep.subr.mxu0 0.0
  %173 = vmatpush1.msra.mxu0 %v71
  %174 = vmatprep.subr.mxu0 0.0
  %175 = vmatpush1.msra.mxu0 %v72
  %176 = vmatprep.subr.mxu0 0.0
  %177 = vmatpush1.msra.mxu0 %v73
  %178 = vmatprep.subr.mxu0 0.0
  %179 = vmatpush1.msra.mxu0 %v74
  %180 = vmatprep.subr.mxu0 0.0
  %181 = vmatpush1.msra.mxu0 %v75
  %182 = vmatprep.subr.mxu0 0.0
  %183 = vmatpush1.msra.mxu0 %v76
  %184 = vmatprep.subr.mxu0 0.0
  %185 = vmatpush1.msra.mxu0 %v77
  %186 = vmatprep.subr.mxu0 0.0
  %187 = vmatpush1.msra.mxu0 %v78
  %188 = vmatprep.subr.mxu0 0.0
  %189 = vmatpush1.msra.mxu0 %v79
  %190 = vmatprep.subr.mxu0 0.0
  %191 = vmatpush1.msra.mxu0 %v80
  %192 = vmatprep.subr.mxu0 0.0
  %193 = vmatpush1.msra.mxu0 %v81
  %194 = vmatprep.subr.mxu0 0.0
  %195 = vmatpush1.msra.mxu0 %v82
  %196 = vmatprep.subr.mxu0 0.0
  %197 = vmatpush1.msra.mxu0 %v83
  %198 = vmatprep.subr.mxu0 0.0
  %199 = vmatpush1.msra.mxu0 %v84
  %200 = vmatprep.mubr.f32.mxu0 %v15
  %201 = vmatmul.mubr.f32.gmra.mrb[0].mxu0 %v14
  %v202 = vpop.f32.mrb[0].mxu0
  %v203 = vadd.f32 %v94, %v202
  %v204 = vpop.f32.mrb[0].mxu0
  %205 = vmatprep.mubr.f32.mxu0 %v18
  %206 = vmatmul.mubr.f32.gmra.mrb[0].mxu0 %v17
  %v207 = vpop.f32.mrb[0].mxu0
  %v208 = vadd.f32 %v94, %v207
  %v209 = vpop.f32.mrb[0].mxu0
  %210 = vmatprep.mubr.f32.mxu0 %v21
  %211 = vmatmul.mubr.f32.gmra.mrb[0].mxu0 %v20
  %v212 = vpop.f32.mrb[0].mxu0
  %v213 = vadd.f32 %v94, %v212
  %v214 = vpop.f32.mrb[0].mxu0
  %215 = vmatprep.mubr.f32.mxu0 %v24
  %216 = vmatmul.mubr.f32.gmra.mrb[0].mxu0 %v23
  %v217 = vpop.f32.mrb[0].mxu0
  %v218 = vadd.f32 %v94, %v217
  %v219 = vpop.f32.mrb[0].mxu0
  %220 = vmatprep.mubr.f32.mxu0 %v27
  %221 = vmatmul.mubr.f32.gmra.mrb[0].mxu0 %v26
  %v222 = vpop.f32.mrb[0].mxu0
  %v223 = vadd.f32 %v94, %v222
  %v224 = vpop.f32.mrb[0].mxu0
  %225 = vmatprep.mubr.f32.mxu0 %v30
  %226 = vmatmul.mubr.f32.gmra.mrb[0].mxu0 %v29
  %v227 = vpop.f32.mrb[0].mxu0
  %v228 = vadd.f32 %v94, %v227
  %v229 = vpop.f32.mrb[0].mxu0
  %230 = vmatprep.mubr.f32.mxu0 %v33
  %231 = vmatmul.mubr.f32.gmra.mrb[0].mxu0 %v32
  %v232 = vpop.f32.mrb[0].mxu0
  %v233 = vadd.f32 %v94, %v232
  %v234 = vpop.f32.mrb[0].mxu0
  %235 = vmatprep.mubr.f32.mxu0 %v36
  %236 = vmatmul.mubr.f32.gmra.mrb[0].mxu0 %v35
  %v237 = vpop.f32.mrb[0].mxu0
  %v238 = vadd.f32 %v94, %v237
  %v239 = vpop.f32.mrb[0].mxu0
  %240 = vmatprep.mubr.f32.mxu0 %v39
  %241 = vmatmul.mubr.f32.gmra.mrb[0].mxu0 %v38
  %v242 = vpop.f32.mrb[0].mxu0
  %v243 = vadd.f32 %v94, %v242
  %v244 = vpop.f32.mrb[0].mxu0
  %245 = vmatprep.mubr.f32.mxu0 %v42
  %246 = vmatmul.mubr.f32.gmra.mrb[0].mxu0 %v41
  %v247 = vpop.f32.mrb[0].mxu0
  %v248 = vadd.f32 %v94, %v247
  %v249 = vpop.f32.mrb[0].mxu0
  %250 = vmatprep.mubr.f32.mxu0 %v45
  %251 = vmatmul.mubr.f32.gmra.mrb[0].mxu0 %v44
  %v252 = vpop.f32.mrb[0].mxu0
  %v253 = vadd.f32 %v94, %v252
  %v254 = vpop.f32.mrb[0].mxu0
  %255 = vmatprep.mubr.f32.mxu0 %v48
  %256 = vmatmul.mubr.f32.gmra.mrb[0].mxu0 %v47
  %v257 = vpop.f32.mrb[0].mxu0
  %v258 = vadd.f32 %v94, %v257
  %v259 = vpop.f32.mrb[0].mxu0
  %260 = vmatprep.mubr.f32.mxu0 %v51
  %261 = vmatmul.mubr.f32.gmra.mrb[0].mxu0 %v50
  %v262 = vpop.f32.mrb[0].mxu0
  %v263 = vadd.f32 %v94, %v262
  %v264 = vpop.f32.mrb[0].mxu0
  %265 = vdwg.mxu0
  %266 = vmatprep.subr.mxu0 0.0
  %267 = vmatpush1.msra.mxu0 %v85
  %268 = vmatprep.subr.mxu0 0.0
  %269 = vmatpush1.msra.mxu0 %v86
  %270 = vmatprep.subr.mxu0 0.0
  %271 = vmatpush1.msra.mxu0 %v87
  %272 = vmatprep.subr.mxu0 0.0
  %273 = vmatpush1.msra.mxu0 %v88
  %274 = vmatprep.subr.mxu0 0.0
  %275 = vmatpush1.msra.mxu0 0.0
  %276 = vmatprep.subr.mxu0 0.0
  %277 = vmatpush1.msra.mxu0 0.0
  %278 = vmatprep.subr.mxu0 0.0
  %279 = vmatpush1.msra.mxu0 0.0
  %280 = vmatprep.subr.mxu0 0.0
  %281 = vmatpush1.msra.mxu0 0.0
  %282 = vmatprep.subr.mxu0 0.0
  %283 = vmatpush1.msra.mxu0 0.0
  %284 = vmatprep.subr.mxu0 0.0
  %285 = vmatpush1.msra.mxu0 0.0
  %286 = vmatprep.subr.mxu0 0.0
  %287 = vmatpush1.msra.mxu0 0.0
  %288 = vmatprep.subr.mxu0 0.0
  %289 = vmatpush1.msra.mxu0 0.0
  %290 = vmatprep.subr.mxu0 0.0
  %291 = vmatpush1.msra.mxu0 0.0
  %292 = vmatprep.subr.mxu0 0.0
  %293 = vmatpush1.msra.mxu0 0.0
  %294 = vmatprep.subr.mxu0 0.0
  %295 = vmatpush1.msra.mxu0 0.0
  %296 = vmatprep.subr.mxu0 0.0
  %297 = vmatpush1.msra.mxu0 0.0
  %298 = vmatprep.subr.mxu0 0.0
  %299 = vmatpush1.msra.mxu0 0.0
  %300 = vmatprep.subr.mxu0 0.0
  %301 = vmatpush1.msra.mxu0 0.0
  %302 = vmatprep.subr.mxu0 0.0
  %303 = vmatpush1.msra.mxu0 0.0
  %304 = vmatprep.subr.mxu0 0.0
  %305 = vmatpush1.msra.mxu0 0.0
  %306 = vmatprep.subr.mxu0 0.0
  %307 = vmatpush1.msra.mxu0 0.0
  %308 = vmatprep.subr.mxu0 0.0
  %309 = vmatpush1.msra.mxu0 0.0
  %310 = vmatprep.subr.mxu0 0.0
  %311 = vmatpush1.msra.mxu0 0.0
  %312 = vmatprep.subr.mxu0 0.0
  %313 = vmatpush1.msra.mxu0 0.0
  %314 = vmatprep.subr.mxu0 0.0
  %315 = vmatpush1.msra.mxu0 0.0
  %316 = vmatprep.subr.mxu0 0.0
  %317 = vmatpush1.msra.mxu0 0.0
  %318 = vmatprep.subr.mxu0 0.0
  %319 = vmatpush1.msra.mxu0 0.0
  %320 = vmatprep.subr.mxu0 0.0
  %321 = vmatpush1.msra.mxu0 0.0
  %322 = vmatprep.subr.mxu0 0.0
  %323 = vmatpush1.msra.mxu0 0.0
  %324 = vmatprep.subr.mxu0 0.0
  %325 = vmatpush1.msra.mxu0 0.0
  %326 = vmatprep.subr.mxu0 0.0
  %327 = vmatpush1.msra.mxu0 0.0
  %328 = vmatprep.subr.mxu0 0.0
  %329 = vmatpush1.msra.mxu0 0.0
  %330 = vmatprep.mubr.f32.mxu0 0.0
  %331 = vmatmul.mubr.f32.gmra.mrb[0].mxu0 %v98
  %v332 = vpop.f32.mrb[0].mxu0
  %v333 = vadd.f32 %v203, %v332
  %v334 = vpop.f32.mrb[0].mxu0
  %335 = vmatprep.mubr.f32.mxu0 0.0
  %336 = vmatmul.mubr.f32.gmra.mrb[0].mxu0 %v101
  %v337 = vpop.f32.mrb[0].mxu0
  %v338 = vadd.f32 %v208, %v337
  %v339 = vpop.f32.mrb[0].mxu0
  %340 = vmatprep.mubr.f32.mxu0 0.0
  %341 = vmatmul.mubr.f32.gmra.mrb[0].mxu0 %v104
  %v342 = vpop.f32.mrb[0].mxu0
  %v343 = vadd.f32 %v213, %v342
  %v344 = vpop.f32.mrb[0].mxu0
  %345 = vmatprep.mubr.f32.mxu0 0.0
  %346 = vmatmul.mubr.f32.gmra.mrb[0].mxu0 %v107
  %v347 = vpop.f32.mrb[0].mxu0
  %v348 = vadd.f32 %v218, %v347
  %v349 = vpop.f32.mrb[0].mxu0
  %350 = vmatprep.mubr.f32.mxu0 0.0
  %351 = vmatmul.mubr.f32.gmra.mrb[0].mxu0 %v110
  %v352 = vpop.f32.mrb[0].mxu0
  %v353 = vadd.f32 %v223, %v352
  %v354 = vpop.f32.mrb[0].mxu0
  %355 = vmatprep.mubr.f32.mxu0 0.0
  %356 = vmatmul.mubr.f32.gmra.mrb[0].mxu0 %v113
  %v357 = vpop.f32.mrb[0].mxu0
  %v358 = vadd.f32 %v228, %v357
  %v359 = vpop.f32.mrb[0].mxu0
  %360 = vmatprep.mubr.f32.mxu0 0.0
  %361 = vmatmul.mubr.f32.gmra.mrb[0].mxu0 %v116
  %v362 = vpop.f32.mrb[0].mxu0
  %v363 = vadd.f32 %v233, %v362
  %v364 = vpop.f32.mrb[0].mxu0
  %365 = vmatprep.mubr.f32.mxu0 0.0
  %366 = vmatmul.mubr.f32.gmra.mrb[0].mxu0 %v119
  %v367 = vpop.f32.mrb[0].mxu0
  %v368 = vadd.f32 %v238, %v367
  %v369 = vpop.f32.mrb[0].mxu0
  %370 = vmatprep.mubr.f32.mxu0 0.0
  %371 = vmatmul.mubr.f32.gmra.mrb[0].mxu0 %v122
  %v372 = vpop.f32.mrb[0].mxu0
  %v373 = vadd.f32 %v243, %v372
  %v374 = vpop.f32.mrb[0].mxu0
  %375 = vmatprep.mubr.f32.mxu0 0.0
  %376 = vmatmul.mubr.f32.gmra.mrb[0].mxu0 %v125
  %v377 = vpop.f32.mrb[0].mxu0
  %v378 = vadd.f32 %v248, %v377
  %v379 = vpop.f32.mrb[0].mxu0
  %380 = vmatprep.mubr.f32.mxu0 0.0
  %381 = vmatmul.mubr.f32.gmra.mrb[0].mxu0 %v128
  %v382 = vpop.f32.mrb[0].mxu0
  %v383 = vadd.f32 %v253, %v382
  %v384 = vpop.f32.mrb[0].mxu0
  %385 = vmatprep.mubr.f32.mxu0 0.0
  %386 = vmatmul.mubr.f32.gmra.mrb[0].mxu0 %v131
  %v387 = vpop.f32.mrb[0].mxu0
  %v388 = vadd.f32 %v258, %v387
  %v389 = vpop.f32.mrb[0].mxu0
  %390 = vmatprep.mubr.f32.mxu0 0.0
  %391 = vmatmul.mubr.f32.gmra.mrb[0].mxu0 %v134
  %v392 = vpop.f32.mrb[0].mxu0
  %v393 = vadd.f32 %v263, %v392
  %v394 = vpop.f32.mrb[0].mxu0
  %395 = vdwg.mxu0
  %v396 = vmax.f32 %v333, 0.0
  %v397 = vmax.f32 %v338, 0.0
  %v398 = vmax.f32 %v343, 0.0
  %v399 = vmax.f32 %v348, 0.0
  %v400 = vmax.f32 %v353, 0.0
  %v401 = vmax.f32 %v358, 0.0
  %v402 = vmax.f32 %v363, 0.0
  %v403 = vmax.f32 %v368, 0.0
  %v404 = vmax.f32 %v373, 0.0
  %v405 = vmax.f32 %v378, 0.0
  %v406 = vmax.f32 %v383, 0.0
  %v407 = vmax.f32 %v388, 0.0
  %v408 = vmax.f32 %v393, 0.0
  %409 = vst [vmem:[%s3] sm:$0xff] %v396
  %410 = vst [vmem:[%s3 + $0x8] sm:$0xff] %v397
  %411 = vst [vmem:[%s3 + $0x10] sm:$0xff] %v398
  %412 = vst [vmem:[%s3 + $0x18] sm:$0xff] %v399
  %413 = vst [vmem:[%s3 + $0x20] sm:$0xff] %v400
  %414 = vst [vmem:[%s3 + $0x28] sm:$0xff] %v401
  %415 = vst [vmem:[%s3 + $0x30] sm:$0xff] %v402
  %416 = vst [vmem:[%s3 + $0x38] sm:$0xff] %v403
  %417 = vst [vmem:[%s3 + $0x40] sm:$0xff] %v404
  %418 = vst [vmem:[%s3 + $0x48] sm:$0xff] %v405
  %419 = vst [vmem:[%s3 + $0x50] sm:$0xff] %v406
  %420 = vst [vmem:[%s3 + $0x58] sm:$0xff] %v407
  %421 = vst [vmem:[%s3 + $0x60] sm:$0x3] %v408
  // Predicated region
  $region14: #{squeezenet2d_forward.36} parent=0 // pred_check
    _
  $region15: #{squeezenet2d_forward.36} parent=0 // pred_check_branch
    %423 = sbr.rel (0) target = $region17
  $region16: #{squeezenet2d_forward.36} parent=0 // pred_region
    _
  $region17: #{squeezenet2d_forward.36} parent=0 // pred_fallthru
    _
  // Predicated region
  $region18: #{squeezenet2d_forward.36} parent=0 // pred_check
    _
  $region19: #{squeezenet2d_forward.36} parent=0 // pred_check_branch
    %425 = sbr.rel (0) target = $region21
  $region20: #{squeezenet2d_forward.36} parent=0 // pred_region
    _
  $region21: #{squeezenet2d_forward.36} parent=0 // pred_fallthru
    _

// kernel: squeezenet2d_forward.37
$region0: #{squeezenet2d_forward.37}
  #allocation0 [shape = 'u32[]', space=smem, size = 0x4, offset = 0x4, fixed_abs, tag = 'smem constant byte address 0x4 - core index']
  #allocation1 [shape = 'u32[144,128]{1,0:T(1,128)}', space=vmem, size = 0x12000, scoped, tag = 'internal scratch']
  %s0 = inlined_call_operand.vmem [shape: f32[98,256], index: 0, kind: input, shape index: {}]
  %s1 = inlined_call_operand.vmem [shape: f32[256,32], index: 1, kind: input, shape index: {}]
  %s2 = inlined_call_operand.vmem [shape: f32[1,32], index: 2, kind: input, shape index: {}]
  %s3 = inlined_call_operand.vmem [shape: f32[98,32], index: 3, kind: output, shape index: {}]
  %s4 = sld [smem:[#allocation0]]
  $region22: #{squeezenet2d_forward.37} parent=0
    _
  %s6 = ssub.s32 1, %s4
  %s7 = scalar_select 0, %s6, %s4
  // Predicated region
  $region2: #{squeezenet2d_forward.37} parent=0 // pred_check
    _
  $region3: #{squeezenet2d_forward.37} parent=0 // pred_check_branch
    %9 = sbr.rel (0) target = $region5
  $region4: #{squeezenet2d_forward.37} parent=0 // pred_region
    _
  $region5: #{squeezenet2d_forward.37} parent=0 // pred_fallthru
    _
  // Predicated region
  $region6: #{squeezenet2d_forward.37} parent=0 // pred_check
    _
  $region7: #{squeezenet2d_forward.37} parent=0 // pred_check_branch
    %11 = sbr.rel (0) target = $region9
  $region8: #{squeezenet2d_forward.37} parent=0 // pred_region
    _
  $region9: #{squeezenet2d_forward.37} parent=0 // pred_fallthru
    _
  // Predicated region
  $region10: #{squeezenet2d_forward.37} parent=0 // pred_check
    _
  $region11: #{squeezenet2d_forward.37} parent=0 // pred_check_branch
    %13 = sbr.rel (0) target = $region13
  $region12: #{squeezenet2d_forward.37} parent=0 // pred_region
    _
  $region13: #{squeezenet2d_forward.37} parent=0 // pred_fallthru
    _
  %v14 = vld [vmem:[%s0] sm:$0xff]
  %v15 = vld [vmem:[%s0 + $0x8] sm:$0xff]
  %v16 = vld [vmem:[%s0 + $0x10] sm:$0xff]
  %v17 = vld [vmem:[%s0 + $0x18] sm:$0xff]
  %v18 = vld [vmem:[%s0 + $0x20] sm:$0xff]
  %v19 = vld [vmem:[%s0 + $0x28] sm:$0xff]
  %v20 = vld [vmem:[%s0 + $0x30] sm:$0xff]
  %v21 = vld [vmem:[%s0 + $0x38] sm:$0xff]
  %v22 = vld [vmem:[%s0 + $0x40] sm:$0xff]
  %v23 = vld [vmem:[%s0 + $0x48] sm:$0xff]
  %v24 = vld [vmem:[%s0 + $0x50] sm:$0xff]
  %v25 = vld [vmem:[%s0 + $0x58] sm:$0xff]
  %v26 = vld [vmem:[%s0 + $0x60] sm:$0xff]
  %v27 = vld [vmem:[%s0 + $0x68] sm:$0xff]
  %v28 = vld [vmem:[%s0 + $0x70] sm:$0xff]
  %v29 = vld [vmem:[%s0 + $0x78] sm:$0xff]
  %v30 = vld [vmem:[%s0 + $0x80] sm:$0xff]
  %v31 = vld [vmem:[%s0 + $0x88] sm:$0xff]
  %v32 = vld [vmem:[%s0 + $0x90] sm:$0xff]
  %v33 = vld [vmem:[%s0 + $0x98] sm:$0xff]
  %v34 = vld [vmem:[%s0 + $0xa0] sm:$0xff]
  %v35 = vld [vmem:[%s0 + $0xa8] sm:$0xff]
  %v36 = vld [vmem:[%s0 + $0xb0] sm:$0xff]
  %v37 = vld [vmem:[%s0 + $0xb8] sm:$0xff]
  %v38 = vld [vmem:[%s0 + $0xc0] sm:$0x3]
  %v39 = vld [vmem:[%s0 + $0xc8] sm:$0x3]
  %v40 = vld [vmem:[%s1] sm:$0xff]
  %v41 = vld [vmem:[%s1 + $0x8] sm:$0xff]
  %v42 = vld [vmem:[%s1 + $0x10] sm:$0xff]
  %v43 = vld [vmem:[%s1 + $0x18] sm:$0xff]
  %v44 = vld [vmem:[%s1 + $0x20] sm:$0xff]
  %v45 = vld [vmem:[%s1 + $0x28] sm:$0xff]
  %v46 = vld [vmem:[%s1 + $0x30] sm:$0xff]
  %v47 = vld [vmem:[%s1 + $0x38] sm:$0xff]
  %v48 = vld [vmem:[%s1 + $0x40] sm:$0xff]
  %v49 = vld [vmem:[%s1 + $0x48] sm:$0xff]
  %v50 = vld [vmem:[%s1 + $0x50] sm:$0xff]
  %v51 = vld [vmem:[%s1 + $0x58] sm:$0xff]
  %v52 = vld [vmem:[%s1 + $0x60] sm:$0xff]
  %v53 = vld [vmem:[%s1 + $0x68] sm:$0xff]
  %v54 = vld [vmem:[%s1 + $0x70] sm:$0xff]
  %v55 = vld [vmem:[%s1 + $0x78] sm:$0xff]
  %v56 = vld [vmem:[%s1 + $0x80] sm:$0xff]
  %v57 = vld [vmem:[%s1 + $0x88] sm:$0xff]
  %v58 = vld [vmem:[%s1 + $0x90] sm:$0xff]
  %v59 = vld [vmem:[%s1 + $0x98] sm:$0xff]
  %v60 = vld [vmem:[%s1 + $0xa0] sm:$0xff]
  %v61 = vld [vmem:[%s1 + $0xa8] sm:$0xff]
  %v62 = vld [vmem:[%s1 + $0xb0] sm:$0xff]
  %v63 = vld [vmem:[%s1 + $0xb8] sm:$0xff]
  %v64 = vld [vmem:[%s1 + $0xc0] sm:$0xff]
  %v65 = vld [vmem:[%s1 + $0xc8] sm:$0xff]
  %v66 = vld [vmem:[%s1 + $0xd0] sm:$0xff]
  %v67 = vld [vmem:[%s1 + $0xd8] sm:$0xff]
  %v68 = vld [vmem:[%s1 + $0xe0] sm:$0xff]
  %v69 = vld [vmem:[%s1 + $0xe8] sm:$0xff]
  %v70 = vld [vmem:[%s1 + $0xf0] sm:$0xff]
  %v71 = vld [vmem:[%s1 + $0xf8] sm:$0xff]
  %v72 = vld [vmem:[%s2] sm:$0x1]
  %v74 = vlaneseq
  %v75 = vshrl.u32 %v74, 7
  %v76 = vsub.s32 0, %v75
  %v77 = vrot.slane %v72, %v76
  %79 = vmatprep.subr.mxu0 0.0
  %80 = vmatpush1.msra.mxu0 %v40
  %81 = vmatprep.subr.mxu0 0.0
  %82 = vmatpush1.msra.mxu0 %v41
  %83 = vmatprep.subr.mxu0 0.0
  %84 = vmatpush1.msra.mxu0 %v42
  %85 = vmatprep.subr.mxu0 0.0
  %86 = vmatpush1.msra.mxu0 %v43
  %87 = vmatprep.subr.mxu0 0.0
  %88 = vmatpush1.msra.mxu0 %v44
  %89 = vmatprep.subr.mxu0 0.0
  %90 = vmatpush1.msra.mxu0 %v45
  %91 = vmatprep.subr.mxu0 0.0
  %92 = vmatpush1.msra.mxu0 %v46
  %93 = vmatprep.subr.mxu0 0.0
  %94 = vmatpush1.msra.mxu0 %v47
  %95 = vmatprep.subr.mxu0 0.0
  %96 = vmatpush1.msra.mxu0 %v48
  %97 = vmatprep.subr.mxu0 0.0
  %98 = vmatpush1.msra.mxu0 %v49
  %99 = vmatprep.subr.mxu0 0.0
  %100 = vmatpush1.msra.mxu0 %v50
  %101 = vmatprep.subr.mxu0 0.0
  %102 = vmatpush1.msra.mxu0 %v51
  %103 = vmatprep.subr.mxu0 0.0
  %104 = vmatpush1.msra.mxu0 %v52
  %105 = vmatprep.subr.mxu0 0.0
  %106 = vmatpush1.msra.mxu0 %v53
  %107 = vmatprep.subr.mxu0 0.0
  %108 = vmatpush1.msra.mxu0 %v54
  %109 = vmatprep.subr.mxu0 0.0
  %110 = vmatpush1.msra.mxu0 %v55
  %111 = vmatprep.subr.mxu0 0.0
  %112 = vmatpush1.msra.mxu0 %v56
  %113 = vmatprep.subr.mxu0 0.0
  %114 = vmatpush1.msra.mxu0 %v57
  %115 = vmatprep.subr.mxu0 0.0
  %116 = vmatpush1.msra.mxu0 %v58
  %117 = vmatprep.subr.mxu0 0.0
  %118 = vmatpush1.msra.mxu0 %v59
  %119 = vmatprep.subr.mxu0 0.0
  %120 = vmatpush1.msra.mxu0 %v60
  %121 = vmatprep.subr.mxu0 0.0
  %122 = vmatpush1.msra.mxu0 %v61
  %123 = vmatprep.subr.mxu0 0.0
  %124 = vmatpush1.msra.mxu0 %v62
  %125 = vmatprep.subr.mxu0 0.0
  %126 = vmatpush1.msra.mxu0 %v63
  %127 = vmatprep.subr.mxu0 0.0
  %128 = vmatpush1.msra.mxu0 %v64
  %129 = vmatprep.subr.mxu0 0.0
  %130 = vmatpush1.msra.mxu0 %v65
  %131 = vmatprep.subr.mxu0 0.0
  %132 = vmatpush1.msra.mxu0 %v66
  %133 = vmatprep.subr.mxu0 0.0
  %134 = vmatpush1.msra.mxu0 %v67
  %135 = vmatprep.subr.mxu0 0.0
  %136 = vmatpush1.msra.mxu0 %v68
  %137 = vmatprep.subr.mxu0 0.0
  %138 = vmatpush1.msra.mxu0 %v69
  %139 = vmatprep.subr.mxu0 0.0
  %140 = vmatpush1.msra.mxu0 %v70
  %141 = vmatprep.subr.mxu0 0.0
  %142 = vmatpush1.msra.mxu0 %v71
  %143 = vmatprep.mubr.f32.mxu0 %v15
  %144 = vmatmul.mubr.f32.gmra.mrb[0].mxu0 %v14
  %v145 = vpop.f32.mrb[0].mxu0
  %v146 = vadd.f32 %v77, %v145
  %v147 = vpop.f32.mrb[0].mxu0
  %148 = vmatprep.mubr.f32.mxu0 %v17
  %149 = vmatmul.mubr.f32.gmra.mrb[0].mxu0 %v16
  %v150 = vpop.f32.mrb[0].mxu0
  %v151 = vadd.f32 %v77, %v150
  %v152 = vpop.f32.mrb[0].mxu0
  %153 = vmatprep.mubr.f32.mxu0 %v19
  %154 = vmatmul.mubr.f32.gmra.mrb[0].mxu0 %v18
  %v155 = vpop.f32.mrb[0].mxu0
  %v156 = vadd.f32 %v77, %v155
  %v157 = vpop.f32.mrb[0].mxu0
  %158 = vmatprep.mubr.f32.mxu0 %v21
  %159 = vmatmul.mubr.f32.gmra.mrb[0].mxu0 %v20
  %v160 = vpop.f32.mrb[0].mxu0
  %v161 = vadd.f32 %v77, %v160
  %v162 = vpop.f32.mrb[0].mxu0
  %163 = vmatprep.mubr.f32.mxu0 %v23
  %164 = vmatmul.mubr.f32.gmra.mrb[0].mxu0 %v22
  %v165 = vpop.f32.mrb[0].mxu0
  %v166 = vadd.f32 %v77, %v165
  %v167 = vpop.f32.mrb[0].mxu0
  %168 = vmatprep.mubr.f32.mxu0 %v25
  %169 = vmatmul.mubr.f32.gmra.mrb[0].mxu0 %v24
  %v170 = vpop.f32.mrb[0].mxu0
  %v171 = vadd.f32 %v77, %v170
  %v172 = vpop.f32.mrb[0].mxu0
  %173 = vmatprep.mubr.f32.mxu0 %v27
  %174 = vmatmul.mubr.f32.gmra.mrb[0].mxu0 %v26
  %v175 = vpop.f32.mrb[0].mxu0
  %v176 = vadd.f32 %v77, %v175
  %v177 = vpop.f32.mrb[0].mxu0
  %178 = vmatprep.mubr.f32.mxu0 %v29
  %179 = vmatmul.mubr.f32.gmra.mrb[0].mxu0 %v28
  %v180 = vpop.f32.mrb[0].mxu0
  %v181 = vadd.f32 %v77, %v180
  %v182 = vpop.f32.mrb[0].mxu0
  %183 = vmatprep.mubr.f32.mxu0 %v31
  %184 = vmatmul.mubr.f32.gmra.mrb[0].mxu0 %v30
  %v185 = vpop.f32.mrb[0].mxu0
  %v186 = vadd.f32 %v77, %v185
  %v187 = vpop.f32.mrb[0].mxu0
  %188 = vmatprep.mubr.f32.mxu0 %v33
  %189 = vmatmul.mubr.f32.gmra.mrb[0].mxu0 %v32
  %v190 = vpop.f32.mrb[0].mxu0
  %v191 = vadd.f32 %v77, %v190
  %v192 = vpop.f32.mrb[0].mxu0
  %193 = vmatprep.mubr.f32.mxu0 %v35
  %194 = vmatmul.mubr.f32.gmra.mrb[0].mxu0 %v34
  %v195 = vpop.f32.mrb[0].mxu0
  %v196 = vadd.f32 %v77, %v195
  %v197 = vpop.f32.mrb[0].mxu0
  %198 = vmatprep.mubr.f32.mxu0 %v37
  %199 = vmatmul.mubr.f32.gmra.mrb[0].mxu0 %v36
  %v200 = vpop.f32.mrb[0].mxu0
  %v201 = vadd.f32 %v77, %v200
  %v202 = vpop.f32.mrb[0].mxu0
  %203 = vmatprep.mubr.f32.mxu0 %v39
  %204 = vmatmul.mubr.f32.gmra.mrb[0].mxu0 %v38
  %v205 = vpop.f32.mrb[0].mxu0
  %v206 = vadd.f32 %v77, %v205
  %v207 = vpop.f32.mrb[0].mxu0
  %208 = vdwg.mxu0
  %v209 = vmax.f32 %v146, 0.0
  %v210 = vmax.f32 %v151, 0.0
  %v211 = vmax.f32 %v156, 0.0
  %v212 = vmax.f32 %v161, 0.0
  %v213 = vmax.f32 %v166, 0.0
  %v214 = vmax.f32 %v171, 0.0
  %v215 = vmax.f32 %v176, 0.0
  %v216 = vmax.f32 %v181, 0.0
  %v217 = vmax.f32 %v186, 0.0
  %v218 = vmax.f32 %v191, 0.0
  %v219 = vmax.f32 %v196, 0.0
  %v220 = vmax.f32 %v201, 0.0
  %v221 = vmax.f32 %v206, 0.0
  %vm222 = vcmask 261120
  %223 = vst.msk [vmem:[%s3] sm:$0xff] %vm222, %v209
  %224 = vst.msk [vmem:[%s3 + $0x8] sm:$0xff] %vm222, %v210
  %225 = vst.msk [vmem:[%s3 + $0x10] sm:$0xff] %vm222, %v211
  %226 = vst.msk [vmem:[%s3 + $0x18] sm:$0xff] %vm222, %v212
  %227 = vst.msk [vmem:[%s3 + $0x20] sm:$0xff] %vm222, %v213
  %228 = vst.msk [vmem:[%s3 + $0x28] sm:$0xff] %vm222, %v214
  %229 = vst.msk [vmem:[%s3 + $0x30] sm:$0xff] %vm222, %v215
  %230 = vst.msk [vmem:[%s3 + $0x38] sm:$0xff] %vm222, %v216
  %231 = vst.msk [vmem:[%s3 + $0x40] sm:$0xff] %vm222, %v217
  %232 = vst.msk [vmem:[%s3 + $0x48] sm:$0xff] %vm222, %v218
  %233 = vst.msk [vmem:[%s3 + $0x50] sm:$0xff] %vm222, %v219
  %234 = vst.msk [vmem:[%s3 + $0x58] sm:$0xff] %vm222, %v220
  %vm235 = vcmask 254976
  %236 = vst.msk [vmem:[%s3 + $0x60] sm:$0x3] %vm235, %v221
  // Predicated region
  $region14: #{squeezenet2d_forward.37} parent=0 // pred_check
    _
  $region15: #{squeezenet2d_forward.37} parent=0 // pred_check_branch
    %238 = sbr.rel (0) target = $region17
  $region16: #{squeezenet2d_forward.37} parent=0 // pred_region
    _
  $region17: #{squeezenet2d_forward.37} parent=0 // pred_fallthru
    _
  // Predicated region
  $region18: #{squeezenet2d_forward.37} parent=0 // pred_check
    _
  $region19: #{squeezenet2d_forward.37} parent=0 // pred_check_branch
    %240 = sbr.rel (0) target = $region21
  $region20: #{squeezenet2d_forward.37} parent=0 // pred_region
    _
  $region21: #{squeezenet2d_forward.37} parent=0 // pred_fallthru
    _

// kernel: squeezenet2d_forward.35
$region0: #{squeezenet2d_forward.35}
  #allocation0 [shape = 'u32[]', space=smem, size = 0x4, offset = 0x4, fixed_abs, tag = 'smem constant byte address 0x4 - core index']
  #allocation1 [shape = 'u32[144,128]{1,0:T(1,128)}', space=vmem, size = 0x12000, scoped, tag = 'internal scratch']
  %s0 = inlined_call_operand.vmem [shape: f32[98,32], index: 0, kind: input, shape index: {}]
  %s1 = inlined_call_operand.vmem [shape: f32[32,128], index: 1, kind: input, shape index: {}]
  %s2 = inlined_call_operand.vmem [shape: f32[1,128], index: 2, kind: input, shape index: {}]
  %s3 = inlined_call_operand.vmem [shape: f32[98,128], index: 3, kind: output, shape index: {}]
  %s4 = sld [smem:[#allocation0]]
  $region22: #{squeezenet2d_forward.35} parent=0
    _
  %s6 = ssub.s32 1, %s4
  %s7 = scalar_select 0, %s6, %s4
  // Predicated region
  $region2: #{squeezenet2d_forward.35} parent=0 // pred_check
    _
  $region3: #{squeezenet2d_forward.35} parent=0 // pred_check_branch
    %9 = sbr.rel (0) target = $region5
  $region4: #{squeezenet2d_forward.35} parent=0 // pred_region
    _
  $region5: #{squeezenet2d_forward.35} parent=0 // pred_fallthru
    _
  // Predicated region
  $region6: #{squeezenet2d_forward.35} parent=0 // pred_check
    _
  $region7: #{squeezenet2d_forward.35} parent=0 // pred_check_branch
    %11 = sbr.rel (0) target = $region9
  $region8: #{squeezenet2d_forward.35} parent=0 // pred_region
    _
  $region9: #{squeezenet2d_forward.35} parent=0 // pred_fallthru
    _
  // Predicated region
  $region10: #{squeezenet2d_forward.35} parent=0 // pred_check
    _
  $region11: #{squeezenet2d_forward.35} parent=0 // pred_check_branch
    %13 = sbr.rel (0) target = $region13
  $region12: #{squeezenet2d_forward.35} parent=0 // pred_region
    _
  $region13: #{squeezenet2d_forward.35} parent=0 // pred_fallthru
    _
  %v14 = vld [vmem:[%s0] sm:$0xff]
  %v15 = vld [vmem:[%s0 + $0x8] sm:$0xff]
  %v16 = vld [vmem:[%s0 + $0x10] sm:$0xff]
  %v17 = vld [vmem:[%s0 + $0x18] sm:$0xff]
  %v18 = vld [vmem:[%s0 + $0x20] sm:$0xff]
  %v19 = vld [vmem:[%s0 + $0x28] sm:$0xff]
  %v20 = vld [vmem:[%s0 + $0x30] sm:$0xff]
  %v21 = vld [vmem:[%s0 + $0x38] sm:$0xff]
  %v22 = vld [vmem:[%s0 + $0x40] sm:$0xff]
  %v23 = vld [vmem:[%s0 + $0x48] sm:$0xff]
  %v24 = vld [vmem:[%s0 + $0x50] sm:$0xff]
  %v25 = vld [vmem:[%s0 + $0x58] sm:$0xff]
  %v26 = vld [vmem:[%s0 + $0x60] sm:$0x3]
  %v27 = vld [vmem:[%s1] sm:$0xff]
  %v28 = vld [vmem:[%s1 + $0x8] sm:$0xff]
  %v29 = vld [vmem:[%s1 + $0x10] sm:$0xff]
  %v30 = vld [vmem:[%s1 + $0x18] sm:$0xff]
  %v31 = vld [vmem:[%s2] sm:$0x1]
  %v33 = vlaneseq
  %v34 = vshrl.u32 %v33, 7
  %v35 = vsub.s32 0, %v34
  %v36 = vrot.slane %v31, %v35
  %vm38 = vcmask 261120
  %v40 = vsel %vm38, %v14, 0
  %v43 = vsel %vm38, %v15, 0
  %v46 = vsel %vm38, %v16, 0
  %v49 = vsel %vm38, %v17, 0
  %v52 = vsel %vm38, %v18, 0
  %v55 = vsel %vm38, %v19, 0
  %v58 = vsel %vm38, %v20, 0
  %v61 = vsel %vm38, %v21, 0
  %v64 = vsel %vm38, %v22, 0
  %v67 = vsel %vm38, %v23, 0
  %v70 = vsel %vm38, %v24, 0
  %v73 = vsel %vm38, %v25, 0
  %v76 = vsel %vm38, %v26, 0
  %78 = vmatprep.subr.mxu0 0.0
  %79 = vmatpush1.msra.mxu0 %v27
  %80 = vmatprep.subr.mxu0 0.0
  %81 = vmatpush1.msra.mxu0 %v28
  %82 = vmatprep.subr.mxu0 0.0
  %83 = vmatpush1.msra.mxu0 %v29
  %84 = vmatprep.subr.mxu0 0.0
  %85 = vmatpush1.msra.mxu0 %v30
  %86 = vmatprep.subr.mxu0 0.0
  %87 = vmatpush1.msra.mxu0 0.0
  %88 = vmatprep.subr.mxu0 0.0
  %89 = vmatpush1.msra.mxu0 0.0
  %90 = vmatprep.subr.mxu0 0.0
  %91 = vmatpush1.msra.mxu0 0.0
  %92 = vmatprep.subr.mxu0 0.0
  %93 = vmatpush1.msra.mxu0 0.0
  %94 = vmatprep.subr.mxu0 0.0
  %95 = vmatpush1.msra.mxu0 0.0
  %96 = vmatprep.subr.mxu0 0.0
  %97 = vmatpush1.msra.mxu0 0.0
  %98 = vmatprep.subr.mxu0 0.0
  %99 = vmatpush1.msra.mxu0 0.0
  %100 = vmatprep.subr.mxu0 0.0
  %101 = vmatpush1.msra.mxu0 0.0
  %102 = vmatprep.subr.mxu0 0.0
  %103 = vmatpush1.msra.mxu0 0.0
  %104 = vmatprep.subr.mxu0 0.0
  %105 = vmatpush1.msra.mxu0 0.0
  %106 = vmatprep.subr.mxu0 0.0
  %107 = vmatpush1.msra.mxu0 0.0
  %108 = vmatprep.subr.mxu0 0.0
  %109 = vmatpush1.msra.mxu0 0.0
  %110 = vmatprep.subr.mxu0 0.0
  %111 = vmatpush1.msra.mxu0 0.0
  %112 = vmatprep.subr.mxu0 0.0
  %113 = vmatpush1.msra.mxu0 0.0
  %114 = vmatprep.subr.mxu0 0.0
  %115 = vmatpush1.msra.mxu0 0.0
  %116 = vmatprep.subr.mxu0 0.0
  %117 = vmatpush1.msra.mxu0 0.0
  %118 = vmatprep.subr.mxu0 0.0
  %119 = vmatpush1.msra.mxu0 0.0
  %120 = vmatprep.subr.mxu0 0.0
  %121 = vmatpush1.msra.mxu0 0.0
  %122 = vmatprep.subr.mxu0 0.0
  %123 = vmatpush1.msra.mxu0 0.0
  %124 = vmatprep.subr.mxu0 0.0
  %125 = vmatpush1.msra.mxu0 0.0
  %126 = vmatprep.subr.mxu0 0.0
  %127 = vmatpush1.msra.mxu0 0.0
  %128 = vmatprep.subr.mxu0 0.0
  %129 = vmatpush1.msra.mxu0 0.0
  %130 = vmatprep.subr.mxu0 0.0
  %131 = vmatpush1.msra.mxu0 0.0
  %132 = vmatprep.subr.mxu0 0.0
  %133 = vmatpush1.msra.mxu0 0.0
  %134 = vmatprep.subr.mxu0 0.0
  %135 = vmatpush1.msra.mxu0 0.0
  %136 = vmatprep.subr.mxu0 0.0
  %137 = vmatpush1.msra.mxu0 0.0
  %138 = vmatprep.subr.mxu0 0.0
  %139 = vmatpush1.msra.mxu0 0.0
  %140 = vmatprep.subr.mxu0 0.0
  %141 = vmatpush1.msra.mxu0 0.0
  %142 = vmatprep.mubr.f32.mxu0 0.0
  %143 = vmatmul.mubr.f32.gmra.mrb[0].mxu0 %v40
  %v144 = vpop.f32.mrb[0].mxu0
  %v145 = vadd.f32 %v36, %v144
  %v146 = vpop.f32.mrb[0].mxu0
  %147 = vmatprep.mubr.f32.mxu0 0.0
  %148 = vmatmul.mubr.f32.gmra.mrb[0].mxu0 %v43
  %v149 = vpop.f32.mrb[0].mxu0
  %v150 = vadd.f32 %v36, %v149
  %v151 = vpop.f32.mrb[0].mxu0
  %152 = vmatprep.mubr.f32.mxu0 0.0
  %153 = vmatmul.mubr.f32.gmra.mrb[0].mxu0 %v46
  %v154 = vpop.f32.mrb[0].mxu0
  %v155 = vadd.f32 %v36, %v154
  %v156 = vpop.f32.mrb[0].mxu0
  %157 = vmatprep.mubr.f32.mxu0 0.0
  %158 = vmatmul.mubr.f32.gmra.mrb[0].mxu0 %v49
  %v159 = vpop.f32.mrb[0].mxu0
  %v160 = vadd.f32 %v36, %v159
  %v161 = vpop.f32.mrb[0].mxu0
  %162 = vmatprep.mubr.f32.mxu0 0.0
  %163 = vmatmul.mubr.f32.gmra.mrb[0].mxu0 %v52
  %v164 = vpop.f32.mrb[0].mxu0
  %v165 = vadd.f32 %v36, %v164
  %v166 = vpop.f32.mrb[0].mxu0
  %167 = vmatprep.mubr.f32.mxu0 0.0
  %168 = vmatmul.mubr.f32.gmra.mrb[0].mxu0 %v55
  %v169 = vpop.f32.mrb[0].mxu0
  %v170 = vadd.f32 %v36, %v169
  %v171 = vpop.f32.mrb[0].mxu0
  %172 = vmatprep.mubr.f32.mxu0 0.0
  %173 = vmatmul.mubr.f32.gmra.mrb[0].mxu0 %v58
  %v174 = vpop.f32.mrb[0].mxu0
  %v175 = vadd.f32 %v36, %v174
  %v176 = vpop.f32.mrb[0].mxu0
  %177 = vmatprep.mubr.f32.mxu0 0.0
  %178 = vmatmul.mubr.f32.gmra.mrb[0].mxu0 %v61
  %v179 = vpop.f32.mrb[0].mxu0
  %v180 = vadd.f32 %v36, %v179
  %v181 = vpop.f32.mrb[0].mxu0
  %182 = vmatprep.mubr.f32.mxu0 0.0
  %183 = vmatmul.mubr.f32.gmra.mrb[0].mxu0 %v64
  %v184 = vpop.f32.mrb[0].mxu0
  %v185 = vadd.f32 %v36, %v184
  %v186 = vpop.f32.mrb[0].mxu0
  %187 = vmatprep.mubr.f32.mxu0 0.0
  %188 = vmatmul.mubr.f32.gmra.mrb[0].mxu0 %v67
  %v189 = vpop.f32.mrb[0].mxu0
  %v190 = vadd.f32 %v36, %v189
  %v191 = vpop.f32.mrb[0].mxu0
  %192 = vmatprep.mubr.f32.mxu0 0.0
  %193 = vmatmul.mubr.f32.gmra.mrb[0].mxu0 %v70
  %v194 = vpop.f32.mrb[0].mxu0
  %v195 = vadd.f32 %v36, %v194
  %v196 = vpop.f32.mrb[0].mxu0
  %197 = vmatprep.mubr.f32.mxu0 0.0
  %198 = vmatmul.mubr.f32.gmra.mrb[0].mxu0 %v73
  %v199 = vpop.f32.mrb[0].mxu0
  %v200 = vadd.f32 %v36, %v199
  %v201 = vpop.f32.mrb[0].mxu0
  %202 = vmatprep.mubr.f32.mxu0 0.0
  %203 = vmatmul.mubr.f32.gmra.mrb[0].mxu0 %v76
  %v204 = vpop.f32.mrb[0].mxu0
  %v205 = vadd.f32 %v36, %v204
  %v206 = vpop.f32.mrb[0].mxu0
  %207 = vdwg.mxu0
  %v208 = vmax.f32 %v145, 0.0
  %v209 = vmax.f32 %v150, 0.0
  %v210 = vmax.f32 %v155, 0.0
  %v211 = vmax.f32 %v160, 0.0
  %v212 = vmax.f32 %v165, 0.0
  %v213 = vmax.f32 %v170, 0.0
  %v214 = vmax.f32 %v175, 0.0
  %v215 = vmax.f32 %v180, 0.0
  %v216 = vmax.f32 %v185, 0.0
  %v217 = vmax.f32 %v190, 0.0
  %v218 = vmax.f32 %v195, 0.0
  %v219 = vmax.f32 %v200, 0.0
  %v220 = vmax.f32 %v205, 0.0
  %221 = vst [vmem:[%s3] sm:$0xff] %v208
  %222 = vst [vmem:[%s3 + $0x8] sm:$0xff] %v209
  %223 = vst [vmem:[%s3 + $0x10] sm:$0xff] %v210
  %224 = vst [vmem:[%s3 + $0x18] sm:$0xff] %v211
  %225 = vst [vmem:[%s3 + $0x20] sm:$0xff] %v212
  %226 = vst [vmem:[%s3 + $0x28] sm:$0xff] %v213
  %227 = vst [vmem:[%s3 + $0x30] sm:$0xff] %v214
  %228 = vst [vmem:[%s3 + $0x38] sm:$0xff] %v215
  %229 = vst [vmem:[%s3 + $0x40] sm:$0xff] %v216
  %230 = vst [vmem:[%s3 + $0x48] sm:$0xff] %v217
  %231 = vst [vmem:[%s3 + $0x50] sm:$0xff] %v218
  %232 = vst [vmem:[%s3 + $0x58] sm:$0xff] %v219
  %233 = vst [vmem:[%s3 + $0x60] sm:$0x3] %v220
  // Predicated region
  $region14: #{squeezenet2d_forward.35} parent=0 // pred_check
    _
  $region15: #{squeezenet2d_forward.35} parent=0 // pred_check_branch
    %235 = sbr.rel (0) target = $region17
  $region16: #{squeezenet2d_forward.35} parent=0 // pred_region
    _
  $region17: #{squeezenet2d_forward.35} parent=0 // pred_fallthru
    _
  // Predicated region
  $region18: #{squeezenet2d_forward.35} parent=0 // pred_check
    _
  $region19: #{squeezenet2d_forward.35} parent=0 // pred_check_branch
    %237 = sbr.rel (0) target = $region21
  $region20: #{squeezenet2d_forward.35} parent=0 // pred_region
    _
  $region21: #{squeezenet2d_forward.35} parent=0 // pred_fallthru
    _

// kernel: squeezenet2d_forward.40
$region0: #{squeezenet2d_forward.40}
  #allocation0 [shape = 'u32[]', space=smem, size = 0x4, offset = 0x4, fixed_abs, tag = 'smem constant byte address 0x4 - core index']
  #allocation1 [shape = 'u32[144,128]{1,0:T(1,128)}', space=vmem, size = 0x12000, scoped, tag = 'internal scratch']
  %s0 = inlined_call_operand.vmem [shape: f32[18,256], index: 0, kind: input, shape index: {}]
  %s1 = inlined_call_operand.vmem [shape: f32[256,48], index: 1, kind: input, shape index: {}]
  %s2 = inlined_call_operand.vmem [shape: f32[1,48], index: 2, kind: input, shape index: {}]
  %s3 = inlined_call_operand.vmem [shape: f32[18,48], index: 3, kind: output, shape index: {}]
  %s4 = sld [smem:[#allocation0]]
  $region22: #{squeezenet2d_forward.40} parent=0
    _
  %s6 = ssub.s32 1, %s4
  %s7 = scalar_select 0, %s6, %s4
  // Predicated region
  $region2: #{squeezenet2d_forward.40} parent=0 // pred_check
    _
  $region3: #{squeezenet2d_forward.40} parent=0 // pred_check_branch
    %9 = sbr.rel (0) target = $region5
  $region4: #{squeezenet2d_forward.40} parent=0 // pred_region
    _
  $region5: #{squeezenet2d_forward.40} parent=0 // pred_fallthru
    _
  // Predicated region
  $region6: #{squeezenet2d_forward.40} parent=0 // pred_check
    _
  $region7: #{squeezenet2d_forward.40} parent=0 // pred_check_branch
    %11 = sbr.rel (0) target = $region9
  $region8: #{squeezenet2d_forward.40} parent=0 // pred_region
    _
  $region9: #{squeezenet2d_forward.40} parent=0 // pred_fallthru
    _
  // Predicated region
  $region10: #{squeezenet2d_forward.40} parent=0 // pred_check
    _
  $region11: #{squeezenet2d_forward.40} parent=0 // pred_check_branch
    %13 = sbr.rel (0) target = $region13
  $region12: #{squeezenet2d_forward.40} parent=0 // pred_region
    _
  $region13: #{squeezenet2d_forward.40} parent=0 // pred_fallthru
    _
  %v14 = vld [vmem:[%s0] sm:$0xff]
  %v15 = vld [vmem:[%s0 + $0x8] sm:$0xff]
  %v16 = vld [vmem:[%s0 + $0x10] sm:$0xff]
  %v17 = vld [vmem:[%s0 + $0x18] sm:$0xff]
  %v18 = vld [vmem:[%s0 + $0x20] sm:$0x3]
  %v19 = vld [vmem:[%s0 + $0x28] sm:$0x3]
  %v20 = vld [vmem:[%s1] sm:$0xff]
  %v21 = vld [vmem:[%s1 + $0x8] sm:$0xff]
  %v22 = vld [vmem:[%s1 + $0x10] sm:$0xff]
  %v23 = vld [vmem:[%s1 + $0x18] sm:$0xff]
  %v24 = vld [vmem:[%s1 + $0x20] sm:$0xff]
  %v25 = vld [vmem:[%s1 + $0x28] sm:$0xff]
  %v26 = vld [vmem:[%s1 + $0x30] sm:$0xff]
  %v27 = vld [vmem:[%s1 + $0x38] sm:$0xff]
  %v28 = vld [vmem:[%s1 + $0x40] sm:$0xff]
  %v29 = vld [vmem:[%s1 + $0x48] sm:$0xff]
  %v30 = vld [vmem:[%s1 + $0x50] sm:$0xff]
  %v31 = vld [vmem:[%s1 + $0x58] sm:$0xff]
  %v32 = vld [vmem:[%s1 + $0x60] sm:$0xff]
  %v33 = vld [vmem:[%s1 + $0x68] sm:$0xff]
  %v34 = vld [vmem:[%s1 + $0x70] sm:$0xff]
  %v35 = vld [vmem:[%s1 + $0x78] sm:$0xff]
  %v36 = vld [vmem:[%s1 + $0x80] sm:$0xff]
  %v37 = vld [vmem:[%s1 + $0x88] sm:$0xff]
  %v38 = vld [vmem:[%s1 + $0x90] sm:$0xff]
  %v39 = vld [vmem:[%s1 + $0x98] sm:$0xff]
  %v40 = vld [vmem:[%s1 + $0xa0] sm:$0xff]
  %v41 = vld [vmem:[%s1 + $0xa8] sm:$0xff]
  %v42 = vld [vmem:[%s1 + $0xb0] sm:$0xff]
  %v43 = vld [vmem:[%s1 + $0xb8] sm:$0xff]
  %v44 = vld [vmem:[%s1 + $0xc0] sm:$0xff]
  %v45 = vld [vmem:[%s1 + $0xc8] sm:$0xff]
  %v46 = vld [vmem:[%s1 + $0xd0] sm:$0xff]
  %v47 = vld [vmem:[%s1 + $0xd8] sm:$0xff]
  %v48 = vld [vmem:[%s1 + $0xe0] sm:$0xff]
  %v49 = vld [vmem:[%s1 + $0xe8] sm:$0xff]
  %v50 = vld [vmem:[%s1 + $0xf0] sm:$0xff]
  %v51 = vld [vmem:[%s1 + $0xf8] sm:$0xff]
  %v52 = vld [vmem:[%s2] sm:$0x1]
  %v54 = vlaneseq
  %v55 = vshrl.u32 %v54, 7
  %v56 = vsub.s32 0, %v55
  %v57 = vrot.slane %v52, %v56
  %59 = vmatprep.subr.mxu0 0.0
  %60 = vmatpush1.msra.mxu0 %v20
  %61 = vmatprep.subr.mxu0 0.0
  %62 = vmatpush1.msra.mxu0 %v21
  %63 = vmatprep.subr.mxu0 0.0
  %64 = vmatpush1.msra.mxu0 %v22
  %65 = vmatprep.subr.mxu0 0.0
  %66 = vmatpush1.msra.mxu0 %v23
  %67 = vmatprep.subr.mxu0 0.0
  %68 = vmatpush1.msra.mxu0 %v24
  %69 = vmatprep.subr.mxu0 0.0
  %70 = vmatpush1.msra.mxu0 %v25
  %71 = vmatprep.subr.mxu0 0.0
  %72 = vmatpush1.msra.mxu0 %v26
  %73 = vmatprep.subr.mxu0 0.0
  %74 = vmatpush1.msra.mxu0 %v27
  %75 = vmatprep.subr.mxu0 0.0
  %76 = vmatpush1.msra.mxu0 %v28
  %77 = vmatprep.subr.mxu0 0.0
  %78 = vmatpush1.msra.mxu0 %v29
  %79 = vmatprep.subr.mxu0 0.0
  %80 = vmatpush1.msra.mxu0 %v30
  %81 = vmatprep.subr.mxu0 0.0
  %82 = vmatpush1.msra.mxu0 %v31
  %83 = vmatprep.subr.mxu0 0.0
  %84 = vmatpush1.msra.mxu0 %v32
  %85 = vmatprep.subr.mxu0 0.0
  %86 = vmatpush1.msra.mxu0 %v33
  %87 = vmatprep.subr.mxu0 0.0
  %88 = vmatpush1.msra.mxu0 %v34
  %89 = vmatprep.subr.mxu0 0.0
  %90 = vmatpush1.msra.mxu0 %v35
  %91 = vmatprep.subr.mxu0 0.0
  %92 = vmatpush1.msra.mxu0 %v36
  %93 = vmatprep.subr.mxu0 0.0
  %94 = vmatpush1.msra.mxu0 %v37
  %95 = vmatprep.subr.mxu0 0.0
  %96 = vmatpush1.msra.mxu0 %v38
  %97 = vmatprep.subr.mxu0 0.0
  %98 = vmatpush1.msra.mxu0 %v39
  %99 = vmatprep.subr.mxu0 0.0
  %100 = vmatpush1.msra.mxu0 %v40
  %101 = vmatprep.subr.mxu0 0.0
  %102 = vmatpush1.msra.mxu0 %v41
  %103 = vmatprep.subr.mxu0 0.0
  %104 = vmatpush1.msra.mxu0 %v42
  %105 = vmatprep.subr.mxu0 0.0
  %106 = vmatpush1.msra.mxu0 %v43
  %107 = vmatprep.subr.mxu0 0.0
  %108 = vmatpush1.msra.mxu0 %v44
  %109 = vmatprep.subr.mxu0 0.0
  %110 = vmatpush1.msra.mxu0 %v45
  %111 = vmatprep.subr.mxu0 0.0
  %112 = vmatpush1.msra.mxu0 %v46
  %113 = vmatprep.subr.mxu0 0.0
  %114 = vmatpush1.msra.mxu0 %v47
  %115 = vmatprep.subr.mxu0 0.0
  %116 = vmatpush1.msra.mxu0 %v48
  %117 = vmatprep.subr.mxu0 0.0
  %118 = vmatpush1.msra.mxu0 %v49
  %119 = vmatprep.subr.mxu0 0.0
  %120 = vmatpush1.msra.mxu0 %v50
  %121 = vmatprep.subr.mxu0 0.0
  %122 = vmatpush1.msra.mxu0 %v51
  %123 = vmatprep.mubr.f32.mxu0 %v15
  %124 = vmatmul.mubr.f32.gmra.mrb[0].mxu0 %v14
  %v125 = vpop.f32.mrb[0].mxu0
  %v126 = vadd.f32 %v57, %v125
  %v127 = vpop.f32.mrb[0].mxu0
  %128 = vmatprep.mubr.f32.mxu0 %v17
  %129 = vmatmul.mubr.f32.gmra.mrb[0].mxu0 %v16
  %v130 = vpop.f32.mrb[0].mxu0
  %v131 = vadd.f32 %v57, %v130
  %v132 = vpop.f32.mrb[0].mxu0
  %133 = vmatprep.mubr.f32.mxu0 %v19
  %134 = vmatmul.mubr.f32.gmra.mrb[0].mxu0 %v18
  %v135 = vpop.f32.mrb[0].mxu0
  %v136 = vadd.f32 %v57, %v135
  %v137 = vpop.f32.mrb[0].mxu0
  %138 = vdwg.mxu0
  %v139 = vmax.f32 %v126, 0.0
  %v140 = vmax.f32 %v131, 0.0
  %v141 = vmax.f32 %v136, 0.0
  %vm142 = vcmask 392192
  %143 = vst.msk [vmem:[%s3] sm:$0xff] %vm142, %v139
  %144 = vst.msk [vmem:[%s3 + $0x8] sm:$0xff] %vm142, %v140
  %vm145 = vcmask 386048
  %146 = vst.msk [vmem:[%s3 + $0x10] sm:$0x3] %vm145, %v141
  // Predicated region
  $region14: #{squeezenet2d_forward.40} parent=0 // pred_check
    _
  $region15: #{squeezenet2d_forward.40} parent=0 // pred_check_branch
    %148 = sbr.rel (0) target = $region17
  $region16: #{squeezenet2d_forward.40} parent=0 // pred_region
    _
  $region17: #{squeezenet2d_forward.40} parent=0 // pred_fallthru
    _
  // Predicated region
  $region18: #{squeezenet2d_forward.40} parent=0 // pred_check
    _
  $region19: #{squeezenet2d_forward.40} parent=0 // pred_check_branch
    %150 = sbr.rel (0) target = $region21
  $region20: #{squeezenet2d_forward.40} parent=0 // pred_region
    _
  $region21: #{squeezenet2d_forward.40} parent=0 // pred_fallthru
    _

// kernel: squeezenet2d_forward.41
$region0: #{squeezenet2d_forward.41}
  #allocation0 [shape = 'u32[]', space=smem, size = 0x4, offset = 0x4, fixed_abs, tag = 'smem constant byte address 0x4 - core index']
  #allocation1 [shape = 'u32[144,128]{1,0:T(1,128)}', space=vmem, size = 0x12000, scoped, tag = 'internal scratch']
  %s0 = inlined_call_operand.vmem [shape: f32[18,48], index: 0, kind: input, shape index: {}]
  %s1 = inlined_call_operand.vmem [shape: f32[48,192], index: 1, kind: input, shape index: {}]
  %s2 = inlined_call_operand.vmem [shape: f32[1,192], index: 2, kind: input, shape index: {}]
  %s3 = inlined_call_operand.vmem [shape: f32[18,192], index: 3, kind: output, shape index: {}]
  %s4 = sld [smem:[#allocation0]]
  $region22: #{squeezenet2d_forward.41} parent=0
    _
  %s6 = ssub.s32 1, %s4
  %s7 = scalar_select 0, %s6, %s4
  // Predicated region
  $region2: #{squeezenet2d_forward.41} parent=0 // pred_check
    _
  $region3: #{squeezenet2d_forward.41} parent=0 // pred_check_branch
    %9 = sbr.rel (0) target = $region5
  $region4: #{squeezenet2d_forward.41} parent=0 // pred_region
    _
  $region5: #{squeezenet2d_forward.41} parent=0 // pred_fallthru
    _
  // Predicated region
  $region6: #{squeezenet2d_forward.41} parent=0 // pred_check
    _
  $region7: #{squeezenet2d_forward.41} parent=0 // pred_check_branch
    %11 = sbr.rel (0) target = $region9
  $region8: #{squeezenet2d_forward.41} parent=0 // pred_region
    _
  $region9: #{squeezenet2d_forward.41} parent=0 // pred_fallthru
    _
  // Predicated region
  $region10: #{squeezenet2d_forward.41} parent=0 // pred_check
    _
  $region11: #{squeezenet2d_forward.41} parent=0 // pred_check_branch
    %13 = sbr.rel (0) target = $region13
  $region12: #{squeezenet2d_forward.41} parent=0 // pred_region
    _
  $region13: #{squeezenet2d_forward.41} parent=0 // pred_fallthru
    _
  %v14 = vld [vmem:[%s0] sm:$0xff]
  %v15 = vld [vmem:[%s0 + $0x8] sm:$0xff]
  %v16 = vld [vmem:[%s0 + $0x10] sm:$0x3]
  %v17 = vld [vmem:[%s1] sm:$0xff]
  %v18 = vld [vmem:[%s1 + $0x8] sm:$0xff]
  %v19 = vld [vmem:[%s1 + $0x10] sm:$0xff]
  %v20 = vld [vmem:[%s1 + $0x18] sm:$0xff]
  %v21 = vld [vmem:[%s1 + $0x20] sm:$0xff]
  %v22 = vld [vmem:[%s1 + $0x28] sm:$0xff]
  %v23 = vld [vmem:[%s1 + $0x30] sm:$0xff]
  %v24 = vld [vmem:[%s1 + $0x38] sm:$0xff]
  %v25 = vld [vmem:[%s1 + $0x40] sm:$0xff]
  %v26 = vld [vmem:[%s1 + $0x48] sm:$0xff]
  %v27 = vld [vmem:[%s1 + $0x50] sm:$0xff]
  %v28 = vld [vmem:[%s1 + $0x58] sm:$0xff]
  %v29 = vld [vmem:[%s2] sm:$0x3]
  %v31 = vlaneseq
  %v32 = vshrl.u32 %v31, 7
  %v33 = vsub.s32 0, %v32
  %v34 = vrot.slane %v29, %v33
  %v35 = vlaneseq
  %v36 = vshrl.u32 %v35, 7
  %v37 = vsub.s32 1, %v36
  %v38 = vrot.slane %v29, %v37
  %vm41 = vcmask 392192
  %v43 = vsel %vm41, %v14, 0
  %v46 = vsel %vm41, %v15, 0
  %v49 = vsel %vm41, %v16, 0
  %51 = vmatprep.subr.mxu0 %v18
  %52 = vmatpush1.msra.mxu0 %v17
  %53 = vmatprep.subr.mxu0 %v20
  %54 = vmatpush1.msra.mxu0 %v19
  %55 = vmatprep.subr.mxu0 %v22
  %56 = vmatpush1.msra.mxu0 %v21
  %57 = vmatprep.subr.mxu0 %v24
  %58 = vmatpush1.msra.mxu0 %v23
  %59 = vmatprep.subr.mxu0 %v26
  %60 = vmatpush1.msra.mxu0 %v25
  %61 = vmatprep.subr.mxu0 %v28
  %62 = vmatpush1.msra.mxu0 %v27
  %63 = vmatprep.subr.mxu0 0.0
  %64 = vmatpush1.msra.mxu0 0.0
  %65 = vmatprep.subr.mxu0 0.0
  %66 = vmatpush1.msra.mxu0 0.0
  %67 = vmatprep.subr.mxu0 0.0
  %68 = vmatpush1.msra.mxu0 0.0
  %69 = vmatprep.subr.mxu0 0.0
  %70 = vmatpush1.msra.mxu0 0.0
  %71 = vmatprep.subr.mxu0 0.0
  %72 = vmatpush1.msra.mxu0 0.0
  %73 = vmatprep.subr.mxu0 0.0
  %74 = vmatpush1.msra.mxu0 0.0
  %75 = vmatprep.subr.mxu0 0.0
  %76 = vmatpush1.msra.mxu0 0.0
  %77 = vmatprep.subr.mxu0 0.0
  %78 = vmatpush1.msra.mxu0 0.0
  %79 = vmatprep.subr.mxu0 0.0
  %80 = vmatpush1.msra.mxu0 0.0
  %81 = vmatprep.subr.mxu0 0.0
  %82 = vmatpush1.msra.mxu0 0.0
  %83 = vmatprep.subr.mxu0 0.0
  %84 = vmatpush1.msra.mxu0 0.0
  %85 = vmatprep.subr.mxu0 0.0
  %86 = vmatpush1.msra.mxu0 0.0
  %87 = vmatprep.subr.mxu0 0.0
  %88 = vmatpush1.msra.mxu0 0.0
  %89 = vmatprep.subr.mxu0 0.0
  %90 = vmatpush1.msra.mxu0 0.0
  %91 = vmatprep.subr.mxu0 0.0
  %92 = vmatpush1.msra.mxu0 0.0
  %93 = vmatprep.subr.mxu0 0.0
  %94 = vmatpush1.msra.mxu0 0.0
  %95 = vmatprep.subr.mxu0 0.0
  %96 = vmatpush1.msra.mxu0 0.0
  %97 = vmatprep.subr.mxu0 0.0
  %98 = vmatpush1.msra.mxu0 0.0
  %99 = vmatprep.subr.mxu0 0.0
  %100 = vmatpush1.msra.mxu0 0.0
  %101 = vmatprep.subr.mxu0 0.0
  %102 = vmatpush1.msra.mxu0 0.0
  %103 = vmatprep.subr.mxu0 0.0
  %104 = vmatpush1.msra.mxu0 0.0
  %105 = vmatprep.subr.mxu0 0.0
  %106 = vmatpush1.msra.mxu0 0.0
  %107 = vmatprep.subr.mxu0 0.0
  %108 = vmatpush1.msra.mxu0 0.0
  %109 = vmatprep.subr.mxu0 0.0
  %110 = vmatpush1.msra.mxu0 0.0
  %111 = vmatprep.subr.mxu0 0.0
  %112 = vmatpush1.msra.mxu0 0.0
  %113 = vmatprep.subr.mxu0 0.0
  %114 = vmatpush1.msra.mxu0 0.0
  %115 = vmatprep.mubr.f32.mxu0 0.0
  %116 = vmatmul.mubr.f32.gmra.mrb[0].mxu0 %v43
  %v117 = vpop.f32.mrb[0].mxu0
  %v118 = vadd.f32 %v34, %v117
  %v119 = vpop.f32.mrb[0].mxu0
  %v120 = vadd.f32 %v38, %v119
  %121 = vmatprep.mubr.f32.mxu0 0.0
  %122 = vmatmul.mubr.f32.gmra.mrb[0].mxu0 %v46
  %v123 = vpop.f32.mrb[0].mxu0
  %v124 = vadd.f32 %v34, %v123
  %v125 = vpop.f32.mrb[0].mxu0
  %v126 = vadd.f32 %v38, %v125
  %127 = vmatprep.mubr.f32.mxu0 0.0
  %128 = vmatmul.mubr.f32.gmra.mrb[0].mxu0 %v49
  %v129 = vpop.f32.mrb[0].mxu0
  %v130 = vadd.f32 %v34, %v129
  %v131 = vpop.f32.mrb[0].mxu0
  %v132 = vadd.f32 %v38, %v131
  %133 = vdwg.mxu0
  %v134 = vmax.f32 %v118, 0.0
  %v135 = vmax.f32 %v120, 0.0
  %v136 = vmax.f32 %v124, 0.0
  %v137 = vmax.f32 %v126, 0.0
  %v138 = vmax.f32 %v130, 0.0
  %v139 = vmax.f32 %v132, 0.0
  %140 = vst [vmem:[%s3] sm:$0xff] %v134
  %vm141 = vcmask 523264
  %142 = vst.msk [vmem:[%s3 + $0x8] sm:$0xff] %vm141, %v135
  %143 = vst [vmem:[%s3 + $0x10] sm:$0xff] %v136
  %144 = vst.msk [vmem:[%s3 + $0x18] sm:$0xff] %vm141, %v137
  %145 = vst [vmem:[%s3 + $0x20] sm:$0x3] %v138
  %vm146 = vcmask 517120
  %147 = vst.msk [vmem:[%s3 + $0x28] sm:$0x3] %vm146, %v139
  // Predicated region
  $region14: #{squeezenet2d_forward.41} parent=0 // pred_check
    _
  $region15: #{squeezenet2d_forward.41} parent=0 // pred_check_branch
    %149 = sbr.rel (0) target = $region17
  $region16: #{squeezenet2d_forward.41} parent=0 // pred_region
    _
  $region17: #{squeezenet2d_forward.41} parent=0 // pred_fallthru
    _
  // Predicated region
  $region18: #{squeezenet2d_forward.41} parent=0 // pred_check
    _
  $region19: #{squeezenet2d_forward.41} parent=0 // pred_check_branch
    %151 = sbr.rel (0) target = $region21
  $region20: #{squeezenet2d_forward.41} parent=0 // pred_region
    _
  $region21: #{squeezenet2d_forward.41} parent=0 // pred_fallthru
    _

// kernel: squeezenet2d_forward.42
$region0: #{squeezenet2d_forward.42}
  #allocation0 [shape = 'u32[]', space=smem, size = 0x4, offset = 0x4, fixed_abs, tag = 'smem constant byte address 0x4 - core index']
  #allocation1 [shape = 'u32[144,128]{1,0:T(1,128)}', space=vmem, size = 0x12000, scoped, tag = 'internal scratch']
  %s0 = inlined_call_operand.vmem [shape: f32[18,432], index: 0, kind: input, shape index: {}]
  %s1 = inlined_call_operand.vmem [shape: f32[432,192], index: 1, kind: input, shape index: {}]
  %s2 = inlined_call_operand.vmem [shape: f32[1,192], index: 2, kind: input, shape index: {}]
  %s3 = inlined_call_operand.vmem [shape: f32[18,192], index: 3, kind: output, shape index: {}]
  %s4 = sld [smem:[#allocation0]]
  $region22: #{squeezenet2d_forward.42} parent=0
    _
  %s6 = ssub.s32 1, %s4
  %s7 = scalar_select 0, %s6, %s4
  // Predicated region
  $region2: #{squeezenet2d_forward.42} parent=0 // pred_check
    _
  $region3: #{squeezenet2d_forward.42} parent=0 // pred_check_branch
    %9 = sbr.rel (0) target = $region5
  $region4: #{squeezenet2d_forward.42} parent=0 // pred_region
    _
  $region5: #{squeezenet2d_forward.42} parent=0 // pred_fallthru
    _
  // Predicated region
  $region6: #{squeezenet2d_forward.42} parent=0 // pred_check
    _
  $region7: #{squeezenet2d_forward.42} parent=0 // pred_check_branch
    %11 = sbr.rel (0) target = $region9
  $region8: #{squeezenet2d_forward.42} parent=0 // pred_region
    _
  $region9: #{squeezenet2d_forward.42} parent=0 // pred_fallthru
    _
  // Predicated region
  $region10: #{squeezenet2d_forward.42} parent=0 // pred_check
    _
  $region11: #{squeezenet2d_forward.42} parent=0 // pred_check_branch
    %13 = sbr.rel (0) target = $region13
  $region12: #{squeezenet2d_forward.42} parent=0 // pred_region
    _
  $region13: #{squeezenet2d_forward.42} parent=0 // pred_fallthru
    _
  %v14 = vld [vmem:[%s0] sm:$0xff]
  %v15 = vld [vmem:[%s0 + $0x8] sm:$0xff]
  %v16 = vld [vmem:[%s0 + $0x10] sm:$0xff]
  %v17 = vld [vmem:[%s0 + $0x18] sm:$0xff]
  %v18 = vld [vmem:[%s0 + $0x20] sm:$0xff]
  %v19 = vld [vmem:[%s0 + $0x28] sm:$0xff]
  %v20 = vld [vmem:[%s0 + $0x30] sm:$0xff]
  %v21 = vld [vmem:[%s0 + $0x38] sm:$0xff]
  %v22 = vld [vmem:[%s0 + $0x40] sm:$0x3]
  %v23 = vld [vmem:[%s0 + $0x48] sm:$0x3]
  %v24 = vld [vmem:[%s0 + $0x50] sm:$0x3]
  %v25 = vld [vmem:[%s0 + $0x58] sm:$0x3]
  %v26 = vld [vmem:[%s1] sm:$0xff]
  %v27 = vld [vmem:[%s1 + $0x8] sm:$0xff]
  %v28 = vld [vmem:[%s1 + $0x10] sm:$0xff]
  %v29 = vld [vmem:[%s1 + $0x18] sm:$0xff]
  %v30 = vld [vmem:[%s1 + $0x20] sm:$0xff]
  %v31 = vld [vmem:[%s1 + $0x28] sm:$0xff]
  %v32 = vld [vmem:[%s1 + $0x30] sm:$0xff]
  %v33 = vld [vmem:[%s1 + $0x38] sm:$0xff]
  %v34 = vld [vmem:[%s1 + $0x40] sm:$0xff]
  %v35 = vld [vmem:[%s1 + $0x48] sm:$0xff]
  %v36 = vld [vmem:[%s1 + $0x50] sm:$0xff]
  %v37 = vld [vmem:[%s1 + $0x58] sm:$0xff]
  %v38 = vld [vmem:[%s1 + $0x60] sm:$0xff]
  %v39 = vld [vmem:[%s1 + $0x68] sm:$0xff]
  %v40 = vld [vmem:[%s1 + $0x70] sm:$0xff]
  %v41 = vld [vmem:[%s1 + $0x78] sm:$0xff]
  %v42 = vld [vmem:[%s1 + $0x80] sm:$0xff]
  %v43 = vld [vmem:[%s1 + $0x88] sm:$0xff]
  %v44 = vld [vmem:[%s1 + $0x90] sm:$0xff]
  %v45 = vld [vmem:[%s1 + $0x98] sm:$0xff]
  %v46 = vld [vmem:[%s1 + $0xa0] sm:$0xff]
  %v47 = vld [vmem:[%s1 + $0xa8] sm:$0xff]
  %v48 = vld [vmem:[%s1 + $0xb0] sm:$0xff]
  %v49 = vld [vmem:[%s1 + $0xb8] sm:$0xff]
  %v50 = vld [vmem:[%s1 + $0xc0] sm:$0xff]
  %v51 = vld [vmem:[%s1 + $0xc8] sm:$0xff]
  %v52 = vld [vmem:[%s1 + $0xd0] sm:$0xff]
  %v53 = vld [vmem:[%s1 + $0xd8] sm:$0xff]
  %v54 = vld [vmem:[%s1 + $0xe0] sm:$0xff]
  %v55 = vld [vmem:[%s1 + $0xe8] sm:$0xff]
  %v56 = vld [vmem:[%s1 + $0xf0] sm:$0xff]
  %v57 = vld [vmem:[%s1 + $0xf8] sm:$0xff]
  %v58 = vld [vmem:[%s1 + $0x100] sm:$0xff]
  %v59 = vld [vmem:[%s1 + $0x108] sm:$0xff]
  %v60 = vld [vmem:[%s1 + $0x110] sm:$0xff]
  %v61 = vld [vmem:[%s1 + $0x118] sm:$0xff]
  %v62 = vld [vmem:[%s1 + $0x120] sm:$0xff]
  %v63 = vld [vmem:[%s1 + $0x128] sm:$0xff]
  %v64 = vld [vmem:[%s1 + $0x130] sm:$0xff]
  %v65 = vld [vmem:[%s1 + $0x138] sm:$0xff]
  %v66 = vld [vmem:[%s1 + $0x140] sm:$0xff]
  %v67 = vld [vmem:[%s1 + $0x148] sm:$0xff]
  %v68 = vld [vmem:[%s1 + $0x150] sm:$0xff]
  %v69 = vld [vmem:[%s1 + $0x158] sm:$0xff]
  %v70 = vld [vmem:[%s1 + $0x160] sm:$0xff]
  %v71 = vld [vmem:[%s1 + $0x168] sm:$0xff]
  %v72 = vld [vmem:[%s1 + $0x170] sm:$0xff]
  %v73 = vld [vmem:[%s1 + $0x178] sm:$0xff]
  %v74 = vld [vmem:[%s1 + $0x180] sm:$0xff]
  %v75 = vld [vmem:[%s1 + $0x188] sm:$0xff]
  %v76 = vld [vmem:[%s1 + $0x190] sm:$0xff]
  %v77 = vld [vmem:[%s1 + $0x198] sm:$0xff]
  %v78 = vld [vmem:[%s1 + $0x1a0] sm:$0xff]
  %v79 = vld [vmem:[%s1 + $0x1a8] sm:$0xff]
  %v80 = vld [vmem:[%s1 + $0x1b0] sm:$0xff]
  %v81 = vld [vmem:[%s1 + $0x1b8] sm:$0xff]
  %v82 = vld [vmem:[%s1 + $0x1c0] sm:$0xff]
  %v83 = vld [vmem:[%s1 + $0x1c8] sm:$0xff]
  %v84 = vld [vmem:[%s1 + $0x1d0] sm:$0xff]
  %v85 = vld [vmem:[%s1 + $0x1d8] sm:$0xff]
  %v86 = vld [vmem:[%s1 + $0x1e0] sm:$0xff]
  %v87 = vld [vmem:[%s1 + $0x1e8] sm:$0xff]
  %v88 = vld [vmem:[%s1 + $0x1f0] sm:$0xff]
  %v89 = vld [vmem:[%s1 + $0x1f8] sm:$0xff]
  %v90 = vld [vmem:[%s1 + $0x200] sm:$0xff]
  %v91 = vld [vmem:[%s1 + $0x208] sm:$0xff]
  %v92 = vld [vmem:[%s1 + $0x210] sm:$0xff]
  %v93 = vld [vmem:[%s1 + $0x218] sm:$0xff]
  %v94 = vld [vmem:[%s1 + $0x220] sm:$0xff]
  %v95 = vld [vmem:[%s1 + $0x228] sm:$0xff]
  %v96 = vld [vmem:[%s1 + $0x230] sm:$0xff]
  %v97 = vld [vmem:[%s1 + $0x238] sm:$0xff]
  %v98 = vld [vmem:[%s1 + $0x240] sm:$0xff]
  %v99 = vld [vmem:[%s1 + $0x248] sm:$0xff]
  %v100 = vld [vmem:[%s1 + $0x250] sm:$0xff]
  %v101 = vld [vmem:[%s1 + $0x258] sm:$0xff]
  %v102 = vld [vmem:[%s1 + $0x260] sm:$0xff]
  %v103 = vld [vmem:[%s1 + $0x268] sm:$0xff]
  %v104 = vld [vmem:[%s1 + $0x270] sm:$0xff]
  %v105 = vld [vmem:[%s1 + $0x278] sm:$0xff]
  %v106 = vld [vmem:[%s1 + $0x280] sm:$0xff]
  %v107 = vld [vmem:[%s1 + $0x288] sm:$0xff]
  %v108 = vld [vmem:[%s1 + $0x290] sm:$0xff]
  %v109 = vld [vmem:[%s1 + $0x298] sm:$0xff]
  %v110 = vld [vmem:[%s1 + $0x2a0] sm:$0xff]
  %v111 = vld [vmem:[%s1 + $0x2a8] sm:$0xff]
  %v112 = vld [vmem:[%s1 + $0x2b0] sm:$0xff]
  %v113 = vld [vmem:[%s1 + $0x2b8] sm:$0xff]
  %v114 = vld [vmem:[%s1 + $0x2c0] sm:$0xff]
  %v115 = vld [vmem:[%s1 + $0x2c8] sm:$0xff]
  %v116 = vld [vmem:[%s1 + $0x2d0] sm:$0xff]
  %v117 = vld [vmem:[%s1 + $0x2d8] sm:$0xff]
  %v118 = vld [vmem:[%s1 + $0x2e0] sm:$0xff]
  %v119 = vld [vmem:[%s1 + $0x2e8] sm:$0xff]
  %v120 = vld [vmem:[%s1 + $0x2f0] sm:$0xff]
  %v121 = vld [vmem:[%s1 + $0x2f8] sm:$0xff]
  %v122 = vld [vmem:[%s1 + $0x300] sm:$0xff]
  %v123 = vld [vmem:[%s1 + $0x308] sm:$0xff]
  %v124 = vld [vmem:[%s1 + $0x310] sm:$0xff]
  %v125 = vld [vmem:[%s1 + $0x318] sm:$0xff]
  %v126 = vld [vmem:[%s1 + $0x320] sm:$0xff]
  %v127 = vld [vmem:[%s1 + $0x328] sm:$0xff]
  %v128 = vld [vmem:[%s1 + $0x330] sm:$0xff]
  %v129 = vld [vmem:[%s1 + $0x338] sm:$0xff]
  %v130 = vld [vmem:[%s1 + $0x340] sm:$0xff]
  %v131 = vld [vmem:[%s1 + $0x348] sm:$0xff]
  %v132 = vld [vmem:[%s1 + $0x350] sm:$0xff]
  %v133 = vld [vmem:[%s1 + $0x358] sm:$0xff]
  %v134 = vld [vmem:[%s2] sm:$0x3]
  %v136 = vlaneseq
  %v137 = vshrl.u32 %v136, 7
  %v138 = vsub.s32 0, %v137
  %v139 = vrot.slane %v134, %v138
  %v140 = vlaneseq
  %v141 = vshrl.u32 %v140, 7
  %v142 = vsub.s32 1, %v141
  %v143 = vrot.slane %v134, %v142
  %vm146 = vcmask 392192
  %v148 = vsel %vm146, %v17, 0
  %v151 = vsel %vm146, %v21, 0
  %v154 = vsel %vm146, %v25, 0
  %156 = vmatprep.subr.mxu0 %v27
  %157 = vmatpush1.msra.mxu0 %v26
  %158 = vmatprep.subr.mxu0 %v29
  %159 = vmatpush1.msra.mxu0 %v28
  %160 = vmatprep.subr.mxu0 %v31
  %161 = vmatpush1.msra.mxu0 %v30
  %162 = vmatprep.subr.mxu0 %v33
  %163 = vmatpush1.msra.mxu0 %v32
  %164 = vmatprep.subr.mxu0 %v35
  %165 = vmatpush1.msra.mxu0 %v34
  %166 = vmatprep.subr.mxu0 %v37
  %167 = vmatpush1.msra.mxu0 %v36
  %168 = vmatprep.subr.mxu0 %v39
  %169 = vmatpush1.msra.mxu0 %v38
  %170 = vmatprep.subr.mxu0 %v41
  %171 = vmatpush1.msra.mxu0 %v40
  %172 = vmatprep.subr.mxu0 %v43
  %173 = vmatpush1.msra.mxu0 %v42
  %174 = vmatprep.subr.mxu0 %v45
  %175 = vmatpush1.msra.mxu0 %v44
  %176 = vmatprep.subr.mxu0 %v47
  %177 = vmatpush1.msra.mxu0 %v46
  %178 = vmatprep.subr.mxu0 %v49
  %179 = vmatpush1.msra.mxu0 %v48
  %180 = vmatprep.subr.mxu0 %v51
  %181 = vmatpush1.msra.mxu0 %v50
  %182 = vmatprep.subr.mxu0 %v53
  %183 = vmatpush1.msra.mxu0 %v52
  %184 = vmatprep.subr.mxu0 %v55
  %185 = vmatpush1.msra.mxu0 %v54
  %186 = vmatprep.subr.mxu0 %v57
  %187 = vmatpush1.msra.mxu0 %v56
  %188 = vmatprep.subr.mxu0 %v59
  %189 = vmatpush1.msra.mxu0 %v58
  %190 = vmatprep.subr.mxu0 %v61
  %191 = vmatpush1.msra.mxu0 %v60
  %192 = vmatprep.subr.mxu0 %v63
  %193 = vmatpush1.msra.mxu0 %v62
  %194 = vmatprep.subr.mxu0 %v65
  %195 = vmatpush1.msra.mxu0 %v64
  %196 = vmatprep.subr.mxu0 %v67
  %197 = vmatpush1.msra.mxu0 %v66
  %198 = vmatprep.subr.mxu0 %v69
  %199 = vmatpush1.msra.mxu0 %v68
  %200 = vmatprep.subr.mxu0 %v71
  %201 = vmatpush1.msra.mxu0 %v70
  %202 = vmatprep.subr.mxu0 %v73
  %203 = vmatpush1.msra.mxu0 %v72
  %204 = vmatprep.subr.mxu0 %v75
  %205 = vmatpush1.msra.mxu0 %v74
  %206 = vmatprep.subr.mxu0 %v77
  %207 = vmatpush1.msra.mxu0 %v76
  %208 = vmatprep.subr.mxu0 %v79
  %209 = vmatpush1.msra.mxu0 %v78
  %210 = vmatprep.subr.mxu0 %v81
  %211 = vmatpush1.msra.mxu0 %v80
  %212 = vmatprep.subr.mxu0 %v83
  %213 = vmatpush1.msra.mxu0 %v82
  %214 = vmatprep.subr.mxu0 %v85
  %215 = vmatpush1.msra.mxu0 %v84
  %216 = vmatprep.subr.mxu0 %v87
  %217 = vmatpush1.msra.mxu0 %v86
  %218 = vmatprep.subr.mxu0 %v89
  %219 = vmatpush1.msra.mxu0 %v88
  %220 = vmatprep.mubr.f32.mxu0 %v15
  %221 = vmatmul.mubr.f32.gmra.mrb[0].mxu0 %v14
  %v222 = vpop.f32.mrb[0].mxu0
  %v223 = vadd.f32 %v139, %v222
  %v224 = vpop.f32.mrb[0].mxu0
  %v225 = vadd.f32 %v143, %v224
  %226 = vmatprep.mubr.f32.mxu0 %v19
  %227 = vmatmul.mubr.f32.gmra.mrb[0].mxu0 %v18
  %v228 = vpop.f32.mrb[0].mxu0
  %v229 = vadd.f32 %v139, %v228
  %v230 = vpop.f32.mrb[0].mxu0
  %v231 = vadd.f32 %v143, %v230
  %232 = vmatprep.mubr.f32.mxu0 %v23
  %233 = vmatmul.mubr.f32.gmra.mrb[0].mxu0 %v22
  %v234 = vpop.f32.mrb[0].mxu0
  %v235 = vadd.f32 %v139, %v234
  %v236 = vpop.f32.mrb[0].mxu0
  %v237 = vadd.f32 %v143, %v236
  %238 = vdwg.mxu0
  %239 = vmatprep.subr.mxu0 %v91
  %240 = vmatpush1.msra.mxu0 %v90
  %241 = vmatprep.subr.mxu0 %v93
  %242 = vmatpush1.msra.mxu0 %v92
  %243 = vmatprep.subr.mxu0 %v95
  %244 = vmatpush1.msra.mxu0 %v94
  %245 = vmatprep.subr.mxu0 %v97
  %246 = vmatpush1.msra.mxu0 %v96
  %247 = vmatprep.subr.mxu0 %v99
  %248 = vmatpush1.msra.mxu0 %v98
  %249 = vmatprep.subr.mxu0 %v101
  %250 = vmatpush1.msra.mxu0 %v100
  %251 = vmatprep.subr.mxu0 %v103
  %252 = vmatpush1.msra.mxu0 %v102
  %253 = vmatprep.subr.mxu0 %v105
  %254 = vmatpush1.msra.mxu0 %v104
  %255 = vmatprep.subr.mxu0 %v107
  %256 = vmatpush1.msra.mxu0 %v106
  %257 = vmatprep.subr.mxu0 %v109
  %258 = vmatpush1.msra.mxu0 %v108
  %259 = vmatprep.subr.mxu0 %v111
  %260 = vmatpush1.msra.mxu0 %v110
  %261 = vmatprep.subr.mxu0 %v113
  %262 = vmatpush1.msra.mxu0 %v112
  %263 = vmatprep.subr.mxu0 %v115
  %264 = vmatpush1.msra.mxu0 %v114
  %265 = vmatprep.subr.mxu0 %v117
  %266 = vmatpush1.msra.mxu0 %v116
  %267 = vmatprep.subr.mxu0 %v119
  %268 = vmatpush1.msra.mxu0 %v118
  %269 = vmatprep.subr.mxu0 %v121
  %270 = vmatpush1.msra.mxu0 %v120
  %271 = vmatprep.subr.mxu0 %v123
  %272 = vmatpush1.msra.mxu0 %v122
  %273 = vmatprep.subr.mxu0 %v125
  %274 = vmatpush1.msra.mxu0 %v124
  %275 = vmatprep.subr.mxu0 %v127
  %276 = vmatpush1.msra.mxu0 %v126
  %277 = vmatprep.subr.mxu0 %v129
  %278 = vmatpush1.msra.mxu0 %v128
  %279 = vmatprep.subr.mxu0 %v131
  %280 = vmatpush1.msra.mxu0 %v130
  %281 = vmatprep.subr.mxu0 %v133
  %282 = vmatpush1.msra.mxu0 %v132
  %283 = vmatprep.subr.mxu0 0.0
  %284 = vmatpush1.msra.mxu0 0.0
  %285 = vmatprep.subr.mxu0 0.0
  %286 = vmatpush1.msra.mxu0 0.0
  %287 = vmatprep.subr.mxu0 0.0
  %288 = vmatpush1.msra.mxu0 0.0
  %289 = vmatprep.subr.mxu0 0.0
  %290 = vmatpush1.msra.mxu0 0.0
  %291 = vmatprep.subr.mxu0 0.0
  %292 = vmatpush1.msra.mxu0 0.0
  %293 = vmatprep.subr.mxu0 0.0
  %294 = vmatpush1.msra.mxu0 0.0
  %295 = vmatprep.subr.mxu0 0.0
  %296 = vmatpush1.msra.mxu0 0.0
  %297 = vmatprep.subr.mxu0 0.0
  %298 = vmatpush1.msra.mxu0 0.0
  %299 = vmatprep.subr.mxu0 0.0
  %300 = vmatpush1.msra.mxu0 0.0
  %301 = vmatprep.subr.mxu0 0.0
  %302 = vmatpush1.msra.mxu0 0.0
  %303 = vmatprep.mubr.f32.mxu0 %v148
  %304 = vmatmul.mubr.f32.gmra.mrb[0].mxu0 %v16
  %v305 = vpop.f32.mrb[0].mxu0
  %v306 = vadd.f32 %v223, %v305
  %v307 = vpop.f32.mrb[0].mxu0
  %v308 = vadd.f32 %v225, %v307
  %309 = vmatprep.mubr.f32.mxu0 %v151
  %310 = vmatmul.mubr.f32.gmra.mrb[0].mxu0 %v20
  %v311 = vpop.f32.mrb[0].mxu0
  %v312 = vadd.f32 %v229, %v311
  %v313 = vpop.f32.mrb[0].mxu0
  %v314 = vadd.f32 %v231, %v313
  %315 = vmatprep.mubr.f32.mxu0 %v154
  %316 = vmatmul.mubr.f32.gmra.mrb[0].mxu0 %v24
  %v317 = vpop.f32.mrb[0].mxu0
  %v318 = vadd.f32 %v235, %v317
  %v319 = vpop.f32.mrb[0].mxu0
  %v320 = vadd.f32 %v237, %v319
  %321 = vdwg.mxu0
  %v322 = vmax.f32 %v306, 0.0
  %v323 = vmax.f32 %v308, 0.0
  %v324 = vmax.f32 %v312, 0.0
  %v325 = vmax.f32 %v314, 0.0
  %v326 = vmax.f32 %v318, 0.0
  %v327 = vmax.f32 %v320, 0.0
  %328 = vst [vmem:[%s3] sm:$0xff] %v322
  %vm329 = vcmask 523264
  %330 = vst.msk [vmem:[%s3 + $0x8] sm:$0xff] %vm329, %v323
  %331 = vst [vmem:[%s3 + $0x10] sm:$0xff] %v324
  %332 = vst.msk [vmem:[%s3 + $0x18] sm:$0xff] %vm329, %v325
  %333 = vst [vmem:[%s3 + $0x20] sm:$0x3] %v326
  %vm334 = vcmask 517120
  %335 = vst.msk [vmem:[%s3 + $0x28] sm:$0x3] %vm334, %v327
  // Predicated region
  $region14: #{squeezenet2d_forward.42} parent=0 // pred_check
    _
  $region15: #{squeezenet2d_forward.42} parent=0 // pred_check_branch
    %337 = sbr.rel (0) target = $region17
  $region16: #{squeezenet2d_forward.42} parent=0 // pred_region
    _
  $region17: #{squeezenet2d_forward.42} parent=0 // pred_fallthru
    _
  // Predicated region
  $region18: #{squeezenet2d_forward.42} parent=0 // pred_check
    _
  $region19: #{squeezenet2d_forward.42} parent=0 // pred_check_branch
    %339 = sbr.rel (0) target = $region21
  $region20: #{squeezenet2d_forward.42} parent=0 // pred_region
    _
  $region21: #{squeezenet2d_forward.42} parent=0 // pred_fallthru
    _

// kernel: squeezenet2d_forward.43
$region0: #{squeezenet2d_forward.43}
  #allocation0 [shape = 'u32[]', space=smem, size = 0x4, offset = 0x4, fixed_abs, tag = 'smem constant byte address 0x4 - core index']
  #allocation1 [shape = 'u32[144,128]{1,0:T(1,128)}', space=vmem, size = 0x12000, scoped, tag = 'internal scratch']
  %s0 = inlined_call_operand.vmem [shape: f32[18,384], index: 0, kind: input, shape index: {}]
  %s1 = inlined_call_operand.vmem [shape: f32[384,48], index: 1, kind: input, shape index: {}]
  %s2 = inlined_call_operand.vmem [shape: f32[1,48], index: 2, kind: input, shape index: {}]
  %s3 = inlined_call_operand.vmem [shape: f32[18,48], index: 3, kind: output, shape index: {}]
  %s4 = sld [smem:[#allocation0]]
  $region22: #{squeezenet2d_forward.43} parent=0
    _
  %s6 = ssub.s32 1, %s4
  %s7 = scalar_select 0, %s6, %s4
  // Predicated region
  $region2: #{squeezenet2d_forward.43} parent=0 // pred_check
    _
  $region3: #{squeezenet2d_forward.43} parent=0 // pred_check_branch
    %9 = sbr.rel (0) target = $region5
  $region4: #{squeezenet2d_forward.43} parent=0 // pred_region
    _
  $region5: #{squeezenet2d_forward.43} parent=0 // pred_fallthru
    _
  // Predicated region
  $region6: #{squeezenet2d_forward.43} parent=0 // pred_check
    _
  $region7: #{squeezenet2d_forward.43} parent=0 // pred_check_branch
    %11 = sbr.rel (0) target = $region9
  $region8: #{squeezenet2d_forward.43} parent=0 // pred_region
    _
  $region9: #{squeezenet2d_forward.43} parent=0 // pred_fallthru
    _
  // Predicated region
  $region10: #{squeezenet2d_forward.43} parent=0 // pred_check
    _
  $region11: #{squeezenet2d_forward.43} parent=0 // pred_check_branch
    %13 = sbr.rel (0) target = $region13
  $region12: #{squeezenet2d_forward.43} parent=0 // pred_region
    _
  $region13: #{squeezenet2d_forward.43} parent=0 // pred_fallthru
    _
  %v14 = vld [vmem:[%s0] sm:$0xff]
  %v15 = vld [vmem:[%s0 + $0x8] sm:$0xff]
  %v16 = vld [vmem:[%s0 + $0x10] sm:$0xff]
  %v17 = vld [vmem:[%s0 + $0x18] sm:$0xff]
  %v18 = vld [vmem:[%s0 + $0x20] sm:$0xff]
  %v19 = vld [vmem:[%s0 + $0x28] sm:$0xff]
  %v20 = vld [vmem:[%s0 + $0x30] sm:$0x3]
  %v21 = vld [vmem:[%s0 + $0x38] sm:$0x3]
  %v22 = vld [vmem:[%s0 + $0x40] sm:$0x3]
  %v23 = vld [vmem:[%s1] sm:$0xff]
  %v24 = vld [vmem:[%s1 + $0x8] sm:$0xff]
  %v25 = vld [vmem:[%s1 + $0x10] sm:$0xff]
  %v26 = vld [vmem:[%s1 + $0x18] sm:$0xff]
  %v27 = vld [vmem:[%s1 + $0x20] sm:$0xff]
  %v28 = vld [vmem:[%s1 + $0x28] sm:$0xff]
  %v29 = vld [vmem:[%s1 + $0x30] sm:$0xff]
  %v30 = vld [vmem:[%s1 + $0x38] sm:$0xff]
  %v31 = vld [vmem:[%s1 + $0x40] sm:$0xff]
  %v32 = vld [vmem:[%s1 + $0x48] sm:$0xff]
  %v33 = vld [vmem:[%s1 + $0x50] sm:$0xff]
  %v34 = vld [vmem:[%s1 + $0x58] sm:$0xff]
  %v35 = vld [vmem:[%s1 + $0x60] sm:$0xff]
  %v36 = vld [vmem:[%s1 + $0x68] sm:$0xff]
  %v37 = vld [vmem:[%s1 + $0x70] sm:$0xff]
  %v38 = vld [vmem:[%s1 + $0x78] sm:$0xff]
  %v39 = vld [vmem:[%s1 + $0x80] sm:$0xff]
  %v40 = vld [vmem:[%s1 + $0x88] sm:$0xff]
  %v41 = vld [vmem:[%s1 + $0x90] sm:$0xff]
  %v42 = vld [vmem:[%s1 + $0x98] sm:$0xff]
  %v43 = vld [vmem:[%s1 + $0xa0] sm:$0xff]
  %v44 = vld [vmem:[%s1 + $0xa8] sm:$0xff]
  %v45 = vld [vmem:[%s1 + $0xb0] sm:$0xff]
  %v46 = vld [vmem:[%s1 + $0xb8] sm:$0xff]
  %v47 = vld [vmem:[%s1 + $0xc0] sm:$0xff]
  %v48 = vld [vmem:[%s1 + $0xc8] sm:$0xff]
  %v49 = vld [vmem:[%s1 + $0xd0] sm:$0xff]
  %v50 = vld [vmem:[%s1 + $0xd8] sm:$0xff]
  %v51 = vld [vmem:[%s1 + $0xe0] sm:$0xff]
  %v52 = vld [vmem:[%s1 + $0xe8] sm:$0xff]
  %v53 = vld [vmem:[%s1 + $0xf0] sm:$0xff]
  %v54 = vld [vmem:[%s1 + $0xf8] sm:$0xff]
  %v55 = vld [vmem:[%s1 + $0x100] sm:$0xff]
  %v56 = vld [vmem:[%s1 + $0x108] sm:$0xff]
  %v57 = vld [vmem:[%s1 + $0x110] sm:$0xff]
  %v58 = vld [vmem:[%s1 + $0x118] sm:$0xff]
  %v59 = vld [vmem:[%s1 + $0x120] sm:$0xff]
  %v60 = vld [vmem:[%s1 + $0x128] sm:$0xff]
  %v61 = vld [vmem:[%s1 + $0x130] sm:$0xff]
  %v62 = vld [vmem:[%s1 + $0x138] sm:$0xff]
  %v63 = vld [vmem:[%s1 + $0x140] sm:$0xff]
  %v64 = vld [vmem:[%s1 + $0x148] sm:$0xff]
  %v65 = vld [vmem:[%s1 + $0x150] sm:$0xff]
  %v66 = vld [vmem:[%s1 + $0x158] sm:$0xff]
  %v67 = vld [vmem:[%s1 + $0x160] sm:$0xff]
  %v68 = vld [vmem:[%s1 + $0x168] sm:$0xff]
  %v69 = vld [vmem:[%s1 + $0x170] sm:$0xff]
  %v70 = vld [vmem:[%s1 + $0x178] sm:$0xff]
  %v71 = vld [vmem:[%s2] sm:$0x1]
  %v73 = vlaneseq
  %v74 = vshrl.u32 %v73, 7
  %v75 = vsub.s32 0, %v74
  %v76 = vrot.slane %v71, %v75
  %78 = vmatprep.subr.mxu0 0.0
  %79 = vmatpush1.msra.mxu0 %v23
  %80 = vmatprep.subr.mxu0 0.0
  %81 = vmatpush1.msra.mxu0 %v24
  %82 = vmatprep.subr.mxu0 0.0
  %83 = vmatpush1.msra.mxu0 %v25
  %84 = vmatprep.subr.mxu0 0.0
  %85 = vmatpush1.msra.mxu0 %v26
  %86 = vmatprep.subr.mxu0 0.0
  %87 = vmatpush1.msra.mxu0 %v27
  %88 = vmatprep.subr.mxu0 0.0
  %89 = vmatpush1.msra.mxu0 %v28
  %90 = vmatprep.subr.mxu0 0.0
  %91 = vmatpush1.msra.mxu0 %v29
  %92 = vmatprep.subr.mxu0 0.0
  %93 = vmatpush1.msra.mxu0 %v30
  %94 = vmatprep.subr.mxu0 0.0
  %95 = vmatpush1.msra.mxu0 %v31
  %96 = vmatprep.subr.mxu0 0.0
  %97 = vmatpush1.msra.mxu0 %v32
  %98 = vmatprep.subr.mxu0 0.0
  %99 = vmatpush1.msra.mxu0 %v33
  %100 = vmatprep.subr.mxu0 0.0
  %101 = vmatpush1.msra.mxu0 %v34
  %102 = vmatprep.subr.mxu0 0.0
  %103 = vmatpush1.msra.mxu0 %v35
  %104 = vmatprep.subr.mxu0 0.0
  %105 = vmatpush1.msra.mxu0 %v36
  %106 = vmatprep.subr.mxu0 0.0
  %107 = vmatpush1.msra.mxu0 %v37
  %108 = vmatprep.subr.mxu0 0.0
  %109 = vmatpush1.msra.mxu0 %v38
  %110 = vmatprep.subr.mxu0 0.0
  %111 = vmatpush1.msra.mxu0 %v39
  %112 = vmatprep.subr.mxu0 0.0
  %113 = vmatpush1.msra.mxu0 %v40
  %114 = vmatprep.subr.mxu0 0.0
  %115 = vmatpush1.msra.mxu0 %v41
  %116 = vmatprep.subr.mxu0 0.0
  %117 = vmatpush1.msra.mxu0 %v42
  %118 = vmatprep.subr.mxu0 0.0
  %119 = vmatpush1.msra.mxu0 %v43
  %120 = vmatprep.subr.mxu0 0.0
  %121 = vmatpush1.msra.mxu0 %v44
  %122 = vmatprep.subr.mxu0 0.0
  %123 = vmatpush1.msra.mxu0 %v45
  %124 = vmatprep.subr.mxu0 0.0
  %125 = vmatpush1.msra.mxu0 %v46
  %126 = vmatprep.subr.mxu0 0.0
  %127 = vmatpush1.msra.mxu0 %v47
  %128 = vmatprep.subr.mxu0 0.0
  %129 = vmatpush1.msra.mxu0 %v48
  %130 = vmatprep.subr.mxu0 0.0
  %131 = vmatpush1.msra.mxu0 %v49
  %132 = vmatprep.subr.mxu0 0.0
  %133 = vmatpush1.msra.mxu0 %v50
  %134 = vmatprep.subr.mxu0 0.0
  %135 = vmatpush1.msra.mxu0 %v51
  %136 = vmatprep.subr.mxu0 0.0
  %137 = vmatpush1.msra.mxu0 %v52
  %138 = vmatprep.subr.mxu0 0.0
  %139 = vmatpush1.msra.mxu0 %v53
  %140 = vmatprep.subr.mxu0 0.0
  %141 = vmatpush1.msra.mxu0 %v54
  %142 = vmatprep.mubr.f32.mxu0 %v15
  %143 = vmatmul.mubr.f32.gmra.mrb[0].mxu0 %v14
  %v144 = vpop.f32.mrb[0].mxu0
  %v145 = vadd.f32 %v76, %v144
  %v146 = vpop.f32.mrb[0].mxu0
  %147 = vmatprep.mubr.f32.mxu0 %v18
  %148 = vmatmul.mubr.f32.gmra.mrb[0].mxu0 %v17
  %v149 = vpop.f32.mrb[0].mxu0
  %v150 = vadd.f32 %v76, %v149
  %v151 = vpop.f32.mrb[0].mxu0
  %152 = vmatprep.mubr.f32.mxu0 %v21
  %153 = vmatmul.mubr.f32.gmra.mrb[0].mxu0 %v20
  %v154 = vpop.f32.mrb[0].mxu0
  %v155 = vadd.f32 %v76, %v154
  %v156 = vpop.f32.mrb[0].mxu0
  %157 = vdwg.mxu0
  %158 = vmatprep.subr.mxu0 0.0
  %159 = vmatpush1.msra.mxu0 %v55
  %160 = vmatprep.subr.mxu0 0.0
  %161 = vmatpush1.msra.mxu0 %v56
  %162 = vmatprep.subr.mxu0 0.0
  %163 = vmatpush1.msra.mxu0 %v57
  %164 = vmatprep.subr.mxu0 0.0
  %165 = vmatpush1.msra.mxu0 %v58
  %166 = vmatprep.subr.mxu0 0.0
  %167 = vmatpush1.msra.mxu0 %v59
  %168 = vmatprep.subr.mxu0 0.0
  %169 = vmatpush1.msra.mxu0 %v60
  %170 = vmatprep.subr.mxu0 0.0
  %171 = vmatpush1.msra.mxu0 %v61
  %172 = vmatprep.subr.mxu0 0.0
  %173 = vmatpush1.msra.mxu0 %v62
  %174 = vmatprep.subr.mxu0 0.0
  %175 = vmatpush1.msra.mxu0 %v63
  %176 = vmatprep.subr.mxu0 0.0
  %177 = vmatpush1.msra.mxu0 %v64
  %178 = vmatprep.subr.mxu0 0.0
  %179 = vmatpush1.msra.mxu0 %v65
  %180 = vmatprep.subr.mxu0 0.0
  %181 = vmatpush1.msra.mxu0 %v66
  %182 = vmatprep.subr.mxu0 0.0
  %183 = vmatpush1.msra.mxu0 %v67
  %184 = vmatprep.subr.mxu0 0.0
  %185 = vmatpush1.msra.mxu0 %v68
  %186 = vmatprep.subr.mxu0 0.0
  %187 = vmatpush1.msra.mxu0 %v69
  %188 = vmatprep.subr.mxu0 0.0
  %189 = vmatpush1.msra.mxu0 %v70
  %190 = vmatprep.subr.mxu0 0.0
  %191 = vmatpush1.msra.mxu0 0.0
  %192 = vmatprep.subr.mxu0 0.0
  %193 = vmatpush1.msra.mxu0 0.0
  %194 = vmatprep.subr.mxu0 0.0
  %195 = vmatpush1.msra.mxu0 0.0
  %196 = vmatprep.subr.mxu0 0.0
  %197 = vmatpush1.msra.mxu0 0.0
  %198 = vmatprep.subr.mxu0 0.0
  %199 = vmatpush1.msra.mxu0 0.0
  %200 = vmatprep.subr.mxu0 0.0
  %201 = vmatpush1.msra.mxu0 0.0
  %202 = vmatprep.subr.mxu0 0.0
  %203 = vmatpush1.msra.mxu0 0.0
  %204 = vmatprep.subr.mxu0 0.0
  %205 = vmatpush1.msra.mxu0 0.0
  %206 = vmatprep.subr.mxu0 0.0
  %207 = vmatpush1.msra.mxu0 0.0
  %208 = vmatprep.subr.mxu0 0.0
  %209 = vmatpush1.msra.mxu0 0.0
  %210 = vmatprep.subr.mxu0 0.0
  %211 = vmatpush1.msra.mxu0 0.0
  %212 = vmatprep.subr.mxu0 0.0
  %213 = vmatpush1.msra.mxu0 0.0
  %214 = vmatprep.subr.mxu0 0.0
  %215 = vmatpush1.msra.mxu0 0.0
  %216 = vmatprep.subr.mxu0 0.0
  %217 = vmatpush1.msra.mxu0 0.0
  %218 = vmatprep.subr.mxu0 0.0
  %219 = vmatpush1.msra.mxu0 0.0
  %220 = vmatprep.subr.mxu0 0.0
  %221 = vmatpush1.msra.mxu0 0.0
  %222 = vmatprep.mubr.f32.mxu0 0.0
  %223 = vmatmul.mubr.f32.gmra.mrb[0].mxu0 %v16
  %v224 = vpop.f32.mrb[0].mxu0
  %v225 = vadd.f32 %v145, %v224
  %v226 = vpop.f32.mrb[0].mxu0
  %227 = vmatprep.mubr.f32.mxu0 0.0
  %228 = vmatmul.mubr.f32.gmra.mrb[0].mxu0 %v19
  %v229 = vpop.f32.mrb[0].mxu0
  %v230 = vadd.f32 %v150, %v229
  %v231 = vpop.f32.mrb[0].mxu0
  %232 = vmatprep.mubr.f32.mxu0 0.0
  %233 = vmatmul.mubr.f32.gmra.mrb[0].mxu0 %v22
  %v234 = vpop.f32.mrb[0].mxu0
  %v235 = vadd.f32 %v155, %v234
  %v236 = vpop.f32.mrb[0].mxu0
  %237 = vdwg.mxu0
  %v238 = vmax.f32 %v225, 0.0
  %v239 = vmax.f32 %v230, 0.0
  %v240 = vmax.f32 %v235, 0.0
  %vm241 = vcmask 392192
  %242 = vst.msk [vmem:[%s3] sm:$0xff] %vm241, %v238
  %243 = vst.msk [vmem:[%s3 + $0x8] sm:$0xff] %vm241, %v239
  %vm244 = vcmask 386048
  %245 = vst.msk [vmem:[%s3 + $0x10] sm:$0x3] %vm244, %v240
  // Predicated region
  $region14: #{squeezenet2d_forward.43} parent=0 // pred_check
    _
  $region15: #{squeezenet2d_forward.43} parent=0 // pred_check_branch
    %247 = sbr.rel (0) target = $region17
  $region16: #{squeezenet2d_forward.43} parent=0 // pred_region
    _
  $region17: #{squeezenet2d_forward.43} parent=0 // pred_fallthru
    _
  // Predicated region
  $region18: #{squeezenet2d_forward.43} parent=0 // pred_check
    _
  $region19: #{squeezenet2d_forward.43} parent=0 // pred_check_branch
    %249 = sbr.rel (0) target = $region21
  $region20: #{squeezenet2d_forward.43} parent=0 // pred_region
    _
  $region21: #{squeezenet2d_forward.43} parent=0 // pred_fallthru
    _

// kernel: squeezenet2d_forward.46
$region0: #{squeezenet2d_forward.46}
  #allocation0 [shape = 'u32[]', space=smem, size = 0x4, offset = 0x4, fixed_abs, tag = 'smem constant byte address 0x4 - core index']
  #allocation1 [shape = 'u32[144,128]{1,0:T(1,128)}', space=vmem, size = 0x12000, scoped, tag = 'internal scratch']
  %s0 = inlined_call_operand.vmem [shape: f32[18,384], index: 0, kind: input, shape index: {}]
  %s1 = inlined_call_operand.vmem [shape: f32[384,64], index: 1, kind: input, shape index: {}]
  %s2 = inlined_call_operand.vmem [shape: f32[1,64], index: 2, kind: input, shape index: {}]
  %s3 = inlined_call_operand.vmem [shape: f32[18,64], index: 3, kind: output, shape index: {}]
  %s4 = sld [smem:[#allocation0]]
  $region22: #{squeezenet2d_forward.46} parent=0
    _
  %s6 = ssub.s32 1, %s4
  %s7 = scalar_select 0, %s6, %s4
  // Predicated region
  $region2: #{squeezenet2d_forward.46} parent=0 // pred_check
    _
  $region3: #{squeezenet2d_forward.46} parent=0 // pred_check_branch
    %9 = sbr.rel (0) target = $region5
  $region4: #{squeezenet2d_forward.46} parent=0 // pred_region
    _
  $region5: #{squeezenet2d_forward.46} parent=0 // pred_fallthru
    _
  // Predicated region
  $region6: #{squeezenet2d_forward.46} parent=0 // pred_check
    _
  $region7: #{squeezenet2d_forward.46} parent=0 // pred_check_branch
    %11 = sbr.rel (0) target = $region9
  $region8: #{squeezenet2d_forward.46} parent=0 // pred_region
    _
  $region9: #{squeezenet2d_forward.46} parent=0 // pred_fallthru
    _
  // Predicated region
  $region10: #{squeezenet2d_forward.46} parent=0 // pred_check
    _
  $region11: #{squeezenet2d_forward.46} parent=0 // pred_check_branch
    %13 = sbr.rel (0) target = $region13
  $region12: #{squeezenet2d_forward.46} parent=0 // pred_region
    _
  $region13: #{squeezenet2d_forward.46} parent=0 // pred_fallthru
    _
  %v14 = vld [vmem:[%s0] sm:$0xff]
  %v15 = vld [vmem:[%s0 + $0x8] sm:$0xff]
  %v16 = vld [vmem:[%s0 + $0x10] sm:$0xff]
  %v17 = vld [vmem:[%s0 + $0x18] sm:$0xff]
  %v18 = vld [vmem:[%s0 + $0x20] sm:$0xff]
  %v19 = vld [vmem:[%s0 + $0x28] sm:$0xff]
  %v20 = vld [vmem:[%s0 + $0x30] sm:$0x3]
  %v21 = vld [vmem:[%s0 + $0x38] sm:$0x3]
  %v22 = vld [vmem:[%s0 + $0x40] sm:$0x3]
  %v23 = vld [vmem:[%s1] sm:$0xff]
  %v24 = vld [vmem:[%s1 + $0x8] sm:$0xff]
  %v25 = vld [vmem:[%s1 + $0x10] sm:$0xff]
  %v26 = vld [vmem:[%s1 + $0x18] sm:$0xff]
  %v27 = vld [vmem:[%s1 + $0x20] sm:$0xff]
  %v28 = vld [vmem:[%s1 + $0x28] sm:$0xff]
  %v29 = vld [vmem:[%s1 + $0x30] sm:$0xff]
  %v30 = vld [vmem:[%s1 + $0x38] sm:$0xff]
  %v31 = vld [vmem:[%s1 + $0x40] sm:$0xff]
  %v32 = vld [vmem:[%s1 + $0x48] sm:$0xff]
  %v33 = vld [vmem:[%s1 + $0x50] sm:$0xff]
  %v34 = vld [vmem:[%s1 + $0x58] sm:$0xff]
  %v35 = vld [vmem:[%s1 + $0x60] sm:$0xff]
  %v36 = vld [vmem:[%s1 + $0x68] sm:$0xff]
  %v37 = vld [vmem:[%s1 + $0x70] sm:$0xff]
  %v38 = vld [vmem:[%s1 + $0x78] sm:$0xff]
  %v39 = vld [vmem:[%s1 + $0x80] sm:$0xff]
  %v40 = vld [vmem:[%s1 + $0x88] sm:$0xff]
  %v41 = vld [vmem:[%s1 + $0x90] sm:$0xff]
  %v42 = vld [vmem:[%s1 + $0x98] sm:$0xff]
  %v43 = vld [vmem:[%s1 + $0xa0] sm:$0xff]
  %v44 = vld [vmem:[%s1 + $0xa8] sm:$0xff]
  %v45 = vld [vmem:[%s1 + $0xb0] sm:$0xff]
  %v46 = vld [vmem:[%s1 + $0xb8] sm:$0xff]
  %v47 = vld [vmem:[%s1 + $0xc0] sm:$0xff]
  %v48 = vld [vmem:[%s1 + $0xc8] sm:$0xff]
  %v49 = vld [vmem:[%s1 + $0xd0] sm:$0xff]
  %v50 = vld [vmem:[%s1 + $0xd8] sm:$0xff]
  %v51 = vld [vmem:[%s1 + $0xe0] sm:$0xff]
  %v52 = vld [vmem:[%s1 + $0xe8] sm:$0xff]
  %v53 = vld [vmem:[%s1 + $0xf0] sm:$0xff]
  %v54 = vld [vmem:[%s1 + $0xf8] sm:$0xff]
  %v55 = vld [vmem:[%s1 + $0x100] sm:$0xff]
  %v56 = vld [vmem:[%s1 + $0x108] sm:$0xff]
  %v57 = vld [vmem:[%s1 + $0x110] sm:$0xff]
  %v58 = vld [vmem:[%s1 + $0x118] sm:$0xff]
  %v59 = vld [vmem:[%s1 + $0x120] sm:$0xff]
  %v60 = vld [vmem:[%s1 + $0x128] sm:$0xff]
  %v61 = vld [vmem:[%s1 + $0x130] sm:$0xff]
  %v62 = vld [vmem:[%s1 + $0x138] sm:$0xff]
  %v63 = vld [vmem:[%s1 + $0x140] sm:$0xff]
  %v64 = vld [vmem:[%s1 + $0x148] sm:$0xff]
  %v65 = vld [vmem:[%s1 + $0x150] sm:$0xff]
  %v66 = vld [vmem:[%s1 + $0x158] sm:$0xff]
  %v67 = vld [vmem:[%s1 + $0x160] sm:$0xff]
  %v68 = vld [vmem:[%s1 + $0x168] sm:$0xff]
  %v69 = vld [vmem:[%s1 + $0x170] sm:$0xff]
  %v70 = vld [vmem:[%s1 + $0x178] sm:$0xff]
  %v71 = vld [vmem:[%s2] sm:$0x1]
  %v73 = vlaneseq
  %v74 = vshrl.u32 %v73, 7
  %v75 = vsub.s32 0, %v74
  %v76 = vrot.slane %v71, %v75
  %78 = vmatprep.subr.mxu0 0.0
  %79 = vmatpush1.msra.mxu0 %v23
  %80 = vmatprep.subr.mxu0 0.0
  %81 = vmatpush1.msra.mxu0 %v24
  %82 = vmatprep.subr.mxu0 0.0
  %83 = vmatpush1.msra.mxu0 %v25
  %84 = vmatprep.subr.mxu0 0.0
  %85 = vmatpush1.msra.mxu0 %v26
  %86 = vmatprep.subr.mxu0 0.0
  %87 = vmatpush1.msra.mxu0 %v27
  %88 = vmatprep.subr.mxu0 0.0
  %89 = vmatpush1.msra.mxu0 %v28
  %90 = vmatprep.subr.mxu0 0.0
  %91 = vmatpush1.msra.mxu0 %v29
  %92 = vmatprep.subr.mxu0 0.0
  %93 = vmatpush1.msra.mxu0 %v30
  %94 = vmatprep.subr.mxu0 0.0
  %95 = vmatpush1.msra.mxu0 %v31
  %96 = vmatprep.subr.mxu0 0.0
  %97 = vmatpush1.msra.mxu0 %v32
  %98 = vmatprep.subr.mxu0 0.0
  %99 = vmatpush1.msra.mxu0 %v33
  %100 = vmatprep.subr.mxu0 0.0
  %101 = vmatpush1.msra.mxu0 %v34
  %102 = vmatprep.subr.mxu0 0.0
  %103 = vmatpush1.msra.mxu0 %v35
  %104 = vmatprep.subr.mxu0 0.0
  %105 = vmatpush1.msra.mxu0 %v36
  %106 = vmatprep.subr.mxu0 0.0
  %107 = vmatpush1.msra.mxu0 %v37
  %108 = vmatprep.subr.mxu0 0.0
  %109 = vmatpush1.msra.mxu0 %v38
  %110 = vmatprep.subr.mxu0 0.0
  %111 = vmatpush1.msra.mxu0 %v39
  %112 = vmatprep.subr.mxu0 0.0
  %113 = vmatpush1.msra.mxu0 %v40
  %114 = vmatprep.subr.mxu0 0.0
  %115 = vmatpush1.msra.mxu0 %v41
  %116 = vmatprep.subr.mxu0 0.0
  %117 = vmatpush1.msra.mxu0 %v42
  %118 = vmatprep.subr.mxu0 0.0
  %119 = vmatpush1.msra.mxu0 %v43
  %120 = vmatprep.subr.mxu0 0.0
  %121 = vmatpush1.msra.mxu0 %v44
  %122 = vmatprep.subr.mxu0 0.0
  %123 = vmatpush1.msra.mxu0 %v45
  %124 = vmatprep.subr.mxu0 0.0
  %125 = vmatpush1.msra.mxu0 %v46
  %126 = vmatprep.subr.mxu0 0.0
  %127 = vmatpush1.msra.mxu0 %v47
  %128 = vmatprep.subr.mxu0 0.0
  %129 = vmatpush1.msra.mxu0 %v48
  %130 = vmatprep.subr.mxu0 0.0
  %131 = vmatpush1.msra.mxu0 %v49
  %132 = vmatprep.subr.mxu0 0.0
  %133 = vmatpush1.msra.mxu0 %v50
  %134 = vmatprep.subr.mxu0 0.0
  %135 = vmatpush1.msra.mxu0 %v51
  %136 = vmatprep.subr.mxu0 0.0
  %137 = vmatpush1.msra.mxu0 %v52
  %138 = vmatprep.subr.mxu0 0.0
  %139 = vmatpush1.msra.mxu0 %v53
  %140 = vmatprep.subr.mxu0 0.0
  %141 = vmatpush1.msra.mxu0 %v54
  %142 = vmatprep.mubr.f32.mxu0 %v15
  %143 = vmatmul.mubr.f32.gmra.mrb[0].mxu0 %v14
  %v144 = vpop.f32.mrb[0].mxu0
  %v145 = vadd.f32 %v76, %v144
  %v146 = vpop.f32.mrb[0].mxu0
  %147 = vmatprep.mubr.f32.mxu0 %v18
  %148 = vmatmul.mubr.f32.gmra.mrb[0].mxu0 %v17
  %v149 = vpop.f32.mrb[0].mxu0
  %v150 = vadd.f32 %v76, %v149
  %v151 = vpop.f32.mrb[0].mxu0
  %152 = vmatprep.mubr.f32.mxu0 %v21
  %153 = vmatmul.mubr.f32.gmra.mrb[0].mxu0 %v20
  %v154 = vpop.f32.mrb[0].mxu0
  %v155 = vadd.f32 %v76, %v154
  %v156 = vpop.f32.mrb[0].mxu0
  %157 = vdwg.mxu0
  %158 = vmatprep.subr.mxu0 0.0
  %159 = vmatpush1.msra.mxu0 %v55
  %160 = vmatprep.subr.mxu0 0.0
  %161 = vmatpush1.msra.mxu0 %v56
  %162 = vmatprep.subr.mxu0 0.0
  %163 = vmatpush1.msra.mxu0 %v57
  %164 = vmatprep.subr.mxu0 0.0
  %165 = vmatpush1.msra.mxu0 %v58
  %166 = vmatprep.subr.mxu0 0.0
  %167 = vmatpush1.msra.mxu0 %v59
  %168 = vmatprep.subr.mxu0 0.0
  %169 = vmatpush1.msra.mxu0 %v60
  %170 = vmatprep.subr.mxu0 0.0
  %171 = vmatpush1.msra.mxu0 %v61
  %172 = vmatprep.subr.mxu0 0.0
  %173 = vmatpush1.msra.mxu0 %v62
  %174 = vmatprep.subr.mxu0 0.0
  %175 = vmatpush1.msra.mxu0 %v63
  %176 = vmatprep.subr.mxu0 0.0
  %177 = vmatpush1.msra.mxu0 %v64
  %178 = vmatprep.subr.mxu0 0.0
  %179 = vmatpush1.msra.mxu0 %v65
  %180 = vmatprep.subr.mxu0 0.0
  %181 = vmatpush1.msra.mxu0 %v66
  %182 = vmatprep.subr.mxu0 0.0
  %183 = vmatpush1.msra.mxu0 %v67
  %184 = vmatprep.subr.mxu0 0.0
  %185 = vmatpush1.msra.mxu0 %v68
  %186 = vmatprep.subr.mxu0 0.0
  %187 = vmatpush1.msra.mxu0 %v69
  %188 = vmatprep.subr.mxu0 0.0
  %189 = vmatpush1.msra.mxu0 %v70
  %190 = vmatprep.subr.mxu0 0.0
  %191 = vmatpush1.msra.mxu0 0.0
  %192 = vmatprep.subr.mxu0 0.0
  %193 = vmatpush1.msra.mxu0 0.0
  %194 = vmatprep.subr.mxu0 0.0
  %195 = vmatpush1.msra.mxu0 0.0
  %196 = vmatprep.subr.mxu0 0.0
  %197 = vmatpush1.msra.mxu0 0.0
  %198 = vmatprep.subr.mxu0 0.0
  %199 = vmatpush1.msra.mxu0 0.0
  %200 = vmatprep.subr.mxu0 0.0
  %201 = vmatpush1.msra.mxu0 0.0
  %202 = vmatprep.subr.mxu0 0.0
  %203 = vmatpush1.msra.mxu0 0.0
  %204 = vmatprep.subr.mxu0 0.0
  %205 = vmatpush1.msra.mxu0 0.0
  %206 = vmatprep.subr.mxu0 0.0
  %207 = vmatpush1.msra.mxu0 0.0
  %208 = vmatprep.subr.mxu0 0.0
  %209 = vmatpush1.msra.mxu0 0.0
  %210 = vmatprep.subr.mxu0 0.0
  %211 = vmatpush1.msra.mxu0 0.0
  %212 = vmatprep.subr.mxu0 0.0
  %213 = vmatpush1.msra.mxu0 0.0
  %214 = vmatprep.subr.mxu0 0.0
  %215 = vmatpush1.msra.mxu0 0.0
  %216 = vmatprep.subr.mxu0 0.0
  %217 = vmatpush1.msra.mxu0 0.0
  %218 = vmatprep.subr.mxu0 0.0
  %219 = vmatpush1.msra.mxu0 0.0
  %220 = vmatprep.subr.mxu0 0.0
  %221 = vmatpush1.msra.mxu0 0.0
  %222 = vmatprep.mubr.f32.mxu0 0.0
  %223 = vmatmul.mubr.f32.gmra.mrb[0].mxu0 %v16
  %v224 = vpop.f32.mrb[0].mxu0
  %v225 = vadd.f32 %v145, %v224
  %v226 = vpop.f32.mrb[0].mxu0
  %227 = vmatprep.mubr.f32.mxu0 0.0
  %228 = vmatmul.mubr.f32.gmra.mrb[0].mxu0 %v19
  %v229 = vpop.f32.mrb[0].mxu0
  %v230 = vadd.f32 %v150, %v229
  %v231 = vpop.f32.mrb[0].mxu0
  %232 = vmatprep.mubr.f32.mxu0 0.0
  %233 = vmatmul.mubr.f32.gmra.mrb[0].mxu0 %v22
  %v234 = vpop.f32.mrb[0].mxu0
  %v235 = vadd.f32 %v155, %v234
  %v236 = vpop.f32.mrb[0].mxu0
  %237 = vdwg.mxu0
  %v238 = vmax.f32 %v225, 0.0
  %v239 = vmax.f32 %v230, 0.0
  %v240 = vmax.f32 %v235, 0.0
  %vm241 = vcmask 523264
  %242 = vst.msk [vmem:[%s3] sm:$0xff] %vm241, %v238
  %243 = vst.msk [vmem:[%s3 + $0x8] sm:$0xff] %vm241, %v239
  %vm244 = vcmask 517120
  %245 = vst.msk [vmem:[%s3 + $0x10] sm:$0x3] %vm244, %v240
  // Predicated region
  $region14: #{squeezenet2d_forward.46} parent=0 // pred_check
    _
  $region15: #{squeezenet2d_forward.46} parent=0 // pred_check_branch
    %247 = sbr.rel (0) target = $region17
  $region16: #{squeezenet2d_forward.46} parent=0 // pred_region
    _
  $region17: #{squeezenet2d_forward.46} parent=0 // pred_fallthru
    _
  // Predicated region
  $region18: #{squeezenet2d_forward.46} parent=0 // pred_check
    _
  $region19: #{squeezenet2d_forward.46} parent=0 // pred_check_branch
    %249 = sbr.rel (0) target = $region21
  $region20: #{squeezenet2d_forward.46} parent=0 // pred_region
    _
  $region21: #{squeezenet2d_forward.46} parent=0 // pred_fallthru
    _

// kernel: squeezenet2d_forward.47
$region0: #{squeezenet2d_forward.47}
  #allocation0 [shape = 'u32[]', space=smem, size = 0x4, offset = 0x4, fixed_abs, tag = 'smem constant byte address 0x4 - core index']
  #allocation1 [shape = 'u32[144,128]{1,0:T(1,128)}', space=vmem, size = 0x12000, scoped, tag = 'internal scratch']
  %s0 = inlined_call_operand.vmem [shape: f32[18,64], index: 0, kind: input, shape index: {}]
  %s1 = inlined_call_operand.vmem [shape: f32[64,256], index: 1, kind: input, shape index: {}]
  %s2 = inlined_call_operand.vmem [shape: f32[1,256], index: 2, kind: input, shape index: {}]
  %s3 = inlined_call_operand.vmem [shape: f32[18,256], index: 3, kind: output, shape index: {}]
  %s4 = sld [smem:[#allocation0]]
  $region22: #{squeezenet2d_forward.47} parent=0
    _
  %s6 = ssub.s32 1, %s4
  %s7 = scalar_select 0, %s6, %s4
  // Predicated region
  $region2: #{squeezenet2d_forward.47} parent=0 // pred_check
    _
  $region3: #{squeezenet2d_forward.47} parent=0 // pred_check_branch
    %9 = sbr.rel (0) target = $region5
  $region4: #{squeezenet2d_forward.47} parent=0 // pred_region
    _
  $region5: #{squeezenet2d_forward.47} parent=0 // pred_fallthru
    _
  // Predicated region
  $region6: #{squeezenet2d_forward.47} parent=0 // pred_check
    _
  $region7: #{squeezenet2d_forward.47} parent=0 // pred_check_branch
    %11 = sbr.rel (0) target = $region9
  $region8: #{squeezenet2d_forward.47} parent=0 // pred_region
    _
  $region9: #{squeezenet2d_forward.47} parent=0 // pred_fallthru
    _
  // Predicated region
  $region10: #{squeezenet2d_forward.47} parent=0 // pred_check
    _
  $region11: #{squeezenet2d_forward.47} parent=0 // pred_check_branch
    %13 = sbr.rel (0) target = $region13
  $region12: #{squeezenet2d_forward.47} parent=0 // pred_region
    _
  $region13: #{squeezenet2d_forward.47} parent=0 // pred_fallthru
    _
  %v14 = vld [vmem:[%s0] sm:$0xff]
  %v15 = vld [vmem:[%s0 + $0x8] sm:$0xff]
  %v16 = vld [vmem:[%s0 + $0x10] sm:$0x3]
  %v17 = vld [vmem:[%s1] sm:$0xff]
  %v18 = vld [vmem:[%s1 + $0x8] sm:$0xff]
  %v19 = vld [vmem:[%s1 + $0x10] sm:$0xff]
  %v20 = vld [vmem:[%s1 + $0x18] sm:$0xff]
  %v21 = vld [vmem:[%s1 + $0x20] sm:$0xff]
  %v22 = vld [vmem:[%s1 + $0x28] sm:$0xff]
  %v23 = vld [vmem:[%s1 + $0x30] sm:$0xff]
  %v24 = vld [vmem:[%s1 + $0x38] sm:$0xff]
  %v25 = vld [vmem:[%s1 + $0x40] sm:$0xff]
  %v26 = vld [vmem:[%s1 + $0x48] sm:$0xff]
  %v27 = vld [vmem:[%s1 + $0x50] sm:$0xff]
  %v28 = vld [vmem:[%s1 + $0x58] sm:$0xff]
  %v29 = vld [vmem:[%s1 + $0x60] sm:$0xff]
  %v30 = vld [vmem:[%s1 + $0x68] sm:$0xff]
  %v31 = vld [vmem:[%s1 + $0x70] sm:$0xff]
  %v32 = vld [vmem:[%s1 + $0x78] sm:$0xff]
  %v33 = vld [vmem:[%s2] sm:$0x3]
  %v35 = vlaneseq
  %v36 = vshrl.u32 %v35, 7
  %v37 = vsub.s32 0, %v36
  %v38 = vrot.slane %v33, %v37
  %v39 = vlaneseq
  %v40 = vshrl.u32 %v39, 7
  %v41 = vsub.s32 1, %v40
  %v42 = vrot.slane %v33, %v41
  %vm45 = vcmask 523264
  %v47 = vsel %vm45, %v14, 0
  %v50 = vsel %vm45, %v15, 0
  %v53 = vsel %vm45, %v16, 0
  %55 = vmatprep.subr.mxu0 %v18
  %56 = vmatpush1.msra.mxu0 %v17
  %57 = vmatprep.subr.mxu0 %v20
  %58 = vmatpush1.msra.mxu0 %v19
  %59 = vmatprep.subr.mxu0 %v22
  %60 = vmatpush1.msra.mxu0 %v21
  %61 = vmatprep.subr.mxu0 %v24
  %62 = vmatpush1.msra.mxu0 %v23
  %63 = vmatprep.subr.mxu0 %v26
  %64 = vmatpush1.msra.mxu0 %v25
  %65 = vmatprep.subr.mxu0 %v28
  %66 = vmatpush1.msra.mxu0 %v27
  %67 = vmatprep.subr.mxu0 %v30
  %68 = vmatpush1.msra.mxu0 %v29
  %69 = vmatprep.subr.mxu0 %v32
  %70 = vmatpush1.msra.mxu0 %v31
  %71 = vmatprep.subr.mxu0 0.0
  %72 = vmatpush1.msra.mxu0 0.0
  %73 = vmatprep.subr.mxu0 0.0
  %74 = vmatpush1.msra.mxu0 0.0
  %75 = vmatprep.subr.mxu0 0.0
  %76 = vmatpush1.msra.mxu0 0.0
  %77 = vmatprep.subr.mxu0 0.0
  %78 = vmatpush1.msra.mxu0 0.0
  %79 = vmatprep.subr.mxu0 0.0
  %80 = vmatpush1.msra.mxu0 0.0
  %81 = vmatprep.subr.mxu0 0.0
  %82 = vmatpush1.msra.mxu0 0.0
  %83 = vmatprep.subr.mxu0 0.0
  %84 = vmatpush1.msra.mxu0 0.0
  %85 = vmatprep.subr.mxu0 0.0
  %86 = vmatpush1.msra.mxu0 0.0
  %87 = vmatprep.subr.mxu0 0.0
  %88 = vmatpush1.msra.mxu0 0.0
  %89 = vmatprep.subr.mxu0 0.0
  %90 = vmatpush1.msra.mxu0 0.0
  %91 = vmatprep.subr.mxu0 0.0
  %92 = vmatpush1.msra.mxu0 0.0
  %93 = vmatprep.subr.mxu0 0.0
  %94 = vmatpush1.msra.mxu0 0.0
  %95 = vmatprep.subr.mxu0 0.0
  %96 = vmatpush1.msra.mxu0 0.0
  %97 = vmatprep.subr.mxu0 0.0
  %98 = vmatpush1.msra.mxu0 0.0
  %99 = vmatprep.subr.mxu0 0.0
  %100 = vmatpush1.msra.mxu0 0.0
  %101 = vmatprep.subr.mxu0 0.0
  %102 = vmatpush1.msra.mxu0 0.0
  %103 = vmatprep.subr.mxu0 0.0
  %104 = vmatpush1.msra.mxu0 0.0
  %105 = vmatprep.subr.mxu0 0.0
  %106 = vmatpush1.msra.mxu0 0.0
  %107 = vmatprep.subr.mxu0 0.0
  %108 = vmatpush1.msra.mxu0 0.0
  %109 = vmatprep.subr.mxu0 0.0
  %110 = vmatpush1.msra.mxu0 0.0
  %111 = vmatprep.subr.mxu0 0.0
  %112 = vmatpush1.msra.mxu0 0.0
  %113 = vmatprep.subr.mxu0 0.0
  %114 = vmatpush1.msra.mxu0 0.0
  %115 = vmatprep.subr.mxu0 0.0
  %116 = vmatpush1.msra.mxu0 0.0
  %117 = vmatprep.subr.mxu0 0.0
  %118 = vmatpush1.msra.mxu0 0.0
  %119 = vmatprep.mubr.f32.mxu0 0.0
  %120 = vmatmul.mubr.f32.gmra.mrb[0].mxu0 %v47
  %v121 = vpop.f32.mrb[0].mxu0
  %v122 = vadd.f32 %v38, %v121
  %v123 = vpop.f32.mrb[0].mxu0
  %v124 = vadd.f32 %v42, %v123
  %125 = vmatprep.mubr.f32.mxu0 0.0
  %126 = vmatmul.mubr.f32.gmra.mrb[0].mxu0 %v50
  %v127 = vpop.f32.mrb[0].mxu0
  %v128 = vadd.f32 %v38, %v127
  %v129 = vpop.f32.mrb[0].mxu0
  %v130 = vadd.f32 %v42, %v129
  %131 = vmatprep.mubr.f32.mxu0 0.0
  %132 = vmatmul.mubr.f32.gmra.mrb[0].mxu0 %v53
  %v133 = vpop.f32.mrb[0].mxu0
  %v134 = vadd.f32 %v38, %v133
  %v135 = vpop.f32.mrb[0].mxu0
  %v136 = vadd.f32 %v42, %v135
  %137 = vdwg.mxu0
  %v138 = vmax.f32 %v122, 0.0
  %v139 = vmax.f32 %v124, 0.0
  %v140 = vmax.f32 %v128, 0.0
  %v141 = vmax.f32 %v130, 0.0
  %v142 = vmax.f32 %v134, 0.0
  %v143 = vmax.f32 %v136, 0.0
  %144 = vst [vmem:[%s3] sm:$0xff] %v138
  %145 = vst [vmem:[%s3 + $0x8] sm:$0xff] %v139
  %146 = vst [vmem:[%s3 + $0x10] sm:$0xff] %v140
  %147 = vst [vmem:[%s3 + $0x18] sm:$0xff] %v141
  %148 = vst [vmem:[%s3 + $0x20] sm:$0x3] %v142
  %149 = vst [vmem:[%s3 + $0x28] sm:$0x3] %v143
  // Predicated region
  $region14: #{squeezenet2d_forward.47} parent=0 // pred_check
    _
  $region15: #{squeezenet2d_forward.47} parent=0 // pred_check_branch
    %151 = sbr.rel (0) target = $region17
  $region16: #{squeezenet2d_forward.47} parent=0 // pred_region
    _
  $region17: #{squeezenet2d_forward.47} parent=0 // pred_fallthru
    _
  // Predicated region
  $region18: #{squeezenet2d_forward.47} parent=0 // pred_check
    _
  $region19: #{squeezenet2d_forward.47} parent=0 // pred_check_branch
    %153 = sbr.rel (0) target = $region21
  $region20: #{squeezenet2d_forward.47} parent=0 // pred_region
    _
  $region21: #{squeezenet2d_forward.47} parent=0 // pred_fallthru
    _

// kernel: squeezenet2d_forward.48
$region0: #{squeezenet2d_forward.48}
  #allocation0 [shape = 'u32[]', space=smem, size = 0x4, offset = 0x4, fixed_abs, tag = 'smem constant byte address 0x4 - core index']
  #allocation1 [shape = 'u32[144,128]{1,0:T(1,128)}', space=vmem, size = 0x12000, scoped, tag = 'internal scratch']
  %s0 = inlined_call_operand.vmem [shape: f32[18,576], index: 0, kind: input, shape index: {}]
  %s1 = inlined_call_operand.vmem [shape: f32[576,256], index: 1, kind: input, shape index: {}]
  %s2 = inlined_call_operand.vmem [shape: f32[1,256], index: 2, kind: input, shape index: {}]
  %s3 = inlined_call_operand.vmem [shape: f32[18,256], index: 3, kind: output, shape index: {}]
  %s4 = sld [smem:[#allocation0]]
  $region22: #{squeezenet2d_forward.48} parent=0
    _
  %s6 = ssub.s32 1, %s4
  %s7 = scalar_select 0, %s6, %s4
  // Predicated region
  $region2: #{squeezenet2d_forward.48} parent=0 // pred_check
    _
  $region3: #{squeezenet2d_forward.48} parent=0 // pred_check_branch
    %9 = sbr.rel (0) target = $region5
  $region4: #{squeezenet2d_forward.48} parent=0 // pred_region
    _
  $region5: #{squeezenet2d_forward.48} parent=0 // pred_fallthru
    _
  // Predicated region
  $region6: #{squeezenet2d_forward.48} parent=0 // pred_check
    _
  $region7: #{squeezenet2d_forward.48} parent=0 // pred_check_branch
    %11 = sbr.rel (0) target = $region9
  $region8: #{squeezenet2d_forward.48} parent=0 // pred_region
    _
  $region9: #{squeezenet2d_forward.48} parent=0 // pred_fallthru
    _
  // Predicated region
  $region10: #{squeezenet2d_forward.48} parent=0 // pred_check
    _
  $region11: #{squeezenet2d_forward.48} parent=0 // pred_check_branch
    %13 = sbr.rel (0) target = $region13
  $region12: #{squeezenet2d_forward.48} parent=0 // pred_region
    _
  $region13: #{squeezenet2d_forward.48} parent=0 // pred_fallthru
    _
  %v14 = vld [vmem:[%s0] sm:$0xff]
  %v15 = vld [vmem:[%s0 + $0x8] sm:$0xff]
  %v16 = vld [vmem:[%s0 + $0x10] sm:$0xff]
  %v17 = vld [vmem:[%s0 + $0x18] sm:$0xff]
  %v18 = vld [vmem:[%s0 + $0x20] sm:$0xff]
  %v19 = vld [vmem:[%s0 + $0x28] sm:$0xff]
  %v20 = vld [vmem:[%s0 + $0x30] sm:$0xff]
  %v21 = vld [vmem:[%s0 + $0x38] sm:$0xff]
  %v22 = vld [vmem:[%s0 + $0x40] sm:$0xff]
  %v23 = vld [vmem:[%s0 + $0x48] sm:$0xff]
  %v24 = vld [vmem:[%s0 + $0x50] sm:$0x3]
  %v25 = vld [vmem:[%s0 + $0x58] sm:$0x3]
  %v26 = vld [vmem:[%s0 + $0x60] sm:$0x3]
  %v27 = vld [vmem:[%s0 + $0x68] sm:$0x3]
  %v28 = vld [vmem:[%s0 + $0x70] sm:$0x3]
  %v29 = vld [vmem:[%s1] sm:$0xff]
  %v30 = vld [vmem:[%s1 + $0x8] sm:$0xff]
  %v31 = vld [vmem:[%s1 + $0x10] sm:$0xff]
  %v32 = vld [vmem:[%s1 + $0x18] sm:$0xff]
  %v33 = vld [vmem:[%s1 + $0x20] sm:$0xff]
  %v34 = vld [vmem:[%s1 + $0x28] sm:$0xff]
  %v35 = vld [vmem:[%s1 + $0x30] sm:$0xff]
  %v36 = vld [vmem:[%s1 + $0x38] sm:$0xff]
  %v37 = vld [vmem:[%s1 + $0x40] sm:$0xff]
  %v38 = vld [vmem:[%s1 + $0x48] sm:$0xff]
  %v39 = vld [vmem:[%s1 + $0x50] sm:$0xff]
  %v40 = vld [vmem:[%s1 + $0x58] sm:$0xff]
  %v41 = vld [vmem:[%s1 + $0x60] sm:$0xff]
  %v42 = vld [vmem:[%s1 + $0x68] sm:$0xff]
  %v43 = vld [vmem:[%s1 + $0x70] sm:$0xff]
  %v44 = vld [vmem:[%s1 + $0x78] sm:$0xff]
  %v45 = vld [vmem:[%s1 + $0x80] sm:$0xff]
  %v46 = vld [vmem:[%s1 + $0x88] sm:$0xff]
  %v47 = vld [vmem:[%s1 + $0x90] sm:$0xff]
  %v48 = vld [vmem:[%s1 + $0x98] sm:$0xff]
  %v49 = vld [vmem:[%s1 + $0xa0] sm:$0xff]
  %v50 = vld [vmem:[%s1 + $0xa8] sm:$0xff]
  %v51 = vld [vmem:[%s1 + $0xb0] sm:$0xff]
  %v52 = vld [vmem:[%s1 + $0xb8] sm:$0xff]
  %v53 = vld [vmem:[%s1 + $0xc0] sm:$0xff]
  %v54 = vld [vmem:[%s1 + $0xc8] sm:$0xff]
  %v55 = vld [vmem:[%s1 + $0xd0] sm:$0xff]
  %v56 = vld [vmem:[%s1 + $0xd8] sm:$0xff]
  %v57 = vld [vmem:[%s1 + $0xe0] sm:$0xff]
  %v58 = vld [vmem:[%s1 + $0xe8] sm:$0xff]
  %v59 = vld [vmem:[%s1 + $0xf0] sm:$0xff]
  %v60 = vld [vmem:[%s1 + $0xf8] sm:$0xff]
  %v61 = vld [vmem:[%s1 + $0x100] sm:$0xff]
  %v62 = vld [vmem:[%s1 + $0x108] sm:$0xff]
  %v63 = vld [vmem:[%s1 + $0x110] sm:$0xff]
  %v64 = vld [vmem:[%s1 + $0x118] sm:$0xff]
  %v65 = vld [vmem:[%s1 + $0x120] sm:$0xff]
  %v66 = vld [vmem:[%s1 + $0x128] sm:$0xff]
  %v67 = vld [vmem:[%s1 + $0x130] sm:$0xff]
  %v68 = vld [vmem:[%s1 + $0x138] sm:$0xff]
  %v69 = vld [vmem:[%s1 + $0x140] sm:$0xff]
  %v70 = vld [vmem:[%s1 + $0x148] sm:$0xff]
  %v71 = vld [vmem:[%s1 + $0x150] sm:$0xff]
  %v72 = vld [vmem:[%s1 + $0x158] sm:$0xff]
  %v73 = vld [vmem:[%s1 + $0x160] sm:$0xff]
  %v74 = vld [vmem:[%s1 + $0x168] sm:$0xff]
  %v75 = vld [vmem:[%s1 + $0x170] sm:$0xff]
  %v76 = vld [vmem:[%s1 + $0x178] sm:$0xff]
  %v77 = vld [vmem:[%s1 + $0x180] sm:$0xff]
  %v78 = vld [vmem:[%s1 + $0x188] sm:$0xff]
  %v79 = vld [vmem:[%s1 + $0x190] sm:$0xff]
  %v80 = vld [vmem:[%s1 + $0x198] sm:$0xff]
  %v81 = vld [vmem:[%s1 + $0x1a0] sm:$0xff]
  %v82 = vld [vmem:[%s1 + $0x1a8] sm:$0xff]
  %v83 = vld [vmem:[%s1 + $0x1b0] sm:$0xff]
  %v84 = vld [vmem:[%s1 + $0x1b8] sm:$0xff]
  %v85 = vld [vmem:[%s1 + $0x1c0] sm:$0xff]
  %v86 = vld [vmem:[%s1 + $0x1c8] sm:$0xff]
  %v87 = vld [vmem:[%s1 + $0x1d0] sm:$0xff]
  %v88 = vld [vmem:[%s1 + $0x1d8] sm:$0xff]
  %v89 = vld [vmem:[%s1 + $0x1e0] sm:$0xff]
  %v90 = vld [vmem:[%s1 + $0x1e8] sm:$0xff]
  %v91 = vld [vmem:[%s1 + $0x1f0] sm:$0xff]
  %v92 = vld [vmem:[%s1 + $0x1f8] sm:$0xff]
  %v93 = vld [vmem:[%s1 + $0x200] sm:$0xff]
  %v94 = vld [vmem:[%s1 + $0x208] sm:$0xff]
  %v95 = vld [vmem:[%s1 + $0x210] sm:$0xff]
  %v96 = vld [vmem:[%s1 + $0x218] sm:$0xff]
  %v97 = vld [vmem:[%s1 + $0x220] sm:$0xff]
  %v98 = vld [vmem:[%s1 + $0x228] sm:$0xff]
  %v99 = vld [vmem:[%s1 + $0x230] sm:$0xff]
  %v100 = vld [vmem:[%s1 + $0x238] sm:$0xff]
  %v101 = vld [vmem:[%s1 + $0x240] sm:$0xff]
  %v102 = vld [vmem:[%s1 + $0x248] sm:$0xff]
  %v103 = vld [vmem:[%s1 + $0x250] sm:$0xff]
  %v104 = vld [vmem:[%s1 + $0x258] sm:$0xff]
  %v105 = vld [vmem:[%s1 + $0x260] sm:$0xff]
  %v106 = vld [vmem:[%s1 + $0x268] sm:$0xff]
  %v107 = vld [vmem:[%s1 + $0x270] sm:$0xff]
  %v108 = vld [vmem:[%s1 + $0x278] sm:$0xff]
  %v109 = vld [vmem:[%s1 + $0x280] sm:$0xff]
  %v110 = vld [vmem:[%s1 + $0x288] sm:$0xff]
  %v111 = vld [vmem:[%s1 + $0x290] sm:$0xff]
  %v112 = vld [vmem:[%s1 + $0x298] sm:$0xff]
  %v113 = vld [vmem:[%s1 + $0x2a0] sm:$0xff]
  %v114 = vld [vmem:[%s1 + $0x2a8] sm:$0xff]
  %v115 = vld [vmem:[%s1 + $0x2b0] sm:$0xff]
  %v116 = vld [vmem:[%s1 + $0x2b8] sm:$0xff]
  %v117 = vld [vmem:[%s1 + $0x2c0] sm:$0xff]
  %v118 = vld [vmem:[%s1 + $0x2c8] sm:$0xff]
  %v119 = vld [vmem:[%s1 + $0x2d0] sm:$0xff]
  %v120 = vld [vmem:[%s1 + $0x2d8] sm:$0xff]
  %v121 = vld [vmem:[%s1 + $0x2e0] sm:$0xff]
  %v122 = vld [vmem:[%s1 + $0x2e8] sm:$0xff]
  %v123 = vld [vmem:[%s1 + $0x2f0] sm:$0xff]
  %v124 = vld [vmem:[%s1 + $0x2f8] sm:$0xff]
  %v125 = vld [vmem:[%s1 + $0x300] sm:$0xff]
  %v126 = vld [vmem:[%s1 + $0x308] sm:$0xff]
  %v127 = vld [vmem:[%s1 + $0x310] sm:$0xff]
  %v128 = vld [vmem:[%s1 + $0x318] sm:$0xff]
  %v129 = vld [vmem:[%s1 + $0x320] sm:$0xff]
  %v130 = vld [vmem:[%s1 + $0x328] sm:$0xff]
  %v131 = vld [vmem:[%s1 + $0x330] sm:$0xff]
  %v132 = vld [vmem:[%s1 + $0x338] sm:$0xff]
  %v133 = vld [vmem:[%s1 + $0x340] sm:$0xff]
  %v134 = vld [vmem:[%s1 + $0x348] sm:$0xff]
  %v135 = vld [vmem:[%s1 + $0x350] sm:$0xff]
  %v136 = vld [vmem:[%s1 + $0x358] sm:$0xff]
  %v137 = vld [vmem:[%s1 + $0x360] sm:$0xff]
  %v138 = vld [vmem:[%s1 + $0x368] sm:$0xff]
  %v139 = vld [vmem:[%s1 + $0x370] sm:$0xff]
  %v140 = vld [vmem:[%s1 + $0x378] sm:$0xff]
  %v141 = vld [vmem:[%s1 + $0x380] sm:$0xff]
  %v142 = vld [vmem:[%s1 + $0x388] sm:$0xff]
  %v143 = vld [vmem:[%s1 + $0x390] sm:$0xff]
  %v144 = vld [vmem:[%s1 + $0x398] sm:$0xff]
  %v145 = vld [vmem:[%s1 + $0x3a0] sm:$0xff]
  %v146 = vld [vmem:[%s1 + $0x3a8] sm:$0xff]
  %v147 = vld [vmem:[%s1 + $0x3b0] sm:$0xff]
  %v148 = vld [vmem:[%s1 + $0x3b8] sm:$0xff]
  %v149 = vld [vmem:[%s1 + $0x3c0] sm:$0xff]
  %v150 = vld [vmem:[%s1 + $0x3c8] sm:$0xff]
  %v151 = vld [vmem:[%s1 + $0x3d0] sm:$0xff]
  %v152 = vld [vmem:[%s1 + $0x3d8] sm:$0xff]
  %v153 = vld [vmem:[%s1 + $0x3e0] sm:$0xff]
  %v154 = vld [vmem:[%s1 + $0x3e8] sm:$0xff]
  %v155 = vld [vmem:[%s1 + $0x3f0] sm:$0xff]
  %v156 = vld [vmem:[%s1 + $0x3f8] sm:$0xff]
  %v157 = vld [vmem:[%s1 + $0x400] sm:$0xff]
  %v158 = vld [vmem:[%s1 + $0x408] sm:$0xff]
  %v159 = vld [vmem:[%s1 + $0x410] sm:$0xff]
  %v160 = vld [vmem:[%s1 + $0x418] sm:$0xff]
  %v161 = vld [vmem:[%s1 + $0x420] sm:$0xff]
  %v162 = vld [vmem:[%s1 + $0x428] sm:$0xff]
  %v163 = vld [vmem:[%s1 + $0x430] sm:$0xff]
  %v164 = vld [vmem:[%s1 + $0x438] sm:$0xff]
  %v165 = vld [vmem:[%s1 + $0x440] sm:$0xff]
  %v166 = vld [vmem:[%s1 + $0x448] sm:$0xff]
  %v167 = vld [vmem:[%s1 + $0x450] sm:$0xff]
  %v168 = vld [vmem:[%s1 + $0x458] sm:$0xff]
  %v169 = vld [vmem:[%s1 + $0x460] sm:$0xff]
  %v170 = vld [vmem:[%s1 + $0x468] sm:$0xff]
  %v171 = vld [vmem:[%s1 + $0x470] sm:$0xff]
  %v172 = vld [vmem:[%s1 + $0x478] sm:$0xff]
  %v173 = vld [vmem:[%s2] sm:$0x3]
  %v175 = vlaneseq
  %v176 = vshrl.u32 %v175, 7
  %v177 = vsub.s32 0, %v176
  %v178 = vrot.slane %v173, %v177
  %v179 = vlaneseq
  %v180 = vshrl.u32 %v179, 7
  %v181 = vsub.s32 1, %v180
  %v182 = vrot.slane %v173, %v181
  %vm185 = vcmask 523264
  %v187 = vsel %vm185, %v18, 0
  %v190 = vsel %vm185, %v23, 0
  %v193 = vsel %vm185, %v28, 0
  %195 = vmatprep.subr.mxu0 %v30
  %196 = vmatpush1.msra.mxu0 %v29
  %197 = vmatprep.subr.mxu0 %v32
  %198 = vmatpush1.msra.mxu0 %v31
  %199 = vmatprep.subr.mxu0 %v34
  %200 = vmatpush1.msra.mxu0 %v33
  %201 = vmatprep.subr.mxu0 %v36
  %202 = vmatpush1.msra.mxu0 %v35
  %203 = vmatprep.subr.mxu0 %v38
  %204 = vmatpush1.msra.mxu0 %v37
  %205 = vmatprep.subr.mxu0 %v40
  %206 = vmatpush1.msra.mxu0 %v39
  %207 = vmatprep.subr.mxu0 %v42
  %208 = vmatpush1.msra.mxu0 %v41
  %209 = vmatprep.subr.mxu0 %v44
  %210 = vmatpush1.msra.mxu0 %v43
  %211 = vmatprep.subr.mxu0 %v46
  %212 = vmatpush1.msra.mxu0 %v45
  %213 = vmatprep.subr.mxu0 %v48
  %214 = vmatpush1.msra.mxu0 %v47
  %215 = vmatprep.subr.mxu0 %v50
  %216 = vmatpush1.msra.mxu0 %v49
  %217 = vmatprep.subr.mxu0 %v52
  %218 = vmatpush1.msra.mxu0 %v51
  %219 = vmatprep.subr.mxu0 %v54
  %220 = vmatpush1.msra.mxu0 %v53
  %221 = vmatprep.subr.mxu0 %v56
  %222 = vmatpush1.msra.mxu0 %v55
  %223 = vmatprep.subr.mxu0 %v58
  %224 = vmatpush1.msra.mxu0 %v57
  %225 = vmatprep.subr.mxu0 %v60
  %226 = vmatpush1.msra.mxu0 %v59
  %227 = vmatprep.subr.mxu0 %v62
  %228 = vmatpush1.msra.mxu0 %v61
  %229 = vmatprep.subr.mxu0 %v64
  %230 = vmatpush1.msra.mxu0 %v63
  %231 = vmatprep.subr.mxu0 %v66
  %232 = vmatpush1.msra.mxu0 %v65
  %233 = vmatprep.subr.mxu0 %v68
  %234 = vmatpush1.msra.mxu0 %v67
  %235 = vmatprep.subr.mxu0 %v70
  %236 = vmatpush1.msra.mxu0 %v69
  %237 = vmatprep.subr.mxu0 %v72
  %238 = vmatpush1.msra.mxu0 %v71
  %239 = vmatprep.subr.mxu0 %v74
  %240 = vmatpush1.msra.mxu0 %v73
  %241 = vmatprep.subr.mxu0 %v76
  %242 = vmatpush1.msra.mxu0 %v75
  %243 = vmatprep.subr.mxu0 %v78
  %244 = vmatpush1.msra.mxu0 %v77
  %245 = vmatprep.subr.mxu0 %v80
  %246 = vmatpush1.msra.mxu0 %v79
  %247 = vmatprep.subr.mxu0 %v82
  %248 = vmatpush1.msra.mxu0 %v81
  %249 = vmatprep.subr.mxu0 %v84
  %250 = vmatpush1.msra.mxu0 %v83
  %251 = vmatprep.subr.mxu0 %v86
  %252 = vmatpush1.msra.mxu0 %v85
  %253 = vmatprep.subr.mxu0 %v88
  %254 = vmatpush1.msra.mxu0 %v87
  %255 = vmatprep.subr.mxu0 %v90
  %256 = vmatpush1.msra.mxu0 %v89
  %257 = vmatprep.subr.mxu0 %v92
  %258 = vmatpush1.msra.mxu0 %v91
  %259 = vmatprep.mubr.f32.mxu0 %v15
  %260 = vmatmul.mubr.f32.gmra.mrb[0].mxu0 %v14
  %v261 = vpop.f32.mrb[0].mxu0
  %v262 = vadd.f32 %v178, %v261
  %v263 = vpop.f32.mrb[0].mxu0
  %v264 = vadd.f32 %v182, %v263
  %265 = vmatprep.mubr.f32.mxu0 %v20
  %266 = vmatmul.mubr.f32.gmra.mrb[0].mxu0 %v19
  %v267 = vpop.f32.mrb[0].mxu0
  %v268 = vadd.f32 %v178, %v267
  %v269 = vpop.f32.mrb[0].mxu0
  %v270 = vadd.f32 %v182, %v269
  %271 = vmatprep.mubr.f32.mxu0 %v25
  %272 = vmatmul.mubr.f32.gmra.mrb[0].mxu0 %v24
  %v273 = vpop.f32.mrb[0].mxu0
  %v274 = vadd.f32 %v178, %v273
  %v275 = vpop.f32.mrb[0].mxu0
  %v276 = vadd.f32 %v182, %v275
  %277 = vdwg.mxu0
  %278 = vmatprep.subr.mxu0 %v94
  %279 = vmatpush1.msra.mxu0 %v93
  %280 = vmatprep.subr.mxu0 %v96
  %281 = vmatpush1.msra.mxu0 %v95
  %282 = vmatprep.subr.mxu0 %v98
  %283 = vmatpush1.msra.mxu0 %v97
  %284 = vmatprep.subr.mxu0 %v100
  %285 = vmatpush1.msra.mxu0 %v99
  %286 = vmatprep.subr.mxu0 %v102
  %287 = vmatpush1.msra.mxu0 %v101
  %288 = vmatprep.subr.mxu0 %v104
  %289 = vmatpush1.msra.mxu0 %v103
  %290 = vmatprep.subr.mxu0 %v106
  %291 = vmatpush1.msra.mxu0 %v105
  %292 = vmatprep.subr.mxu0 %v108
  %293 = vmatpush1.msra.mxu0 %v107
  %294 = vmatprep.subr.mxu0 %v110
  %295 = vmatpush1.msra.mxu0 %v109
  %296 = vmatprep.subr.mxu0 %v112
  %297 = vmatpush1.msra.mxu0 %v111
  %298 = vmatprep.subr.mxu0 %v114
  %299 = vmatpush1.msra.mxu0 %v113
  %300 = vmatprep.subr.mxu0 %v116
  %301 = vmatpush1.msra.mxu0 %v115
  %302 = vmatprep.subr.mxu0 %v118
  %303 = vmatpush1.msra.mxu0 %v117
  %304 = vmatprep.subr.mxu0 %v120
  %305 = vmatpush1.msra.mxu0 %v119
  %306 = vmatprep.subr.mxu0 %v122
  %307 = vmatpush1.msra.mxu0 %v121
  %308 = vmatprep.subr.mxu0 %v124
  %309 = vmatpush1.msra.mxu0 %v123
  %310 = vmatprep.subr.mxu0 %v126
  %311 = vmatpush1.msra.mxu0 %v125
  %312 = vmatprep.subr.mxu0 %v128
  %313 = vmatpush1.msra.mxu0 %v127
  %314 = vmatprep.subr.mxu0 %v130
  %315 = vmatpush1.msra.mxu0 %v129
  %316 = vmatprep.subr.mxu0 %v132
  %317 = vmatpush1.msra.mxu0 %v131
  %318 = vmatprep.subr.mxu0 %v134
  %319 = vmatpush1.msra.mxu0 %v133
  %320 = vmatprep.subr.mxu0 %v136
  %321 = vmatpush1.msra.mxu0 %v135
  %322 = vmatprep.subr.mxu0 %v138
  %323 = vmatpush1.msra.mxu0 %v137
  %324 = vmatprep.subr.mxu0 %v140
  %325 = vmatpush1.msra.mxu0 %v139
  %326 = vmatprep.subr.mxu0 %v142
  %327 = vmatpush1.msra.mxu0 %v141
  %328 = vmatprep.subr.mxu0 %v144
  %329 = vmatpush1.msra.mxu0 %v143
  %330 = vmatprep.subr.mxu0 %v146
  %331 = vmatpush1.msra.mxu0 %v145
  %332 = vmatprep.subr.mxu0 %v148
  %333 = vmatpush1.msra.mxu0 %v147
  %334 = vmatprep.subr.mxu0 %v150
  %335 = vmatpush1.msra.mxu0 %v149
  %336 = vmatprep.subr.mxu0 %v152
  %337 = vmatpush1.msra.mxu0 %v151
  %338 = vmatprep.subr.mxu0 %v154
  %339 = vmatpush1.msra.mxu0 %v153
  %340 = vmatprep.subr.mxu0 %v156
  %341 = vmatpush1.msra.mxu0 %v155
  %342 = vmatprep.mubr.f32.mxu0 %v17
  %343 = vmatmul.mubr.f32.gmra.mrb[0].mxu0 %v16
  %v344 = vpop.f32.mrb[0].mxu0
  %v345 = vadd.f32 %v262, %v344
  %v346 = vpop.f32.mrb[0].mxu0
  %v347 = vadd.f32 %v264, %v346
  %348 = vmatprep.mubr.f32.mxu0 %v22
  %349 = vmatmul.mubr.f32.gmra.mrb[0].mxu0 %v21
  %v350 = vpop.f32.mrb[0].mxu0
  %v351 = vadd.f32 %v268, %v350
  %v352 = vpop.f32.mrb[0].mxu0
  %v353 = vadd.f32 %v270, %v352
  %354 = vmatprep.mubr.f32.mxu0 %v27
  %355 = vmatmul.mubr.f32.gmra.mrb[0].mxu0 %v26
  %v356 = vpop.f32.mrb[0].mxu0
  %v357 = vadd.f32 %v274, %v356
  %v358 = vpop.f32.mrb[0].mxu0
  %v359 = vadd.f32 %v276, %v358
  %360 = vdwg.mxu0
  %361 = vmatprep.subr.mxu0 %v158
  %362 = vmatpush1.msra.mxu0 %v157
  %363 = vmatprep.subr.mxu0 %v160
  %364 = vmatpush1.msra.mxu0 %v159
  %365 = vmatprep.subr.mxu0 %v162
  %366 = vmatpush1.msra.mxu0 %v161
  %367 = vmatprep.subr.mxu0 %v164
  %368 = vmatpush1.msra.mxu0 %v163
  %369 = vmatprep.subr.mxu0 %v166
  %370 = vmatpush1.msra.mxu0 %v165
  %371 = vmatprep.subr.mxu0 %v168
  %372 = vmatpush1.msra.mxu0 %v167
  %373 = vmatprep.subr.mxu0 %v170
  %374 = vmatpush1.msra.mxu0 %v169
  %375 = vmatprep.subr.mxu0 %v172
  %376 = vmatpush1.msra.mxu0 %v171
  %377 = vmatprep.subr.mxu0 0.0
  %378 = vmatpush1.msra.mxu0 0.0
  %379 = vmatprep.subr.mxu0 0.0
  %380 = vmatpush1.msra.mxu0 0.0
  %381 = vmatprep.subr.mxu0 0.0
  %382 = vmatpush1.msra.mxu0 0.0
  %383 = vmatprep.subr.mxu0 0.0
  %384 = vmatpush1.msra.mxu0 0.0
  %385 = vmatprep.subr.mxu0 0.0
  %386 = vmatpush1.msra.mxu0 0.0
  %387 = vmatprep.subr.mxu0 0.0
  %388 = vmatpush1.msra.mxu0 0.0
  %389 = vmatprep.subr.mxu0 0.0
  %390 = vmatpush1.msra.mxu0 0.0
  %391 = vmatprep.subr.mxu0 0.0
  %392 = vmatpush1.msra.mxu0 0.0
  %393 = vmatprep.subr.mxu0 0.0
  %394 = vmatpush1.msra.mxu0 0.0
  %395 = vmatprep.subr.mxu0 0.0
  %396 = vmatpush1.msra.mxu0 0.0
  %397 = vmatprep.subr.mxu0 0.0
  %398 = vmatpush1.msra.mxu0 0.0
  %399 = vmatprep.subr.mxu0 0.0
  %400 = vmatpush1.msra.mxu0 0.0
  %401 = vmatprep.subr.mxu0 0.0
  %402 = vmatpush1.msra.mxu0 0.0
  %403 = vmatprep.subr.mxu0 0.0
  %404 = vmatpush1.msra.mxu0 0.0
  %405 = vmatprep.subr.mxu0 0.0
  %406 = vmatpush1.msra.mxu0 0.0
  %407 = vmatprep.subr.mxu0 0.0
  %408 = vmatpush1.msra.mxu0 0.0
  %409 = vmatprep.subr.mxu0 0.0
  %410 = vmatpush1.msra.mxu0 0.0
  %411 = vmatprep.subr.mxu0 0.0
  %412 = vmatpush1.msra.mxu0 0.0
  %413 = vmatprep.subr.mxu0 0.0
  %414 = vmatpush1.msra.mxu0 0.0
  %415 = vmatprep.subr.mxu0 0.0
  %416 = vmatpush1.msra.mxu0 0.0
  %417 = vmatprep.subr.mxu0 0.0
  %418 = vmatpush1.msra.mxu0 0.0
  %419 = vmatprep.subr.mxu0 0.0
  %420 = vmatpush1.msra.mxu0 0.0
  %421 = vmatprep.subr.mxu0 0.0
  %422 = vmatpush1.msra.mxu0 0.0
  %423 = vmatprep.subr.mxu0 0.0
  %424 = vmatpush1.msra.mxu0 0.0
  %425 = vmatprep.mubr.f32.mxu0 0.0
  %426 = vmatmul.mubr.f32.gmra.mrb[0].mxu0 %v187
  %v427 = vpop.f32.mrb[0].mxu0
  %v428 = vadd.f32 %v345, %v427
  %v429 = vpop.f32.mrb[0].mxu0
  %v430 = vadd.f32 %v347, %v429
  %431 = vmatprep.mubr.f32.mxu0 0.0
  %432 = vmatmul.mubr.f32.gmra.mrb[0].mxu0 %v190
  %v433 = vpop.f32.mrb[0].mxu0
  %v434 = vadd.f32 %v351, %v433
  %v435 = vpop.f32.mrb[0].mxu0
  %v436 = vadd.f32 %v353, %v435
  %437 = vmatprep.mubr.f32.mxu0 0.0
  %438 = vmatmul.mubr.f32.gmra.mrb[0].mxu0 %v193
  %v439 = vpop.f32.mrb[0].mxu0
  %v440 = vadd.f32 %v357, %v439
  %v441 = vpop.f32.mrb[0].mxu0
  %v442 = vadd.f32 %v359, %v441
  %443 = vdwg.mxu0
  %v444 = vmax.f32 %v428, 0.0
  %v445 = vmax.f32 %v430, 0.0
  %v446 = vmax.f32 %v434, 0.0
  %v447 = vmax.f32 %v436, 0.0
  %v448 = vmax.f32 %v440, 0.0
  %v449 = vmax.f32 %v442, 0.0
  %450 = vst [vmem:[%s3] sm:$0xff] %v444
  %451 = vst [vmem:[%s3 + $0x8] sm:$0xff] %v445
  %452 = vst [vmem:[%s3 + $0x10] sm:$0xff] %v446
  %453 = vst [vmem:[%s3 + $0x18] sm:$0xff] %v447
  %454 = vst [vmem:[%s3 + $0x20] sm:$0x3] %v448
  %455 = vst [vmem:[%s3 + $0x28] sm:$0x3] %v449
  // Predicated region
  $region14: #{squeezenet2d_forward.48} parent=0 // pred_check
    _
  $region15: #{squeezenet2d_forward.48} parent=0 // pred_check_branch
    %457 = sbr.rel (0) target = $region17
  $region16: #{squeezenet2d_forward.48} parent=0 // pred_region
    _
  $region17: #{squeezenet2d_forward.48} parent=0 // pred_fallthru
    _
  // Predicated region
  $region18: #{squeezenet2d_forward.48} parent=0 // pred_check
    _
  $region19: #{squeezenet2d_forward.48} parent=0 // pred_check_branch
    %459 = sbr.rel (0) target = $region21
  $region20: #{squeezenet2d_forward.48} parent=0 // pred_region
    _
  $region21: #{squeezenet2d_forward.48} parent=0 // pred_fallthru
    _

// kernel: squeezenet2d_forward.49
$region0: #{squeezenet2d_forward.49}
  #allocation0 [shape = 'u32[]', space=smem, size = 0x4, offset = 0x4, fixed_abs, tag = 'smem constant byte address 0x4 - core index']
  #allocation1 [shape = 'u32[144,128]{1,0:T(1,128)}', space=vmem, size = 0x12000, scoped, tag = 'internal scratch']
  %s0 = inlined_call_operand.vmem [shape: f32[18,512], index: 0, kind: input, shape index: {}]
  %s1 = inlined_call_operand.vmem [shape: f32[512,64], index: 1, kind: input, shape index: {}]
  %s2 = inlined_call_operand.vmem [shape: f32[1,64], index: 2, kind: input, shape index: {}]
  %s3 = inlined_call_operand.vmem [shape: f32[18,64], index: 3, kind: output, shape index: {}]
  %s4 = sld [smem:[#allocation0]]
  $region22: #{squeezenet2d_forward.49} parent=0
    _
  %s6 = ssub.s32 1, %s4
  %s7 = scalar_select 0, %s6, %s4
  // Predicated region
  $region2: #{squeezenet2d_forward.49} parent=0 // pred_check
    _
  $region3: #{squeezenet2d_forward.49} parent=0 // pred_check_branch
    %9 = sbr.rel (0) target = $region5
  $region4: #{squeezenet2d_forward.49} parent=0 // pred_region
    _
  $region5: #{squeezenet2d_forward.49} parent=0 // pred_fallthru
    _
  // Predicated region
  $region6: #{squeezenet2d_forward.49} parent=0 // pred_check
    _
  $region7: #{squeezenet2d_forward.49} parent=0 // pred_check_branch
    %11 = sbr.rel (0) target = $region9
  $region8: #{squeezenet2d_forward.49} parent=0 // pred_region
    _
  $region9: #{squeezenet2d_forward.49} parent=0 // pred_fallthru
    _
  // Predicated region
  $region10: #{squeezenet2d_forward.49} parent=0 // pred_check
    _
  $region11: #{squeezenet2d_forward.49} parent=0 // pred_check_branch
    %13 = sbr.rel (0) target = $region13
  $region12: #{squeezenet2d_forward.49} parent=0 // pred_region
    _
  $region13: #{squeezenet2d_forward.49} parent=0 // pred_fallthru
    _
  %v14 = vld [vmem:[%s0] sm:$0xff]
  %v15 = vld [vmem:[%s0 + $0x8] sm:$0xff]
  %v16 = vld [vmem:[%s0 + $0x10] sm:$0xff]
  %v17 = vld [vmem:[%s0 + $0x18] sm:$0xff]
  %v18 = vld [vmem:[%s0 + $0x20] sm:$0xff]
  %v19 = vld [vmem:[%s0 + $0x28] sm:$0xff]
  %v20 = vld [vmem:[%s0 + $0x30] sm:$0xff]
  %v21 = vld [vmem:[%s0 + $0x38] sm:$0xff]
  %v22 = vld [vmem:[%s0 + $0x40] sm:$0x3]
  %v23 = vld [vmem:[%s0 + $0x48] sm:$0x3]
  %v24 = vld [vmem:[%s0 + $0x50] sm:$0x3]
  %v25 = vld [vmem:[%s0 + $0x58] sm:$0x3]
  %v26 = vld [vmem:[%s1] sm:$0xff]
  %v27 = vld [vmem:[%s1 + $0x8] sm:$0xff]
  %v28 = vld [vmem:[%s1 + $0x10] sm:$0xff]
  %v29 = vld [vmem:[%s1 + $0x18] sm:$0xff]
  %v30 = vld [vmem:[%s1 + $0x20] sm:$0xff]
  %v31 = vld [vmem:[%s1 + $0x28] sm:$0xff]
  %v32 = vld [vmem:[%s1 + $0x30] sm:$0xff]
  %v33 = vld [vmem:[%s1 + $0x38] sm:$0xff]
  %v34 = vld [vmem:[%s1 + $0x40] sm:$0xff]
  %v35 = vld [vmem:[%s1 + $0x48] sm:$0xff]
  %v36 = vld [vmem:[%s1 + $0x50] sm:$0xff]
  %v37 = vld [vmem:[%s1 + $0x58] sm:$0xff]
  %v38 = vld [vmem:[%s1 + $0x60] sm:$0xff]
  %v39 = vld [vmem:[%s1 + $0x68] sm:$0xff]
  %v40 = vld [vmem:[%s1 + $0x70] sm:$0xff]
  %v41 = vld [vmem:[%s1 + $0x78] sm:$0xff]
  %v42 = vld [vmem:[%s1 + $0x80] sm:$0xff]
  %v43 = vld [vmem:[%s1 + $0x88] sm:$0xff]
  %v44 = vld [vmem:[%s1 + $0x90] sm:$0xff]
  %v45 = vld [vmem:[%s1 + $0x98] sm:$0xff]
  %v46 = vld [vmem:[%s1 + $0xa0] sm:$0xff]
  %v47 = vld [vmem:[%s1 + $0xa8] sm:$0xff]
  %v48 = vld [vmem:[%s1 + $0xb0] sm:$0xff]
  %v49 = vld [vmem:[%s1 + $0xb8] sm:$0xff]
  %v50 = vld [vmem:[%s1 + $0xc0] sm:$0xff]
  %v51 = vld [vmem:[%s1 + $0xc8] sm:$0xff]
  %v52 = vld [vmem:[%s1 + $0xd0] sm:$0xff]
  %v53 = vld [vmem:[%s1 + $0xd8] sm:$0xff]
  %v54 = vld [vmem:[%s1 + $0xe0] sm:$0xff]
  %v55 = vld [vmem:[%s1 + $0xe8] sm:$0xff]
  %v56 = vld [vmem:[%s1 + $0xf0] sm:$0xff]
  %v57 = vld [vmem:[%s1 + $0xf8] sm:$0xff]
  %v58 = vld [vmem:[%s1 + $0x100] sm:$0xff]
  %v59 = vld [vmem:[%s1 + $0x108] sm:$0xff]
  %v60 = vld [vmem:[%s1 + $0x110] sm:$0xff]
  %v61 = vld [vmem:[%s1 + $0x118] sm:$0xff]
  %v62 = vld [vmem:[%s1 + $0x120] sm:$0xff]
  %v63 = vld [vmem:[%s1 + $0x128] sm:$0xff]
  %v64 = vld [vmem:[%s1 + $0x130] sm:$0xff]
  %v65 = vld [vmem:[%s1 + $0x138] sm:$0xff]
  %v66 = vld [vmem:[%s1 + $0x140] sm:$0xff]
  %v67 = vld [vmem:[%s1 + $0x148] sm:$0xff]
  %v68 = vld [vmem:[%s1 + $0x150] sm:$0xff]
  %v69 = vld [vmem:[%s1 + $0x158] sm:$0xff]
  %v70 = vld [vmem:[%s1 + $0x160] sm:$0xff]
  %v71 = vld [vmem:[%s1 + $0x168] sm:$0xff]
  %v72 = vld [vmem:[%s1 + $0x170] sm:$0xff]
  %v73 = vld [vmem:[%s1 + $0x178] sm:$0xff]
  %v74 = vld [vmem:[%s1 + $0x180] sm:$0xff]
  %v75 = vld [vmem:[%s1 + $0x188] sm:$0xff]
  %v76 = vld [vmem:[%s1 + $0x190] sm:$0xff]
  %v77 = vld [vmem:[%s1 + $0x198] sm:$0xff]
  %v78 = vld [vmem:[%s1 + $0x1a0] sm:$0xff]
  %v79 = vld [vmem:[%s1 + $0x1a8] sm:$0xff]
  %v80 = vld [vmem:[%s1 + $0x1b0] sm:$0xff]
  %v81 = vld [vmem:[%s1 + $0x1b8] sm:$0xff]
  %v82 = vld [vmem:[%s1 + $0x1c0] sm:$0xff]
  %v83 = vld [vmem:[%s1 + $0x1c8] sm:$0xff]
  %v84 = vld [vmem:[%s1 + $0x1d0] sm:$0xff]
  %v85 = vld [vmem:[%s1 + $0x1d8] sm:$0xff]
  %v86 = vld [vmem:[%s1 + $0x1e0] sm:$0xff]
  %v87 = vld [vmem:[%s1 + $0x1e8] sm:$0xff]
  %v88 = vld [vmem:[%s1 + $0x1f0] sm:$0xff]
  %v89 = vld [vmem:[%s1 + $0x1f8] sm:$0xff]
  %v90 = vld [vmem:[%s2] sm:$0x1]
  %v92 = vlaneseq
  %v93 = vshrl.u32 %v92, 7
  %v94 = vsub.s32 0, %v93
  %v95 = vrot.slane %v90, %v94
  %97 = vmatprep.subr.mxu0 0.0
  %98 = vmatpush1.msra.mxu0 %v26
  %99 = vmatprep.subr.mxu0 0.0
  %100 = vmatpush1.msra.mxu0 %v27
  %101 = vmatprep.subr.mxu0 0.0
  %102 = vmatpush1.msra.mxu0 %v28
  %103 = vmatprep.subr.mxu0 0.0
  %104 = vmatpush1.msra.mxu0 %v29
  %105 = vmatprep.subr.mxu0 0.0
  %106 = vmatpush1.msra.mxu0 %v30
  %107 = vmatprep.subr.mxu0 0.0
  %108 = vmatpush1.msra.mxu0 %v31
  %109 = vmatprep.subr.mxu0 0.0
  %110 = vmatpush1.msra.mxu0 %v32
  %111 = vmatprep.subr.mxu0 0.0
  %112 = vmatpush1.msra.mxu0 %v33
  %113 = vmatprep.subr.mxu0 0.0
  %114 = vmatpush1.msra.mxu0 %v34
  %115 = vmatprep.subr.mxu0 0.0
  %116 = vmatpush1.msra.mxu0 %v35
  %117 = vmatprep.subr.mxu0 0.0
  %118 = vmatpush1.msra.mxu0 %v36
  %119 = vmatprep.subr.mxu0 0.0
  %120 = vmatpush1.msra.mxu0 %v37
  %121 = vmatprep.subr.mxu0 0.0
  %122 = vmatpush1.msra.mxu0 %v38
  %123 = vmatprep.subr.mxu0 0.0
  %124 = vmatpush1.msra.mxu0 %v39
  %125 = vmatprep.subr.mxu0 0.0
  %126 = vmatpush1.msra.mxu0 %v40
  %127 = vmatprep.subr.mxu0 0.0
  %128 = vmatpush1.msra.mxu0 %v41
  %129 = vmatprep.subr.mxu0 0.0
  %130 = vmatpush1.msra.mxu0 %v42
  %131 = vmatprep.subr.mxu0 0.0
  %132 = vmatpush1.msra.mxu0 %v43
  %133 = vmatprep.subr.mxu0 0.0
  %134 = vmatpush1.msra.mxu0 %v44
  %135 = vmatprep.subr.mxu0 0.0
  %136 = vmatpush1.msra.mxu0 %v45
  %137 = vmatprep.subr.mxu0 0.0
  %138 = vmatpush1.msra.mxu0 %v46
  %139 = vmatprep.subr.mxu0 0.0
  %140 = vmatpush1.msra.mxu0 %v47
  %141 = vmatprep.subr.mxu0 0.0
  %142 = vmatpush1.msra.mxu0 %v48
  %143 = vmatprep.subr.mxu0 0.0
  %144 = vmatpush1.msra.mxu0 %v49
  %145 = vmatprep.subr.mxu0 0.0
  %146 = vmatpush1.msra.mxu0 %v50
  %147 = vmatprep.subr.mxu0 0.0
  %148 = vmatpush1.msra.mxu0 %v51
  %149 = vmatprep.subr.mxu0 0.0
  %150 = vmatpush1.msra.mxu0 %v52
  %151 = vmatprep.subr.mxu0 0.0
  %152 = vmatpush1.msra.mxu0 %v53
  %153 = vmatprep.subr.mxu0 0.0
  %154 = vmatpush1.msra.mxu0 %v54
  %155 = vmatprep.subr.mxu0 0.0
  %156 = vmatpush1.msra.mxu0 %v55
  %157 = vmatprep.subr.mxu0 0.0
  %158 = vmatpush1.msra.mxu0 %v56
  %159 = vmatprep.subr.mxu0 0.0
  %160 = vmatpush1.msra.mxu0 %v57
  %161 = vmatprep.mubr.f32.mxu0 %v15
  %162 = vmatmul.mubr.f32.gmra.mrb[0].mxu0 %v14
  %v163 = vpop.f32.mrb[0].mxu0
  %v164 = vadd.f32 %v95, %v163
  %v165 = vpop.f32.mrb[0].mxu0
  %166 = vmatprep.mubr.f32.mxu0 %v19
  %167 = vmatmul.mubr.f32.gmra.mrb[0].mxu0 %v18
  %v168 = vpop.f32.mrb[0].mxu0
  %v169 = vadd.f32 %v95, %v168
  %v170 = vpop.f32.mrb[0].mxu0
  %171 = vmatprep.mubr.f32.mxu0 %v23
  %172 = vmatmul.mubr.f32.gmra.mrb[0].mxu0 %v22
  %v173 = vpop.f32.mrb[0].mxu0
  %v174 = vadd.f32 %v95, %v173
  %v175 = vpop.f32.mrb[0].mxu0
  %176 = vdwg.mxu0
  %177 = vmatprep.subr.mxu0 0.0
  %178 = vmatpush1.msra.mxu0 %v58
  %179 = vmatprep.subr.mxu0 0.0
  %180 = vmatpush1.msra.mxu0 %v59
  %181 = vmatprep.subr.mxu0 0.0
  %182 = vmatpush1.msra.mxu0 %v60
  %183 = vmatprep.subr.mxu0 0.0
  %184 = vmatpush1.msra.mxu0 %v61
  %185 = vmatprep.subr.mxu0 0.0
  %186 = vmatpush1.msra.mxu0 %v62
  %187 = vmatprep.subr.mxu0 0.0
  %188 = vmatpush1.msra.mxu0 %v63
  %189 = vmatprep.subr.mxu0 0.0
  %190 = vmatpush1.msra.mxu0 %v64
  %191 = vmatprep.subr.mxu0 0.0
  %192 = vmatpush1.msra.mxu0 %v65
  %193 = vmatprep.subr.mxu0 0.0
  %194 = vmatpush1.msra.mxu0 %v66
  %195 = vmatprep.subr.mxu0 0.0
  %196 = vmatpush1.msra.mxu0 %v67
  %197 = vmatprep.subr.mxu0 0.0
  %198 = vmatpush1.msra.mxu0 %v68
  %199 = vmatprep.subr.mxu0 0.0
  %200 = vmatpush1.msra.mxu0 %v69
  %201 = vmatprep.subr.mxu0 0.0
  %202 = vmatpush1.msra.mxu0 %v70
  %203 = vmatprep.subr.mxu0 0.0
  %204 = vmatpush1.msra.mxu0 %v71
  %205 = vmatprep.subr.mxu0 0.0
  %206 = vmatpush1.msra.mxu0 %v72
  %207 = vmatprep.subr.mxu0 0.0
  %208 = vmatpush1.msra.mxu0 %v73
  %209 = vmatprep.subr.mxu0 0.0
  %210 = vmatpush1.msra.mxu0 %v74
  %211 = vmatprep.subr.mxu0 0.0
  %212 = vmatpush1.msra.mxu0 %v75
  %213 = vmatprep.subr.mxu0 0.0
  %214 = vmatpush1.msra.mxu0 %v76
  %215 = vmatprep.subr.mxu0 0.0
  %216 = vmatpush1.msra.mxu0 %v77
  %217 = vmatprep.subr.mxu0 0.0
  %218 = vmatpush1.msra.mxu0 %v78
  %219 = vmatprep.subr.mxu0 0.0
  %220 = vmatpush1.msra.mxu0 %v79
  %221 = vmatprep.subr.mxu0 0.0
  %222 = vmatpush1.msra.mxu0 %v80
  %223 = vmatprep.subr.mxu0 0.0
  %224 = vmatpush1.msra.mxu0 %v81
  %225 = vmatprep.subr.mxu0 0.0
  %226 = vmatpush1.msra.mxu0 %v82
  %227 = vmatprep.subr.mxu0 0.0
  %228 = vmatpush1.msra.mxu0 %v83
  %229 = vmatprep.subr.mxu0 0.0
  %230 = vmatpush1.msra.mxu0 %v84
  %231 = vmatprep.subr.mxu0 0.0
  %232 = vmatpush1.msra.mxu0 %v85
  %233 = vmatprep.subr.mxu0 0.0
  %234 = vmatpush1.msra.mxu0 %v86
  %235 = vmatprep.subr.mxu0 0.0
  %236 = vmatpush1.msra.mxu0 %v87
  %237 = vmatprep.subr.mxu0 0.0
  %238 = vmatpush1.msra.mxu0 %v88
  %239 = vmatprep.subr.mxu0 0.0
  %240 = vmatpush1.msra.mxu0 %v89
  %241 = vmatprep.mubr.f32.mxu0 %v17
  %242 = vmatmul.mubr.f32.gmra.mrb[0].mxu0 %v16
  %v243 = vpop.f32.mrb[0].mxu0
  %v244 = vadd.f32 %v164, %v243
  %v245 = vpop.f32.mrb[0].mxu0
  %246 = vmatprep.mubr.f32.mxu0 %v21
  %247 = vmatmul.mubr.f32.gmra.mrb[0].mxu0 %v20
  %v248 = vpop.f32.mrb[0].mxu0
  %v249 = vadd.f32 %v169, %v248
  %v250 = vpop.f32.mrb[0].mxu0
  %251 = vmatprep.mubr.f32.mxu0 %v25
  %252 = vmatmul.mubr.f32.gmra.mrb[0].mxu0 %v24
  %v253 = vpop.f32.mrb[0].mxu0
  %v254 = vadd.f32 %v174, %v253
  %v255 = vpop.f32.mrb[0].mxu0
  %256 = vdwg.mxu0
  %v257 = vmax.f32 %v244, 0.0
  %v258 = vmax.f32 %v249, 0.0
  %v259 = vmax.f32 %v254, 0.0
  %vm260 = vcmask 523264
  %261 = vst.msk [vmem:[%s3] sm:$0xff] %vm260, %v257
  %262 = vst.msk [vmem:[%s3 + $0x8] sm:$0xff] %vm260, %v258
  %vm263 = vcmask 517120
  %264 = vst.msk [vmem:[%s3 + $0x10] sm:$0x3] %vm263, %v259
  // Predicated region
  $region14: #{squeezenet2d_forward.49} parent=0 // pred_check
    _
  $region15: #{squeezenet2d_forward.49} parent=0 // pred_check_branch
    %266 = sbr.rel (0) target = $region17
  $region16: #{squeezenet2d_forward.49} parent=0 // pred_region
    _
  $region17: #{squeezenet2d_forward.49} parent=0 // pred_fallthru
    _
  // Predicated region
  $region18: #{squeezenet2d_forward.49} parent=0 // pred_check
    _
  $region19: #{squeezenet2d_forward.49} parent=0 // pred_check_branch
    %268 = sbr.rel (0) target = $region21
  $region20: #{squeezenet2d_forward.49} parent=0 // pred_region
    _
  $region21: #{squeezenet2d_forward.49} parent=0 // pred_fallthru
    _

// kernel: squeezenet2d_forward.52
$region0: #{squeezenet2d_forward.52}
  #allocation0 [shape = 'u32[]', space=smem, size = 0x4, offset = 0x4, fixed_abs, tag = 'smem constant byte address 0x4 - core index']
  #allocation1 [shape = 'u32[144,128]{1,0:T(1,128)}', space=vmem, size = 0x12000, scoped, tag = 'internal scratch']
  %s0 = inlined_call_operand.vmem [shape: f32[18,512], index: 0, kind: input, shape index: {}]
  %s1 = inlined_call_operand.vmem [shape: f32[512,1000], index: 1, kind: input, shape index: {}]
  %s2 = inlined_call_operand.vmem [shape: f32[1,1000], index: 2, kind: input, shape index: {}]
  %s3 = inlined_call_operand.vmem [shape: f32[18,1000], index: 3, kind: output, shape index: {}]
  %s4 = sld [smem:[#allocation0]]
  $region22: #{squeezenet2d_forward.52} parent=0
    _
  %s6 = ssub.s32 1, %s4
  %s7 = scalar_select 0, %s6, %s4
  // Predicated region
  $region2: #{squeezenet2d_forward.52} parent=0 // pred_check
    _
  $region3: #{squeezenet2d_forward.52} parent=0 // pred_check_branch
    %9 = sbr.rel (0) target = $region5
  $region4: #{squeezenet2d_forward.52} parent=0 // pred_region
    _
  $region5: #{squeezenet2d_forward.52} parent=0 // pred_fallthru
    _
  // Predicated region
  $region6: #{squeezenet2d_forward.52} parent=0 // pred_check
    _
  $region7: #{squeezenet2d_forward.52} parent=0 // pred_check_branch
    %11 = sbr.rel (0) target = $region9
  $region8: #{squeezenet2d_forward.52} parent=0 // pred_region
    _
  $region9: #{squeezenet2d_forward.52} parent=0 // pred_fallthru
    _
  // Predicated region
  $region10: #{squeezenet2d_forward.52} parent=0 // pred_check
    _
  $region11: #{squeezenet2d_forward.52} parent=0 // pred_check_branch
    %13 = sbr.rel (0) target = $region13
  $region12: #{squeezenet2d_forward.52} parent=0 // pred_region
    _
  $region13: #{squeezenet2d_forward.52} parent=0 // pred_fallthru
    _
  %v14 = vld [vmem:[%s0] sm:$0xff]
  %v15 = vld [vmem:[%s0 + $0x8] sm:$0xff]
  %v16 = vld [vmem:[%s0 + $0x10] sm:$0xff]
  %v17 = vld [vmem:[%s0 + $0x18] sm:$0xff]
  %v18 = vld [vmem:[%s0 + $0x20] sm:$0xff]
  %v19 = vld [vmem:[%s0 + $0x28] sm:$0xff]
  %v20 = vld [vmem:[%s0 + $0x30] sm:$0xff]
  %v21 = vld [vmem:[%s0 + $0x38] sm:$0xff]
  %v22 = vld [vmem:[%s0 + $0x40] sm:$0x3]
  %v23 = vld [vmem:[%s0 + $0x48] sm:$0x3]
  %v24 = vld [vmem:[%s0 + $0x50] sm:$0x3]
  %v25 = vld [vmem:[%s0 + $0x58] sm:$0x3]
  %v26 = vld [vmem:[%s1] sm:$0xff]
  %v27 = vld [vmem:[%s1 + $0x8] sm:$0xff]
  %v28 = vld [vmem:[%s1 + $0x10] sm:$0xff]
  %v29 = vld [vmem:[%s1 + $0x18] sm:$0xff]
  %v30 = vld [vmem:[%s1 + $0x20] sm:$0xff]
  %v31 = vld [vmem:[%s1 + $0x28] sm:$0xff]
  %v32 = vld [vmem:[%s1 + $0x30] sm:$0xff]
  %v33 = vld [vmem:[%s1 + $0x38] sm:$0xff]
  %v34 = vld [vmem:[%s1 + $0x40] sm:$0xff]
  %v35 = vld [vmem:[%s1 + $0x48] sm:$0xff]
  %v36 = vld [vmem:[%s1 + $0x50] sm:$0xff]
  %v37 = vld [vmem:[%s1 + $0x58] sm:$0xff]
  %v38 = vld [vmem:[%s1 + $0x60] sm:$0xff]
  %v39 = vld [vmem:[%s1 + $0x68] sm:$0xff]
  %v40 = vld [vmem:[%s1 + $0x70] sm:$0xff]
  %v41 = vld [vmem:[%s1 + $0x78] sm:$0xff]
  %v42 = vld [vmem:[%s1 + $0x80] sm:$0xff]
  %v43 = vld [vmem:[%s1 + $0x88] sm:$0xff]
  %v44 = vld [vmem:[%s1 + $0x90] sm:$0xff]
  %v45 = vld [vmem:[%s1 + $0x98] sm:$0xff]
  %v46 = vld [vmem:[%s1 + $0xa0] sm:$0xff]
  %v47 = vld [vmem:[%s1 + $0xa8] sm:$0xff]
  %v48 = vld [vmem:[%s1 + $0xb0] sm:$0xff]
  %v49 = vld [vmem:[%s1 + $0xb8] sm:$0xff]
  %v50 = vld [vmem:[%s1 + $0xc0] sm:$0xff]
  %v51 = vld [vmem:[%s1 + $0xc8] sm:$0xff]
  %v52 = vld [vmem:[%s1 + $0xd0] sm:$0xff]
  %v53 = vld [vmem:[%s1 + $0xd8] sm:$0xff]
  %v54 = vld [vmem:[%s1 + $0xe0] sm:$0xff]
  %v55 = vld [vmem:[%s1 + $0xe8] sm:$0xff]
  %v56 = vld [vmem:[%s1 + $0xf0] sm:$0xff]
  %v57 = vld [vmem:[%s1 + $0xf8] sm:$0xff]
  %v58 = vld [vmem:[%s1 + $0x100] sm:$0xff]
  %v59 = vld [vmem:[%s1 + $0x108] sm:$0xff]
  %v60 = vld [vmem:[%s1 + $0x110] sm:$0xff]
  %v61 = vld [vmem:[%s1 + $0x118] sm:$0xff]
  %v62 = vld [vmem:[%s1 + $0x120] sm:$0xff]
  %v63 = vld [vmem:[%s1 + $0x128] sm:$0xff]
  %v64 = vld [vmem:[%s1 + $0x130] sm:$0xff]
  %v65 = vld [vmem:[%s1 + $0x138] sm:$0xff]
  %v66 = vld [vmem:[%s1 + $0x140] sm:$0xff]
  %v67 = vld [vmem:[%s1 + $0x148] sm:$0xff]
  %v68 = vld [vmem:[%s1 + $0x150] sm:$0xff]
  %v69 = vld [vmem:[%s1 + $0x158] sm:$0xff]
  %v70 = vld [vmem:[%s1 + $0x160] sm:$0xff]
  %v71 = vld [vmem:[%s1 + $0x168] sm:$0xff]
  %v72 = vld [vmem:[%s1 + $0x170] sm:$0xff]
  %v73 = vld [vmem:[%s1 + $0x178] sm:$0xff]
  %v74 = vld [vmem:[%s1 + $0x180] sm:$0xff]
  %v75 = vld [vmem:[%s1 + $0x188] sm:$0xff]
  %v76 = vld [vmem:[%s1 + $0x190] sm:$0xff]
  %v77 = vld [vmem:[%s1 + $0x198] sm:$0xff]
  %v78 = vld [vmem:[%s1 + $0x1a0] sm:$0xff]
  %v79 = vld [vmem:[%s1 + $0x1a8] sm:$0xff]
  %v80 = vld [vmem:[%s1 + $0x1b0] sm:$0xff]
  %v81 = vld [vmem:[%s1 + $0x1b8] sm:$0xff]
  %v82 = vld [vmem:[%s1 + $0x1c0] sm:$0xff]
  %v83 = vld [vmem:[%s1 + $0x1c8] sm:$0xff]
  %v84 = vld [vmem:[%s1 + $0x1d0] sm:$0xff]
  %v85 = vld [vmem:[%s1 + $0x1d8] sm:$0xff]
  %v86 = vld [vmem:[%s1 + $0x1e0] sm:$0xff]
  %v87 = vld [vmem:[%s1 + $0x1e8] sm:$0xff]
  %v88 = vld [vmem:[%s1 + $0x1f0] sm:$0xff]
  %v89 = vld [vmem:[%s1 + $0x1f8] sm:$0xff]
  %v90 = vld [vmem:[%s1 + $0x200] sm:$0xff]
  %v91 = vld [vmem:[%s1 + $0x208] sm:$0xff]
  %v92 = vld [vmem:[%s1 + $0x210] sm:$0xff]
  %v93 = vld [vmem:[%s1 + $0x218] sm:$0xff]
  %v94 = vld [vmem:[%s1 + $0x220] sm:$0xff]
  %v95 = vld [vmem:[%s1 + $0x228] sm:$0xff]
  %v96 = vld [vmem:[%s1 + $0x230] sm:$0xff]
  %v97 = vld [vmem:[%s1 + $0x238] sm:$0xff]
  %v98 = vld [vmem:[%s1 + $0x240] sm:$0xff]
  %v99 = vld [vmem:[%s1 + $0x248] sm:$0xff]
  %v100 = vld [vmem:[%s1 + $0x250] sm:$0xff]
  %v101 = vld [vmem:[%s1 + $0x258] sm:$0xff]
  %v102 = vld [vmem:[%s1 + $0x260] sm:$0xff]
  %v103 = vld [vmem:[%s1 + $0x268] sm:$0xff]
  %v104 = vld [vmem:[%s1 + $0x270] sm:$0xff]
  %v105 = vld [vmem:[%s1 + $0x278] sm:$0xff]
  %v106 = vld [vmem:[%s1 + $0x280] sm:$0xff]
  %v107 = vld [vmem:[%s1 + $0x288] sm:$0xff]
  %v108 = vld [vmem:[%s1 + $0x290] sm:$0xff]
  %v109 = vld [vmem:[%s1 + $0x298] sm:$0xff]
  %v110 = vld [vmem:[%s1 + $0x2a0] sm:$0xff]
  %v111 = vld [vmem:[%s1 + $0x2a8] sm:$0xff]
  %v112 = vld [vmem:[%s1 + $0x2b0] sm:$0xff]
  %v113 = vld [vmem:[%s1 + $0x2b8] sm:$0xff]
  %v114 = vld [vmem:[%s1 + $0x2c0] sm:$0xff]
  %v115 = vld [vmem:[%s1 + $0x2c8] sm:$0xff]
  %v116 = vld [vmem:[%s1 + $0x2d0] sm:$0xff]
  %v117 = vld [vmem:[%s1 + $0x2d8] sm:$0xff]
  %v118 = vld [vmem:[%s1 + $0x2e0] sm:$0xff]
  %v119 = vld [vmem:[%s1 + $0x2e8] sm:$0xff]
  %v120 = vld [vmem:[%s1 + $0x2f0] sm:$0xff]
  %v121 = vld [vmem:[%s1 + $0x2f8] sm:$0xff]
  %v122 = vld [vmem:[%s1 + $0x300] sm:$0xff]
  %v123 = vld [vmem:[%s1 + $0x308] sm:$0xff]
  %v124 = vld [vmem:[%s1 + $0x310] sm:$0xff]
  %v125 = vld [vmem:[%s1 + $0x318] sm:$0xff]
  %v126 = vld [vmem:[%s1 + $0x320] sm:$0xff]
  %v127 = vld [vmem:[%s1 + $0x328] sm:$0xff]
  %v128 = vld [vmem:[%s1 + $0x330] sm:$0xff]
  %v129 = vld [vmem:[%s1 + $0x338] sm:$0xff]
  %v130 = vld [vmem:[%s1 + $0x340] sm:$0xff]
  %v131 = vld [vmem:[%s1 + $0x348] sm:$0xff]
  %v132 = vld [vmem:[%s1 + $0x350] sm:$0xff]
  %v133 = vld [vmem:[%s1 + $0x358] sm:$0xff]
  %v134 = vld [vmem:[%s1 + $0x360] sm:$0xff]
  %v135 = vld [vmem:[%s1 + $0x368] sm:$0xff]
  %v136 = vld [vmem:[%s1 + $0x370] sm:$0xff]
  %v137 = vld [vmem:[%s1 + $0x378] sm:$0xff]
  %v138 = vld [vmem:[%s1 + $0x380] sm:$0xff]
  %v139 = vld [vmem:[%s1 + $0x388] sm:$0xff]
  %v140 = vld [vmem:[%s1 + $0x390] sm:$0xff]
  %v141 = vld [vmem:[%s1 + $0x398] sm:$0xff]
  %v142 = vld [vmem:[%s1 + $0x3a0] sm:$0xff]
  %v143 = vld [vmem:[%s1 + $0x3a8] sm:$0xff]
  %v144 = vld [vmem:[%s1 + $0x3b0] sm:$0xff]
  %v145 = vld [vmem:[%s1 + $0x3b8] sm:$0xff]
  %v146 = vld [vmem:[%s1 + $0x3c0] sm:$0xff]
  %v147 = vld [vmem:[%s1 + $0x3c8] sm:$0xff]
  %v148 = vld [vmem:[%s1 + $0x3d0] sm:$0xff]
  %v149 = vld [vmem:[%s1 + $0x3d8] sm:$0xff]
  %v150 = vld [vmem:[%s1 + $0x3e0] sm:$0xff]
  %v151 = vld [vmem:[%s1 + $0x3e8] sm:$0xff]
  %v152 = vld [vmem:[%s1 + $0x3f0] sm:$0xff]
  %v153 = vld [vmem:[%s1 + $0x3f8] sm:$0xff]
  %v154 = vld [vmem:[%s1 + $0x400] sm:$0xff]
  %v155 = vld [vmem:[%s1 + $0x408] sm:$0xff]
  %v156 = vld [vmem:[%s1 + $0x410] sm:$0xff]
  %v157 = vld [vmem:[%s1 + $0x418] sm:$0xff]
  %v158 = vld [vmem:[%s1 + $0x420] sm:$0xff]
  %v159 = vld [vmem:[%s1 + $0x428] sm:$0xff]
  %v160 = vld [vmem:[%s1 + $0x430] sm:$0xff]
  %v161 = vld [vmem:[%s1 + $0x438] sm:$0xff]
  %v162 = vld [vmem:[%s1 + $0x440] sm:$0xff]
  %v163 = vld [vmem:[%s1 + $0x448] sm:$0xff]
  %v164 = vld [vmem:[%s1 + $0x450] sm:$0xff]
  %v165 = vld [vmem:[%s1 + $0x458] sm:$0xff]
  %v166 = vld [vmem:[%s1 + $0x460] sm:$0xff]
  %v167 = vld [vmem:[%s1 + $0x468] sm:$0xff]
  %v168 = vld [vmem:[%s1 + $0x470] sm:$0xff]
  %v169 = vld [vmem:[%s1 + $0x478] sm:$0xff]
  %v170 = vld [vmem:[%s1 + $0x480] sm:$0xff]
  %v171 = vld [vmem:[%s1 + $0x488] sm:$0xff]
  %v172 = vld [vmem:[%s1 + $0x490] sm:$0xff]
  %v173 = vld [vmem:[%s1 + $0x498] sm:$0xff]
  %v174 = vld [vmem:[%s1 + $0x4a0] sm:$0xff]
  %v175 = vld [vmem:[%s1 + $0x4a8] sm:$0xff]
  %v176 = vld [vmem:[%s1 + $0x4b0] sm:$0xff]
  %v177 = vld [vmem:[%s1 + $0x4b8] sm:$0xff]
  %v178 = vld [vmem:[%s1 + $0x4c0] sm:$0xff]
  %v179 = vld [vmem:[%s1 + $0x4c8] sm:$0xff]
  %v180 = vld [vmem:[%s1 + $0x4d0] sm:$0xff]
  %v181 = vld [vmem:[%s1 + $0x4d8] sm:$0xff]
  %v182 = vld [vmem:[%s1 + $0x4e0] sm:$0xff]
  %v183 = vld [vmem:[%s1 + $0x4e8] sm:$0xff]
  %v184 = vld [vmem:[%s1 + $0x4f0] sm:$0xff]
  %v185 = vld [vmem:[%s1 + $0x4f8] sm:$0xff]
  %v186 = vld [vmem:[%s1 + $0x500] sm:$0xff]
  %v187 = vld [vmem:[%s1 + $0x508] sm:$0xff]
  %v188 = vld [vmem:[%s1 + $0x510] sm:$0xff]
  %v189 = vld [vmem:[%s1 + $0x518] sm:$0xff]
  %v190 = vld [vmem:[%s1 + $0x520] sm:$0xff]
  %v191 = vld [vmem:[%s1 + $0x528] sm:$0xff]
  %v192 = vld [vmem:[%s1 + $0x530] sm:$0xff]
  %v193 = vld [vmem:[%s1 + $0x538] sm:$0xff]
  %v194 = vld [vmem:[%s1 + $0x540] sm:$0xff]
  %v195 = vld [vmem:[%s1 + $0x548] sm:$0xff]
  %v196 = vld [vmem:[%s1 + $0x550] sm:$0xff]
  %v197 = vld [vmem:[%s1 + $0x558] sm:$0xff]
  %v198 = vld [vmem:[%s1 + $0x560] sm:$0xff]
  %v199 = vld [vmem:[%s1 + $0x568] sm:$0xff]
  %v200 = vld [vmem:[%s1 + $0x570] sm:$0xff]
  %v201 = vld [vmem:[%s1 + $0x578] sm:$0xff]
  %v202 = vld [vmem:[%s1 + $0x580] sm:$0xff]
  %v203 = vld [vmem:[%s1 + $0x588] sm:$0xff]
  %v204 = vld [vmem:[%s1 + $0x590] sm:$0xff]
  %v205 = vld [vmem:[%s1 + $0x598] sm:$0xff]
  %v206 = vld [vmem:[%s1 + $0x5a0] sm:$0xff]
  %v207 = vld [vmem:[%s1 + $0x5a8] sm:$0xff]
  %v208 = vld [vmem:[%s1 + $0x5b0] sm:$0xff]
  %v209 = vld [vmem:[%s1 + $0x5b8] sm:$0xff]
  %v210 = vld [vmem:[%s1 + $0x5c0] sm:$0xff]
  %v211 = vld [vmem:[%s1 + $0x5c8] sm:$0xff]
  %v212 = vld [vmem:[%s1 + $0x5d0] sm:$0xff]
  %v213 = vld [vmem:[%s1 + $0x5d8] sm:$0xff]
  %v214 = vld [vmem:[%s1 + $0x5e0] sm:$0xff]
  %v215 = vld [vmem:[%s1 + $0x5e8] sm:$0xff]
  %v216 = vld [vmem:[%s1 + $0x5f0] sm:$0xff]
  %v217 = vld [vmem:[%s1 + $0x5f8] sm:$0xff]
  %v218 = vld [vmem:[%s1 + $0x600] sm:$0xff]
  %v219 = vld [vmem:[%s1 + $0x608] sm:$0xff]
  %v220 = vld [vmem:[%s1 + $0x610] sm:$0xff]
  %v221 = vld [vmem:[%s1 + $0x618] sm:$0xff]
  %v222 = vld [vmem:[%s1 + $0x620] sm:$0xff]
  %v223 = vld [vmem:[%s1 + $0x628] sm:$0xff]
  %v224 = vld [vmem:[%s1 + $0x630] sm:$0xff]
  %v225 = vld [vmem:[%s1 + $0x638] sm:$0xff]
  %v226 = vld [vmem:[%s1 + $0x640] sm:$0xff]
  %v227 = vld [vmem:[%s1 + $0x648] sm:$0xff]
  %v228 = vld [vmem:[%s1 + $0x650] sm:$0xff]
  %v229 = vld [vmem:[%s1 + $0x658] sm:$0xff]
  %v230 = vld [vmem:[%s1 + $0x660] sm:$0xff]
  %v231 = vld [vmem:[%s1 + $0x668] sm:$0xff]
  %v232 = vld [vmem:[%s1 + $0x670] sm:$0xff]
  %v233 = vld [vmem:[%s1 + $0x678] sm:$0xff]
  %v234 = vld [vmem:[%s1 + $0x680] sm:$0xff]
  %v235 = vld [vmem:[%s1 + $0x688] sm:$0xff]
  %v236 = vld [vmem:[%s1 + $0x690] sm:$0xff]
  %v237 = vld [vmem:[%s1 + $0x698] sm:$0xff]
  %v238 = vld [vmem:[%s1 + $0x6a0] sm:$0xff]
  %v239 = vld [vmem:[%s1 + $0x6a8] sm:$0xff]
  %v240 = vld [vmem:[%s1 + $0x6b0] sm:$0xff]
  %v241 = vld [vmem:[%s1 + $0x6b8] sm:$0xff]
  %v242 = vld [vmem:[%s1 + $0x6c0] sm:$0xff]
  %v243 = vld [vmem:[%s1 + $0x6c8] sm:$0xff]
  %v244 = vld [vmem:[%s1 + $0x6d0] sm:$0xff]
  %v245 = vld [vmem:[%s1 + $0x6d8] sm:$0xff]
  %v246 = vld [vmem:[%s1 + $0x6e0] sm:$0xff]
  %v247 = vld [vmem:[%s1 + $0x6e8] sm:$0xff]
  %v248 = vld [vmem:[%s1 + $0x6f0] sm:$0xff]
  %v249 = vld [vmem:[%s1 + $0x6f8] sm:$0xff]
  %v250 = vld [vmem:[%s1 + $0x700] sm:$0xff]
  %v251 = vld [vmem:[%s1 + $0x708] sm:$0xff]
  %v252 = vld [vmem:[%s1 + $0x710] sm:$0xff]
  %v253 = vld [vmem:[%s1 + $0x718] sm:$0xff]
  %v254 = vld [vmem:[%s1 + $0x720] sm:$0xff]
  %v255 = vld [vmem:[%s1 + $0x728] sm:$0xff]
  %v256 = vld [vmem:[%s1 + $0x730] sm:$0xff]
  %v257 = vld [vmem:[%s1 + $0x738] sm:$0xff]
  %v258 = vld [vmem:[%s1 + $0x740] sm:$0xff]
  %v259 = vld [vmem:[%s1 + $0x748] sm:$0xff]
  %v260 = vld [vmem:[%s1 + $0x750] sm:$0xff]
  %v261 = vld [vmem:[%s1 + $0x758] sm:$0xff]
  %v262 = vld [vmem:[%s1 + $0x760] sm:$0xff]
  %v263 = vld [vmem:[%s1 + $0x768] sm:$0xff]
  %v264 = vld [vmem:[%s1 + $0x770] sm:$0xff]
  %v265 = vld [vmem:[%s1 + $0x778] sm:$0xff]
  %v266 = vld [vmem:[%s1 + $0x780] sm:$0xff]
  %v267 = vld [vmem:[%s1 + $0x788] sm:$0xff]
  %v268 = vld [vmem:[%s1 + $0x790] sm:$0xff]
  %v269 = vld [vmem:[%s1 + $0x798] sm:$0xff]
  %v270 = vld [vmem:[%s1 + $0x7a0] sm:$0xff]
  %v271 = vld [vmem:[%s1 + $0x7a8] sm:$0xff]
  %v272 = vld [vmem:[%s1 + $0x7b0] sm:$0xff]
  %v273 = vld [vmem:[%s1 + $0x7b8] sm:$0xff]
  %v274 = vld [vmem:[%s1 + $0x7c0] sm:$0xff]
  %v275 = vld [vmem:[%s1 + $0x7c8] sm:$0xff]
  %v276 = vld [vmem:[%s1 + $0x7d0] sm:$0xff]
  %v277 = vld [vmem:[%s1 + $0x7d8] sm:$0xff]
  %v278 = vld [vmem:[%s1 + $0x7e0] sm:$0xff]
  %v279 = vld [vmem:[%s1 + $0x7e8] sm:$0xff]
  %v280 = vld [vmem:[%s1 + $0x7f0] sm:$0xff]
  %v281 = vld [vmem:[%s1 + $0x7f8] sm:$0xff]
  %v282 = vld [vmem:[%s1 + $0x800] sm:$0xff]
  %v283 = vld [vmem:[%s1 + $0x808] sm:$0xff]
  %v284 = vld [vmem:[%s1 + $0x810] sm:$0xff]
  %v285 = vld [vmem:[%s1 + $0x818] sm:$0xff]
  %v286 = vld [vmem:[%s1 + $0x820] sm:$0xff]
  %v287 = vld [vmem:[%s1 + $0x828] sm:$0xff]
  %v288 = vld [vmem:[%s1 + $0x830] sm:$0xff]
  %v289 = vld [vmem:[%s1 + $0x838] sm:$0xff]
  %v290 = vld [vmem:[%s1 + $0x840] sm:$0xff]
  %v291 = vld [vmem:[%s1 + $0x848] sm:$0xff]
  %v292 = vld [vmem:[%s1 + $0x850] sm:$0xff]
  %v293 = vld [vmem:[%s1 + $0x858] sm:$0xff]
  %v294 = vld [vmem:[%s1 + $0x860] sm:$0xff]
  %v295 = vld [vmem:[%s1 + $0x868] sm:$0xff]
  %v296 = vld [vmem:[%s1 + $0x870] sm:$0xff]
  %v297 = vld [vmem:[%s1 + $0x878] sm:$0xff]
  %v298 = vld [vmem:[%s1 + $0x880] sm:$0xff]
  %v299 = vld [vmem:[%s1 + $0x888] sm:$0xff]
  %v300 = vld [vmem:[%s1 + $0x890] sm:$0xff]
  %v301 = vld [vmem:[%s1 + $0x898] sm:$0xff]
  %v302 = vld [vmem:[%s1 + $0x8a0] sm:$0xff]
  %v303 = vld [vmem:[%s1 + $0x8a8] sm:$0xff]
  %v304 = vld [vmem:[%s1 + $0x8b0] sm:$0xff]
  %v305 = vld [vmem:[%s1 + $0x8b8] sm:$0xff]
  %v306 = vld [vmem:[%s1 + $0x8c0] sm:$0xff]
  %v307 = vld [vmem:[%s1 + $0x8c8] sm:$0xff]
  %v308 = vld [vmem:[%s1 + $0x8d0] sm:$0xff]
  %v309 = vld [vmem:[%s1 + $0x8d8] sm:$0xff]
  %v310 = vld [vmem:[%s1 + $0x8e0] sm:$0xff]
  %v311 = vld [vmem:[%s1 + $0x8e8] sm:$0xff]
  %v312 = vld [vmem:[%s1 + $0x8f0] sm:$0xff]
  %v313 = vld [vmem:[%s1 + $0x8f8] sm:$0xff]
  %v314 = vld [vmem:[%s1 + $0x900] sm:$0xff]
  %v315 = vld [vmem:[%s1 + $0x908] sm:$0xff]
  %v316 = vld [vmem:[%s1 + $0x910] sm:$0xff]
  %v317 = vld [vmem:[%s1 + $0x918] sm:$0xff]
  %v318 = vld [vmem:[%s1 + $0x920] sm:$0xff]
  %v319 = vld [vmem:[%s1 + $0x928] sm:$0xff]
  %v320 = vld [vmem:[%s1 + $0x930] sm:$0xff]
  %v321 = vld [vmem:[%s1 + $0x938] sm:$0xff]
  %v322 = vld [vmem:[%s1 + $0x940] sm:$0xff]
  %v323 = vld [vmem:[%s1 + $0x948] sm:$0xff]
  %v324 = vld [vmem:[%s1 + $0x950] sm:$0xff]
  %v325 = vld [vmem:[%s1 + $0x958] sm:$0xff]
  %v326 = vld [vmem:[%s1 + $0x960] sm:$0xff]
  %v327 = vld [vmem:[%s1 + $0x968] sm:$0xff]
  %v328 = vld [vmem:[%s1 + $0x970] sm:$0xff]
  %v329 = vld [vmem:[%s1 + $0x978] sm:$0xff]
  %v330 = vld [vmem:[%s1 + $0x980] sm:$0xff]
  %v331 = vld [vmem:[%s1 + $0x988] sm:$0xff]
  %v332 = vld [vmem:[%s1 + $0x990] sm:$0xff]
  %v333 = vld [vmem:[%s1 + $0x998] sm:$0xff]
  %v334 = vld [vmem:[%s1 + $0x9a0] sm:$0xff]
  %v335 = vld [vmem:[%s1 + $0x9a8] sm:$0xff]
  %v336 = vld [vmem:[%s1 + $0x9b0] sm:$0xff]
  %v337 = vld [vmem:[%s1 + $0x9b8] sm:$0xff]
  %v338 = vld [vmem:[%s1 + $0x9c0] sm:$0xff]
  %v339 = vld [vmem:[%s1 + $0x9c8] sm:$0xff]
  %v340 = vld [vmem:[%s1 + $0x9d0] sm:$0xff]
  %v341 = vld [vmem:[%s1 + $0x9d8] sm:$0xff]
  %v342 = vld [vmem:[%s1 + $0x9e0] sm:$0xff]
  %v343 = vld [vmem:[%s1 + $0x9e8] sm:$0xff]
  %v344 = vld [vmem:[%s1 + $0x9f0] sm:$0xff]
  %v345 = vld [vmem:[%s1 + $0x9f8] sm:$0xff]
  %v346 = vld [vmem:[%s1 + $0xa00] sm:$0xff]
  %v347 = vld [vmem:[%s1 + $0xa08] sm:$0xff]
  %v348 = vld [vmem:[%s1 + $0xa10] sm:$0xff]
  %v349 = vld [vmem:[%s1 + $0xa18] sm:$0xff]
  %v350 = vld [vmem:[%s1 + $0xa20] sm:$0xff]
  %v351 = vld [vmem:[%s1 + $0xa28] sm:$0xff]
  %v352 = vld [vmem:[%s1 + $0xa30] sm:$0xff]
  %v353 = vld [vmem:[%s1 + $0xa38] sm:$0xff]
  %v354 = vld [vmem:[%s1 + $0xa40] sm:$0xff]
  %v355 = vld [vmem:[%s1 + $0xa48] sm:$0xff]
  %v356 = vld [vmem:[%s1 + $0xa50] sm:$0xff]
  %v357 = vld [vmem:[%s1 + $0xa58] sm:$0xff]
  %v358 = vld [vmem:[%s1 + $0xa60] sm:$0xff]
  %v359 = vld [vmem:[%s1 + $0xa68] sm:$0xff]
  %v360 = vld [vmem:[%s1 + $0xa70] sm:$0xff]
  %v361 = vld [vmem:[%s1 + $0xa78] sm:$0xff]
  %v362 = vld [vmem:[%s1 + $0xa80] sm:$0xff]
  %v363 = vld [vmem:[%s1 + $0xa88] sm:$0xff]
  %v364 = vld [vmem:[%s1 + $0xa90] sm:$0xff]
  %v365 = vld [vmem:[%s1 + $0xa98] sm:$0xff]
  %v366 = vld [vmem:[%s1 + $0xaa0] sm:$0xff]
  %v367 = vld [vmem:[%s1 + $0xaa8] sm:$0xff]
  %v368 = vld [vmem:[%s1 + $0xab0] sm:$0xff]
  %v369 = vld [vmem:[%s1 + $0xab8] sm:$0xff]
  %v370 = vld [vmem:[%s1 + $0xac0] sm:$0xff]
  %v371 = vld [vmem:[%s1 + $0xac8] sm:$0xff]
  %v372 = vld [vmem:[%s1 + $0xad0] sm:$0xff]
  %v373 = vld [vmem:[%s1 + $0xad8] sm:$0xff]
  %v374 = vld [vmem:[%s1 + $0xae0] sm:$0xff]
  %v375 = vld [vmem:[%s1 + $0xae8] sm:$0xff]
  %v376 = vld [vmem:[%s1 + $0xaf0] sm:$0xff]
  %v377 = vld [vmem:[%s1 + $0xaf8] sm:$0xff]
  %v378 = vld [vmem:[%s1 + $0xb00] sm:$0xff]
  %v379 = vld [vmem:[%s1 + $0xb08] sm:$0xff]
  %v380 = vld [vmem:[%s1 + $0xb10] sm:$0xff]
  %v381 = vld [vmem:[%s1 + $0xb18] sm:$0xff]
  %v382 = vld [vmem:[%s1 + $0xb20] sm:$0xff]
  %v383 = vld [vmem:[%s1 + $0xb28] sm:$0xff]
  %v384 = vld [vmem:[%s1 + $0xb30] sm:$0xff]
  %v385 = vld [vmem:[%s1 + $0xb38] sm:$0xff]
  %v386 = vld [vmem:[%s1 + $0xb40] sm:$0xff]
  %v387 = vld [vmem:[%s1 + $0xb48] sm:$0xff]
  %v388 = vld [vmem:[%s1 + $0xb50] sm:$0xff]
  %v389 = vld [vmem:[%s1 + $0xb58] sm:$0xff]
  %v390 = vld [vmem:[%s1 + $0xb60] sm:$0xff]
  %v391 = vld [vmem:[%s1 + $0xb68] sm:$0xff]
  %v392 = vld [vmem:[%s1 + $0xb70] sm:$0xff]
  %v393 = vld [vmem:[%s1 + $0xb78] sm:$0xff]
  %v394 = vld [vmem:[%s1 + $0xb80] sm:$0xff]
  %v395 = vld [vmem:[%s1 + $0xb88] sm:$0xff]
  %v396 = vld [vmem:[%s1 + $0xb90] sm:$0xff]
  %v397 = vld [vmem:[%s1 + $0xb98] sm:$0xff]
  %v398 = vld [vmem:[%s1 + $0xba0] sm:$0xff]
  %v399 = vld [vmem:[%s1 + $0xba8] sm:$0xff]
  %v400 = vld [vmem:[%s1 + $0xbb0] sm:$0xff]
  %v401 = vld [vmem:[%s1 + $0xbb8] sm:$0xff]
  %v402 = vld [vmem:[%s1 + $0xbc0] sm:$0xff]
  %v403 = vld [vmem:[%s1 + $0xbc8] sm:$0xff]
  %v404 = vld [vmem:[%s1 + $0xbd0] sm:$0xff]
  %v405 = vld [vmem:[%s1 + $0xbd8] sm:$0xff]
  %v406 = vld [vmem:[%s1 + $0xbe0] sm:$0xff]
  %v407 = vld [vmem:[%s1 + $0xbe8] sm:$0xff]
  %v408 = vld [vmem:[%s1 + $0xbf0] sm:$0xff]
  %v409 = vld [vmem:[%s1 + $0xbf8] sm:$0xff]
  %v410 = vld [vmem:[%s1 + $0xc00] sm:$0xff]
  %v411 = vld [vmem:[%s1 + $0xc08] sm:$0xff]
  %v412 = vld [vmem:[%s1 + $0xc10] sm:$0xff]
  %v413 = vld [vmem:[%s1 + $0xc18] sm:$0xff]
  %v414 = vld [vmem:[%s1 + $0xc20] sm:$0xff]
  %v415 = vld [vmem:[%s1 + $0xc28] sm:$0xff]
  %v416 = vld [vmem:[%s1 + $0xc30] sm:$0xff]
  %v417 = vld [vmem:[%s1 + $0xc38] sm:$0xff]
  %v418 = vld [vmem:[%s1 + $0xc40] sm:$0xff]
  %v419 = vld [vmem:[%s1 + $0xc48] sm:$0xff]
  %v420 = vld [vmem:[%s1 + $0xc50] sm:$0xff]
  %v421 = vld [vmem:[%s1 + $0xc58] sm:$0xff]
  %v422 = vld [vmem:[%s1 + $0xc60] sm:$0xff]
  %v423 = vld [vmem:[%s1 + $0xc68] sm:$0xff]
  %v424 = vld [vmem:[%s1 + $0xc70] sm:$0xff]
  %v425 = vld [vmem:[%s1 + $0xc78] sm:$0xff]
  %v426 = vld [vmem:[%s1 + $0xc80] sm:$0xff]
  %v427 = vld [vmem:[%s1 + $0xc88] sm:$0xff]
  %v428 = vld [vmem:[%s1 + $0xc90] sm:$0xff]
  %v429 = vld [vmem:[%s1 + $0xc98] sm:$0xff]
  %v430 = vld [vmem:[%s1 + $0xca0] sm:$0xff]
  %v431 = vld [vmem:[%s1 + $0xca8] sm:$0xff]
  %v432 = vld [vmem:[%s1 + $0xcb0] sm:$0xff]
  %v433 = vld [vmem:[%s1 + $0xcb8] sm:$0xff]
  %v434 = vld [vmem:[%s1 + $0xcc0] sm:$0xff]
  %v435 = vld [vmem:[%s1 + $0xcc8] sm:$0xff]
  %v436 = vld [vmem:[%s1 + $0xcd0] sm:$0xff]
  %v437 = vld [vmem:[%s1 + $0xcd8] sm:$0xff]
  %v438 = vld [vmem:[%s1 + $0xce0] sm:$0xff]
  %v439 = vld [vmem:[%s1 + $0xce8] sm:$0xff]
  %v440 = vld [vmem:[%s1 + $0xcf0] sm:$0xff]
  %v441 = vld [vmem:[%s1 + $0xcf8] sm:$0xff]
  %v442 = vld [vmem:[%s1 + $0xd00] sm:$0xff]
  %v443 = vld [vmem:[%s1 + $0xd08] sm:$0xff]
  %v444 = vld [vmem:[%s1 + $0xd10] sm:$0xff]
  %v445 = vld [vmem:[%s1 + $0xd18] sm:$0xff]
  %v446 = vld [vmem:[%s1 + $0xd20] sm:$0xff]
  %v447 = vld [vmem:[%s1 + $0xd28] sm:$0xff]
  %v448 = vld [vmem:[%s1 + $0xd30] sm:$0xff]
  %v449 = vld [vmem:[%s1 + $0xd38] sm:$0xff]
  %v450 = vld [vmem:[%s1 + $0xd40] sm:$0xff]
  %v451 = vld [vmem:[%s1 + $0xd48] sm:$0xff]
  %v452 = vld [vmem:[%s1 + $0xd50] sm:$0xff]
  %v453 = vld [vmem:[%s1 + $0xd58] sm:$0xff]
  %v454 = vld [vmem:[%s1 + $0xd60] sm:$0xff]
  %v455 = vld [vmem:[%s1 + $0xd68] sm:$0xff]
  %v456 = vld [vmem:[%s1 + $0xd70] sm:$0xff]
  %v457 = vld [vmem:[%s1 + $0xd78] sm:$0xff]
  %v458 = vld [vmem:[%s1 + $0xd80] sm:$0xff]
  %v459 = vld [vmem:[%s1 + $0xd88] sm:$0xff]
  %v460 = vld [vmem:[%s1 + $0xd90] sm:$0xff]
  %v461 = vld [vmem:[%s1 + $0xd98] sm:$0xff]
  %v462 = vld [vmem:[%s1 + $0xda0] sm:$0xff]
  %v463 = vld [vmem:[%s1 + $0xda8] sm:$0xff]
  %v464 = vld [vmem:[%s1 + $0xdb0] sm:$0xff]
  %v465 = vld [vmem:[%s1 + $0xdb8] sm:$0xff]
  %v466 = vld [vmem:[%s1 + $0xdc0] sm:$0xff]
  %v467 = vld [vmem:[%s1 + $0xdc8] sm:$0xff]
  %v468 = vld [vmem:[%s1 + $0xdd0] sm:$0xff]
  %v469 = vld [vmem:[%s1 + $0xdd8] sm:$0xff]
  %v470 = vld [vmem:[%s1 + $0xde0] sm:$0xff]
  %v471 = vld [vmem:[%s1 + $0xde8] sm:$0xff]
  %v472 = vld [vmem:[%s1 + $0xdf0] sm:$0xff]
  %v473 = vld [vmem:[%s1 + $0xdf8] sm:$0xff]
  %v474 = vld [vmem:[%s1 + $0xe00] sm:$0xff]
  %v475 = vld [vmem:[%s1 + $0xe08] sm:$0xff]
  %v476 = vld [vmem:[%s1 + $0xe10] sm:$0xff]
  %v477 = vld [vmem:[%s1 + $0xe18] sm:$0xff]
  %v478 = vld [vmem:[%s1 + $0xe20] sm:$0xff]
  %v479 = vld [vmem:[%s1 + $0xe28] sm:$0xff]
  %v480 = vld [vmem:[%s1 + $0xe30] sm:$0xff]
  %v481 = vld [vmem:[%s1 + $0xe38] sm:$0xff]
  %v482 = vld [vmem:[%s1 + $0xe40] sm:$0xff]
  %v483 = vld [vmem:[%s1 + $0xe48] sm:$0xff]
  %v484 = vld [vmem:[%s1 + $0xe50] sm:$0xff]
  %v485 = vld [vmem:[%s1 + $0xe58] sm:$0xff]
  %v486 = vld [vmem:[%s1 + $0xe60] sm:$0xff]
  %v487 = vld [vmem:[%s1 + $0xe68] sm:$0xff]
  %v488 = vld [vmem:[%s1 + $0xe70] sm:$0xff]
  %v489 = vld [vmem:[%s1 + $0xe78] sm:$0xff]
  %v490 = vld [vmem:[%s1 + $0xe80] sm:$0xff]
  %v491 = vld [vmem:[%s1 + $0xe88] sm:$0xff]
  %v492 = vld [vmem:[%s1 + $0xe90] sm:$0xff]
  %v493 = vld [vmem:[%s1 + $0xe98] sm:$0xff]
  %v494 = vld [vmem:[%s1 + $0xea0] sm:$0xff]
  %v495 = vld [vmem:[%s1 + $0xea8] sm:$0xff]
  %v496 = vld [vmem:[%s1 + $0xeb0] sm:$0xff]
  %v497 = vld [vmem:[%s1 + $0xeb8] sm:$0xff]
  %v498 = vld [vmem:[%s1 + $0xec0] sm:$0xff]
  %v499 = vld [vmem:[%s1 + $0xec8] sm:$0xff]
  %v500 = vld [vmem:[%s1 + $0xed0] sm:$0xff]
  %v501 = vld [vmem:[%s1 + $0xed8] sm:$0xff]
  %v502 = vld [vmem:[%s1 + $0xee0] sm:$0xff]
  %v503 = vld [vmem:[%s1 + $0xee8] sm:$0xff]
  %v504 = vld [vmem:[%s1 + $0xef0] sm:$0xff]
  %v505 = vld [vmem:[%s1 + $0xef8] sm:$0xff]
  %v506 = vld [vmem:[%s1 + $0xf00] sm:$0xff]
  %v507 = vld [vmem:[%s1 + $0xf08] sm:$0xff]
  %v508 = vld [vmem:[%s1 + $0xf10] sm:$0xff]
  %v509 = vld [vmem:[%s1 + $0xf18] sm:$0xff]
  %v510 = vld [vmem:[%s1 + $0xf20] sm:$0xff]
  %v511 = vld [vmem:[%s1 + $0xf28] sm:$0xff]
  %v512 = vld [vmem:[%s1 + $0xf30] sm:$0xff]
  %v513 = vld [vmem:[%s1 + $0xf38] sm:$0xff]
  %v514 = vld [vmem:[%s1 + $0xf40] sm:$0xff]
  %v515 = vld [vmem:[%s1 + $0xf48] sm:$0xff]
  %v516 = vld [vmem:[%s1 + $0xf50] sm:$0xff]
  %v517 = vld [vmem:[%s1 + $0xf58] sm:$0xff]
  %v518 = vld [vmem:[%s1 + $0xf60] sm:$0xff]
  %v519 = vld [vmem:[%s1 + $0xf68] sm:$0xff]
  %v520 = vld [vmem:[%s1 + $0xf70] sm:$0xff]
  %v521 = vld [vmem:[%s1 + $0xf78] sm:$0xff]
  %v522 = vld [vmem:[%s1 + $0xf80] sm:$0xff]
  %v523 = vld [vmem:[%s1 + $0xf88] sm:$0xff]
  %v524 = vld [vmem:[%s1 + $0xf90] sm:$0xff]
  %v525 = vld [vmem:[%s1 + $0xf98] sm:$0xff]
  %v526 = vld [vmem:[%s1 + $0xfa0] sm:$0xff]
  %v527 = vld [vmem:[%s1 + $0xfa8] sm:$0xff]
  %v528 = vld [vmem:[%s1 + $0xfb0] sm:$0xff]
  %v529 = vld [vmem:[%s1 + $0xfb8] sm:$0xff]
  %v530 = vld [vmem:[%s1 + $0xfc0] sm:$0xff]
  %v531 = vld [vmem:[%s1 + $0xfc8] sm:$0xff]
  %v532 = vld [vmem:[%s1 + $0xfd0] sm:$0xff]
  %v533 = vld [vmem:[%s1 + $0xfd8] sm:$0xff]
  %v534 = vld [vmem:[%s1 + $0xfe0] sm:$0xff]
  %v535 = vld [vmem:[%s1 + $0xfe8] sm:$0xff]
  %v536 = vld [vmem:[%s1 + $0xff0] sm:$0xff]
  %v537 = vld [vmem:[%s1 + $0xff8] sm:$0xff]
  %v538 = vld [vmem:[%s2] sm:$0xff]
  %v540 = vlaneseq
  %v541 = vshrl.u32 %v540, 7
  %v542 = vsub.s32 0, %v541
  %v543 = vrot.slane %v538, %v542
  %v544 = vlaneseq
  %v545 = vshrl.u32 %v544, 7
  %v546 = vsub.s32 1, %v545
  %v547 = vrot.slane %v538, %v546
  %v548 = vlaneseq
  %v549 = vshrl.u32 %v548, 7
  %v550 = vsub.s32 2, %v549
  %v551 = vrot.slane %v538, %v550
  %v552 = vlaneseq
  %v553 = vshrl.u32 %v552, 7
  %v554 = vsub.s32 3, %v553
  %v555 = vrot.slane %v538, %v554
  %v556 = vlaneseq
  %v557 = vshrl.u32 %v556, 7
  %v558 = vsub.s32 4, %v557
  %v559 = vrot.slane %v538, %v558
  %v560 = vlaneseq
  %v561 = vshrl.u32 %v560, 7
  %v562 = vsub.s32 5, %v561
  %v563 = vrot.slane %v538, %v562
  %v564 = vlaneseq
  %v565 = vshrl.u32 %v564, 7
  %v566 = vsub.s32 6, %v565
  %v567 = vrot.slane %v538, %v566
  %v568 = vlaneseq
  %v569 = vshrl.u32 %v568, 7
  %v570 = vsub.s32 7, %v569
  %v571 = vrot.slane %v538, %v570
  %580 = vmatprep.subr.mxu0 %v27
  %581 = vmatpush1.msra.mxu0 %v26
  %582 = vmatprep.subr.mxu0 %v35
  %583 = vmatpush1.msra.mxu0 %v34
  %584 = vmatprep.subr.mxu0 %v43
  %585 = vmatpush1.msra.mxu0 %v42
  %586 = vmatprep.subr.mxu0 %v51
  %587 = vmatpush1.msra.mxu0 %v50
  %588 = vmatprep.subr.mxu0 %v59
  %589 = vmatpush1.msra.mxu0 %v58
  %590 = vmatprep.subr.mxu0 %v67
  %591 = vmatpush1.msra.mxu0 %v66
  %592 = vmatprep.subr.mxu0 %v75
  %593 = vmatpush1.msra.mxu0 %v74
  %594 = vmatprep.subr.mxu0 %v83
  %595 = vmatpush1.msra.mxu0 %v82
  %596 = vmatprep.subr.mxu0 %v91
  %597 = vmatpush1.msra.mxu0 %v90
  %598 = vmatprep.subr.mxu0 %v99
  %599 = vmatpush1.msra.mxu0 %v98
  %600 = vmatprep.subr.mxu0 %v107
  %601 = vmatpush1.msra.mxu0 %v106
  %602 = vmatprep.subr.mxu0 %v115
  %603 = vmatpush1.msra.mxu0 %v114
  %604 = vmatprep.subr.mxu0 %v123
  %605 = vmatpush1.msra.mxu0 %v122
  %606 = vmatprep.subr.mxu0 %v131
  %607 = vmatpush1.msra.mxu0 %v130
  %608 = vmatprep.subr.mxu0 %v139
  %609 = vmatpush1.msra.mxu0 %v138
  %610 = vmatprep.subr.mxu0 %v147
  %611 = vmatpush1.msra.mxu0 %v146
  %612 = vmatprep.subr.mxu0 %v155
  %613 = vmatpush1.msra.mxu0 %v154
  %614 = vmatprep.subr.mxu0 %v163
  %615 = vmatpush1.msra.mxu0 %v162
  %616 = vmatprep.subr.mxu0 %v171
  %617 = vmatpush1.msra.mxu0 %v170
  %618 = vmatprep.subr.mxu0 %v179
  %619 = vmatpush1.msra.mxu0 %v178
  %620 = vmatprep.subr.mxu0 %v187
  %621 = vmatpush1.msra.mxu0 %v186
  %622 = vmatprep.subr.mxu0 %v195
  %623 = vmatpush1.msra.mxu0 %v194
  %624 = vmatprep.subr.mxu0 %v203
  %625 = vmatpush1.msra.mxu0 %v202
  %626 = vmatprep.subr.mxu0 %v211
  %627 = vmatpush1.msra.mxu0 %v210
  %628 = vmatprep.subr.mxu0 %v219
  %629 = vmatpush1.msra.mxu0 %v218
  %630 = vmatprep.subr.mxu0 %v227
  %631 = vmatpush1.msra.mxu0 %v226
  %632 = vmatprep.subr.mxu0 %v235
  %633 = vmatpush1.msra.mxu0 %v234
  %634 = vmatprep.subr.mxu0 %v243
  %635 = vmatpush1.msra.mxu0 %v242
  %636 = vmatprep.subr.mxu0 %v251
  %637 = vmatpush1.msra.mxu0 %v250
  %638 = vmatprep.subr.mxu0 %v259
  %639 = vmatpush1.msra.mxu0 %v258
  %640 = vmatprep.subr.mxu0 %v267
  %641 = vmatpush1.msra.mxu0 %v266
  %642 = vmatprep.subr.mxu0 %v275
  %643 = vmatpush1.msra.mxu0 %v274
  %644 = vmatprep.mubr.f32.mxu0 %v15
  %645 = vmatmul.mubr.f32.gmra.mrb[0].mxu0 %v14
  %v646 = vpop.f32.mrb[0].mxu0
  %v647 = vadd.f32 %v543, %v646
  %v648 = vpop.f32.mrb[0].mxu0
  %v649 = vadd.f32 %v547, %v648
  %650 = vmatprep.mubr.f32.mxu0 %v19
  %651 = vmatmul.mubr.f32.gmra.mrb[0].mxu0 %v18
  %v652 = vpop.f32.mrb[0].mxu0
  %v653 = vadd.f32 %v543, %v652
  %v654 = vpop.f32.mrb[0].mxu0
  %v655 = vadd.f32 %v547, %v654
  %656 = vmatprep.mubr.f32.mxu0 %v23
  %657 = vmatmul.mubr.f32.gmra.mrb[0].mxu0 %v22
  %v658 = vpop.f32.mrb[0].mxu0
  %v659 = vadd.f32 %v543, %v658
  %v660 = vpop.f32.mrb[0].mxu0
  %v661 = vadd.f32 %v547, %v660
  %662 = vdwg.mxu0
  %663 = vmatprep.subr.mxu0 %v283
  %664 = vmatpush1.msra.mxu0 %v282
  %665 = vmatprep.subr.mxu0 %v291
  %666 = vmatpush1.msra.mxu0 %v290
  %667 = vmatprep.subr.mxu0 %v299
  %668 = vmatpush1.msra.mxu0 %v298
  %669 = vmatprep.subr.mxu0 %v307
  %670 = vmatpush1.msra.mxu0 %v306
  %671 = vmatprep.subr.mxu0 %v315
  %672 = vmatpush1.msra.mxu0 %v314
  %673 = vmatprep.subr.mxu0 %v323
  %674 = vmatpush1.msra.mxu0 %v322
  %675 = vmatprep.subr.mxu0 %v331
  %676 = vmatpush1.msra.mxu0 %v330
  %677 = vmatprep.subr.mxu0 %v339
  %678 = vmatpush1.msra.mxu0 %v338
  %679 = vmatprep.subr.mxu0 %v347
  %680 = vmatpush1.msra.mxu0 %v346
  %681 = vmatprep.subr.mxu0 %v355
  %682 = vmatpush1.msra.mxu0 %v354
  %683 = vmatprep.subr.mxu0 %v363
  %684 = vmatpush1.msra.mxu0 %v362
  %685 = vmatprep.subr.mxu0 %v371
  %686 = vmatpush1.msra.mxu0 %v370
  %687 = vmatprep.subr.mxu0 %v379
  %688 = vmatpush1.msra.mxu0 %v378
  %689 = vmatprep.subr.mxu0 %v387
  %690 = vmatpush1.msra.mxu0 %v386
  %691 = vmatprep.subr.mxu0 %v395
  %692 = vmatpush1.msra.mxu0 %v394
  %693 = vmatprep.subr.mxu0 %v403
  %694 = vmatpush1.msra.mxu0 %v402
  %695 = vmatprep.subr.mxu0 %v411
  %696 = vmatpush1.msra.mxu0 %v410
  %697 = vmatprep.subr.mxu0 %v419
  %698 = vmatpush1.msra.mxu0 %v418
  %699 = vmatprep.subr.mxu0 %v427
  %700 = vmatpush1.msra.mxu0 %v426
  %701 = vmatprep.subr.mxu0 %v435
  %702 = vmatpush1.msra.mxu0 %v434
  %703 = vmatprep.subr.mxu0 %v443
  %704 = vmatpush1.msra.mxu0 %v442
  %705 = vmatprep.subr.mxu0 %v451
  %706 = vmatpush1.msra.mxu0 %v450
  %707 = vmatprep.subr.mxu0 %v459
  %708 = vmatpush1.msra.mxu0 %v458
  %709 = vmatprep.subr.mxu0 %v467
  %710 = vmatpush1.msra.mxu0 %v466
  %711 = vmatprep.subr.mxu0 %v475
  %712 = vmatpush1.msra.mxu0 %v474
  %713 = vmatprep.subr.mxu0 %v483
  %714 = vmatpush1.msra.mxu0 %v482
  %715 = vmatprep.subr.mxu0 %v491
  %716 = vmatpush1.msra.mxu0 %v490
  %717 = vmatprep.subr.mxu0 %v499
  %718 = vmatpush1.msra.mxu0 %v498
  %719 = vmatprep.subr.mxu0 %v507
  %720 = vmatpush1.msra.mxu0 %v506
  %721 = vmatprep.subr.mxu0 %v515
  %722 = vmatpush1.msra.mxu0 %v514
  %723 = vmatprep.subr.mxu0 %v523
  %724 = vmatpush1.msra.mxu0 %v522
  %725 = vmatprep.subr.mxu0 %v531
  %726 = vmatpush1.msra.mxu0 %v530
  %727 = vmatprep.mubr.f32.mxu0 %v17
  %728 = vmatmul.mubr.f32.gmra.mrb[0].mxu0 %v16
  %v729 = vpop.f32.mrb[0].mxu0
  %v730 = vadd.f32 %v647, %v729
  %v731 = vpop.f32.mrb[0].mxu0
  %v732 = vadd.f32 %v649, %v731
  %733 = vmatprep.mubr.f32.mxu0 %v21
  %734 = vmatmul.mubr.f32.gmra.mrb[0].mxu0 %v20
  %v735 = vpop.f32.mrb[0].mxu0
  %v736 = vadd.f32 %v653, %v735
  %v737 = vpop.f32.mrb[0].mxu0
  %v738 = vadd.f32 %v655, %v737
  %739 = vmatprep.mubr.f32.mxu0 %v25
  %740 = vmatmul.mubr.f32.gmra.mrb[0].mxu0 %v24
  %v741 = vpop.f32.mrb[0].mxu0
  %v742 = vadd.f32 %v659, %v741
  %v743 = vpop.f32.mrb[0].mxu0
  %v744 = vadd.f32 %v661, %v743
  %745 = vdwg.mxu0
  %746 = vmatprep.subr.mxu0 %v29
  %747 = vmatpush1.msra.mxu0 %v28
  %748 = vmatprep.subr.mxu0 %v37
  %749 = vmatpush1.msra.mxu0 %v36
  %750 = vmatprep.subr.mxu0 %v45
  %751 = vmatpush1.msra.mxu0 %v44
  %752 = vmatprep.subr.mxu0 %v53
  %753 = vmatpush1.msra.mxu0 %v52
  %754 = vmatprep.subr.mxu0 %v61
  %755 = vmatpush1.msra.mxu0 %v60
  %756 = vmatprep.subr.mxu0 %v69
  %757 = vmatpush1.msra.mxu0 %v68
  %758 = vmatprep.subr.mxu0 %v77
  %759 = vmatpush1.msra.mxu0 %v76
  %760 = vmatprep.subr.mxu0 %v85
  %761 = vmatpush1.msra.mxu0 %v84
  %762 = vmatprep.subr.mxu0 %v93
  %763 = vmatpush1.msra.mxu0 %v92
  %764 = vmatprep.subr.mxu0 %v101
  %765 = vmatpush1.msra.mxu0 %v100
  %766 = vmatprep.subr.mxu0 %v109
  %767 = vmatpush1.msra.mxu0 %v108
  %768 = vmatprep.subr.mxu0 %v117
  %769 = vmatpush1.msra.mxu0 %v116
  %770 = vmatprep.subr.mxu0 %v125
  %771 = vmatpush1.msra.mxu0 %v124
  %772 = vmatprep.subr.mxu0 %v133
  %773 = vmatpush1.msra.mxu0 %v132
  %774 = vmatprep.subr.mxu0 %v141
  %775 = vmatpush1.msra.mxu0 %v140
  %776 = vmatprep.subr.mxu0 %v149
  %777 = vmatpush1.msra.mxu0 %v148
  %778 = vmatprep.subr.mxu0 %v157
  %779 = vmatpush1.msra.mxu0 %v156
  %780 = vmatprep.subr.mxu0 %v165
  %781 = vmatpush1.msra.mxu0 %v164
  %782 = vmatprep.subr.mxu0 %v173
  %783 = vmatpush1.msra.mxu0 %v172
  %784 = vmatprep.subr.mxu0 %v181
  %785 = vmatpush1.msra.mxu0 %v180
  %786 = vmatprep.subr.mxu0 %v189
  %787 = vmatpush1.msra.mxu0 %v188
  %788 = vmatprep.subr.mxu0 %v197
  %789 = vmatpush1.msra.mxu0 %v196
  %790 = vmatprep.subr.mxu0 %v205
  %791 = vmatpush1.msra.mxu0 %v204
  %792 = vmatprep.subr.mxu0 %v213
  %793 = vmatpush1.msra.mxu0 %v212
  %794 = vmatprep.subr.mxu0 %v221
  %795 = vmatpush1.msra.mxu0 %v220
  %796 = vmatprep.subr.mxu0 %v229
  %797 = vmatpush1.msra.mxu0 %v228
  %798 = vmatprep.subr.mxu0 %v237
  %799 = vmatpush1.msra.mxu0 %v236
  %800 = vmatprep.subr.mxu0 %v245
  %801 = vmatpush1.msra.mxu0 %v244
  %802 = vmatprep.subr.mxu0 %v253
  %803 = vmatpush1.msra.mxu0 %v252
  %804 = vmatprep.subr.mxu0 %v261
  %805 = vmatpush1.msra.mxu0 %v260
  %806 = vmatprep.subr.mxu0 %v269
  %807 = vmatpush1.msra.mxu0 %v268
  %808 = vmatprep.subr.mxu0 %v277
  %809 = vmatpush1.msra.mxu0 %v276
  %810 = vmatprep.mubr.f32.mxu0 %v15
  %811 = vmatmul.mubr.f32.gmra.mrb[0].mxu0 %v14
  %v812 = vpop.f32.mrb[0].mxu0
  %v813 = vadd.f32 %v551, %v812
  %v814 = vpop.f32.mrb[0].mxu0
  %v815 = vadd.f32 %v555, %v814
  %816 = vmatprep.mubr.f32.mxu0 %v19
  %817 = vmatmul.mubr.f32.gmra.mrb[0].mxu0 %v18
  %v818 = vpop.f32.mrb[0].mxu0
  %v819 = vadd.f32 %v551, %v818
  %v820 = vpop.f32.mrb[0].mxu0
  %v821 = vadd.f32 %v555, %v820
  %822 = vmatprep.mubr.f32.mxu0 %v23
  %823 = vmatmul.mubr.f32.gmra.mrb[0].mxu0 %v22
  %v824 = vpop.f32.mrb[0].mxu0
  %v825 = vadd.f32 %v551, %v824
  %v826 = vpop.f32.mrb[0].mxu0
  %v827 = vadd.f32 %v555, %v826
  %828 = vdwg.mxu0
  %829 = vmatprep.subr.mxu0 %v285
  %830 = vmatpush1.msra.mxu0 %v284
  %831 = vmatprep.subr.mxu0 %v293
  %832 = vmatpush1.msra.mxu0 %v292
  %833 = vmatprep.subr.mxu0 %v301
  %834 = vmatpush1.msra.mxu0 %v300
  %835 = vmatprep.subr.mxu0 %v309
  %836 = vmatpush1.msra.mxu0 %v308
  %837 = vmatprep.subr.mxu0 %v317
  %838 = vmatpush1.msra.mxu0 %v316
  %839 = vmatprep.subr.mxu0 %v325
  %840 = vmatpush1.msra.mxu0 %v324
  %841 = vmatprep.subr.mxu0 %v333
  %842 = vmatpush1.msra.mxu0 %v332
  %843 = vmatprep.subr.mxu0 %v341
  %844 = vmatpush1.msra.mxu0 %v340
  %845 = vmatprep.subr.mxu0 %v349
  %846 = vmatpush1.msra.mxu0 %v348
  %847 = vmatprep.subr.mxu0 %v357
  %848 = vmatpush1.msra.mxu0 %v356
  %849 = vmatprep.subr.mxu0 %v365
  %850 = vmatpush1.msra.mxu0 %v364
  %851 = vmatprep.subr.mxu0 %v373
  %852 = vmatpush1.msra.mxu0 %v372
  %853 = vmatprep.subr.mxu0 %v381
  %854 = vmatpush1.msra.mxu0 %v380
  %855 = vmatprep.subr.mxu0 %v389
  %856 = vmatpush1.msra.mxu0 %v388
  %857 = vmatprep.subr.mxu0 %v397
  %858 = vmatpush1.msra.mxu0 %v396
  %859 = vmatprep.subr.mxu0 %v405
  %860 = vmatpush1.msra.mxu0 %v404
  %861 = vmatprep.subr.mxu0 %v413
  %862 = vmatpush1.msra.mxu0 %v412
  %863 = vmatprep.subr.mxu0 %v421
  %864 = vmatpush1.msra.mxu0 %v420
  %865 = vmatprep.subr.mxu0 %v429
  %866 = vmatpush1.msra.mxu0 %v428
  %867 = vmatprep.subr.mxu0 %v437
  %868 = vmatpush1.msra.mxu0 %v436
  %869 = vmatprep.subr.mxu0 %v445
  %870 = vmatpush1.msra.mxu0 %v444
  %871 = vmatprep.subr.mxu0 %v453
  %872 = vmatpush1.msra.mxu0 %v452
  %873 = vmatprep.subr.mxu0 %v461
  %874 = vmatpush1.msra.mxu0 %v460
  %875 = vmatprep.subr.mxu0 %v469
  %876 = vmatpush1.msra.mxu0 %v468
  %877 = vmatprep.subr.mxu0 %v477
  %878 = vmatpush1.msra.mxu0 %v476
  %879 = vmatprep.subr.mxu0 %v485
  %880 = vmatpush1.msra.mxu0 %v484
  %881 = vmatprep.subr.mxu0 %v493
  %882 = vmatpush1.msra.mxu0 %v492
  %883 = vmatprep.subr.mxu0 %v501
  %884 = vmatpush1.msra.mxu0 %v500
  %885 = vmatprep.subr.mxu0 %v509
  %886 = vmatpush1.msra.mxu0 %v508
  %887 = vmatprep.subr.mxu0 %v517
  %888 = vmatpush1.msra.mxu0 %v516
  %889 = vmatprep.subr.mxu0 %v525
  %890 = vmatpush1.msra.mxu0 %v524
  %891 = vmatprep.subr.mxu0 %v533
  %892 = vmatpush1.msra.mxu0 %v532
  %893 = vmatprep.mubr.f32.mxu0 %v17
  %894 = vmatmul.mubr.f32.gmra.mrb[0].mxu0 %v16
  %v895 = vpop.f32.mrb[0].mxu0
  %v896 = vadd.f32 %v813, %v895
  %v897 = vpop.f32.mrb[0].mxu0
  %v898 = vadd.f32 %v815, %v897
  %899 = vmatprep.mubr.f32.mxu0 %v21
  %900 = vmatmul.mubr.f32.gmra.mrb[0].mxu0 %v20
  %v901 = vpop.f32.mrb[0].mxu0
  %v902 = vadd.f32 %v819, %v901
  %v903 = vpop.f32.mrb[0].mxu0
  %v904 = vadd.f32 %v821, %v903
  %905 = vmatprep.mubr.f32.mxu0 %v25
  %906 = vmatmul.mubr.f32.gmra.mrb[0].mxu0 %v24
  %v907 = vpop.f32.mrb[0].mxu0
  %v908 = vadd.f32 %v825, %v907
  %v909 = vpop.f32.mrb[0].mxu0
  %v910 = vadd.f32 %v827, %v909
  %911 = vdwg.mxu0
  %912 = vmatprep.subr.mxu0 %v31
  %913 = vmatpush1.msra.mxu0 %v30
  %914 = vmatprep.subr.mxu0 %v39
  %915 = vmatpush1.msra.mxu0 %v38
  %916 = vmatprep.subr.mxu0 %v47
  %917 = vmatpush1.msra.mxu0 %v46
  %918 = vmatprep.subr.mxu0 %v55
  %919 = vmatpush1.msra.mxu0 %v54
  %920 = vmatprep.subr.mxu0 %v63
  %921 = vmatpush1.msra.mxu0 %v62
  %922 = vmatprep.subr.mxu0 %v71
  %923 = vmatpush1.msra.mxu0 %v70
  %924 = vmatprep.subr.mxu0 %v79
  %925 = vmatpush1.msra.mxu0 %v78
  %926 = vmatprep.subr.mxu0 %v87
  %927 = vmatpush1.msra.mxu0 %v86
  %928 = vmatprep.subr.mxu0 %v95
  %929 = vmatpush1.msra.mxu0 %v94
  %930 = vmatprep.subr.mxu0 %v103
  %931 = vmatpush1.msra.mxu0 %v102
  %932 = vmatprep.subr.mxu0 %v111
  %933 = vmatpush1.msra.mxu0 %v110
  %934 = vmatprep.subr.mxu0 %v119
  %935 = vmatpush1.msra.mxu0 %v118
  %936 = vmatprep.subr.mxu0 %v127
  %937 = vmatpush1.msra.mxu0 %v126
  %938 = vmatprep.subr.mxu0 %v135
  %939 = vmatpush1.msra.mxu0 %v134
  %940 = vmatprep.subr.mxu0 %v143
  %941 = vmatpush1.msra.mxu0 %v142
  %942 = vmatprep.subr.mxu0 %v151
  %943 = vmatpush1.msra.mxu0 %v150
  %944 = vmatprep.subr.mxu0 %v159
  %945 = vmatpush1.msra.mxu0 %v158
  %946 = vmatprep.subr.mxu0 %v167
  %947 = vmatpush1.msra.mxu0 %v166
  %948 = vmatprep.subr.mxu0 %v175
  %949 = vmatpush1.msra.mxu0 %v174
  %950 = vmatprep.subr.mxu0 %v183
  %951 = vmatpush1.msra.mxu0 %v182
  %952 = vmatprep.subr.mxu0 %v191
  %953 = vmatpush1.msra.mxu0 %v190
  %954 = vmatprep.subr.mxu0 %v199
  %955 = vmatpush1.msra.mxu0 %v198
  %956 = vmatprep.subr.mxu0 %v207
  %957 = vmatpush1.msra.mxu0 %v206
  %958 = vmatprep.subr.mxu0 %v215
  %959 = vmatpush1.msra.mxu0 %v214
  %960 = vmatprep.subr.mxu0 %v223
  %961 = vmatpush1.msra.mxu0 %v222
  %962 = vmatprep.subr.mxu0 %v231
  %963 = vmatpush1.msra.mxu0 %v230
  %964 = vmatprep.subr.mxu0 %v239
  %965 = vmatpush1.msra.mxu0 %v238
  %966 = vmatprep.subr.mxu0 %v247
  %967 = vmatpush1.msra.mxu0 %v246
  %968 = vmatprep.subr.mxu0 %v255
  %969 = vmatpush1.msra.mxu0 %v254
  %970 = vmatprep.subr.mxu0 %v263
  %971 = vmatpush1.msra.mxu0 %v262
  %972 = vmatprep.subr.mxu0 %v271
  %973 = vmatpush1.msra.mxu0 %v270
  %974 = vmatprep.subr.mxu0 %v279
  %975 = vmatpush1.msra.mxu0 %v278
  %976 = vmatprep.mubr.f32.mxu0 %v15
  %977 = vmatmul.mubr.f32.gmra.mrb[0].mxu0 %v14
  %v978 = vpop.f32.mrb[0].mxu0
  %v979 = vadd.f32 %v559, %v978
  %v980 = vpop.f32.mrb[0].mxu0
  %v981 = vadd.f32 %v563, %v980
  %982 = vmatprep.mubr.f32.mxu0 %v19
  %983 = vmatmul.mubr.f32.gmra.mrb[0].mxu0 %v18
  %v984 = vpop.f32.mrb[0].mxu0
  %v985 = vadd.f32 %v559, %v984
  %v986 = vpop.f32.mrb[0].mxu0
  %v987 = vadd.f32 %v563, %v986
  %988 = vmatprep.mubr.f32.mxu0 %v23
  %989 = vmatmul.mubr.f32.gmra.mrb[0].mxu0 %v22
  %v990 = vpop.f32.mrb[0].mxu0
  %v991 = vadd.f32 %v559, %v990
  %v992 = vpop.f32.mrb[0].mxu0
  %v993 = vadd.f32 %v563, %v992
  %994 = vdwg.mxu0
  %995 = vmatprep.subr.mxu0 %v287
  %996 = vmatpush1.msra.mxu0 %v286
  %997 = vmatprep.subr.mxu0 %v295
  %998 = vmatpush1.msra.mxu0 %v294
  %999 = vmatprep.subr.mxu0 %v303
  %1000 = vmatpush1.msra.mxu0 %v302
  %1001 = vmatprep.subr.mxu0 %v311
  %1002 = vmatpush1.msra.mxu0 %v310
  %1003 = vmatprep.subr.mxu0 %v319
  %1004 = vmatpush1.msra.mxu0 %v318
  %1005 = vmatprep.subr.mxu0 %v327
  %1006 = vmatpush1.msra.mxu0 %v326
  %1007 = vmatprep.subr.mxu0 %v335
  %1008 = vmatpush1.msra.mxu0 %v334
  %1009 = vmatprep.subr.mxu0 %v343
  %1010 = vmatpush1.msra.mxu0 %v342
  %1011 = vmatprep.subr.mxu0 %v351
  %1012 = vmatpush1.msra.mxu0 %v350
  %1013 = vmatprep.subr.mxu0 %v359
  %1014 = vmatpush1.msra.mxu0 %v358
  %1015 = vmatprep.subr.mxu0 %v367
  %1016 = vmatpush1.msra.mxu0 %v366
  %1017 = vmatprep.subr.mxu0 %v375
  %1018 = vmatpush1.msra.mxu0 %v374
  %1019 = vmatprep.subr.mxu0 %v383
  %1020 = vmatpush1.msra.mxu0 %v382
  %1021 = vmatprep.subr.mxu0 %v391
  %1022 = vmatpush1.msra.mxu0 %v390
  %1023 = vmatprep.subr.mxu0 %v399
  %1024 = vmatpush1.msra.mxu0 %v398
  %1025 = vmatprep.subr.mxu0 %v407
  %1026 = vmatpush1.msra.mxu0 %v406
  %1027 = vmatprep.subr.mxu0 %v415
  %1028 = vmatpush1.msra.mxu0 %v414
  %1029 = vmatprep.subr.mxu0 %v423
  %1030 = vmatpush1.msra.mxu0 %v422
  %1031 = vmatprep.subr.mxu0 %v431
  %1032 = vmatpush1.msra.mxu0 %v430
  %1033 = vmatprep.subr.mxu0 %v439
  %1034 = vmatpush1.msra.mxu0 %v438
  %1035 = vmatprep.subr.mxu0 %v447
  %1036 = vmatpush1.msra.mxu0 %v446
  %1037 = vmatprep.subr.mxu0 %v455
  %1038 = vmatpush1.msra.mxu0 %v454
  %1039 = vmatprep.subr.mxu0 %v463
  %1040 = vmatpush1.msra.mxu0 %v462
  %1041 = vmatprep.subr.mxu0 %v471
  %1042 = vmatpush1.msra.mxu0 %v470
  %1043 = vmatprep.subr.mxu0 %v479
  %1044 = vmatpush1.msra.mxu0 %v478
  %1045 = vmatprep.subr.mxu0 %v487
  %1046 = vmatpush1.msra.mxu0 %v486
  %1047 = vmatprep.subr.mxu0 %v495
  %1048 = vmatpush1.msra.mxu0 %v494
  %1049 = vmatprep.subr.mxu0 %v503
  %1050 = vmatpush1.msra.mxu0 %v502
  %1051 = vmatprep.subr.mxu0 %v511
  %1052 = vmatpush1.msra.mxu0 %v510
  %1053 = vmatprep.subr.mxu0 %v519
  %1054 = vmatpush1.msra.mxu0 %v518
  %1055 = vmatprep.subr.mxu0 %v527
  %1056 = vmatpush1.msra.mxu0 %v526
  %1057 = vmatprep.subr.mxu0 %v535
  %1058 = vmatpush1.msra.mxu0 %v534
  %1059 = vmatprep.mubr.f32.mxu0 %v17
  %1060 = vmatmul.mubr.f32.gmra.mrb[0].mxu0 %v16
  %v1061 = vpop.f32.mrb[0].mxu0
  %v1062 = vadd.f32 %v979, %v1061
  %v1063 = vpop.f32.mrb[0].mxu0
  %v1064 = vadd.f32 %v981, %v1063
  %1065 = vmatprep.mubr.f32.mxu0 %v21
  %1066 = vmatmul.mubr.f32.gmra.mrb[0].mxu0 %v20
  %v1067 = vpop.f32.mrb[0].mxu0
  %v1068 = vadd.f32 %v985, %v1067
  %v1069 = vpop.f32.mrb[0].mxu0
  %v1070 = vadd.f32 %v987, %v1069
  %1071 = vmatprep.mubr.f32.mxu0 %v25
  %1072 = vmatmul.mubr.f32.gmra.mrb[0].mxu0 %v24
  %v1073 = vpop.f32.mrb[0].mxu0
  %v1074 = vadd.f32 %v991, %v1073
  %v1075 = vpop.f32.mrb[0].mxu0
  %v1076 = vadd.f32 %v993, %v1075
  %1077 = vdwg.mxu0
  %1078 = vmatprep.subr.mxu0 %v33
  %1079 = vmatpush1.msra.mxu0 %v32
  %1080 = vmatprep.subr.mxu0 %v41
  %1081 = vmatpush1.msra.mxu0 %v40
  %1082 = vmatprep.subr.mxu0 %v49
  %1083 = vmatpush1.msra.mxu0 %v48
  %1084 = vmatprep.subr.mxu0 %v57
  %1085 = vmatpush1.msra.mxu0 %v56
  %1086 = vmatprep.subr.mxu0 %v65
  %1087 = vmatpush1.msra.mxu0 %v64
  %1088 = vmatprep.subr.mxu0 %v73
  %1089 = vmatpush1.msra.mxu0 %v72
  %1090 = vmatprep.subr.mxu0 %v81
  %1091 = vmatpush1.msra.mxu0 %v80
  %1092 = vmatprep.subr.mxu0 %v89
  %1093 = vmatpush1.msra.mxu0 %v88
  %1094 = vmatprep.subr.mxu0 %v97
  %1095 = vmatpush1.msra.mxu0 %v96
  %1096 = vmatprep.subr.mxu0 %v105
  %1097 = vmatpush1.msra.mxu0 %v104
  %1098 = vmatprep.subr.mxu0 %v113
  %1099 = vmatpush1.msra.mxu0 %v112
  %1100 = vmatprep.subr.mxu0 %v121
  %1101 = vmatpush1.msra.mxu0 %v120
  %1102 = vmatprep.subr.mxu0 %v129
  %1103 = vmatpush1.msra.mxu0 %v128
  %1104 = vmatprep.subr.mxu0 %v137
  %1105 = vmatpush1.msra.mxu0 %v136
  %1106 = vmatprep.subr.mxu0 %v145
  %1107 = vmatpush1.msra.mxu0 %v144
  %1108 = vmatprep.subr.mxu0 %v153
  %1109 = vmatpush1.msra.mxu0 %v152
  %1110 = vmatprep.subr.mxu0 %v161
  %1111 = vmatpush1.msra.mxu0 %v160
  %1112 = vmatprep.subr.mxu0 %v169
  %1113 = vmatpush1.msra.mxu0 %v168
  %1114 = vmatprep.subr.mxu0 %v177
  %1115 = vmatpush1.msra.mxu0 %v176
  %1116 = vmatprep.subr.mxu0 %v185
  %1117 = vmatpush1.msra.mxu0 %v184
  %1118 = vmatprep.subr.mxu0 %v193
  %1119 = vmatpush1.msra.mxu0 %v192
  %1120 = vmatprep.subr.mxu0 %v201
  %1121 = vmatpush1.msra.mxu0 %v200
  %1122 = vmatprep.subr.mxu0 %v209
  %1123 = vmatpush1.msra.mxu0 %v208
  %1124 = vmatprep.subr.mxu0 %v217
  %1125 = vmatpush1.msra.mxu0 %v216
  %1126 = vmatprep.subr.mxu0 %v225
  %1127 = vmatpush1.msra.mxu0 %v224
  %1128 = vmatprep.subr.mxu0 %v233
  %1129 = vmatpush1.msra.mxu0 %v232
  %1130 = vmatprep.subr.mxu0 %v241
  %1131 = vmatpush1.msra.mxu0 %v240
  %1132 = vmatprep.subr.mxu0 %v249
  %1133 = vmatpush1.msra.mxu0 %v248
  %1134 = vmatprep.subr.mxu0 %v257
  %1135 = vmatpush1.msra.mxu0 %v256
  %1136 = vmatprep.subr.mxu0 %v265
  %1137 = vmatpush1.msra.mxu0 %v264
  %1138 = vmatprep.subr.mxu0 %v273
  %1139 = vmatpush1.msra.mxu0 %v272
  %1140 = vmatprep.subr.mxu0 %v281
  %1141 = vmatpush1.msra.mxu0 %v280
  %1142 = vmatprep.mubr.f32.mxu0 %v15
  %1143 = vmatmul.mubr.f32.gmra.mrb[0].mxu0 %v14
  %v1144 = vpop.f32.mrb[0].mxu0
  %v1145 = vadd.f32 %v567, %v1144
  %v1146 = vpop.f32.mrb[0].mxu0
  %v1147 = vadd.f32 %v571, %v1146
  %1148 = vmatprep.mubr.f32.mxu0 %v19
  %1149 = vmatmul.mubr.f32.gmra.mrb[0].mxu0 %v18
  %v1150 = vpop.f32.mrb[0].mxu0
  %v1151 = vadd.f32 %v567, %v1150
  %v1152 = vpop.f32.mrb[0].mxu0
  %v1153 = vadd.f32 %v571, %v1152
  %1154 = vmatprep.mubr.f32.mxu0 %v23
  %1155 = vmatmul.mubr.f32.gmra.mrb[0].mxu0 %v22
  %v1156 = vpop.f32.mrb[0].mxu0
  %v1157 = vadd.f32 %v567, %v1156
  %v1158 = vpop.f32.mrb[0].mxu0
  %v1159 = vadd.f32 %v571, %v1158
  %1160 = vdwg.mxu0
  %1161 = vmatprep.subr.mxu0 %v289
  %1162 = vmatpush1.msra.mxu0 %v288
  %1163 = vmatprep.subr.mxu0 %v297
  %1164 = vmatpush1.msra.mxu0 %v296
  %1165 = vmatprep.subr.mxu0 %v305
  %1166 = vmatpush1.msra.mxu0 %v304
  %1167 = vmatprep.subr.mxu0 %v313
  %1168 = vmatpush1.msra.mxu0 %v312
  %1169 = vmatprep.subr.mxu0 %v321
  %1170 = vmatpush1.msra.mxu0 %v320
  %1171 = vmatprep.subr.mxu0 %v329
  %1172 = vmatpush1.msra.mxu0 %v328
  %1173 = vmatprep.subr.mxu0 %v337
  %1174 = vmatpush1.msra.mxu0 %v336
  %1175 = vmatprep.subr.mxu0 %v345
  %1176 = vmatpush1.msra.mxu0 %v344
  %1177 = vmatprep.subr.mxu0 %v353
  %1178 = vmatpush1.msra.mxu0 %v352
  %1179 = vmatprep.subr.mxu0 %v361
  %1180 = vmatpush1.msra.mxu0 %v360
  %1181 = vmatprep.subr.mxu0 %v369
  %1182 = vmatpush1.msra.mxu0 %v368
  %1183 = vmatprep.subr.mxu0 %v377
  %1184 = vmatpush1.msra.mxu0 %v376
  %1185 = vmatprep.subr.mxu0 %v385
  %1186 = vmatpush1.msra.mxu0 %v384
  %1187 = vmatprep.subr.mxu0 %v393
  %1188 = vmatpush1.msra.mxu0 %v392
  %1189 = vmatprep.subr.mxu0 %v401
  %1190 = vmatpush1.msra.mxu0 %v400
  %1191 = vmatprep.subr.mxu0 %v409
  %1192 = vmatpush1.msra.mxu0 %v408
  %1193 = vmatprep.subr.mxu0 %v417
  %1194 = vmatpush1.msra.mxu0 %v416
  %1195 = vmatprep.subr.mxu0 %v425
  %1196 = vmatpush1.msra.mxu0 %v424
  %1197 = vmatprep.subr.mxu0 %v433
  %1198 = vmatpush1.msra.mxu0 %v432
  %1199 = vmatprep.subr.mxu0 %v441
  %1200 = vmatpush1.msra.mxu0 %v440
  %1201 = vmatprep.subr.mxu0 %v449
  %1202 = vmatpush1.msra.mxu0 %v448
  %1203 = vmatprep.subr.mxu0 %v457
  %1204 = vmatpush1.msra.mxu0 %v456
  %1205 = vmatprep.subr.mxu0 %v465
  %1206 = vmatpush1.msra.mxu0 %v464
  %1207 = vmatprep.subr.mxu0 %v473
  %1208 = vmatpush1.msra.mxu0 %v472
  %1209 = vmatprep.subr.mxu0 %v481
  %1210 = vmatpush1.msra.mxu0 %v480
  %1211 = vmatprep.subr.mxu0 %v489
  %1212 = vmatpush1.msra.mxu0 %v488
  %1213 = vmatprep.subr.mxu0 %v497
  %1214 = vmatpush1.msra.mxu0 %v496
  %1215 = vmatprep.subr.mxu0 %v505
  %1216 = vmatpush1.msra.mxu0 %v504
  %1217 = vmatprep.subr.mxu0 %v513
  %1218 = vmatpush1.msra.mxu0 %v512
  %1219 = vmatprep.subr.mxu0 %v521
  %1220 = vmatpush1.msra.mxu0 %v520
  %1221 = vmatprep.subr.mxu0 %v529
  %1222 = vmatpush1.msra.mxu0 %v528
  %1223 = vmatprep.subr.mxu0 %v537
  %1224 = vmatpush1.msra.mxu0 %v536
  %1225 = vmatprep.mubr.f32.mxu0 %v17
  %1226 = vmatmul.mubr.f32.gmra.mrb[0].mxu0 %v16
  %v1227 = vpop.f32.mrb[0].mxu0
  %v1228 = vadd.f32 %v1145, %v1227
  %v1229 = vpop.f32.mrb[0].mxu0
  %v1230 = vadd.f32 %v1147, %v1229
  %1231 = vmatprep.mubr.f32.mxu0 %v21
  %1232 = vmatmul.mubr.f32.gmra.mrb[0].mxu0 %v20
  %v1233 = vpop.f32.mrb[0].mxu0
  %v1234 = vadd.f32 %v1151, %v1233
  %v1235 = vpop.f32.mrb[0].mxu0
  %v1236 = vadd.f32 %v1153, %v1235
  %1237 = vmatprep.mubr.f32.mxu0 %v25
  %1238 = vmatmul.mubr.f32.gmra.mrb[0].mxu0 %v24
  %v1239 = vpop.f32.mrb[0].mxu0
  %v1240 = vadd.f32 %v1157, %v1239
  %v1241 = vpop.f32.mrb[0].mxu0
  %v1242 = vadd.f32 %v1159, %v1241
  %1243 = vdwg.mxu0
  %v1244 = vmax.f32 %v730, 0.0
  %v1245 = vmax.f32 %v732, 0.0
  %v1246 = vmax.f32 %v896, 0.0
  %v1247 = vmax.f32 %v898, 0.0
  %v1248 = vmax.f32 %v1062, 0.0
  %v1249 = vmax.f32 %v1064, 0.0
  %v1250 = vmax.f32 %v1228, 0.0
  %v1251 = vmax.f32 %v1230, 0.0
  %v1252 = vmax.f32 %v736, 0.0
  %v1253 = vmax.f32 %v738, 0.0
  %v1254 = vmax.f32 %v902, 0.0
  %v1255 = vmax.f32 %v904, 0.0
  %v1256 = vmax.f32 %v1068, 0.0
  %v1257 = vmax.f32 %v1070, 0.0
  %v1258 = vmax.f32 %v1234, 0.0
  %v1259 = vmax.f32 %v1236, 0.0
  %v1260 = vmax.f32 %v742, 0.0
  %v1261 = vmax.f32 %v744, 0.0
  %v1262 = vmax.f32 %v908, 0.0
  %v1263 = vmax.f32 %v910, 0.0
  %v1264 = vmax.f32 %v1074, 0.0
  %v1265 = vmax.f32 %v1076, 0.0
  %v1266 = vmax.f32 %v1240, 0.0
  %v1267 = vmax.f32 %v1242, 0.0
  %1268 = vst [vmem:[%s3] sm:$0xff] %v1244
  %1269 = vst [vmem:[%s3 + $0x8] sm:$0xff] %v1245
  %1270 = vst [vmem:[%s3 + $0x10] sm:$0xff] %v1246
  %1271 = vst [vmem:[%s3 + $0x18] sm:$0xff] %v1247
  %1272 = vst [vmem:[%s3 + $0x20] sm:$0xff] %v1248
  %1273 = vst [vmem:[%s3 + $0x28] sm:$0xff] %v1249
  %1274 = vst [vmem:[%s3 + $0x30] sm:$0xff] %v1250
  %vm1275 = vcmask 850944
  %1276 = vst.msk [vmem:[%s3 + $0x38] sm:$0xff] %vm1275, %v1251
  %1277 = vst [vmem:[%s3 + $0x40] sm:$0xff] %v1252
  %1278 = vst [vmem:[%s3 + $0x48] sm:$0xff] %v1253
  %1279 = vst [vmem:[%s3 + $0x50] sm:$0xff] %v1254
  %1280 = vst [vmem:[%s3 + $0x58] sm:$0xff] %v1255
  %1281 = vst [vmem:[%s3 + $0x60] sm:$0xff] %v1256
  %1282 = vst [vmem:[%s3 + $0x68] sm:$0xff] %v1257
  %1283 = vst [vmem:[%s3 + $0x70] sm:$0xff] %v1258
  %1284 = vst.msk [vmem:[%s3 + $0x78] sm:$0xff] %vm1275, %v1259
  %1285 = vst [vmem:[%s3 + $0x80] sm:$0x3] %v1260
  %1286 = vst [vmem:[%s3 + $0x88] sm:$0x3] %v1261
  %1287 = vst [vmem:[%s3 + $0x90] sm:$0x3] %v1262
  %1288 = vst [vmem:[%s3 + $0x98] sm:$0x3] %v1263
  %1289 = vst [vmem:[%s3 + $0xa0] sm:$0x3] %v1264
  %1290 = vst [vmem:[%s3 + $0xa8] sm:$0x3] %v1265
  %1291 = vst [vmem:[%s3 + $0xb0] sm:$0x3] %v1266
  %vm1292 = vcmask 844800
  %1293 = vst.msk [vmem:[%s3 + $0xb8] sm:$0x3] %vm1292, %v1267
  // Predicated region
  $region14: #{squeezenet2d_forward.52} parent=0 // pred_check
    _
  $region15: #{squeezenet2d_forward.52} parent=0 // pred_check_branch
    %1295 = sbr.rel (0) target = $region17
  $region16: #{squeezenet2d_forward.52} parent=0 // pred_region
    _
  $region17: #{squeezenet2d_forward.52} parent=0 // pred_fallthru
    _
  // Predicated region
  $region18: #{squeezenet2d_forward.52} parent=0 // pred_check
    _
  $region19: #{squeezenet2d_forward.52} parent=0 // pred_check_branch
    %1297 = sbr.rel (0) target = $region21
  $region20: #{squeezenet2d_forward.52} parent=0 // pred_region
    _
  $region21: #{squeezenet2d_forward.52} parent=0 // pred_fallthru
    _

// kernel: squeezenet2d_forward.53
$region0: #{squeezenet2d_forward.53}
  #allocation0 [shape = 'u32[]', space=smem, size = 0x4, offset = 0x4, fixed_abs, tag = 'smem constant byte address 0x4 - core index']
  #allocation1 [shape = 'u32[144,128]{1,0:T(1,128)}', space=vmem, size = 0x12000, scoped, tag = 'internal scratch']
  #allocation2 [shape = 'f32[1,1]{1,0:T(1,128)S(1)}', space=vmem, size = 0x200, scoped, tag = 'scoped memory for squeezenet2d_forward.53']
  %s0 = inlined_call_operand.vmem [shape: f32[2,1000], index: 0, kind: input, shape index: {}]
  %s1 = inlined_call_operand.vmem [shape: f32[1000,1], index: 1, kind: input, shape index: {}]
  %s2 = inlined_call_operand.<no memory space> [shape: f32[1,1], index: 2, kind: input, shape index: {}]
  %s3 = inlined_call_operand.vmem [shape: f32[2,1], index: 3, kind: output, shape index: {}]
  %s4 = sld [smem:[#allocation0]]
  $region22: #{squeezenet2d_forward.53} parent=0
    _
  %s6 = ssub.s32 1, %s4
  %s7 = scalar_select 0, %s6, %s4
  %v8 = vstv %s2
  %9 = vst [vmem:[#allocation2] sm:$0x1] %v8
  // Predicated region
  $region2: #{squeezenet2d_forward.53} parent=0 // pred_check
    _
  $region3: #{squeezenet2d_forward.53} parent=0 // pred_check_branch
    %11 = sbr.rel (0) target = $region5
  $region4: #{squeezenet2d_forward.53} parent=0 // pred_region
    _
  $region5: #{squeezenet2d_forward.53} parent=0 // pred_fallthru
    _
  // Predicated region
  $region6: #{squeezenet2d_forward.53} parent=0 // pred_check
    _
  $region7: #{squeezenet2d_forward.53} parent=0 // pred_check_branch
    %13 = sbr.rel (0) target = $region9
  $region8: #{squeezenet2d_forward.53} parent=0 // pred_region
    _
  $region9: #{squeezenet2d_forward.53} parent=0 // pred_fallthru
    _
  // Predicated region
  $region10: #{squeezenet2d_forward.53} parent=0 // pred_check
    _
  $region11: #{squeezenet2d_forward.53} parent=0 // pred_check_branch
    %15 = sbr.rel (0) target = $region13
  $region12: #{squeezenet2d_forward.53} parent=0 // pred_region
    _
  $region13: #{squeezenet2d_forward.53} parent=0 // pred_fallthru
    _
  %v16 = vld [vmem:[%s0] sm:$0xff]
  %v17 = vld [vmem:[%s0 + $0x8] sm:$0xff]
  %v18 = vmax.f32 %v16, 0.0
  %v19 = vmax.f32 %v17, 0.0
  %v20 = vld [vmem:[%s1] sm:$0xff]
  %v21 = vld [vmem:[%s1 + $0x8] sm:$0xff]
  %v22 = vld [vmem:[%s1 + $0x10] sm:$0xff]
  %v23 = vld [vmem:[%s1 + $0x18] sm:$0xff]
  %v24 = vld [vmem:[%s1 + $0x20] sm:$0xff]
  %v25 = vld [vmem:[%s1 + $0x28] sm:$0xff]
  %v26 = vld [vmem:[%s1 + $0x30] sm:$0xff]
  %v27 = vld [vmem:[%s1 + $0x38] sm:$0xff]
  %v28 = vld [vmem:[%s1 + $0x40] sm:$0xff]
  %v29 = vld [vmem:[%s1 + $0x48] sm:$0xff]
  %v30 = vld [vmem:[%s1 + $0x50] sm:$0xff]
  %v31 = vld [vmem:[%s1 + $0x58] sm:$0xff]
  %v32 = vld [vmem:[%s1 + $0x60] sm:$0xff]
  %v33 = vld [vmem:[%s1 + $0x68] sm:$0xff]
  %v34 = vld [vmem:[%s1 + $0x70] sm:$0xff]
  %v35 = vld [vmem:[%s1 + $0x78] sm:$0xff]
  %v36 = vld [vmem:[%s1 + $0x80] sm:$0xff]
  %v37 = vld [vmem:[%s1 + $0x88] sm:$0xff]
  %v38 = vld [vmem:[%s1 + $0x90] sm:$0xff]
  %v39 = vld [vmem:[%s1 + $0x98] sm:$0xff]
  %v40 = vld [vmem:[%s1 + $0xa0] sm:$0xff]
  %v41 = vld [vmem:[%s1 + $0xa8] sm:$0xff]
  %v42 = vld [vmem:[%s1 + $0xb0] sm:$0xff]
  %v43 = vld [vmem:[%s1 + $0xb8] sm:$0xff]
  %v44 = vld [vmem:[%s1 + $0xc0] sm:$0xff]
  %v45 = vld [vmem:[%s1 + $0xc8] sm:$0xff]
  %v46 = vld [vmem:[%s1 + $0xd0] sm:$0xff]
  %v47 = vld [vmem:[%s1 + $0xd8] sm:$0xff]
  %v48 = vld [vmem:[%s1 + $0xe0] sm:$0xff]
  %v49 = vld [vmem:[%s1 + $0xe8] sm:$0xff]
  %v50 = vld [vmem:[%s1 + $0xf0] sm:$0xff]
  %v51 = vld [vmem:[%s1 + $0xf8] sm:$0xff]
  %v52 = vld [vmem:[%s1 + $0x100] sm:$0xff]
  %v53 = vld [vmem:[%s1 + $0x108] sm:$0xff]
  %v54 = vld [vmem:[%s1 + $0x110] sm:$0xff]
  %v55 = vld [vmem:[%s1 + $0x118] sm:$0xff]
  %v56 = vld [vmem:[%s1 + $0x120] sm:$0xff]
  %v57 = vld [vmem:[%s1 + $0x128] sm:$0xff]
  %v58 = vld [vmem:[%s1 + $0x130] sm:$0xff]
  %v59 = vld [vmem:[%s1 + $0x138] sm:$0xff]
  %v60 = vld [vmem:[%s1 + $0x140] sm:$0xff]
  %v61 = vld [vmem:[%s1 + $0x148] sm:$0xff]
  %v62 = vld [vmem:[%s1 + $0x150] sm:$0xff]
  %v63 = vld [vmem:[%s1 + $0x158] sm:$0xff]
  %v64 = vld [vmem:[%s1 + $0x160] sm:$0xff]
  %v65 = vld [vmem:[%s1 + $0x168] sm:$0xff]
  %v66 = vld [vmem:[%s1 + $0x170] sm:$0xff]
  %v67 = vld [vmem:[%s1 + $0x178] sm:$0xff]
  %v68 = vld [vmem:[%s1 + $0x180] sm:$0xff]
  %v69 = vld [vmem:[%s1 + $0x188] sm:$0xff]
  %v70 = vld [vmem:[%s1 + $0x190] sm:$0xff]
  %v71 = vld [vmem:[%s1 + $0x198] sm:$0xff]
  %v72 = vld [vmem:[%s1 + $0x1a0] sm:$0xff]
  %v73 = vld [vmem:[%s1 + $0x1a8] sm:$0xff]
  %v74 = vld [vmem:[%s1 + $0x1b0] sm:$0xff]
  %v75 = vld [vmem:[%s1 + $0x1b8] sm:$0xff]
  %v76 = vld [vmem:[%s1 + $0x1c0] sm:$0xff]
  %v77 = vld [vmem:[%s1 + $0x1c8] sm:$0xff]
  %v78 = vld [vmem:[%s1 + $0x1d0] sm:$0xff]
  %v79 = vld [vmem:[%s1 + $0x1d8] sm:$0xff]
  %v80 = vld [vmem:[%s1 + $0x1e0] sm:$0xff]
  %v81 = vld [vmem:[%s1 + $0x1e8] sm:$0xff]
  %v82 = vld [vmem:[%s1 + $0x1f0] sm:$0xff]
  %v83 = vld [vmem:[%s1 + $0x1f8] sm:$0xff]
  %v84 = vld [vmem:[%s1 + $0x200] sm:$0xff]
  %v85 = vld [vmem:[%s1 + $0x208] sm:$0xff]
  %v86 = vld [vmem:[%s1 + $0x210] sm:$0xff]
  %v87 = vld [vmem:[%s1 + $0x218] sm:$0xff]
  %v88 = vld [vmem:[%s1 + $0x220] sm:$0xff]
  %v89 = vld [vmem:[%s1 + $0x228] sm:$0xff]
  %v90 = vld [vmem:[%s1 + $0x230] sm:$0xff]
  %v91 = vld [vmem:[%s1 + $0x238] sm:$0xff]
  %v92 = vld [vmem:[%s1 + $0x240] sm:$0xff]
  %v93 = vld [vmem:[%s1 + $0x248] sm:$0xff]
  %v94 = vld [vmem:[%s1 + $0x250] sm:$0xff]
  %v95 = vld [vmem:[%s1 + $0x258] sm:$0xff]
  %v96 = vld [vmem:[%s1 + $0x260] sm:$0xff]
  %v97 = vld [vmem:[%s1 + $0x268] sm:$0xff]
  %v98 = vld [vmem:[%s1 + $0x270] sm:$0xff]
  %v99 = vld [vmem:[%s1 + $0x278] sm:$0xff]
  %v100 = vld [vmem:[%s1 + $0x280] sm:$0xff]
  %v101 = vld [vmem:[%s1 + $0x288] sm:$0xff]
  %v102 = vld [vmem:[%s1 + $0x290] sm:$0xff]
  %v103 = vld [vmem:[%s1 + $0x298] sm:$0xff]
  %v104 = vld [vmem:[%s1 + $0x2a0] sm:$0xff]
  %v105 = vld [vmem:[%s1 + $0x2a8] sm:$0xff]
  %v106 = vld [vmem:[%s1 + $0x2b0] sm:$0xff]
  %v107 = vld [vmem:[%s1 + $0x2b8] sm:$0xff]
  %v108 = vld [vmem:[%s1 + $0x2c0] sm:$0xff]
  %v109 = vld [vmem:[%s1 + $0x2c8] sm:$0xff]
  %v110 = vld [vmem:[%s1 + $0x2d0] sm:$0xff]
  %v111 = vld [vmem:[%s1 + $0x2d8] sm:$0xff]
  %v112 = vld [vmem:[%s1 + $0x2e0] sm:$0xff]
  %v113 = vld [vmem:[%s1 + $0x2e8] sm:$0xff]
  %v114 = vld [vmem:[%s1 + $0x2f0] sm:$0xff]
  %v115 = vld [vmem:[%s1 + $0x2f8] sm:$0xff]
  %v116 = vld [vmem:[%s1 + $0x300] sm:$0xff]
  %v117 = vld [vmem:[%s1 + $0x308] sm:$0xff]
  %v118 = vld [vmem:[%s1 + $0x310] sm:$0xff]
  %v119 = vld [vmem:[%s1 + $0x318] sm:$0xff]
  %v120 = vld [vmem:[%s1 + $0x320] sm:$0xff]
  %v121 = vld [vmem:[%s1 + $0x328] sm:$0xff]
  %v122 = vld [vmem:[%s1 + $0x330] sm:$0xff]
  %v123 = vld [vmem:[%s1 + $0x338] sm:$0xff]
  %v124 = vld [vmem:[%s1 + $0x340] sm:$0xff]
  %v125 = vld [vmem:[%s1 + $0x348] sm:$0xff]
  %v126 = vld [vmem:[%s1 + $0x350] sm:$0xff]
  %v127 = vld [vmem:[%s1 + $0x358] sm:$0xff]
  %v128 = vld [vmem:[%s1 + $0x360] sm:$0xff]
  %v129 = vld [vmem:[%s1 + $0x368] sm:$0xff]
  %v130 = vld [vmem:[%s1 + $0x370] sm:$0xff]
  %v131 = vld [vmem:[%s1 + $0x378] sm:$0xff]
  %v132 = vld [vmem:[%s1 + $0x380] sm:$0xff]
  %v133 = vld [vmem:[%s1 + $0x388] sm:$0xff]
  %v134 = vld [vmem:[%s1 + $0x390] sm:$0xff]
  %v135 = vld [vmem:[%s1 + $0x398] sm:$0xff]
  %v136 = vld [vmem:[%s1 + $0x3a0] sm:$0xff]
  %v137 = vld [vmem:[%s1 + $0x3a8] sm:$0xff]
  %v138 = vld [vmem:[%s1 + $0x3b0] sm:$0xff]
  %v139 = vld [vmem:[%s1 + $0x3b8] sm:$0xff]
  %v140 = vld [vmem:[%s1 + $0x3c0] sm:$0xff]
  %v141 = vld [vmem:[%s1 + $0x3c8] sm:$0xff]
  %v142 = vld [vmem:[%s1 + $0x3d0] sm:$0xff]
  %v143 = vld [vmem:[%s1 + $0x3d8] sm:$0xff]
  %v144 = vld [vmem:[%s1 + $0x3e0] sm:$0xff]
  %v145 = vld [vmem:[#allocation2] sm:$0x1]
  %v147 = vlaneseq
  %v148 = vshrl.u32 %v147, 7
  %v149 = vsub.s32 0, %v148
  %v150 = vrot.slane %v145, %v149
  %v154 = vcombine.high %v18, %v18
  %v156 = vunpack.c.l.s4 1983009808
  %v157 = vunpack.c.0.s8 %v156
  %v158 = vlaneseq
  %v159 = vshrl.u32 %v158, 7
  %v160 = vsub.s32 %v157, %v159
  %v161 = vrot.slane %v18, %v160
  %v163 = vunpack.c.l.s4 1983009808
  %v164 = vunpack.c.0.s8 %v163
  %v165 = vlaneseq
  %v166 = vshrl.u32 %v165, 7
  %v167 = vsub.s32 %v164, %v166
  %v168 = vrot.slane %v154, %v167
  %v169 = vcombine.high %v161, %v161
  %v170 = vcombine.high %v168, %v168
  %v171 = vcombine.high %v19, %v19
  %v173 = vunpack.c.l.s4 1983009808
  %v174 = vunpack.c.0.s8 %v173
  %v175 = vlaneseq
  %v176 = vshrl.u32 %v175, 7
  %v177 = vsub.s32 %v174, %v176
  %v178 = vrot.slane %v19, %v177
  %v180 = vunpack.c.l.s4 1983009808
  %v181 = vunpack.c.0.s8 %v180
  %v182 = vlaneseq
  %v183 = vshrl.u32 %v182, 7
  %v184 = vsub.s32 %v181, %v183
  %v185 = vrot.slane %v171, %v184
  %v186 = vcombine.high %v178, %v178
  %v187 = vcombine.high %v185, %v185
  %vm195 = vcmask 850944
  %v196 = vsel %vm195, %v187, 0
  %198 = vmatprep.subr.mxu0 0.0
  %199 = vmatpush1.msra.mxu0 %v20
  %200 = vmatprep.subr.mxu0 0.0
  %201 = vmatpush1.msra.mxu0 %v21
  %202 = vmatprep.subr.mxu0 0.0
  %203 = vmatpush1.msra.mxu0 %v22
  %204 = vmatprep.subr.mxu0 0.0
  %205 = vmatpush1.msra.mxu0 %v23
  %206 = vmatprep.subr.mxu0 0.0
  %207 = vmatpush1.msra.mxu0 %v24
  %208 = vmatprep.subr.mxu0 0.0
  %209 = vmatpush1.msra.mxu0 %v25
  %210 = vmatprep.subr.mxu0 0.0
  %211 = vmatpush1.msra.mxu0 %v26
  %212 = vmatprep.subr.mxu0 0.0
  %213 = vmatpush1.msra.mxu0 %v27
  %214 = vmatprep.subr.mxu0 0.0
  %215 = vmatpush1.msra.mxu0 %v28
  %216 = vmatprep.subr.mxu0 0.0
  %217 = vmatpush1.msra.mxu0 %v29
  %218 = vmatprep.subr.mxu0 0.0
  %219 = vmatpush1.msra.mxu0 %v30
  %220 = vmatprep.subr.mxu0 0.0
  %221 = vmatpush1.msra.mxu0 %v31
  %222 = vmatprep.subr.mxu0 0.0
  %223 = vmatpush1.msra.mxu0 %v32
  %224 = vmatprep.subr.mxu0 0.0
  %225 = vmatpush1.msra.mxu0 %v33
  %226 = vmatprep.subr.mxu0 0.0
  %227 = vmatpush1.msra.mxu0 %v34
  %228 = vmatprep.subr.mxu0 0.0
  %229 = vmatpush1.msra.mxu0 %v35
  %230 = vmatprep.subr.mxu0 0.0
  %231 = vmatpush1.msra.mxu0 %v36
  %232 = vmatprep.subr.mxu0 0.0
  %233 = vmatpush1.msra.mxu0 %v37
  %234 = vmatprep.subr.mxu0 0.0
  %235 = vmatpush1.msra.mxu0 %v38
  %236 = vmatprep.subr.mxu0 0.0
  %237 = vmatpush1.msra.mxu0 %v39
  %238 = vmatprep.subr.mxu0 0.0
  %239 = vmatpush1.msra.mxu0 %v40
  %240 = vmatprep.subr.mxu0 0.0
  %241 = vmatpush1.msra.mxu0 %v41
  %242 = vmatprep.subr.mxu0 0.0
  %243 = vmatpush1.msra.mxu0 %v42
  %244 = vmatprep.subr.mxu0 0.0
  %245 = vmatpush1.msra.mxu0 %v43
  %246 = vmatprep.subr.mxu0 0.0
  %247 = vmatpush1.msra.mxu0 %v44
  %248 = vmatprep.subr.mxu0 0.0
  %249 = vmatpush1.msra.mxu0 %v45
  %250 = vmatprep.subr.mxu0 0.0
  %251 = vmatpush1.msra.mxu0 %v46
  %252 = vmatprep.subr.mxu0 0.0
  %253 = vmatpush1.msra.mxu0 %v47
  %254 = vmatprep.subr.mxu0 0.0
  %255 = vmatpush1.msra.mxu0 %v48
  %256 = vmatprep.subr.mxu0 0.0
  %257 = vmatpush1.msra.mxu0 %v49
  %258 = vmatprep.subr.mxu0 0.0
  %259 = vmatpush1.msra.mxu0 %v50
  %260 = vmatprep.subr.mxu0 0.0
  %261 = vmatpush1.msra.mxu0 %v51
  %262 = vmatprep.mubr.f32.mxu0 %v169
  %263 = vmatmul.mubr.f32.gmra.mrb[0].mxu0 %v161
  %v264 = vpop.f32.mrb[0].mxu0
  %v265 = vadd.f32 %v150, %v264
  %v266 = vpop.f32.mrb[0].mxu0
  %267 = vdwg.mxu0
  %268 = vmatprep.subr.mxu0 0.0
  %269 = vmatpush1.msra.mxu0 %v52
  %270 = vmatprep.subr.mxu0 0.0
  %271 = vmatpush1.msra.mxu0 %v53
  %272 = vmatprep.subr.mxu0 0.0
  %273 = vmatpush1.msra.mxu0 %v54
  %274 = vmatprep.subr.mxu0 0.0
  %275 = vmatpush1.msra.mxu0 %v55
  %276 = vmatprep.subr.mxu0 0.0
  %277 = vmatpush1.msra.mxu0 %v56
  %278 = vmatprep.subr.mxu0 0.0
  %279 = vmatpush1.msra.mxu0 %v57
  %280 = vmatprep.subr.mxu0 0.0
  %281 = vmatpush1.msra.mxu0 %v58
  %282 = vmatprep.subr.mxu0 0.0
  %283 = vmatpush1.msra.mxu0 %v59
  %284 = vmatprep.subr.mxu0 0.0
  %285 = vmatpush1.msra.mxu0 %v60
  %286 = vmatprep.subr.mxu0 0.0
  %287 = vmatpush1.msra.mxu0 %v61
  %288 = vmatprep.subr.mxu0 0.0
  %289 = vmatpush1.msra.mxu0 %v62
  %290 = vmatprep.subr.mxu0 0.0
  %291 = vmatpush1.msra.mxu0 %v63
  %292 = vmatprep.subr.mxu0 0.0
  %293 = vmatpush1.msra.mxu0 %v64
  %294 = vmatprep.subr.mxu0 0.0
  %295 = vmatpush1.msra.mxu0 %v65
  %296 = vmatprep.subr.mxu0 0.0
  %297 = vmatpush1.msra.mxu0 %v66
  %298 = vmatprep.subr.mxu0 0.0
  %299 = vmatpush1.msra.mxu0 %v67
  %300 = vmatprep.subr.mxu0 0.0
  %301 = vmatpush1.msra.mxu0 %v68
  %302 = vmatprep.subr.mxu0 0.0
  %303 = vmatpush1.msra.mxu0 %v69
  %304 = vmatprep.subr.mxu0 0.0
  %305 = vmatpush1.msra.mxu0 %v70
  %306 = vmatprep.subr.mxu0 0.0
  %307 = vmatpush1.msra.mxu0 %v71
  %308 = vmatprep.subr.mxu0 0.0
  %309 = vmatpush1.msra.mxu0 %v72
  %310 = vmatprep.subr.mxu0 0.0
  %311 = vmatpush1.msra.mxu0 %v73
  %312 = vmatprep.subr.mxu0 0.0
  %313 = vmatpush1.msra.mxu0 %v74
  %314 = vmatprep.subr.mxu0 0.0
  %315 = vmatpush1.msra.mxu0 %v75
  %316 = vmatprep.subr.mxu0 0.0
  %317 = vmatpush1.msra.mxu0 %v76
  %318 = vmatprep.subr.mxu0 0.0
  %319 = vmatpush1.msra.mxu0 %v77
  %320 = vmatprep.subr.mxu0 0.0
  %321 = vmatpush1.msra.mxu0 %v78
  %322 = vmatprep.subr.mxu0 0.0
  %323 = vmatpush1.msra.mxu0 %v79
  %324 = vmatprep.subr.mxu0 0.0
  %325 = vmatpush1.msra.mxu0 %v80
  %326 = vmatprep.subr.mxu0 0.0
  %327 = vmatpush1.msra.mxu0 %v81
  %328 = vmatprep.subr.mxu0 0.0
  %329 = vmatpush1.msra.mxu0 %v82
  %330 = vmatprep.subr.mxu0 0.0
  %331 = vmatpush1.msra.mxu0 %v83
  %332 = vmatprep.mubr.f32.mxu0 %v170
  %333 = vmatmul.mubr.f32.gmra.mrb[0].mxu0 %v168
  %v334 = vpop.f32.mrb[0].mxu0
  %v335 = vadd.f32 %v265, %v334
  %v336 = vpop.f32.mrb[0].mxu0
  %337 = vdwg.mxu0
  %338 = vmatprep.subr.mxu0 0.0
  %339 = vmatpush1.msra.mxu0 %v84
  %340 = vmatprep.subr.mxu0 0.0
  %341 = vmatpush1.msra.mxu0 %v85
  %342 = vmatprep.subr.mxu0 0.0
  %343 = vmatpush1.msra.mxu0 %v86
  %344 = vmatprep.subr.mxu0 0.0
  %345 = vmatpush1.msra.mxu0 %v87
  %346 = vmatprep.subr.mxu0 0.0
  %347 = vmatpush1.msra.mxu0 %v88
  %348 = vmatprep.subr.mxu0 0.0
  %349 = vmatpush1.msra.mxu0 %v89
  %350 = vmatprep.subr.mxu0 0.0
  %351 = vmatpush1.msra.mxu0 %v90
  %352 = vmatprep.subr.mxu0 0.0
  %353 = vmatpush1.msra.mxu0 %v91
  %354 = vmatprep.subr.mxu0 0.0
  %355 = vmatpush1.msra.mxu0 %v92
  %356 = vmatprep.subr.mxu0 0.0
  %357 = vmatpush1.msra.mxu0 %v93
  %358 = vmatprep.subr.mxu0 0.0
  %359 = vmatpush1.msra.mxu0 %v94
  %360 = vmatprep.subr.mxu0 0.0
  %361 = vmatpush1.msra.mxu0 %v95
  %362 = vmatprep.subr.mxu0 0.0
  %363 = vmatpush1.msra.mxu0 %v96
  %364 = vmatprep.subr.mxu0 0.0
  %365 = vmatpush1.msra.mxu0 %v97
  %366 = vmatprep.subr.mxu0 0.0
  %367 = vmatpush1.msra.mxu0 %v98
  %368 = vmatprep.subr.mxu0 0.0
  %369 = vmatpush1.msra.mxu0 %v99
  %370 = vmatprep.subr.mxu0 0.0
  %371 = vmatpush1.msra.mxu0 %v100
  %372 = vmatprep.subr.mxu0 0.0
  %373 = vmatpush1.msra.mxu0 %v101
  %374 = vmatprep.subr.mxu0 0.0
  %375 = vmatpush1.msra.mxu0 %v102
  %376 = vmatprep.subr.mxu0 0.0
  %377 = vmatpush1.msra.mxu0 %v103
  %378 = vmatprep.subr.mxu0 0.0
  %379 = vmatpush1.msra.mxu0 %v104
  %380 = vmatprep.subr.mxu0 0.0
  %381 = vmatpush1.msra.mxu0 %v105
  %382 = vmatprep.subr.mxu0 0.0
  %383 = vmatpush1.msra.mxu0 %v106
  %384 = vmatprep.subr.mxu0 0.0
  %385 = vmatpush1.msra.mxu0 %v107
  %386 = vmatprep.subr.mxu0 0.0
  %387 = vmatpush1.msra.mxu0 %v108
  %388 = vmatprep.subr.mxu0 0.0
  %389 = vmatpush1.msra.mxu0 %v109
  %390 = vmatprep.subr.mxu0 0.0
  %391 = vmatpush1.msra.mxu0 %v110
  %392 = vmatprep.subr.mxu0 0.0
  %393 = vmatpush1.msra.mxu0 %v111
  %394 = vmatprep.subr.mxu0 0.0
  %395 = vmatpush1.msra.mxu0 %v112
  %396 = vmatprep.subr.mxu0 0.0
  %397 = vmatpush1.msra.mxu0 %v113
  %398 = vmatprep.subr.mxu0 0.0
  %399 = vmatpush1.msra.mxu0 %v114
  %400 = vmatprep.subr.mxu0 0.0
  %401 = vmatpush1.msra.mxu0 %v115
  %402 = vmatprep.mubr.f32.mxu0 %v186
  %403 = vmatmul.mubr.f32.gmra.mrb[0].mxu0 %v178
  %v404 = vpop.f32.mrb[0].mxu0
  %v405 = vadd.f32 %v335, %v404
  %v406 = vpop.f32.mrb[0].mxu0
  %407 = vdwg.mxu0
  %408 = vmatprep.subr.mxu0 0.0
  %409 = vmatpush1.msra.mxu0 %v116
  %410 = vmatprep.subr.mxu0 0.0
  %411 = vmatpush1.msra.mxu0 %v117
  %412 = vmatprep.subr.mxu0 0.0
  %413 = vmatpush1.msra.mxu0 %v118
  %414 = vmatprep.subr.mxu0 0.0
  %415 = vmatpush1.msra.mxu0 %v119
  %416 = vmatprep.subr.mxu0 0.0
  %417 = vmatpush1.msra.mxu0 %v120
  %418 = vmatprep.subr.mxu0 0.0
  %419 = vmatpush1.msra.mxu0 %v121
  %420 = vmatprep.subr.mxu0 0.0
  %421 = vmatpush1.msra.mxu0 %v122
  %422 = vmatprep.subr.mxu0 0.0
  %423 = vmatpush1.msra.mxu0 %v123
  %424 = vmatprep.subr.mxu0 0.0
  %425 = vmatpush1.msra.mxu0 %v124
  %426 = vmatprep.subr.mxu0 0.0
  %427 = vmatpush1.msra.mxu0 %v125
  %428 = vmatprep.subr.mxu0 0.0
  %429 = vmatpush1.msra.mxu0 %v126
  %430 = vmatprep.subr.mxu0 0.0
  %431 = vmatpush1.msra.mxu0 %v127
  %432 = vmatprep.subr.mxu0 0.0
  %433 = vmatpush1.msra.mxu0 %v128
  %434 = vmatprep.subr.mxu0 0.0
  %435 = vmatpush1.msra.mxu0 %v129
  %436 = vmatprep.subr.mxu0 0.0
  %437 = vmatpush1.msra.mxu0 %v130
  %438 = vmatprep.subr.mxu0 0.0
  %439 = vmatpush1.msra.mxu0 %v131
  %440 = vmatprep.subr.mxu0 0.0
  %441 = vmatpush1.msra.mxu0 %v132
  %442 = vmatprep.subr.mxu0 0.0
  %443 = vmatpush1.msra.mxu0 %v133
  %444 = vmatprep.subr.mxu0 0.0
  %445 = vmatpush1.msra.mxu0 %v134
  %446 = vmatprep.subr.mxu0 0.0
  %447 = vmatpush1.msra.mxu0 %v135
  %448 = vmatprep.subr.mxu0 0.0
  %449 = vmatpush1.msra.mxu0 %v136
  %450 = vmatprep.subr.mxu0 0.0
  %451 = vmatpush1.msra.mxu0 %v137
  %452 = vmatprep.subr.mxu0 0.0
  %453 = vmatpush1.msra.mxu0 %v138
  %454 = vmatprep.subr.mxu0 0.0
  %455 = vmatpush1.msra.mxu0 %v139
  %456 = vmatprep.subr.mxu0 0.0
  %457 = vmatpush1.msra.mxu0 %v140
  %458 = vmatprep.subr.mxu0 0.0
  %459 = vmatpush1.msra.mxu0 %v141
  %460 = vmatprep.subr.mxu0 0.0
  %461 = vmatpush1.msra.mxu0 %v142
  %462 = vmatprep.subr.mxu0 0.0
  %463 = vmatpush1.msra.mxu0 %v143
  %464 = vmatprep.subr.mxu0 0.0
  %465 = vmatpush1.msra.mxu0 %v144
  %466 = vmatprep.subr.mxu0 0.0
  %467 = vmatpush1.msra.mxu0 0.0
  %468 = vmatprep.subr.mxu0 0.0
  %469 = vmatpush1.msra.mxu0 0.0
  %470 = vmatprep.subr.mxu0 0.0
  %471 = vmatpush1.msra.mxu0 0.0
  %472 = vmatprep.mubr.f32.mxu0 %v196
  %473 = vmatmul.mubr.f32.gmra.mrb[0].mxu0 %v185
  %v474 = vpop.f32.mrb[0].mxu0
  %v475 = vadd.f32 %v405, %v474
  %v476 = vpop.f32.mrb[0].mxu0
  %477 = vdwg.mxu0
  %vm478 = vcmask 1024
  %479 = vst.msk [vmem:[%s3] sm:$0x3] %vm478, %v475
  // Predicated region
  $region14: #{squeezenet2d_forward.53} parent=0 // pred_check
    _
  $region15: #{squeezenet2d_forward.53} parent=0 // pred_check_branch
    %481 = sbr.rel (0) target = $region17
  $region16: #{squeezenet2d_forward.53} parent=0 // pred_region
    _
  $region17: #{squeezenet2d_forward.53} parent=0 // pred_fallthru
    _
  // Predicated region
  $region18: #{squeezenet2d_forward.53} parent=0 // pred_check
    _
  $region19: #{squeezenet2d_forward.53} parent=0 // pred_check_branch
    %483 = sbr.rel (0) target = $region21
  $region20: #{squeezenet2d_forward.53} parent=0 // pred_region
    _
  $region21: #{squeezenet2d_forward.53} parent=0 // pred_fallthru
    _

</llo_original>
